<compile_context>
chip_gen: v5e
topology: v5e:2x2
jax: 0.10.0
libtpu: 0.0.40
codegen_flags: <defaults>
</compile_context>

<pallas_src>
import functools

import jax
import jax.numpy as jnp
from jax import lax
from jax.experimental import pallas as pl
from jax.experimental.pallas import tpu as pltpu

K1_PAD = 32     # conv1 im2col contraction: 25 taps -> 32
C1_PAD = 32     # conv1 out channels: 20 -> 32 (= conv2 in channels)
C2_PAD = 64     # conv2 out channels: 50 -> 64
FC1_PAD = 512   # fc1 width: 500 -> 512
OUT_PAD = 128   # fc2 width: 36 -> 128 (lane-dense output)


# ----------------------------- Pallas kernels ------------------------------

def _pool_bias_relu(acc_ref, b_ref, o_ref, *, n_img, oh, ow, c):
    """2x2/2 maxpool + bias + relu from a (n_img*oh*ow, c) conv accumulator.

    Pool commutes with the per-channel bias add and the monotonic relu, so we
    pool the raw conv values and apply bias+relu only on the pooled tile.
    """
    ow2 = ow // 2
    bias = jnp.broadcast_to(b_ref[...], (ow2, c))      # hoisted: emitted once
    for bi in range(n_img):
        base = bi * oh * ow
        for p in range(oh // 2):
            r0 = base + (2 * p) * ow                   # conv row 2p
            r1 = r0 + ow                               # conv row 2p + 1
            ee = acc_ref[pl.ds(r0, ow2, stride=2), :]      # row 2p,   even cols
            eo = acc_ref[pl.ds(r0 + 1, ow2, stride=2), :]  # row 2p,   odd  cols
            oe = acc_ref[pl.ds(r1, ow2, stride=2), :]      # row 2p+1, even cols
            oo = acc_ref[pl.ds(r1 + 1, ow2, stride=2), :]  # row 2p+1, odd  cols
            pooled = jnp.maximum(jnp.maximum(ee, eo), jnp.maximum(oe, oo))
            o_ref[bi, p, :, :] = jnp.maximum(pooled + bias, 0.0).astype(o_ref.dtype)


def _conv1_kernel(p_ref, w_ref, b_ref, o_ref, acc_ref, *, n_img, oh, ow):
    """conv1 as a single im2col GEMM + bias + relu + 2x2 maxpool.

    p_ref:   (n_img*oh*ow, K1_PAD)  im2col patches (rows ordered (img, y, x))
    w_ref:   (K1_PAD, C1_PAD)       tap-major GEMM weight
    b_ref:   (1, C1_PAD)
    o_ref:   (n_img, oh//2, ow//2, C1_PAD)
    acc_ref: (n_img*oh*ow, C1_PAD)  f32 VMEM conv result (written once)
    """
    c = w_ref.shape[-1]
    acc_ref[...] = jnp.dot(p_ref[...], w_ref[...],
                           preferred_element_type=jnp.float32)
    _pool_bias_relu(acc_ref, b_ref, o_ref, n_img=n_img, oh=oh, ow=ow, c=c)


def _conv2_kernel(x_ref, w_ref, b_ref, o_ref, acc_ref, *, kh, kw, oh, ow):
    """conv2 (valid, stride 1) + bias + relu + 2x2 maxpool for a batch of images.

    x_ref:   (B, 12, 12, C1_PAD)   NHWC input block
    w_ref:   (kh*kw, C1_PAD, C2_PAD) weights, tap-major
    b_ref:   (1, C2_PAD)
    o_ref:   (B, oh//2, ow//2, C2_PAD)
    acc_ref: (B*oh*ow, C2_PAD) f32 scratch, written once for the pooling reads
    """
    n_img, _, _, cin = x_ref.shape
    c = w_ref.shape[-1]
    m1 = oh * ow
    acc = None
    for i in range(kh):
        for j in range(kw):
            if n_img == 1:
                patch = x_ref[0, pl.ds(i, oh), pl.ds(j, ow), :].reshape(m1, cin)
            else:
                patch = jnp.concatenate(
                    [x_ref[bi, pl.ds(i, oh), pl.ds(j, ow), :].reshape(m1, cin)
                     for bi in range(n_img)], axis=0)          # (B*oh*ow, cin)
            contrib = jnp.dot(patch, w_ref[i * kw + j],
                              preferred_element_type=jnp.float32)
            acc = contrib if acc is None else acc + contrib    # local-value acc
    acc_ref[...] = acc
    _pool_bias_relu(acc_ref, b_ref, o_ref, n_img=n_img, oh=oh, ow=ow, c=c)


def _fc_kernel(x_ref, w1_ref, b1_ref, w2_ref, b2_ref, o_ref):
    # fc1 + relu + fc2, intermediate stays on-chip.
    h = jnp.dot(x_ref[...], w1_ref[...], preferred_element_type=jnp.float32)
    h = jnp.maximum(h + b1_ref[...], 0.0)
    o = jnp.dot(h, w2_ref[...], preferred_element_type=jnp.float32) + b2_ref[...]
    o_ref[...] = o.astype(o_ref.dtype)


# ------------------------------- wrappers -----------------------------------

def _conv_batch_block(n):
    for d in (8, 4, 2):
        if n % d == 0:
            return d
    return 1


def _fc_batch_block(n):
    if n <= 256:
        return n
    for d in (256, 128, 64, 32, 16, 8):
        if n % d == 0:
            return d
    return n


def conv1_gemm_pool(patches, w, b, *, n, block_b, oh=24, ow=24):
    """patches: (n*oh*ow, K1_PAD), w: (K1_PAD, C), b: (1, C) -> (n, oh/2, ow/2, C)."""
    k = patches.shape[-1]
    c = w.shape[-1]
    m = oh * ow
    kernel = functools.partial(_conv1_kernel, n_img=block_b, oh=oh, ow=ow)
    return pl.pallas_call(
        kernel,
        out_shape=jax.ShapeDtypeStruct((n, oh // 2, ow // 2, c), jnp.float32),
        grid_spec=pltpu.PrefetchScalarGridSpec(
            num_scalar_prefetch=0,
            grid=(n // block_b,),
            in_specs=[
                pl.BlockSpec((block_b * m, k), lambda i: (i, 0)),
                pl.BlockSpec((k, c), lambda i: (0, 0)),
                pl.BlockSpec((1, c), lambda i: (0, 0)),
            ],
            out_specs=pl.BlockSpec((block_b, oh // 2, ow // 2, c),
                                   lambda i: (i, 0, 0, 0)),
            scratch_shapes=[pltpu.VMEM((block_b * m, c), jnp.float32)],
        ),
        compiler_params=pltpu.CompilerParams(
            dimension_semantics=("parallel",)),
    )(patches, w, b)


def conv2_relu_pool(x, w, b, *, block_b, kh=5, kw=5):
    """x: (n, 12, 12, C1_PAD), w: (kh*kw, C1_PAD, C), b: (1, C) -> (n, 4, 4, C)."""
    n, ih, iw, cin = x.shape
    c = w.shape[-1]
    oh, ow = ih - kh + 1, iw - kw + 1
    kernel = functools.partial(_conv2_kernel, kh=kh, kw=kw, oh=oh, ow=ow)
    return pl.pallas_call(
        kernel,
        out_shape=jax.ShapeDtypeStruct((n, oh // 2, ow // 2, c), jnp.float32),
        grid_spec=pltpu.PrefetchScalarGridSpec(
            num_scalar_prefetch=0,
            grid=(n // block_b,),
            in_specs=[
                pl.BlockSpec((block_b, ih, iw, cin), lambda i: (i, 0, 0, 0)),
                pl.BlockSpec((kh * kw, cin, c), lambda i: (0, 0, 0)),
                pl.BlockSpec((1, c), lambda i: (0, 0)),
            ],
            out_specs=pl.BlockSpec((block_b, oh // 2, ow // 2, c),
                                   lambda i: (i, 0, 0, 0)),
            scratch_shapes=[pltpu.VMEM((block_b * oh * ow, c), jnp.float32)],
        ),
        compiler_params=pltpu.CompilerParams(
            dimension_semantics=("parallel",)),
    )(x, w, b)


def fc_fused(xf, w1, b1, w2, b2, *, block_n):
    """xf: (n, 1024), w1: (1024, 512), w2: (512, 128) -> (n, 128)."""
    n, kin = xf.shape
    hmid = w1.shape[-1]
    cout = w2.shape[-1]
    return pl.pallas_call(
        _fc_kernel,
        out_shape=jax.ShapeDtypeStruct((n, cout), jnp.float32),
        grid_spec=pltpu.PrefetchScalarGridSpec(
            num_scalar_prefetch=0,
            grid=(n // block_n,),
            in_specs=[
                pl.BlockSpec((block_n, kin), lambda i: (i, 0)),
                pl.BlockSpec((kin, hmid), lambda i: (0, 0)),   # resident weights
                pl.BlockSpec((1, hmid), lambda i: (0, 0)),
                pl.BlockSpec((hmid, cout), lambda i: (0, 0)),
                pl.BlockSpec((1, cout), lambda i: (0, 0)),
            ],
            out_specs=pl.BlockSpec((block_n, cout), lambda i: (i, 0)),
        ),
        compiler_params=pltpu.CompilerParams(
            dimension_semantics=("parallel",)),
    )(xf, w1, b1, w2, b2)


# ----------------------- parameter prep (outside jit) -----------------------

def init_params(key):
    """Deterministic init mirroring PyTorch default (uniform +/- 1/sqrt(fan_in))."""
    def uni(k, shape, fan_in):
        bound = 1.0 / jnp.sqrt(float(fan_in))
        return jax.random.uniform(k, shape, jnp.float32, -bound, bound)

    ks = jax.random.split(key, 8)
    return {
        "conv1_w": uni(ks[0], (20, 1, 5, 5), 1 * 5 * 5),
        "conv1_b": uni(ks[1], (20,), 1 * 5 * 5),
        "conv2_w": uni(ks[2], (50, 20, 5, 5), 20 * 5 * 5),
        "conv2_b": uni(ks[3], (50,), 20 * 5 * 5),
        "fc1_w":   uni(ks[4], (500, 4 * 4 * 50), 4 * 4 * 50),
        "fc1_b":   uni(ks[5], (500,), 4 * 4 * 50),
        "fc2_w":   uni(ks[6], (36, 500), 500),
        "fc2_b":   uni(ks[7], (36,), 500),
    }


def prepare_params(params):
    """Fold all transposes / flatten permutation / lane padding into the weights."""
    # conv1: im2col GEMM weight, tap-major rows (t = i*5 + j), padded (25,20)->(32,32)
    w1c = params["conv1_w"].reshape(20, 25).T
    w1c = jnp.pad(w1c, ((0, K1_PAD - 25), (0, C1_PAD - 20)))
    b1c = jnp.pad(params["conv1_b"], (0, C1_PAD - 20)).reshape(1, C1_PAD)

    # conv2: tap-major (kh*kw, cin, cout), padded (25,20,50)->(25,32,64)
    w2c = jnp.transpose(params["conv2_w"], (2, 3, 1, 0)).reshape(25, 20, 50)
    w2c = jnp.pad(w2c, ((0, 0), (0, C1_PAD - 20), (0, C2_PAD - 50)))
    b2c = jnp.pad(params["conv2_b"], (0, C2_PAD - 50)).reshape(1, C2_PAD)

    # fc1: PyTorch flattens (C=50, H=4, W=4); our activations flatten as (H, W, C2_PAD).
    wf1 = params["fc1_w"].reshape(500, 50, 4, 4)        # (out, c, h, w)
    wf1 = jnp.transpose(wf1, (2, 3, 1, 0))              # (h, w, c, out)
    wf1 = jnp.pad(wf1, ((0, 0), (0, 0), (0, C2_PAD - 50), (0, FC1_PAD - 500)))
    wf1 = wf1.reshape(4 * 4 * C2_PAD, FC1_PAD)          # (1024, 512)
    bf1 = jnp.pad(params["fc1_b"], (0, FC1_PAD - 500)).reshape(1, FC1_PAD)

    wf2 = jnp.pad(params["fc2_w"].T, ((0, FC1_PAD - 500), (0, OUT_PAD - 36)))  # (512, 128)
    bf2 = jnp.pad(params["fc2_b"], (0, OUT_PAD - 36)).reshape(1, OUT_PAD)

    return {"conv1_w": w1c, "conv1_b": b1c, "conv2_w": w2c, "conv2_b": b2c,
            "fc1_w": wf1, "fc1_b": bf1, "fc2_w": wf2, "fc2_b": bf2}


# ------------------------------ forward pass --------------------------------

@jax.jit
def net_forward(prep, x):
    # x: (N, 1, 28, 28) float32 NCHW (PyTorch layout)
    n = x.shape[0]
    x2 = x.reshape(n, 28, 28)
    # conv1 im2col (Cin=1): 25 shifted crops, tap index t = i*5 + j.
    taps = [x2[:, i:i + 24, j:j + 24] for i in range(5) for j in range(5)]
    patches = jnp.stack(taps, axis=-1).reshape(n * 576, 25)        # rows = (img, y, x)
    patches = jnp.pad(patches, ((0, 0), (0, K1_PAD - 25)))         # (n*576, 32)

    bb = _conv_batch_block(n)
    h1 = conv1_gemm_pool(patches, prep["conv1_w"], prep["conv1_b"],
                         n=n, block_b=bb)                          # (n, 12, 12, 32)
    h2 = conv2_relu_pool(h1, prep["conv2_w"], prep["conv2_b"],
                         block_b=bb)                               # (n, 4, 4, 64)
    hf = h2.reshape(n, 4 * 4 * C2_PAD)                             # (n, 1024)
    out = fc_fused(hf, prep["fc1_w"], prep["fc1_b"],
                   prep["fc2_w"], prep["fc2_b"],
                   block_n=_fc_batch_block(n))                     # (n, 128)
    return out[:, :36]


# --------------------------- pure-JAX reference -----------------------------

def net_reference(params, x):
    dn = lax.conv_dimension_numbers(x.shape, params["conv1_w"].shape,
                                    ("NCHW", "OIHW", "NCHW"))
    x = lax.conv_general_dilated(x, params["conv1_w"], (1, 1), "VALID",
                                 dimension_numbers=dn)
    x = jax.nn.relu(x + params["conv1_b"][None, :, None, None])
    x = lax.reduce_window(x, -jnp.inf, lax.max, (1, 1, 2, 2), (1, 1, 2, 2), "VALID")
    dn = lax.conv_dimension_numbers(x.shape, params["conv2_w"].shape,
                                    ("NCHW", "OIHW", "NCHW"))
    x = lax.conv_general_dilated(x, params["conv2_w"], (1, 1), "VALID",
                                 dimension_numbers=dn)
    x = jax.nn.relu(x + params["conv2_b"][None, :, None, None])
    x = lax.reduce_window(x, -jnp.inf, lax.max, (1, 1, 2, 2), (1, 1, 2, 2), "VALID")
    x = x.reshape(-1, 4 * 4 * 50)
    x = jax.nn.relu(x @ params["fc1_w"].T + params["fc1_b"])
    x = x @ params["fc2_w"].T + params["fc2_b"]
    return x


if __name__ == "__main__":
    key = jax.random.PRNGKey(0)
    pkey, xkey = jax.random.split(key)
    params = init_params(pkey)
    prep = prepare_params(params)
    # Input implied by the forward pass: 28x28 single-channel images.
    x = jax.random.normal(xkey, (2, 1, 28, 28), jnp.float32)

    out = jax.block_until_ready(net_forward(prep, x))
    assert out.shape == (2, 36), out.shape

    ref = jax.block_until_ready(net_reference(params, x))
    assert jnp.allclose(out, ref, atol=1e-3, rtol=1e-3), \
        float(jnp.max(jnp.abs(out - ref)))

    print("KERNEL_OK")
</pallas_src>

<mosaic_0001>
module attributes {stable_mosaic.version = 11 : i64} {
  func.func @_conv1_kernel(%arg0: i32, %arg1: memref<1152x32xf32, #tpu.memory_space<vmem>>, %arg2: memref<32x32xf32, #tpu.memory_space<vmem>>, %arg3: memref<1x32xf32, #tpu.memory_space<vmem>>, %arg4: memref<2x12x12x32xf32, #tpu.memory_space<vmem>>, %arg5: memref<1152x32xf32, #tpu.memory_space<vmem>>) attributes {dimension_semantics = [#tpu.dimension_semantics<parallel>], iteration_bounds = array<i64: 1>, scalar_prefetch = 0 : i64, scratch_operands = 1 : i64, tpu.core_type = #tpu.core_type<tc>, window_params = [{transform_indices = @transform_0, window_bounds = array<i64: 1152, 32>}, {pipeline_mode = #tpu.pipeline_mode<synchronous>, transform_indices = @transform_1, window_bounds = array<i64: 32, 32>}, {pipeline_mode = #tpu.pipeline_mode<synchronous>, transform_indices = @transform_2, window_bounds = array<i64: 1, 32>}, {transform_indices = @transform_3, window_bounds = array<i64: 2, 12, 12, 32>}]} {
    %c0 = arith.constant 0 : index
    %c0_0 = arith.constant 0 : index
    %0 = vector.load %arg1[%c0, %c0_0] : memref<1152x32xf32, #tpu.memory_space<vmem>>, vector<1152x32xf32>
    %c0_1 = arith.constant 0 : index
    %c0_2 = arith.constant 0 : index
    %1 = vector.load %arg2[%c0_1, %c0_2] : memref<32x32xf32, #tpu.memory_space<vmem>>, vector<32x32xf32>
    %cst = arith.constant dense<0.000000e+00> : vector<1152x32xf32>
    %2 = tpu.matmul %0, %1, %cst {dimension_numbers = #tpu.dot_dimension_numbers<[1], [0], [0], [1], [0, 0, 1, 1], [], []>} : vector<1152x32xf32>, vector<32x32xf32>, vector<1152x32xf32> -> vector<1152x32xf32>
    %c0_3 = arith.constant 0 : index
    %c0_4 = arith.constant 0 : index
    %3 = vector.load %arg5[%c0_3, %c0_4] : memref<1152x32xf32, #tpu.memory_space<vmem>>, vector<1152x32xf32>
    tpu.vector_store %arg5[%c0_3, %c0_4], %2 {strides = array<i32>} : memref<1152x32xf32, #tpu.memory_space<vmem>>, vector<1152x32xf32>,
    %c0_5 = arith.constant 0 : index
    %c0_6 = arith.constant 0 : index
    %4 = vector.load %arg3[%c0_5, %c0_6] : memref<1x32xf32, #tpu.memory_space<vmem>>, vector<1x32xf32>
    %5 = vector.shape_cast %4 : vector<1x32xf32> to vector<1x32xf32>
    %6 = vector.broadcast %5 : vector<1x32xf32> to vector<12x32xf32>
    %c0_7 = arith.constant 0 : index
    %c0_8 = arith.constant 0 : index
    %7 = tpu.strided_load %arg5[%c0_7, %c0_8] {strides = array<i32: 2, 1>} : memref<1152x32xf32, #tpu.memory_space<vmem>>, vector<12x32xf32>
    %c1 = arith.constant 1 : index
    %c0_9 = arith.constant 0 : index
    %8 = tpu.strided_load %arg5[%c1, %c0_9] {strides = array<i32: 2, 1>} : memref<1152x32xf32, #tpu.memory_space<vmem>>, vector<12x32xf32>
    %c24 = arith.constant 24 : index
    %c0_10 = arith.constant 0 : index
    %9 = tpu.strided_load %arg5[%c24, %c0_10] {strides = array<i32: 2, 1>} : memref<1152x32xf32, #tpu.memory_space<vmem>>, vector<12x32xf32>
    %c25 = arith.constant 25 : index
    %c0_11 = arith.constant 0 : index
    %10 = tpu.strided_load %arg5[%c25, %c0_11] {strides = array<i32: 2, 1>} : memref<1152x32xf32, #tpu.memory_space<vmem>>, vector<12x32xf32>
    %11 = arith.maximumf %7, %8 : vector<12x32xf32>
    %12 = arith.maximumf %9, %10 : vector<12x32xf32>
    %13 = arith.maximumf %11, %12 : vector<12x32xf32>
    %14 = arith.addf %13, %6 : vector<12x32xf32>
    %cst_12 = arith.constant 0.000000e+00 : f32
    %15 = vector.broadcast %cst_12 : f32 to vector<12x32xf32>
    %16 = arith.maximumf %14, %15 : vector<12x32xf32>
    %c0_13 = arith.constant 0 : index
    %c0_14 = arith.constant 0 : index
    %c0_15 = arith.constant 0 : index
    %c0_16 = arith.constant 0 : index
    %17 = vector.load %arg4[%c0_13, %c0_14, %c0_15, %c0_16] : memref<2x12x12x32xf32, #tpu.memory_space<vmem>>, vector<1x1x12x32xf32>
    %18 = vector.shape_cast %17 : vector<1x1x12x32xf32> to vector<12x32xf32>
    %19 = vector.shape_cast %16 : vector<12x32xf32> to vector<1x1x12x32xf32>
    tpu.vector_store %arg4[%c0_13, %c0_14, %c0_15, %c0_16], %19 {strides = array<i32>} : memref<2x12x12x32xf32, #tpu.memory_space<vmem>>, vector<1x1x12x32xf32>,
    %c48 = arith.constant 48 : index
    %c0_17 = arith.constant 0 : index
    %20 = tpu.strided_load %arg5[%c48, %c0_17] {strides = array<i32: 2, 1>} : memref<1152x32xf32, #tpu.memory_space<vmem>>, vector<12x32xf32>
    %c49 = arith.constant 49 : index
    %c0_18 = arith.constant 0 : index
    %21 = tpu.strided_load %arg5[%c49, %c0_18] {strides = array<i32: 2, 1>} : memref<1152x32xf32, #tpu.memory_space<vmem>>, vector<12x32xf32>
    %c72 = arith.constant 72 : index
    %c0_19 = arith.constant 0 : index
    %22 = tpu.strided_load %arg5[%c72, %c0_19] {strides = array<i32: 2, 1>} : memref<1152x32xf32, #tpu.memory_space<vmem>>, vector<12x32xf32>
    %c73 = arith.constant 73 : index
    %c0_20 = arith.constant 0 : index
    %23 = tpu.strided_load %arg5[%c73, %c0_20] {strides = array<i32: 2, 1>} : memref<1152x32xf32, #tpu.memory_space<vmem>>, vector<12x32xf32>
    %24 = arith.maximumf %20, %21 : vector<12x32xf32>
    %25 = arith.maximumf %22, %23 : vector<12x32xf32>
    %26 = arith.maximumf %24, %25 : vector<12x32xf32>
    %27 = arith.addf %26, %6 : vector<12x32xf32>
    %cst_21 = arith.constant 0.000000e+00 : f32
    %28 = vector.broadcast %cst_21 : f32 to vector<12x32xf32>
    %29 = arith.maximumf %27, %28 : vector<12x32xf32>
    %c0_22 = arith.constant 0 : index
    %c1_23 = arith.constant 1 : index
    %c0_24 = arith.constant 0 : index
    %c0_25 = arith.constant 0 : index
    %30 = vector.load %arg4[%c0_22, %c1_23, %c0_24, %c0_25] : memref<2x12x12x32xf32, #tpu.memory_space<vmem>>, vector<1x1x12x32xf32>
    %31 = vector.shape_cast %30 : vector<1x1x12x32xf32> to vector<12x32xf32>
    %32 = vector.shape_cast %29 : vector<12x32xf32> to vector<1x1x12x32xf32>
    tpu.vector_store %arg4[%c0_22, %c1_23, %c0_24, %c0_25], %32 {strides = array<i32>} : memref<2x12x12x32xf32, #tpu.memory_space<vmem>>, vector<1x1x12x32xf32>,
    %c96 = arith.constant 96 : index
    %c0_26 = arith.constant 0 : index
    %33 = tpu.strided_load %arg5[%c96, %c0_26] {strides = array<i32: 2, 1>} : memref<1152x32xf32, #tpu.memory_space<vmem>>, vector<12x32xf32>
    %c97 = arith.constant 97 : index
    %c0_27 = arith.constant 0 : index
    %34 = tpu.strided_load %arg5[%c97, %c0_27] {strides = array<i32: 2, 1>} : memref<1152x32xf32, #tpu.memory_space<vmem>>, vector<12x32xf32>
    %c120 = arith.constant 120 : index
    %c0_28 = arith.constant 0 : index
    %35 = tpu.strided_load %arg5[%c120, %c0_28] {strides = array<i32: 2, 1>} : memref<1152x32xf32, #tpu.memory_space<vmem>>, vector<12x32xf32>
    %c121 = arith.constant 121 : index
    %c0_29 = arith.constant 0 : index
    %36 = tpu.strided_load %arg5[%c121, %c0_29] {strides = array<i32: 2, 1>} : memref<1152x32xf32, #tpu.memory_space<vmem>>, vector<12x32xf32>
    %37 = arith.maximumf %33, %34 : vector<12x32xf32>
    %38 = arith.maximumf %35, %36 : vector<12x32xf32>
    %39 = arith.maximumf %37, %38 : vector<12x32xf32>
    %40 = arith.addf %39, %6 : vector<12x32xf32>
    %cst_30 = arith.constant 0.000000e+00 : f32
    %41 = vector.broadcast %cst_30 : f32 to vector<12x32xf32>
    %42 = arith.maximumf %40, %41 : vector<12x32xf32>
    %c0_31 = arith.constant 0 : index
    %c2 = arith.constant 2 : index
    %c0_32 = arith.constant 0 : index
    %c0_33 = arith.constant 0 : index
    %43 = vector.load %arg4[%c0_31, %c2, %c0_32, %c0_33] : memref<2x12x12x32xf32, #tpu.memory_space<vmem>>, vector<1x1x12x32xf32>
    %44 = vector.shape_cast %43 : vector<1x1x12x32xf32> to vector<12x32xf32>
    %45 = vector.shape_cast %42 : vector<12x32xf32> to vector<1x1x12x32xf32>
    tpu.vector_store %arg4[%c0_31, %c2, %c0_32, %c0_33], %45 {strides = array<i32>} : memref<2x12x12x32xf32, #tpu.memory_space<vmem>>, vector<1x1x12x32xf32>,
    %c144 = arith.constant 144 : index
    %c0_34 = arith.constant 0 : index
    %46 = tpu.strided_load %arg5[%c144, %c0_34] {strides = array<i32: 2, 1>} : memref<1152x32xf32, #tpu.memory_space<vmem>>, vector<12x32xf32>
    %c145 = arith.constant 145 : index
    %c0_35 = arith.constant 0 : index
    %47 = tpu.strided_load %arg5[%c145, %c0_35] {strides = array<i32: 2, 1>} : memref<1152x32xf32, #tpu.memory_space<vmem>>, vector<12x32xf32>
    %c168 = arith.constant 168 : index
    %c0_36 = arith.constant 0 : index
    %48 = tpu.strided_load %arg5[%c168, %c0_36] {strides = array<i32: 2, 1>} : memref<1152x32xf32, #tpu.memory_space<vmem>>, vector<12x32xf32>
    %c169 = arith.constant 169 : index
    %c0_37 = arith.constant 0 : index
    %49 = tpu.strided_load %arg5[%c169, %c0_37] {strides = array<i32: 2, 1>} : memref<1152x32xf32, #tpu.memory_space<vmem>>, vector<12x32xf32>
    %50 = arith.maximumf %46, %47 : vector<12x32xf32>
    %51 = arith.maximumf %48, %49 : vector<12x32xf32>
    %52 = arith.maximumf %50, %51 : vector<12x32xf32>
    %53 = arith.addf %52, %6 : vector<12x32xf32>
    %cst_38 = arith.constant 0.000000e+00 : f32
    %54 = vector.broadcast %cst_38 : f32 to vector<12x32xf32>
    %55 = arith.maximumf %53, %54 : vector<12x32xf32>
    %c0_39 = arith.constant 0 : index
    %c3 = arith.constant 3 : index
    %c0_40 = arith.constant 0 : index
    %c0_41 = arith.constant 0 : index
    %56 = vector.load %arg4[%c0_39, %c3, %c0_40, %c0_41] : memref<2x12x12x32xf32, #tpu.memory_space<vmem>>, vector<1x1x12x32xf32>
    %57 = vector.shape_cast %56 : vector<1x1x12x32xf32> to vector<12x32xf32>
    %58 = vector.shape_cast %55 : vector<12x32xf32> to vector<1x1x12x32xf32>
    tpu.vector_store %arg4[%c0_39, %c3, %c0_40, %c0_41], %58 {strides = array<i32>} : memref<2x12x12x32xf32, #tpu.memory_space<vmem>>, vector<1x1x12x32xf32>,
    %c192 = arith.constant 192 : index
    %c0_42 = arith.constant 0 : index
    %59 = tpu.strided_load %arg5[%c192, %c0_42] {strides = array<i32: 2, 1>} : memref<1152x32xf32, #tpu.memory_space<vmem>>, vector<12x32xf32>
    %c193 = arith.constant 193 : index
    %c0_43 = arith.constant 0 : index
    %60 = tpu.strided_load %arg5[%c193, %c0_43] {strides = array<i32: 2, 1>} : memref<1152x32xf32, #tpu.memory_space<vmem>>, vector<12x32xf32>
    %c216 = arith.constant 216 : index
    %c0_44 = arith.constant 0 : index
    %61 = tpu.strided_load %arg5[%c216, %c0_44] {strides = array<i32: 2, 1>} : memref<1152x32xf32, #tpu.memory_space<vmem>>, vector<12x32xf32>
    %c217 = arith.constant 217 : index
    %c0_45 = arith.constant 0 : index
    %62 = tpu.strided_load %arg5[%c217, %c0_45] {strides = array<i32: 2, 1>} : memref<1152x32xf32, #tpu.memory_space<vmem>>, vector<12x32xf32>
    %63 = arith.maximumf %59, %60 : vector<12x32xf32>
    %64 = arith.maximumf %61, %62 : vector<12x32xf32>
    %65 = arith.maximumf %63, %64 : vector<12x32xf32>
    %66 = arith.addf %65, %6 : vector<12x32xf32>
    %cst_46 = arith.constant 0.000000e+00 : f32
    %67 = vector.broadcast %cst_46 : f32 to vector<12x32xf32>
    %68 = arith.maximumf %66, %67 : vector<12x32xf32>
    %c0_47 = arith.constant 0 : index
    %c4 = arith.constant 4 : index
    %c0_48 = arith.constant 0 : index
    %c0_49 = arith.constant 0 : index
    %69 = vector.load %arg4[%c0_47, %c4, %c0_48, %c0_49] : memref<2x12x12x32xf32, #tpu.memory_space<vmem>>, vector<1x1x12x32xf32>
    %70 = vector.shape_cast %69 : vector<1x1x12x32xf32> to vector<12x32xf32>
    %71 = vector.shape_cast %68 : vector<12x32xf32> to vector<1x1x12x32xf32>
    tpu.vector_store %arg4[%c0_47, %c4, %c0_48, %c0_49], %71 {strides = array<i32>} : memref<2x12x12x32xf32, #tpu.memory_space<vmem>>, vector<1x1x12x32xf32>,
    %c240 = arith.constant 240 : index
    %c0_50 = arith.constant 0 : index
    %72 = tpu.strided_load %arg5[%c240, %c0_50] {strides = array<i32: 2, 1>} : memref<1152x32xf32, #tpu.memory_space<vmem>>, vector<12x32xf32>
    %c241 = arith.constant 241 : index
    %c0_51 = arith.constant 0 : index
    %73 = tpu.strided_load %arg5[%c241, %c0_51] {strides = array<i32: 2, 1>} : memref<1152x32xf32, #tpu.memory_space<vmem>>, vector<12x32xf32>
    %c264 = arith.constant 264 : index
    %c0_52 = arith.constant 0 : index
    %74 = tpu.strided_load %arg5[%c264, %c0_52] {strides = array<i32: 2, 1>} : memref<1152x32xf32, #tpu.memory_space<vmem>>, vector<12x32xf32>
    %c265 = arith.constant 265 : index
    %c0_53 = arith.constant 0 : index
    %75 = tpu.strided_load %arg5[%c265, %c0_53] {strides = array<i32: 2, 1>} : memref<1152x32xf32, #tpu.memory_space<vmem>>, vector<12x32xf32>
    %76 = arith.maximumf %72, %73 : vector<12x32xf32>
    %77 = arith.maximumf %74, %75 : vector<12x32xf32>
    %78 = arith.maximumf %76, %77 : vector<12x32xf32>
    %79 = arith.addf %78, %6 : vector<12x32xf32>
    %cst_54 = arith.constant 0.000000e+00 : f32
    %80 = vector.broadcast %cst_54 : f32 to vector<12x32xf32>
    %81 = arith.maximumf %79, %80 : vector<12x32xf32>
    %c0_55 = arith.constant 0 : index
    %c5 = arith.constant 5 : index
    %c0_56 = arith.constant 0 : index
    %c0_57 = arith.constant 0 : index
    %82 = vector.load %arg4[%c0_55, %c5, %c0_56, %c0_57] : memref<2x12x12x32xf32, #tpu.memory_space<vmem>>, vector<1x1x12x32xf32>
    %83 = vector.shape_cast %82 : vector<1x1x12x32xf32> to vector<12x32xf32>
    %84 = vector.shape_cast %81 : vector<12x32xf32> to vector<1x1x12x32xf32>
    tpu.vector_store %arg4[%c0_55, %c5, %c0_56, %c0_57], %84 {strides = array<i32>} : memref<2x12x12x32xf32, #tpu.memory_space<vmem>>, vector<1x1x12x32xf32>,
    %c288 = arith.constant 288 : index
    %c0_58 = arith.constant 0 : index
    %85 = tpu.strided_load %arg5[%c288, %c0_58] {strides = array<i32: 2, 1>} : memref<1152x32xf32, #tpu.memory_space<vmem>>, vector<12x32xf32>
    %c289 = arith.constant 289 : index
    %c0_59 = arith.constant 0 : index
    %86 = tpu.strided_load %arg5[%c289, %c0_59] {strides = array<i32: 2, 1>} : memref<1152x32xf32, #tpu.memory_space<vmem>>, vector<12x32xf32>
    %c312 = arith.constant 312 : index
    %c0_60 = arith.constant 0 : index
    %87 = tpu.strided_load %arg5[%c312, %c0_60] {strides = array<i32: 2, 1>} : memref<1152x32xf32, #tpu.memory_space<vmem>>, vector<12x32xf32>
    %c313 = arith.constant 313 : index
    %c0_61 = arith.constant 0 : index
    %88 = tpu.strided_load %arg5[%c313, %c0_61] {strides = array<i32: 2, 1>} : memref<1152x32xf32, #tpu.memory_space<vmem>>, vector<12x32xf32>
    %89 = arith.maximumf %85, %86 : vector<12x32xf32>
    %90 = arith.maximumf %87, %88 : vector<12x32xf32>
    %91 = arith.maximumf %89, %90 : vector<12x32xf32>
    %92 = arith.addf %91, %6 : vector<12x32xf32>
    %cst_62 = arith.constant 0.000000e+00 : f32
    %93 = vector.broadcast %cst_62 : f32 to vector<12x32xf32>
    %94 = arith.maximumf %92, %93 : vector<12x32xf32>
    %c0_63 = arith.constant 0 : index
    %c6 = arith.constant 6 : index
    %c0_64 = arith.constant 0 : index
    %c0_65 = arith.constant 0 : index
    %95 = vector.load %arg4[%c0_63, %c6, %c0_64, %c0_65] : memref<2x12x12x32xf32, #tpu.memory_space<vmem>>, vector<1x1x12x32xf32>
    %96 = vector.shape_cast %95 : vector<1x1x12x32xf32> to vector<12x32xf32>
    %97 = vector.shape_cast %94 : vector<12x32xf32> to vector<1x1x12x32xf32>
    tpu.vector_store %arg4[%c0_63, %c6, %c0_64, %c0_65], %97 {strides = array<i32>} : memref<2x12x12x32xf32, #tpu.memory_space<vmem>>, vector<1x1x12x32xf32>,
    %c336 = arith.constant 336 : index
    %c0_66 = arith.constant 0 : index
    %98 = tpu.strided_load %arg5[%c336, %c0_66] {strides = array<i32: 2, 1>} : memref<1152x32xf32, #tpu.memory_space<vmem>>, vector<12x32xf32>
    %c337 = arith.constant 337 : index
    %c0_67 = arith.constant 0 : index
    %99 = tpu.strided_load %arg5[%c337, %c0_67] {strides = array<i32: 2, 1>} : memref<1152x32xf32, #tpu.memory_space<vmem>>, vector<12x32xf32>
    %c360 = arith.constant 360 : index
    %c0_68 = arith.constant 0 : index
    %100 = tpu.strided_load %arg5[%c360, %c0_68] {strides = array<i32: 2, 1>} : memref<1152x32xf32, #tpu.memory_space<vmem>>, vector<12x32xf32>
    %c361 = arith.constant 361 : index
    %c0_69 = arith.constant 0 : index
    %101 = tpu.strided_load %arg5[%c361, %c0_69] {strides = array<i32: 2, 1>} : memref<1152x32xf32, #tpu.memory_space<vmem>>, vector<12x32xf32>
    %102 = arith.maximumf %98, %99 : vector<12x32xf32>
    %103 = arith.maximumf %100, %101 : vector<12x32xf32>
    %104 = arith.maximumf %102, %103 : vector<12x32xf32>
    %105 = arith.addf %104, %6 : vector<12x32xf32>
    %cst_70 = arith.constant 0.000000e+00 : f32
    %106 = vector.broadcast %cst_70 : f32 to vector<12x32xf32>
    %107 = arith.maximumf %105, %106 : vector<12x32xf32>
    %c0_71 = arith.constant 0 : index
    %c7 = arith.constant 7 : index
    %c0_72 = arith.constant 0 : index
    %c0_73 = arith.constant 0 : index
    %108 = vector.load %arg4[%c0_71, %c7, %c0_72, %c0_73] : memref<2x12x12x32xf32, #tpu.memory_space<vmem>>, vector<1x1x12x32xf32>
    %109 = vector.shape_cast %108 : vector<1x1x12x32xf32> to vector<12x32xf32>
    %110 = vector.shape_cast %107 : vector<12x32xf32> to vector<1x1x12x32xf32>
    tpu.vector_store %arg4[%c0_71, %c7, %c0_72, %c0_73], %110 {strides = array<i32>} : memref<2x12x12x32xf32, #tpu.memory_space<vmem>>, vector<1x1x12x32xf32>,
    %c384 = arith.constant 384 : index
    %c0_74 = arith.constant 0 : index
    %111 = tpu.strided_load %arg5[%c384, %c0_74] {strides = array<i32: 2, 1>} : memref<1152x32xf32, #tpu.memory_space<vmem>>, vector<12x32xf32>
    %c385 = arith.constant 385 : index
    %c0_75 = arith.constant 0 : index
    %112 = tpu.strided_load %arg5[%c385, %c0_75] {strides = array<i32: 2, 1>} : memref<1152x32xf32, #tpu.memory_space<vmem>>, vector<12x32xf32>
    %c408 = arith.constant 408 : index
    %c0_76 = arith.constant 0 : index
    %113 = tpu.strided_load %arg5[%c408, %c0_76] {strides = array<i32: 2, 1>} : memref<1152x32xf32, #tpu.memory_space<vmem>>, vector<12x32xf32>
    %c409 = arith.constant 409 : index
    %c0_77 = arith.constant 0 : index
    %114 = tpu.strided_load %arg5[%c409, %c0_77] {strides = array<i32: 2, 1>} : memref<1152x32xf32, #tpu.memory_space<vmem>>, vector<12x32xf32>
    %115 = arith.maximumf %111, %112 : vector<12x32xf32>
    %116 = arith.maximumf %113, %114 : vector<12x32xf32>
    %117 = arith.maximumf %115, %116 : vector<12x32xf32>
    %118 = arith.addf %117, %6 : vector<12x32xf32>
    %cst_78 = arith.constant 0.000000e+00 : f32
    %119 = vector.broadcast %cst_78 : f32 to vector<12x32xf32>
    %120 = arith.maximumf %118, %119 : vector<12x32xf32>
    %c0_79 = arith.constant 0 : index
    %c8 = arith.constant 8 : index
    %c0_80 = arith.constant 0 : index
    %c0_81 = arith.constant 0 : index
    %121 = vector.load %arg4[%c0_79, %c8, %c0_80, %c0_81] : memref<2x12x12x32xf32, #tpu.memory_space<vmem>>, vector<1x1x12x32xf32>
    %122 = vector.shape_cast %121 : vector<1x1x12x32xf32> to vector<12x32xf32>
    %123 = vector.shape_cast %120 : vector<12x32xf32> to vector<1x1x12x32xf32>
    tpu.vector_store %arg4[%c0_79, %c8, %c0_80, %c0_81], %123 {strides = array<i32>} : memref<2x12x12x32xf32, #tpu.memory_space<vmem>>, vector<1x1x12x32xf32>,
    %c432 = arith.constant 432 : index
    %c0_82 = arith.constant 0 : index
    %124 = tpu.strided_load %arg5[%c432, %c0_82] {strides = array<i32: 2, 1>} : memref<1152x32xf32, #tpu.memory_space<vmem>>, vector<12x32xf32>
    %c433 = arith.constant 433 : index
    %c0_83 = arith.constant 0 : index
    %125 = tpu.strided_load %arg5[%c433, %c0_83] {strides = array<i32: 2, 1>} : memref<1152x32xf32, #tpu.memory_space<vmem>>, vector<12x32xf32>
    %c456 = arith.constant 456 : index
    %c0_84 = arith.constant 0 : index
    %126 = tpu.strided_load %arg5[%c456, %c0_84] {strides = array<i32: 2, 1>} : memref<1152x32xf32, #tpu.memory_space<vmem>>, vector<12x32xf32>
    %c457 = arith.constant 457 : index
    %c0_85 = arith.constant 0 : index
    %127 = tpu.strided_load %arg5[%c457, %c0_85] {strides = array<i32: 2, 1>} : memref<1152x32xf32, #tpu.memory_space<vmem>>, vector<12x32xf32>
    %128 = arith.maximumf %124, %125 : vector<12x32xf32>
    %129 = arith.maximumf %126, %127 : vector<12x32xf32>
    %130 = arith.maximumf %128, %129 : vector<12x32xf32>
    %131 = arith.addf %130, %6 : vector<12x32xf32>
    %cst_86 = arith.constant 0.000000e+00 : f32
    %132 = vector.broadcast %cst_86 : f32 to vector<12x32xf32>
    %133 = arith.maximumf %131, %132 : vector<12x32xf32>
    %c0_87 = arith.constant 0 : index
    %c9 = arith.constant 9 : index
    %c0_88 = arith.constant 0 : index
    %c0_89 = arith.constant 0 : index
    %134 = vector.load %arg4[%c0_87, %c9, %c0_88, %c0_89] : memref<2x12x12x32xf32, #tpu.memory_space<vmem>>, vector<1x1x12x32xf32>
    %135 = vector.shape_cast %134 : vector<1x1x12x32xf32> to vector<12x32xf32>
    %136 = vector.shape_cast %133 : vector<12x32xf32> to vector<1x1x12x32xf32>
    tpu.vector_store %arg4[%c0_87, %c9, %c0_88, %c0_89], %136 {strides = array<i32>} : memref<2x12x12x32xf32, #tpu.memory_space<vmem>>, vector<1x1x12x32xf32>,
    %c480 = arith.constant 480 : index
    %c0_90 = arith.constant 0 : index
    %137 = tpu.strided_load %arg5[%c480, %c0_90] {strides = array<i32: 2, 1>} : memref<1152x32xf32, #tpu.memory_space<vmem>>, vector<12x32xf32>
    %c481 = arith.constant 481 : index
    %c0_91 = arith.constant 0 : index
    %138 = tpu.strided_load %arg5[%c481, %c0_91] {strides = array<i32: 2, 1>} : memref<1152x32xf32, #tpu.memory_space<vmem>>, vector<12x32xf32>
    %c504 = arith.constant 504 : index
    %c0_92 = arith.constant 0 : index
    %139 = tpu.strided_load %arg5[%c504, %c0_92] {strides = array<i32: 2, 1>} : memref<1152x32xf32, #tpu.memory_space<vmem>>, vector<12x32xf32>
    %c505 = arith.constant 505 : index
    %c0_93 = arith.constant 0 : index
    %140 = tpu.strided_load %arg5[%c505, %c0_93] {strides = array<i32: 2, 1>} : memref<1152x32xf32, #tpu.memory_space<vmem>>, vector<12x32xf32>
    %141 = arith.maximumf %137, %138 : vector<12x32xf32>
    %142 = arith.maximumf %139, %140 : vector<12x32xf32>
    %143 = arith.maximumf %141, %142 : vector<12x32xf32>
    %144 = arith.addf %143, %6 : vector<12x32xf32>
    %cst_94 = arith.constant 0.000000e+00 : f32
    %145 = vector.broadcast %cst_94 : f32 to vector<12x32xf32>
    %146 = arith.maximumf %144, %145 : vector<12x32xf32>
    %c0_95 = arith.constant 0 : index
    %c10 = arith.constant 10 : index
    %c0_96 = arith.constant 0 : index
    %c0_97 = arith.constant 0 : index
    %147 = vector.load %arg4[%c0_95, %c10, %c0_96, %c0_97] : memref<2x12x12x32xf32, #tpu.memory_space<vmem>>, vector<1x1x12x32xf32>
    %148 = vector.shape_cast %147 : vector<1x1x12x32xf32> to vector<12x32xf32>
    %149 = vector.shape_cast %146 : vector<12x32xf32> to vector<1x1x12x32xf32>
    tpu.vector_store %arg4[%c0_95, %c10, %c0_96, %c0_97], %149 {strides = array<i32>} : memref<2x12x12x32xf32, #tpu.memory_space<vmem>>, vector<1x1x12x32xf32>,
    %c528 = arith.constant 528 : index
    %c0_98 = arith.constant 0 : index
    %150 = tpu.strided_load %arg5[%c528, %c0_98] {strides = array<i32: 2, 1>} : memref<1152x32xf32, #tpu.memory_space<vmem>>, vector<12x32xf32>
    %c529 = arith.constant 529 : index
    %c0_99 = arith.constant 0 : index
    %151 = tpu.strided_load %arg5[%c529, %c0_99] {strides = array<i32: 2, 1>} : memref<1152x32xf32, #tpu.memory_space<vmem>>, vector<12x32xf32>
    %c552 = arith.constant 552 : index
    %c0_100 = arith.constant 0 : index
    %152 = tpu.strided_load %arg5[%c552, %c0_100] {strides = array<i32: 2, 1>} : memref<1152x32xf32, #tpu.memory_space<vmem>>, vector<12x32xf32>
    %c553 = arith.constant 553 : index
    %c0_101 = arith.constant 0 : index
    %153 = tpu.strided_load %arg5[%c553, %c0_101] {strides = array<i32: 2, 1>} : memref<1152x32xf32, #tpu.memory_space<vmem>>, vector<12x32xf32>
    %154 = arith.maximumf %150, %151 : vector<12x32xf32>
    %155 = arith.maximumf %152, %153 : vector<12x32xf32>
    %156 = arith.maximumf %154, %155 : vector<12x32xf32>
    %157 = arith.addf %156, %6 : vector<12x32xf32>
    %cst_102 = arith.constant 0.000000e+00 : f32
    %158 = vector.broadcast %cst_102 : f32 to vector<12x32xf32>
    %159 = arith.maximumf %157, %158 : vector<12x32xf32>
    %c0_103 = arith.constant 0 : index
    %c11 = arith.constant 11 : index
    %c0_104 = arith.constant 0 : index
    %c0_105 = arith.constant 0 : index
    %160 = vector.load %arg4[%c0_103, %c11, %c0_104, %c0_105] : memref<2x12x12x32xf32, #tpu.memory_space<vmem>>, vector<1x1x12x32xf32>
    %161 = vector.shape_cast %160 : vector<1x1x12x32xf32> to vector<12x32xf32>
    %162 = vector.shape_cast %159 : vector<12x32xf32> to vector<1x1x12x32xf32>
    tpu.vector_store %arg4[%c0_103, %c11, %c0_104, %c0_105], %162 {strides = array<i32>} : memref<2x12x12x32xf32, #tpu.memory_space<vmem>>, vector<1x1x12x32xf32>,
    %c576 = arith.constant 576 : index
    %c0_106 = arith.constant 0 : index
    %163 = tpu.strided_load %arg5[%c576, %c0_106] {strides = array<i32: 2, 1>} : memref<1152x32xf32, #tpu.memory_space<vmem>>, vector<12x32xf32>
    %c577 = arith.constant 577 : index
    %c0_107 = arith.constant 0 : index
    %164 = tpu.strided_load %arg5[%c577, %c0_107] {strides = array<i32: 2, 1>} : memref<1152x32xf32, #tpu.memory_space<vmem>>, vector<12x32xf32>
    %c600 = arith.constant 600 : index
    %c0_108 = arith.constant 0 : index
    %165 = tpu.strided_load %arg5[%c600, %c0_108] {strides = array<i32: 2, 1>} : memref<1152x32xf32, #tpu.memory_space<vmem>>, vector<12x32xf32>
    %c601 = arith.constant 601 : index
    %c0_109 = arith.constant 0 : index
    %166 = tpu.strided_load %arg5[%c601, %c0_109] {strides = array<i32: 2, 1>} : memref<1152x32xf32, #tpu.memory_space<vmem>>, vector<12x32xf32>
    %167 = arith.maximumf %163, %164 : vector<12x32xf32>
    %168 = arith.maximumf %165, %166 : vector<12x32xf32>
    %169 = arith.maximumf %167, %168 : vector<12x32xf32>
    %170 = arith.addf %169, %6 : vector<12x32xf32>
    %cst_110 = arith.constant 0.000000e+00 : f32
    %171 = vector.broadcast %cst_110 : f32 to vector<12x32xf32>
    %172 = arith.maximumf %170, %171 : vector<12x32xf32>
    %c1_111 = arith.constant 1 : index
    %c0_112 = arith.constant 0 : index
    %c0_113 = arith.constant 0 : index
    %c0_114 = arith.constant 0 : index
    %173 = vector.load %arg4[%c1_111, %c0_112, %c0_113, %c0_114] : memref<2x12x12x32xf32, #tpu.memory_space<vmem>>, vector<1x1x12x32xf32>
    %174 = vector.shape_cast %173 : vector<1x1x12x32xf32> to vector<12x32xf32>
    %175 = vector.shape_cast %172 : vector<12x32xf32> to vector<1x1x12x32xf32>
    tpu.vector_store %arg4[%c1_111, %c0_112, %c0_113, %c0_114], %175 {strides = array<i32>} : memref<2x12x12x32xf32, #tpu.memory_space<vmem>>, vector<1x1x12x32xf32>,
    %c624 = arith.constant 624 : index
    %c0_115 = arith.constant 0 : index
    %176 = tpu.strided_load %arg5[%c624, %c0_115] {strides = array<i32: 2, 1>} : memref<1152x32xf32, #tpu.memory_space<vmem>>, vector<12x32xf32>
    %c625 = arith.constant 625 : index
    %c0_116 = arith.constant 0 : index
    %177 = tpu.strided_load %arg5[%c625, %c0_116] {strides = array<i32: 2, 1>} : memref<1152x32xf32, #tpu.memory_space<vmem>>, vector<12x32xf32>
    %c648 = arith.constant 648 : index
    %c0_117 = arith.constant 0 : index
    %178 = tpu.strided_load %arg5[%c648, %c0_117] {strides = array<i32: 2, 1>} : memref<1152x32xf32, #tpu.memory_space<vmem>>, vector<12x32xf32>
    %c649 = arith.constant 649 : index
    %c0_118 = arith.constant 0 : index
    %179 = tpu.strided_load %arg5[%c649, %c0_118] {strides = array<i32: 2, 1>} : memref<1152x32xf32, #tpu.memory_space<vmem>>, vector<12x32xf32>
    %180 = arith.maximumf %176, %177 : vector<12x32xf32>
    %181 = arith.maximumf %178, %179 : vector<12x32xf32>
    %182 = arith.maximumf %180, %181 : vector<12x32xf32>
    %183 = arith.addf %182, %6 : vector<12x32xf32>
    %cst_119 = arith.constant 0.000000e+00 : f32
    %184 = vector.broadcast %cst_119 : f32 to vector<12x32xf32>
    %185 = arith.maximumf %183, %184 : vector<12x32xf32>
    %c1_120 = arith.constant 1 : index
    %c1_121 = arith.constant 1 : index
    %c0_122 = arith.constant 0 : index
    %c0_123 = arith.constant 0 : index
    %186 = vector.load %arg4[%c1_120, %c1_121, %c0_122, %c0_123] : memref<2x12x12x32xf32, #tpu.memory_space<vmem>>, vector<1x1x12x32xf32>
    %187 = vector.shape_cast %186 : vector<1x1x12x32xf32> to vector<12x32xf32>
    %188 = vector.shape_cast %185 : vector<12x32xf32> to vector<1x1x12x32xf32>
    tpu.vector_store %arg4[%c1_120, %c1_121, %c0_122, %c0_123], %188 {strides = array<i32>} : memref<2x12x12x32xf32, #tpu.memory_space<vmem>>, vector<1x1x12x32xf32>,
    %c672 = arith.constant 672 : index
    %c0_124 = arith.constant 0 : index
    %189 = tpu.strided_load %arg5[%c672, %c0_124] {strides = array<i32: 2, 1>} : memref<1152x32xf32, #tpu.memory_space<vmem>>, vector<12x32xf32>
    %c673 = arith.constant 673 : index
    %c0_125 = arith.constant 0 : index
    %190 = tpu.strided_load %arg5[%c673, %c0_125] {strides = array<i32: 2, 1>} : memref<1152x32xf32, #tpu.memory_space<vmem>>, vector<12x32xf32>
    %c696 = arith.constant 696 : index
    %c0_126 = arith.constant 0 : index
    %191 = tpu.strided_load %arg5[%c696, %c0_126] {strides = array<i32: 2, 1>} : memref<1152x32xf32, #tpu.memory_space<vmem>>, vector<12x32xf32>
    %c697 = arith.constant 697 : index
    %c0_127 = arith.constant 0 : index
    %192 = tpu.strided_load %arg5[%c697, %c0_127] {strides = array<i32: 2, 1>} : memref<1152x32xf32, #tpu.memory_space<vmem>>, vector<12x32xf32>
    %193 = arith.maximumf %189, %190 : vector<12x32xf32>
    %194 = arith.maximumf %191, %192 : vector<12x32xf32>
    %195 = arith.maximumf %193, %194 : vector<12x32xf32>
    %196 = arith.addf %195, %6 : vector<12x32xf32>
    %cst_128 = arith.constant 0.000000e+00 : f32
    %197 = vector.broadcast %cst_128 : f32 to vector<12x32xf32>
    %198 = arith.maximumf %196, %197 : vector<12x32xf32>
    %c1_129 = arith.constant 1 : index
    %c2_130 = arith.constant 2 : index
    %c0_131 = arith.constant 0 : index
    %c0_132 = arith.constant 0 : index
    %199 = vector.load %arg4[%c1_129, %c2_130, %c0_131, %c0_132] : memref<2x12x12x32xf32, #tpu.memory_space<vmem>>, vector<1x1x12x32xf32>
    %200 = vector.shape_cast %199 : vector<1x1x12x32xf32> to vector<12x32xf32>
    %201 = vector.shape_cast %198 : vector<12x32xf32> to vector<1x1x12x32xf32>
    tpu.vector_store %arg4[%c1_129, %c2_130, %c0_131, %c0_132], %201 {strides = array<i32>} : memref<2x12x12x32xf32, #tpu.memory_space<vmem>>, vector<1x1x12x32xf32>,
    %c720 = arith.constant 720 : index
    %c0_133 = arith.constant 0 : index
    %202 = tpu.strided_load %arg5[%c720, %c0_133] {strides = array<i32: 2, 1>} : memref<1152x32xf32, #tpu.memory_space<vmem>>, vector<12x32xf32>
    %c721 = arith.constant 721 : index
    %c0_134 = arith.constant 0 : index
    %203 = tpu.strided_load %arg5[%c721, %c0_134] {strides = array<i32: 2, 1>} : memref<1152x32xf32, #tpu.memory_space<vmem>>, vector<12x32xf32>
    %c744 = arith.constant 744 : index
    %c0_135 = arith.constant 0 : index
    %204 = tpu.strided_load %arg5[%c744, %c0_135] {strides = array<i32: 2, 1>} : memref<1152x32xf32, #tpu.memory_space<vmem>>, vector<12x32xf32>
    %c745 = arith.constant 745 : index
    %c0_136 = arith.constant 0 : index
    %205 = tpu.strided_load %arg5[%c745, %c0_136] {strides = array<i32: 2, 1>} : memref<1152x32xf32, #tpu.memory_space<vmem>>, vector<12x32xf32>
    %206 = arith.maximumf %202, %203 : vector<12x32xf32>
    %207 = arith.maximumf %204, %205 : vector<12x32xf32>
    %208 = arith.maximumf %206, %207 : vector<12x32xf32>
    %209 = arith.addf %208, %6 : vector<12x32xf32>
    %cst_137 = arith.constant 0.000000e+00 : f32
    %210 = vector.broadcast %cst_137 : f32 to vector<12x32xf32>
    %211 = arith.maximumf %209, %210 : vector<12x32xf32>
    %c1_138 = arith.constant 1 : index
    %c3_139 = arith.constant 3 : index
    %c0_140 = arith.constant 0 : index
    %c0_141 = arith.constant 0 : index
    %212 = vector.load %arg4[%c1_138, %c3_139, %c0_140, %c0_141] : memref<2x12x12x32xf32, #tpu.memory_space<vmem>>, vector<1x1x12x32xf32>
    %213 = vector.shape_cast %212 : vector<1x1x12x32xf32> to vector<12x32xf32>
    %214 = vector.shape_cast %211 : vector<12x32xf32> to vector<1x1x12x32xf32>
    tpu.vector_store %arg4[%c1_138, %c3_139, %c0_140, %c0_141], %214 {strides = array<i32>} : memref<2x12x12x32xf32, #tpu.memory_space<vmem>>, vector<1x1x12x32xf32>,
    %c768 = arith.constant 768 : index
    %c0_142 = arith.constant 0 : index
    %215 = tpu.strided_load %arg5[%c768, %c0_142] {strides = array<i32: 2, 1>} : memref<1152x32xf32, #tpu.memory_space<vmem>>, vector<12x32xf32>
    %c769 = arith.constant 769 : index
    %c0_143 = arith.constant 0 : index
    %216 = tpu.strided_load %arg5[%c769, %c0_143] {strides = array<i32: 2, 1>} : memref<1152x32xf32, #tpu.memory_space<vmem>>, vector<12x32xf32>
    %c792 = arith.constant 792 : index
    %c0_144 = arith.constant 0 : index
    %217 = tpu.strided_load %arg5[%c792, %c0_144] {strides = array<i32: 2, 1>} : memref<1152x32xf32, #tpu.memory_space<vmem>>, vector<12x32xf32>
    %c793 = arith.constant 793 : index
    %c0_145 = arith.constant 0 : index
    %218 = tpu.strided_load %arg5[%c793, %c0_145] {strides = array<i32: 2, 1>} : memref<1152x32xf32, #tpu.memory_space<vmem>>, vector<12x32xf32>
    %219 = arith.maximumf %215, %216 : vector<12x32xf32>
    %220 = arith.maximumf %217, %218 : vector<12x32xf32>
    %221 = arith.maximumf %219, %220 : vector<12x32xf32>
    %222 = arith.addf %221, %6 : vector<12x32xf32>
    %cst_146 = arith.constant 0.000000e+00 : f32
    %223 = vector.broadcast %cst_146 : f32 to vector<12x32xf32>
    %224 = arith.maximumf %222, %223 : vector<12x32xf32>
    %c1_147 = arith.constant 1 : index
    %c4_148 = arith.constant 4 : index
    %c0_149 = arith.constant 0 : index
    %c0_150 = arith.constant 0 : index
    %225 = vector.load %arg4[%c1_147, %c4_148, %c0_149, %c0_150] : memref<2x12x12x32xf32, #tpu.memory_space<vmem>>, vector<1x1x12x32xf32>
    %226 = vector.shape_cast %225 : vector<1x1x12x32xf32> to vector<12x32xf32>
    %227 = vector.shape_cast %224 : vector<12x32xf32> to vector<1x1x12x32xf32>
    tpu.vector_store %arg4[%c1_147, %c4_148, %c0_149, %c0_150], %227 {strides = array<i32>} : memref<2x12x12x32xf32, #tpu.memory_space<vmem>>, vector<1x1x12x32xf32>,
    %c816 = arith.constant 816 : index
    %c0_151 = arith.constant 0 : index
    %228 = tpu.strided_load %arg5[%c816, %c0_151] {strides = array<i32: 2, 1>} : memref<1152x32xf32, #tpu.memory_space<vmem>>, vector<12x32xf32>
    %c817 = arith.constant 817 : index
    %c0_152 = arith.constant 0 : index
    %229 = tpu.strided_load %arg5[%c817, %c0_152] {strides = array<i32: 2, 1>} : memref<1152x32xf32, #tpu.memory_space<vmem>>, vector<12x32xf32>
    %c840 = arith.constant 840 : index
    %c0_153 = arith.constant 0 : index
    %230 = tpu.strided_load %arg5[%c840, %c0_153] {strides = array<i32: 2, 1>} : memref<1152x32xf32, #tpu.memory_space<vmem>>, vector<12x32xf32>
    %c841 = arith.constant 841 : index
    %c0_154 = arith.constant 0 : index
    %231 = tpu.strided_load %arg5[%c841, %c0_154] {strides = array<i32: 2, 1>} : memref<1152x32xf32, #tpu.memory_space<vmem>>, vector<12x32xf32>
    %232 = arith.maximumf %228, %229 : vector<12x32xf32>
    %233 = arith.maximumf %230, %231 : vector<12x32xf32>
    %234 = arith.maximumf %232, %233 : vector<12x32xf32>
    %235 = arith.addf %234, %6 : vector<12x32xf32>
    %cst_155 = arith.constant 0.000000e+00 : f32
    %236 = vector.broadcast %cst_155 : f32 to vector<12x32xf32>
    %237 = arith.maximumf %235, %236 : vector<12x32xf32>
    %c1_156 = arith.constant 1 : index
    %c5_157 = arith.constant 5 : index
    %c0_158 = arith.constant 0 : index
    %c0_159 = arith.constant 0 : index
    %238 = vector.load %arg4[%c1_156, %c5_157, %c0_158, %c0_159] : memref<2x12x12x32xf32, #tpu.memory_space<vmem>>, vector<1x1x12x32xf32>
    %239 = vector.shape_cast %238 : vector<1x1x12x32xf32> to vector<12x32xf32>
    %240 = vector.shape_cast %237 : vector<12x32xf32> to vector<1x1x12x32xf32>
    tpu.vector_store %arg4[%c1_156, %c5_157, %c0_158, %c0_159], %240 {strides = array<i32>} : memref<2x12x12x32xf32, #tpu.memory_space<vmem>>, vector<1x1x12x32xf32>,
    %c864 = arith.constant 864 : index
    %c0_160 = arith.constant 0 : index
    %241 = tpu.strided_load %arg5[%c864, %c0_160] {strides = array<i32: 2, 1>} : memref<1152x32xf32, #tpu.memory_space<vmem>>, vector<12x32xf32>
    %c865 = arith.constant 865 : index
    %c0_161 = arith.constant 0 : index
    %242 = tpu.strided_load %arg5[%c865, %c0_161] {strides = array<i32: 2, 1>} : memref<1152x32xf32, #tpu.memory_space<vmem>>, vector<12x32xf32>
    %c888 = arith.constant 888 : index
    %c0_162 = arith.constant 0 : index
    %243 = tpu.strided_load %arg5[%c888, %c0_162] {strides = array<i32: 2, 1>} : memref<1152x32xf32, #tpu.memory_space<vmem>>, vector<12x32xf32>
    %c889 = arith.constant 889 : index
    %c0_163 = arith.constant 0 : index
    %244 = tpu.strided_load %arg5[%c889, %c0_163] {strides = array<i32: 2, 1>} : memref<1152x32xf32, #tpu.memory_space<vmem>>, vector<12x32xf32>
    %245 = arith.maximumf %241, %242 : vector<12x32xf32>
    %246 = arith.maximumf %243, %244 : vector<12x32xf32>
    %247 = arith.maximumf %245, %246 : vector<12x32xf32>
    %248 = arith.addf %247, %6 : vector<12x32xf32>
    %cst_164 = arith.constant 0.000000e+00 : f32
    %249 = vector.broadcast %cst_164 : f32 to vector<12x32xf32>
    %250 = arith.maximumf %248, %249 : vector<12x32xf32>
    %c1_165 = arith.constant 1 : index
    %c6_166 = arith.constant 6 : index
    %c0_167 = arith.constant 0 : index
    %c0_168 = arith.constant 0 : index
    %251 = vector.load %arg4[%c1_165, %c6_166, %c0_167, %c0_168] : memref<2x12x12x32xf32, #tpu.memory_space<vmem>>, vector<1x1x12x32xf32>
    %252 = vector.shape_cast %251 : vector<1x1x12x32xf32> to vector<12x32xf32>
    %253 = vector.shape_cast %250 : vector<12x32xf32> to vector<1x1x12x32xf32>
    tpu.vector_store %arg4[%c1_165, %c6_166, %c0_167, %c0_168], %253 {strides = array<i32>} : memref<2x12x12x32xf32, #tpu.memory_space<vmem>>, vector<1x1x12x32xf32>,
    %c912 = arith.constant 912 : index
    %c0_169 = arith.constant 0 : index
    %254 = tpu.strided_load %arg5[%c912, %c0_169] {strides = array<i32: 2, 1>} : memref<1152x32xf32, #tpu.memory_space<vmem>>, vector<12x32xf32>
    %c913 = arith.constant 913 : index
    %c0_170 = arith.constant 0 : index
    %255 = tpu.strided_load %arg5[%c913, %c0_170] {strides = array<i32: 2, 1>} : memref<1152x32xf32, #tpu.memory_space<vmem>>, vector<12x32xf32>
    %c936 = arith.constant 936 : index
    %c0_171 = arith.constant 0 : index
    %256 = tpu.strided_load %arg5[%c936, %c0_171] {strides = array<i32: 2, 1>} : memref<1152x32xf32, #tpu.memory_space<vmem>>, vector<12x32xf32>
    %c937 = arith.constant 937 : index
    %c0_172 = arith.constant 0 : index
    %257 = tpu.strided_load %arg5[%c937, %c0_172] {strides = array<i32: 2, 1>} : memref<1152x32xf32, #tpu.memory_space<vmem>>, vector<12x32xf32>
    %258 = arith.maximumf %254, %255 : vector<12x32xf32>
    %259 = arith.maximumf %256, %257 : vector<12x32xf32>
    %260 = arith.maximumf %258, %259 : vector<12x32xf32>
    %261 = arith.addf %260, %6 : vector<12x32xf32>
    %cst_173 = arith.constant 0.000000e+00 : f32
    %262 = vector.broadcast %cst_173 : f32 to vector<12x32xf32>
    %263 = arith.maximumf %261, %262 : vector<12x32xf32>
    %c1_174 = arith.constant 1 : index
    %c7_175 = arith.constant 7 : index
    %c0_176 = arith.constant 0 : index
    %c0_177 = arith.constant 0 : index
    %264 = vector.load %arg4[%c1_174, %c7_175, %c0_176, %c0_177] : memref<2x12x12x32xf32, #tpu.memory_space<vmem>>, vector<1x1x12x32xf32>
    %265 = vector.shape_cast %264 : vector<1x1x12x32xf32> to vector<12x32xf32>
    %266 = vector.shape_cast %263 : vector<12x32xf32> to vector<1x1x12x32xf32>
    tpu.vector_store %arg4[%c1_174, %c7_175, %c0_176, %c0_177], %266 {strides = array<i32>} : memref<2x12x12x32xf32, #tpu.memory_space<vmem>>, vector<1x1x12x32xf32>,
    %c960 = arith.constant 960 : index
    %c0_178 = arith.constant 0 : index
    %267 = tpu.strided_load %arg5[%c960, %c0_178] {strides = array<i32: 2, 1>} : memref<1152x32xf32, #tpu.memory_space<vmem>>, vector<12x32xf32>
    %c961 = arith.constant 961 : index
    %c0_179 = arith.constant 0 : index
    %268 = tpu.strided_load %arg5[%c961, %c0_179] {strides = array<i32: 2, 1>} : memref<1152x32xf32, #tpu.memory_space<vmem>>, vector<12x32xf32>
    %c984 = arith.constant 984 : index
    %c0_180 = arith.constant 0 : index
    %269 = tpu.strided_load %arg5[%c984, %c0_180] {strides = array<i32: 2, 1>} : memref<1152x32xf32, #tpu.memory_space<vmem>>, vector<12x32xf32>
    %c985 = arith.constant 985 : index
    %c0_181 = arith.constant 0 : index
    %270 = tpu.strided_load %arg5[%c985, %c0_181] {strides = array<i32: 2, 1>} : memref<1152x32xf32, #tpu.memory_space<vmem>>, vector<12x32xf32>
    %271 = arith.maximumf %267, %268 : vector<12x32xf32>
    %272 = arith.maximumf %269, %270 : vector<12x32xf32>
    %273 = arith.maximumf %271, %272 : vector<12x32xf32>
    %274 = arith.addf %273, %6 : vector<12x32xf32>
    %cst_182 = arith.constant 0.000000e+00 : f32
    %275 = vector.broadcast %cst_182 : f32 to vector<12x32xf32>
    %276 = arith.maximumf %274, %275 : vector<12x32xf32>
    %c1_183 = arith.constant 1 : index
    %c8_184 = arith.constant 8 : index
    %c0_185 = arith.constant 0 : index
    %c0_186 = arith.constant 0 : index
    %277 = vector.load %arg4[%c1_183, %c8_184, %c0_185, %c0_186] : memref<2x12x12x32xf32, #tpu.memory_space<vmem>>, vector<1x1x12x32xf32>
    %278 = vector.shape_cast %277 : vector<1x1x12x32xf32> to vector<12x32xf32>
    %279 = vector.shape_cast %276 : vector<12x32xf32> to vector<1x1x12x32xf32>
    tpu.vector_store %arg4[%c1_183, %c8_184, %c0_185, %c0_186], %279 {strides = array<i32>} : memref<2x12x12x32xf32, #tpu.memory_space<vmem>>, vector<1x1x12x32xf32>,
    %c1008 = arith.constant 1008 : index
    %c0_187 = arith.constant 0 : index
    %280 = tpu.strided_load %arg5[%c1008, %c0_187] {strides = array<i32: 2, 1>} : memref<1152x32xf32, #tpu.memory_space<vmem>>, vector<12x32xf32>
    %c1009 = arith.constant 1009 : index
    %c0_188 = arith.constant 0 : index
    %281 = tpu.strided_load %arg5[%c1009, %c0_188] {strides = array<i32: 2, 1>} : memref<1152x32xf32, #tpu.memory_space<vmem>>, vector<12x32xf32>
    %c1032 = arith.constant 1032 : index
    %c0_189 = arith.constant 0 : index
    %282 = tpu.strided_load %arg5[%c1032, %c0_189] {strides = array<i32: 2, 1>} : memref<1152x32xf32, #tpu.memory_space<vmem>>, vector<12x32xf32>
    %c1033 = arith.constant 1033 : index
    %c0_190 = arith.constant 0 : index
    %283 = tpu.strided_load %arg5[%c1033, %c0_190] {strides = array<i32: 2, 1>} : memref<1152x32xf32, #tpu.memory_space<vmem>>, vector<12x32xf32>
    %284 = arith.maximumf %280, %281 : vector<12x32xf32>
    %285 = arith.maximumf %282, %283 : vector<12x32xf32>
    %286 = arith.maximumf %284, %285 : vector<12x32xf32>
    %287 = arith.addf %286, %6 : vector<12x32xf32>
    %cst_191 = arith.constant 0.000000e+00 : f32
    %288 = vector.broadcast %cst_191 : f32 to vector<12x32xf32>
    %289 = arith.maximumf %287, %288 : vector<12x32xf32>
    %c1_192 = arith.constant 1 : index
    %c9_193 = arith.constant 9 : index
    %c0_194 = arith.constant 0 : index
    %c0_195 = arith.constant 0 : index
    %290 = vector.load %arg4[%c1_192, %c9_193, %c0_194, %c0_195] : memref<2x12x12x32xf32, #tpu.memory_space<vmem>>, vector<1x1x12x32xf32>
    %291 = vector.shape_cast %290 : vector<1x1x12x32xf32> to vector<12x32xf32>
    %292 = vector.shape_cast %289 : vector<12x32xf32> to vector<1x1x12x32xf32>
    tpu.vector_store %arg4[%c1_192, %c9_193, %c0_194, %c0_195], %292 {strides = array<i32>} : memref<2x12x12x32xf32, #tpu.memory_space<vmem>>, vector<1x1x12x32xf32>,
    %c1056 = arith.constant 1056 : index
    %c0_196 = arith.constant 0 : index
    %293 = tpu.strided_load %arg5[%c1056, %c0_196] {strides = array<i32: 2, 1>} : memref<1152x32xf32, #tpu.memory_space<vmem>>, vector<12x32xf32>
    %c1057 = arith.constant 1057 : index
    %c0_197 = arith.constant 0 : index
    %294 = tpu.strided_load %arg5[%c1057, %c0_197] {strides = array<i32: 2, 1>} : memref<1152x32xf32, #tpu.memory_space<vmem>>, vector<12x32xf32>
    %c1080 = arith.constant 1080 : index
    %c0_198 = arith.constant 0 : index
    %295 = tpu.strided_load %arg5[%c1080, %c0_198] {strides = array<i32: 2, 1>} : memref<1152x32xf32, #tpu.memory_space<vmem>>, vector<12x32xf32>
    %c1081 = arith.constant 1081 : index
    %c0_199 = arith.constant 0 : index
    %296 = tpu.strided_load %arg5[%c1081, %c0_199] {strides = array<i32: 2, 1>} : memref<1152x32xf32, #tpu.memory_space<vmem>>, vector<12x32xf32>
    %297 = arith.maximumf %293, %294 : vector<12x32xf32>
    %298 = arith.maximumf %295, %296 : vector<12x32xf32>
    %299 = arith.maximumf %297, %298 : vector<12x32xf32>
    %300 = arith.addf %299, %6 : vector<12x32xf32>
    %cst_200 = arith.constant 0.000000e+00 : f32
    %301 = vector.broadcast %cst_200 : f32 to vector<12x32xf32>
    %302 = arith.maximumf %300, %301 : vector<12x32xf32>
    %c1_201 = arith.constant 1 : index
    %c10_202 = arith.constant 10 : index
    %c0_203 = arith.constant 0 : index
    %c0_204 = arith.constant 0 : index
    %303 = vector.load %arg4[%c1_201, %c10_202, %c0_203, %c0_204] : memref<2x12x12x32xf32, #tpu.memory_space<vmem>>, vector<1x1x12x32xf32>
    %304 = vector.shape_cast %303 : vector<1x1x12x32xf32> to vector<12x32xf32>
    %305 = vector.shape_cast %302 : vector<12x32xf32> to vector<1x1x12x32xf32>
    tpu.vector_store %arg4[%c1_201, %c10_202, %c0_203, %c0_204], %305 {strides = array<i32>} : memref<2x12x12x32xf32, #tpu.memory_space<vmem>>, vector<1x1x12x32xf32>,
    %c1104 = arith.constant 1104 : index
    %c0_205 = arith.constant 0 : index
    %306 = tpu.strided_load %arg5[%c1104, %c0_205] {strides = array<i32: 2, 1>} : memref<1152x32xf32, #tpu.memory_space<vmem>>, vector<12x32xf32>
    %c1105 = arith.constant 1105 : index
    %c0_206 = arith.constant 0 : index
    %307 = tpu.strided_load %arg5[%c1105, %c0_206] {strides = array<i32: 2, 1>} : memref<1152x32xf32, #tpu.memory_space<vmem>>, vector<12x32xf32>
    %c1128 = arith.constant 1128 : index
    %c0_207 = arith.constant 0 : index
    %308 = tpu.strided_load %arg5[%c1128, %c0_207] {strides = array<i32: 2, 1>} : memref<1152x32xf32, #tpu.memory_space<vmem>>, vector<12x32xf32>
    %c1129 = arith.constant 1129 : index
    %c0_208 = arith.constant 0 : index
    %309 = tpu.strided_load %arg5[%c1129, %c0_208] {strides = array<i32: 2, 1>} : memref<1152x32xf32, #tpu.memory_space<vmem>>, vector<12x32xf32>
    %310 = arith.maximumf %306, %307 : vector<12x32xf32>
    %311 = arith.maximumf %308, %309 : vector<12x32xf32>
    %312 = arith.maximumf %310, %311 : vector<12x32xf32>
    %313 = arith.addf %312, %6 : vector<12x32xf32>
    %cst_209 = arith.constant 0.000000e+00 : f32
    %314 = vector.broadcast %cst_209 : f32 to vector<12x32xf32>
    %315 = arith.maximumf %313, %314 : vector<12x32xf32>
    %c1_210 = arith.constant 1 : index
    %c11_211 = arith.constant 11 : index
    %c0_212 = arith.constant 0 : index
    %c0_213 = arith.constant 0 : index
    %316 = vector.load %arg4[%c1_210, %c11_211, %c0_212, %c0_213] : memref<2x12x12x32xf32, #tpu.memory_space<vmem>>, vector<1x1x12x32xf32>
    %317 = vector.shape_cast %316 : vector<1x1x12x32xf32> to vector<12x32xf32>
    %318 = vector.shape_cast %315 : vector<12x32xf32> to vector<1x1x12x32xf32>
    tpu.vector_store %arg4[%c1_210, %c11_211, %c0_212, %c0_213], %318 {strides = array<i32>} : memref<2x12x12x32xf32, #tpu.memory_space<vmem>>, vector<1x1x12x32xf32>,
    return
  }
  func.func @transform_0(%arg0: i32) -> (i32, i32) {
    %c0_i32 = arith.constant 0 : i32
    %c0_i32_0 = arith.constant 0 : i32
    return %arg0, %c0_i32 : i32, i32
  }
  func.func @transform_1(%arg0: i32) -> (i32, i32) {
    %c0_i32 = arith.constant 0 : i32
    %c0_i32_0 = arith.constant 0 : i32
    %c0_i32_1 = arith.constant 0 : i32
    return %c0_i32, %c0_i32_0 : i32, i32
  }
  func.func @transform_2(%arg0: i32) -> (i32, i32) {
    %c0_i32 = arith.constant 0 : i32
    %c0_i32_0 = arith.constant 0 : i32
    %c0_i32_1 = arith.constant 0 : i32
    return %c0_i32, %c0_i32_0 : i32, i32
  }
  func.func @transform_3(%arg0: i32) -> (i32, i32, i32, i32) {
    %c0_i32 = arith.constant 0 : i32
    %c0_i32_0 = arith.constant 0 : i32
    %c0_i32_1 = arith.constant 0 : i32
    %c0_i32_2 = arith.constant 0 : i32
    return %arg0, %c0_i32, %c0_i32_0, %c0_i32_1 : i32, i32, i32, i32
  }
}

module attributes {stable_mosaic.version = 11 : i64} {
  func.func @_fc_kernel(%arg0: i32, %arg1: memref<2x1024xf32, #tpu.memory_space<vmem>>, %arg2: memref<1024x512xf32, #tpu.memory_space<vmem>>, %arg3: memref<1x512xf32, #tpu.memory_space<vmem>>, %arg4: memref<512x128xf32, #tpu.memory_space<vmem>>, %arg5: memref<1x128xf32, #tpu.memory_space<vmem>>, %arg6: memref<2x128xf32, #tpu.memory_space<vmem>>) attributes {dimension_semantics = [#tpu.dimension_semantics<parallel>], iteration_bounds = array<i64: 1>, scalar_prefetch = 0 : i64, scratch_operands = 0 : i64, tpu.core_type = #tpu.core_type<tc>, window_params = [{transform_indices = @transform_0, window_bounds = array<i64: 2, 1024>}, {pipeline_mode = #tpu.pipeline_mode<synchronous>, transform_indices = @transform_1, window_bounds = array<i64: 1024, 512>}, {pipeline_mode = #tpu.pipeline_mode<synchronous>, transform_indices = @transform_2, window_bounds = array<i64: 1, 512>}, {pipeline_mode = #tpu.pipeline_mode<synchronous>, transform_indices = @transform_3, window_bounds = array<i64: 512, 128>}, {pipeline_mode = #tpu.pipeline_mode<synchronous>, transform_indices = @transform_4, window_bounds = array<i64: 1, 128>}, {transform_indices = @transform_5, window_bounds = array<i64: 2, 128>}]} {
    %c0 = arith.constant 0 : index
    %c0_0 = arith.constant 0 : index
    %0 = vector.load %arg1[%c0, %c0_0] : memref<2x1024xf32, #tpu.memory_space<vmem>>, vector<2x1024xf32>
    %c0_1 = arith.constant 0 : index
    %c0_2 = arith.constant 0 : index
    %1 = vector.load %arg2[%c0_1, %c0_2] : memref<1024x512xf32, #tpu.memory_space<vmem>>, vector<1024x512xf32>
    %cst = arith.constant dense<0.000000e+00> : vector<2x512xf32>
    %2 = tpu.matmul %0, %1, %cst {dimension_numbers = #tpu.dot_dimension_numbers<[1], [0], [0], [1], [0, 0, 1, 1], [], []>} : vector<2x1024xf32>, vector<1024x512xf32>, vector<2x512xf32> -> vector<2x512xf32>
    %c0_3 = arith.constant 0 : index
    %c0_4 = arith.constant 0 : index
    %3 = vector.load %arg3[%c0_3, %c0_4] : memref<1x512xf32, #tpu.memory_space<vmem>>, vector<1x512xf32>
    %4 = vector.broadcast %3 : vector<1x512xf32> to vector<2x512xf32>
    %5 = arith.addf %2, %4 : vector<2x512xf32>
    %cst_5 = arith.constant 0.000000e+00 : f32
    %6 = vector.broadcast %cst_5 : f32 to vector<2x512xf32>
    %7 = arith.maximumf %5, %6 : vector<2x512xf32>
    %c0_6 = arith.constant 0 : index
    %c0_7 = arith.constant 0 : index
    %8 = vector.load %arg4[%c0_6, %c0_7] : memref<512x128xf32, #tpu.memory_space<vmem>>, vector<512x128xf32>
    %cst_8 = arith.constant dense<0.000000e+00> : vector<2x128xf32>
    %9 = tpu.matmul %7, %8, %cst_8 {dimension_numbers = #tpu.dot_dimension_numbers<[1], [0], [0], [1], [0, 0, 1, 1], [], []>} : vector<2x512xf32>, vector<512x128xf32>, vector<2x128xf32> -> vector<2x128xf32>
    %c0_9 = arith.constant 0 : index
    %c0_10 = arith.constant 0 : index
    %10 = vector.load %arg5[%c0_9, %c0_10] : memref<1x128xf32, #tpu.memory_space<vmem>>, vector<1x128xf32>
    %11 = vector.broadcast %10 : vector<1x128xf32> to vector<2x128xf32>
    %12 = arith.addf %9, %11 : vector<2x128xf32>
    %c0_11 = arith.constant 0 : index
    %c0_12 = arith.constant 0 : index
    %13 = vector.load %arg6[%c0_11, %c0_12] : memref<2x128xf32, #tpu.memory_space<vmem>>, vector<2x128xf32>
    tpu.vector_store %arg6[%c0_11, %c0_12], %12 {strides = array<i32>} : memref<2x128xf32, #tpu.memory_space<vmem>>, vector<2x128xf32>,
    return
  }
  func.func @transform_0(%arg0: i32) -> (i32, i32) {
    %c0_i32 = arith.constant 0 : i32
    %c0_i32_0 = arith.constant 0 : i32
    return %arg0, %c0_i32 : i32, i32
  }
  func.func @transform_1(%arg0: i32) -> (i32, i32) {
    %c0_i32 = arith.constant 0 : i32
    %c0_i32_0 = arith.constant 0 : i32
    %c0_i32_1 = arith.constant 0 : i32
    return %c0_i32, %c0_i32_0 : i32, i32
  }
  func.func @transform_2(%arg0: i32) -> (i32, i32) {
    %c0_i32 = arith.constant 0 : i32
    %c0_i32_0 = arith.constant 0 : i32
    %c0_i32_1 = arith.constant 0 : i32
    return %c0_i32, %c0_i32_0 : i32, i32
  }
  func.func @transform_3(%arg0: i32) -> (i32, i32) {
    %c0_i32 = arith.constant 0 : i32
    %c0_i32_0 = arith.constant 0 : i32
    %c0_i32_1 = arith.constant 0 : i32
    return %c0_i32, %c0_i32_0 : i32, i32
  }
  func.func @transform_4(%arg0: i32) -> (i32, i32) {
    %c0_i32 = arith.constant 0 : i32
    %c0_i32_0 = arith.constant 0 : i32
    %c0_i32_1 = arith.constant 0 : i32
    return %c0_i32, %c0_i32_0 : i32, i32
  }
  func.func @transform_5(%arg0: i32) -> (i32, i32) {
    %c0_i32 = arith.constant 0 : i32
    %c0_i32_0 = arith.constant 0 : i32
    return %arg0, %c0_i32 : i32, i32
  }
}

module attributes {stable_mosaic.version = 11 : i64} {
  func.func @_conv2_kernel(%arg0: i32, %arg1: memref<2x12x12x32xf32, #tpu.memory_space<vmem>>, %arg2: memref<25x32x64xf32, #tpu.memory_space<vmem>>, %arg3: memref<1x64xf32, #tpu.memory_space<vmem>>, %arg4: memref<2x4x4x64xf32, #tpu.memory_space<vmem>>, %arg5: memref<128x64xf32, #tpu.memory_space<vmem>>) attributes {dimension_semantics = [#tpu.dimension_semantics<parallel>], iteration_bounds = array<i64: 1>, scalar_prefetch = 0 : i64, scratch_operands = 1 : i64, tpu.core_type = #tpu.core_type<tc>, window_params = [{transform_indices = @transform_0, window_bounds = array<i64: 2, 12, 12, 32>}, {pipeline_mode = #tpu.pipeline_mode<synchronous>, transform_indices = @transform_1, window_bounds = array<i64: 25, 32, 64>}, {pipeline_mode = #tpu.pipeline_mode<synchronous>, transform_indices = @transform_2, window_bounds = array<i64: 1, 64>}, {transform_indices = @transform_3, window_bounds = array<i64: 2, 4, 4, 64>}]} {
    %c0 = arith.constant 0 : index
    %c0_0 = arith.constant 0 : index
    %c0_1 = arith.constant 0 : index
    %c0_2 = arith.constant 0 : index
    %0 = vector.load %arg1[%c0, %c0_0, %c0_1, %c0_2] : memref<2x12x12x32xf32, #tpu.memory_space<vmem>>, vector<1x8x8x32xf32>
    %1 = vector.shape_cast %0 : vector<1x8x8x32xf32> to vector<8x8x32xf32>
    %2 = vector.shape_cast %1 : vector<8x8x32xf32> to vector<64x32xf32>
    %c1 = arith.constant 1 : index
    %c0_3 = arith.constant 0 : index
    %c0_4 = arith.constant 0 : index
    %c0_5 = arith.constant 0 : index
    %3 = vector.load %arg1[%c1, %c0_3, %c0_4, %c0_5] : memref<2x12x12x32xf32, #tpu.memory_space<vmem>>, vector<1x8x8x32xf32>
    %4 = vector.shape_cast %3 : vector<1x8x8x32xf32> to vector<8x8x32xf32>
    %5 = vector.shape_cast %4 : vector<8x8x32xf32> to vector<64x32xf32>
    %6 = tpu.concatenate %2, %5 in 0 : vector<64x32xf32>, vector<64x32xf32> -> vector<128x32xf32>
    %c0_6 = arith.constant 0 : index
    %c0_7 = arith.constant 0 : index
    %c0_8 = arith.constant 0 : index
    %7 = vector.load %arg2[%c0_6, %c0_7, %c0_8] : memref<25x32x64xf32, #tpu.memory_space<vmem>>, vector<1x32x64xf32>
    %8 = vector.shape_cast %7 : vector<1x32x64xf32> to vector<32x64xf32>
    %cst = arith.constant dense<0.000000e+00> : vector<128x64xf32>
    %9 = tpu.matmul %6, %8, %cst {dimension_numbers = #tpu.dot_dimension_numbers<[1], [0], [0], [1], [0, 0, 1, 1], [], []>} : vector<128x32xf32>, vector<32x64xf32>, vector<128x64xf32> -> vector<128x64xf32>
    %c0_9 = arith.constant 0 : index
    %c0_10 = arith.constant 0 : index
    %c1_11 = arith.constant 1 : index
    %c0_12 = arith.constant 0 : index
    %10 = vector.load %arg1[%c0_9, %c0_10, %c1_11, %c0_12] : memref<2x12x12x32xf32, #tpu.memory_space<vmem>>, vector<1x8x8x32xf32>
    %11 = vector.shape_cast %10 : vector<1x8x8x32xf32> to vector<8x8x32xf32>
    %12 = vector.shape_cast %11 : vector<8x8x32xf32> to vector<64x32xf32>
    %c1_13 = arith.constant 1 : index
    %c0_14 = arith.constant 0 : index
    %c1_15 = arith.constant 1 : index
    %c0_16 = arith.constant 0 : index
    %13 = vector.load %arg1[%c1_13, %c0_14, %c1_15, %c0_16] : memref<2x12x12x32xf32, #tpu.memory_space<vmem>>, vector<1x8x8x32xf32>
    %14 = vector.shape_cast %13 : vector<1x8x8x32xf32> to vector<8x8x32xf32>
    %15 = vector.shape_cast %14 : vector<8x8x32xf32> to vector<64x32xf32>
    %16 = tpu.concatenate %12, %15 in 0 : vector<64x32xf32>, vector<64x32xf32> -> vector<128x32xf32>
    %c1_17 = arith.constant 1 : index
    %c0_18 = arith.constant 0 : index
    %c0_19 = arith.constant 0 : index
    %17 = vector.load %arg2[%c1_17, %c0_18, %c0_19] : memref<25x32x64xf32, #tpu.memory_space<vmem>>, vector<1x32x64xf32>
    %18 = vector.shape_cast %17 : vector<1x32x64xf32> to vector<32x64xf32>
    %cst_20 = arith.constant dense<0.000000e+00> : vector<128x64xf32>
    %19 = tpu.matmul %16, %18, %cst_20 {dimension_numbers = #tpu.dot_dimension_numbers<[1], [0], [0], [1], [0, 0, 1, 1], [], []>} : vector<128x32xf32>, vector<32x64xf32>, vector<128x64xf32> -> vector<128x64xf32>
    %20 = arith.addf %9, %19 : vector<128x64xf32>
    %c0_21 = arith.constant 0 : index
    %c0_22 = arith.constant 0 : index
    %c2 = arith.constant 2 : index
    %c0_23 = arith.constant 0 : index
    %21 = vector.load %arg1[%c0_21, %c0_22, %c2, %c0_23] : memref<2x12x12x32xf32, #tpu.memory_space<vmem>>, vector<1x8x8x32xf32>
    %22 = vector.shape_cast %21 : vector<1x8x8x32xf32> to vector<8x8x32xf32>
    %23 = vector.shape_cast %22 : vector<8x8x32xf32> to vector<64x32xf32>
    %c1_24 = arith.constant 1 : index
    %c0_25 = arith.constant 0 : index
    %c2_26 = arith.constant 2 : index
    %c0_27 = arith.constant 0 : index
    %24 = vector.load %arg1[%c1_24, %c0_25, %c2_26, %c0_27] : memref<2x12x12x32xf32, #tpu.memory_space<vmem>>, vector<1x8x8x32xf32>
    %25 = vector.shape_cast %24 : vector<1x8x8x32xf32> to vector<8x8x32xf32>
    %26 = vector.shape_cast %25 : vector<8x8x32xf32> to vector<64x32xf32>
    %27 = tpu.concatenate %23, %26 in 0 : vector<64x32xf32>, vector<64x32xf32> -> vector<128x32xf32>
    %c2_28 = arith.constant 2 : index
    %c0_29 = arith.constant 0 : index
    %c0_30 = arith.constant 0 : index
    %28 = vector.load %arg2[%c2_28, %c0_29, %c0_30] : memref<25x32x64xf32, #tpu.memory_space<vmem>>, vector<1x32x64xf32>
    %29 = vector.shape_cast %28 : vector<1x32x64xf32> to vector<32x64xf32>
    %cst_31 = arith.constant dense<0.000000e+00> : vector<128x64xf32>
    %30 = tpu.matmul %27, %29, %cst_31 {dimension_numbers = #tpu.dot_dimension_numbers<[1], [0], [0], [1], [0, 0, 1, 1], [], []>} : vector<128x32xf32>, vector<32x64xf32>, vector<128x64xf32> -> vector<128x64xf32>
    %31 = arith.addf %20, %30 : vector<128x64xf32>
    %c0_32 = arith.constant 0 : index
    %c0_33 = arith.constant 0 : index
    %c3 = arith.constant 3 : index
    %c0_34 = arith.constant 0 : index
    %32 = vector.load %arg1[%c0_32, %c0_33, %c3, %c0_34] : memref<2x12x12x32xf32, #tpu.memory_space<vmem>>, vector<1x8x8x32xf32>
    %33 = vector.shape_cast %32 : vector<1x8x8x32xf32> to vector<8x8x32xf32>
    %34 = vector.shape_cast %33 : vector<8x8x32xf32> to vector<64x32xf32>
    %c1_35 = arith.constant 1 : index
    %c0_36 = arith.constant 0 : index
    %c3_37 = arith.constant 3 : index
    %c0_38 = arith.constant 0 : index
    %35 = vector.load %arg1[%c1_35, %c0_36, %c3_37, %c0_38] : memref<2x12x12x32xf32, #tpu.memory_space<vmem>>, vector<1x8x8x32xf32>
    %36 = vector.shape_cast %35 : vector<1x8x8x32xf32> to vector<8x8x32xf32>
    %37 = vector.shape_cast %36 : vector<8x8x32xf32> to vector<64x32xf32>
    %38 = tpu.concatenate %34, %37 in 0 : vector<64x32xf32>, vector<64x32xf32> -> vector<128x32xf32>
    %c3_39 = arith.constant 3 : index
    %c0_40 = arith.constant 0 : index
    %c0_41 = arith.constant 0 : index
    %39 = vector.load %arg2[%c3_39, %c0_40, %c0_41] : memref<25x32x64xf32, #tpu.memory_space<vmem>>, vector<1x32x64xf32>
    %40 = vector.shape_cast %39 : vector<1x32x64xf32> to vector<32x64xf32>
    %cst_42 = arith.constant dense<0.000000e+00> : vector<128x64xf32>
    %41 = tpu.matmul %38, %40, %cst_42 {dimension_numbers = #tpu.dot_dimension_numbers<[1], [0], [0], [1], [0, 0, 1, 1], [], []>} : vector<128x32xf32>, vector<32x64xf32>, vector<128x64xf32> -> vector<128x64xf32>
    %42 = arith.addf %31, %41 : vector<128x64xf32>
    %c0_43 = arith.constant 0 : index
    %c0_44 = arith.constant 0 : index
    %c4 = arith.constant 4 : index
    %c0_45 = arith.constant 0 : index
    %43 = vector.load %arg1[%c0_43, %c0_44, %c4, %c0_45] : memref<2x12x12x32xf32, #tpu.memory_space<vmem>>, vector<1x8x8x32xf32>
    %44 = vector.shape_cast %43 : vector<1x8x8x32xf32> to vector<8x8x32xf32>
    %45 = vector.shape_cast %44 : vector<8x8x32xf32> to vector<64x32xf32>
    %c1_46 = arith.constant 1 : index
    %c0_47 = arith.constant 0 : index
    %c4_48 = arith.constant 4 : index
    %c0_49 = arith.constant 0 : index
    %46 = vector.load %arg1[%c1_46, %c0_47, %c4_48, %c0_49] : memref<2x12x12x32xf32, #tpu.memory_space<vmem>>, vector<1x8x8x32xf32>
    %47 = vector.shape_cast %46 : vector<1x8x8x32xf32> to vector<8x8x32xf32>
    %48 = vector.shape_cast %47 : vector<8x8x32xf32> to vector<64x32xf32>
    %49 = tpu.concatenate %45, %48 in 0 : vector<64x32xf32>, vector<64x32xf32> -> vector<128x32xf32>
    %c4_50 = arith.constant 4 : index
    %c0_51 = arith.constant 0 : index
    %c0_52 = arith.constant 0 : index
    %50 = vector.load %arg2[%c4_50, %c0_51, %c0_52] : memref<25x32x64xf32, #tpu.memory_space<vmem>>, vector<1x32x64xf32>
    %51 = vector.shape_cast %50 : vector<1x32x64xf32> to vector<32x64xf32>
    %cst_53 = arith.constant dense<0.000000e+00> : vector<128x64xf32>
    %52 = tpu.matmul %49, %51, %cst_53 {dimension_numbers = #tpu.dot_dimension_numbers<[1], [0], [0], [1], [0, 0, 1, 1], [], []>} : vector<128x32xf32>, vector<32x64xf32>, vector<128x64xf32> -> vector<128x64xf32>
    %53 = arith.addf %42, %52 : vector<128x64xf32>
    %c0_54 = arith.constant 0 : index
    %c1_55 = arith.constant 1 : index
    %c0_56 = arith.constant 0 : index
    %c0_57 = arith.constant 0 : index
    %54 = vector.load %arg1[%c0_54, %c1_55, %c0_56, %c0_57] : memref<2x12x12x32xf32, #tpu.memory_space<vmem>>, vector<1x8x8x32xf32>
    %55 = vector.shape_cast %54 : vector<1x8x8x32xf32> to vector<8x8x32xf32>
    %56 = vector.shape_cast %55 : vector<8x8x32xf32> to vector<64x32xf32>
    %c1_58 = arith.constant 1 : index
    %c1_59 = arith.constant 1 : index
    %c0_60 = arith.constant 0 : index
    %c0_61 = arith.constant 0 : index
    %57 = vector.load %arg1[%c1_58, %c1_59, %c0_60, %c0_61] : memref<2x12x12x32xf32, #tpu.memory_space<vmem>>, vector<1x8x8x32xf32>
    %58 = vector.shape_cast %57 : vector<1x8x8x32xf32> to vector<8x8x32xf32>
    %59 = vector.shape_cast %58 : vector<8x8x32xf32> to vector<64x32xf32>
    %60 = tpu.concatenate %56, %59 in 0 : vector<64x32xf32>, vector<64x32xf32> -> vector<128x32xf32>
    %c5 = arith.constant 5 : index
    %c0_62 = arith.constant 0 : index
    %c0_63 = arith.constant 0 : index
    %61 = vector.load %arg2[%c5, %c0_62, %c0_63] : memref<25x32x64xf32, #tpu.memory_space<vmem>>, vector<1x32x64xf32>
    %62 = vector.shape_cast %61 : vector<1x32x64xf32> to vector<32x64xf32>
    %cst_64 = arith.constant dense<0.000000e+00> : vector<128x64xf32>
    %63 = tpu.matmul %60, %62, %cst_64 {dimension_numbers = #tpu.dot_dimension_numbers<[1], [0], [0], [1], [0, 0, 1, 1], [], []>} : vector<128x32xf32>, vector<32x64xf32>, vector<128x64xf32> -> vector<128x64xf32>
    %64 = arith.addf %53, %63 : vector<128x64xf32>
    %c0_65 = arith.constant 0 : index
    %c1_66 = arith.constant 1 : index
    %c1_67 = arith.constant 1 : index
    %c0_68 = arith.constant 0 : index
    %65 = vector.load %arg1[%c0_65, %c1_66, %c1_67, %c0_68] : memref<2x12x12x32xf32, #tpu.memory_space<vmem>>, vector<1x8x8x32xf32>
    %66 = vector.shape_cast %65 : vector<1x8x8x32xf32> to vector<8x8x32xf32>
    %67 = vector.shape_cast %66 : vector<8x8x32xf32> to vector<64x32xf32>
    %c1_69 = arith.constant 1 : index
    %c1_70 = arith.constant 1 : index
    %c1_71 = arith.constant 1 : index
    %c0_72 = arith.constant 0 : index
    %68 = vector.load %arg1[%c1_69, %c1_70, %c1_71, %c0_72] : memref<2x12x12x32xf32, #tpu.memory_space<vmem>>, vector<1x8x8x32xf32>
    %69 = vector.shape_cast %68 : vector<1x8x8x32xf32> to vector<8x8x32xf32>
    %70 = vector.shape_cast %69 : vector<8x8x32xf32> to vector<64x32xf32>
    %71 = tpu.concatenate %67, %70 in 0 : vector<64x32xf32>, vector<64x32xf32> -> vector<128x32xf32>
    %c6 = arith.constant 6 : index
    %c0_73 = arith.constant 0 : index
    %c0_74 = arith.constant 0 : index
    %72 = vector.load %arg2[%c6, %c0_73, %c0_74] : memref<25x32x64xf32, #tpu.memory_space<vmem>>, vector<1x32x64xf32>
    %73 = vector.shape_cast %72 : vector<1x32x64xf32> to vector<32x64xf32>
    %cst_75 = arith.constant dense<0.000000e+00> : vector<128x64xf32>
    %74 = tpu.matmul %71, %73, %cst_75 {dimension_numbers = #tpu.dot_dimension_numbers<[1], [0], [0], [1], [0, 0, 1, 1], [], []>} : vector<128x32xf32>, vector<32x64xf32>, vector<128x64xf32> -> vector<128x64xf32>
    %75 = arith.addf %64, %74 : vector<128x64xf32>
    %c0_76 = arith.constant 0 : index
    %c1_77 = arith.constant 1 : index
    %c2_78 = arith.constant 2 : index
    %c0_79 = arith.constant 0 : index
    %76 = vector.load %arg1[%c0_76, %c1_77, %c2_78, %c0_79] : memref<2x12x12x32xf32, #tpu.memory_space<vmem>>, vector<1x8x8x32xf32>
    %77 = vector.shape_cast %76 : vector<1x8x8x32xf32> to vector<8x8x32xf32>
    %78 = vector.shape_cast %77 : vector<8x8x32xf32> to vector<64x32xf32>
    %c1_80 = arith.constant 1 : index
    %c1_81 = arith.constant 1 : index
    %c2_82 = arith.constant 2 : index
    %c0_83 = arith.constant 0 : index
    %79 = vector.load %arg1[%c1_80, %c1_81, %c2_82, %c0_83] : memref<2x12x12x32xf32, #tpu.memory_space<vmem>>, vector<1x8x8x32xf32>
    %80 = vector.shape_cast %79 : vector<1x8x8x32xf32> to vector<8x8x32xf32>
    %81 = vector.shape_cast %80 : vector<8x8x32xf32> to vector<64x32xf32>
    %82 = tpu.concatenate %78, %81 in 0 : vector<64x32xf32>, vector<64x32xf32> -> vector<128x32xf32>
    %c7 = arith.constant 7 : index
    %c0_84 = arith.constant 0 : index
    %c0_85 = arith.constant 0 : index
    %83 = vector.load %arg2[%c7, %c0_84, %c0_85] : memref<25x32x64xf32, #tpu.memory_space<vmem>>, vector<1x32x64xf32>
    %84 = vector.shape_cast %83 : vector<1x32x64xf32> to vector<32x64xf32>
    %cst_86 = arith.constant dense<0.000000e+00> : vector<128x64xf32>
    %85 = tpu.matmul %82, %84, %cst_86 {dimension_numbers = #tpu.dot_dimension_numbers<[1], [0], [0], [1], [0, 0, 1, 1], [], []>} : vector<128x32xf32>, vector<32x64xf32>, vector<128x64xf32> -> vector<128x64xf32>
    %86 = arith.addf %75, %85 : vector<128x64xf32>
    %c0_87 = arith.constant 0 : index
    %c1_88 = arith.constant 1 : index
    %c3_89 = arith.constant 3 : index
    %c0_90 = arith.constant 0 : index
    %87 = vector.load %arg1[%c0_87, %c1_88, %c3_89, %c0_90] : memref<2x12x12x32xf32, #tpu.memory_space<vmem>>, vector<1x8x8x32xf32>
    %88 = vector.shape_cast %87 : vector<1x8x8x32xf32> to vector<8x8x32xf32>
    %89 = vector.shape_cast %88 : vector<8x8x32xf32> to vector<64x32xf32>
    %c1_91 = arith.constant 1 : index
    %c1_92 = arith.constant 1 : index
    %c3_93 = arith.constant 3 : index
    %c0_94 = arith.constant 0 : index
    %90 = vector.load %arg1[%c1_91, %c1_92, %c3_93, %c0_94] : memref<2x12x12x32xf32, #tpu.memory_space<vmem>>, vector<1x8x8x32xf32>
    %91 = vector.shape_cast %90 : vector<1x8x8x32xf32> to vector<8x8x32xf32>
    %92 = vector.shape_cast %91 : vector<8x8x32xf32> to vector<64x32xf32>
    %93 = tpu.concatenate %89, %92 in 0 : vector<64x32xf32>, vector<64x32xf32> -> vector<128x32xf32>
    %c8 = arith.constant 8 : index
    %c0_95 = arith.constant 0 : index
    %c0_96 = arith.constant 0 : index
    %94 = vector.load %arg2[%c8, %c0_95, %c0_96] : memref<25x32x64xf32, #tpu.memory_space<vmem>>, vector<1x32x64xf32>
    %95 = vector.shape_cast %94 : vector<1x32x64xf32> to vector<32x64xf32>
    %cst_97 = arith.constant dense<0.000000e+00> : vector<128x64xf32>
    %96 = tpu.matmul %93, %95, %cst_97 {dimension_numbers = #tpu.dot_dimension_numbers<[1], [0], [0], [1], [0, 0, 1, 1], [], []>} : vector<128x32xf32>, vector<32x64xf32>, vector<128x64xf32> -> vector<128x64xf32>
    %97 = arith.addf %86, %96 : vector<128x64xf32>
    %c0_98 = arith.constant 0 : index
    %c1_99 = arith.constant 1 : index
    %c4_100 = arith.constant 4 : index
    %c0_101 = arith.constant 0 : index
    %98 = vector.load %arg1[%c0_98, %c1_99, %c4_100, %c0_101] : memref<2x12x12x32xf32, #tpu.memory_space<vmem>>, vector<1x8x8x32xf32>
    %99 = vector.shape_cast %98 : vector<1x8x8x32xf32> to vector<8x8x32xf32>
    %100 = vector.shape_cast %99 : vector<8x8x32xf32> to vector<64x32xf32>
    %c1_102 = arith.constant 1 : index
    %c1_103 = arith.constant 1 : index
    %c4_104 = arith.constant 4 : index
    %c0_105 = arith.constant 0 : index
    %101 = vector.load %arg1[%c1_102, %c1_103, %c4_104, %c0_105] : memref<2x12x12x32xf32, #tpu.memory_space<vmem>>, vector<1x8x8x32xf32>
    %102 = vector.shape_cast %101 : vector<1x8x8x32xf32> to vector<8x8x32xf32>
    %103 = vector.shape_cast %102 : vector<8x8x32xf32> to vector<64x32xf32>
    %104 = tpu.concatenate %100, %103 in 0 : vector<64x32xf32>, vector<64x32xf32> -> vector<128x32xf32>
    %c9 = arith.constant 9 : index
    %c0_106 = arith.constant 0 : index
    %c0_107 = arith.constant 0 : index
    %105 = vector.load %arg2[%c9, %c0_106, %c0_107] : memref<25x32x64xf32, #tpu.memory_space<vmem>>, vector<1x32x64xf32>
    %106 = vector.shape_cast %105 : vector<1x32x64xf32> to vector<32x64xf32>
    %cst_108 = arith.constant dense<0.000000e+00> : vector<128x64xf32>
    %107 = tpu.matmul %104, %106, %cst_108 {dimension_numbers = #tpu.dot_dimension_numbers<[1], [0], [0], [1], [0, 0, 1, 1], [], []>} : vector<128x32xf32>, vector<32x64xf32>, vector<128x64xf32> -> vector<128x64xf32>
    %108 = arith.addf %97, %107 : vector<128x64xf32>
    %c0_109 = arith.constant 0 : index
    %c2_110 = arith.constant 2 : index
    %c0_111 = arith.constant 0 : index
    %c0_112 = arith.constant 0 : index
    %109 = vector.load %arg1[%c0_109, %c2_110, %c0_111, %c0_112] : memref<2x12x12x32xf32, #tpu.memory_space<vmem>>, vector<1x8x8x32xf32>
    %110 = vector.shape_cast %109 : vector<1x8x8x32xf32> to vector<8x8x32xf32>
    %111 = vector.shape_cast %110 : vector<8x8x32xf32> to vector<64x32xf32>
    %c1_113 = arith.constant 1 : index
    %c2_114 = arith.constant 2 : index
    %c0_115 = arith.constant 0 : index
    %c0_116 = arith.constant 0 : index
    %112 = vector.load %arg1[%c1_113, %c2_114, %c0_115, %c0_116] : memref<2x12x12x32xf32, #tpu.memory_space<vmem>>, vector<1x8x8x32xf32>
    %113 = vector.shape_cast %112 : vector<1x8x8x32xf32> to vector<8x8x32xf32>
    %114 = vector.shape_cast %113 : vector<8x8x32xf32> to vector<64x32xf32>
    %115 = tpu.concatenate %111, %114 in 0 : vector<64x32xf32>, vector<64x32xf32> -> vector<128x32xf32>
    %c10 = arith.constant 10 : index
    %c0_117 = arith.constant 0 : index
    %c0_118 = arith.constant 0 : index
    %116 = vector.load %arg2[%c10, %c0_117, %c0_118] : memref<25x32x64xf32, #tpu.memory_space<vmem>>, vector<1x32x64xf32>
    %117 = vector.shape_cast %116 : vector<1x32x64xf32> to vector<32x64xf32>
    %cst_119 = arith.constant dense<0.000000e+00> : vector<128x64xf32>
    %118 = tpu.matmul %115, %117, %cst_119 {dimension_numbers = #tpu.dot_dimension_numbers<[1], [0], [0], [1], [0, 0, 1, 1], [], []>} : vector<128x32xf32>, vector<32x64xf32>, vector<128x64xf32> -> vector<128x64xf32>
    %119 = arith.addf %108, %118 : vector<128x64xf32>
    %c0_120 = arith.constant 0 : index
    %c2_121 = arith.constant 2 : index
    %c1_122 = arith.constant 1 : index
    %c0_123 = arith.constant 0 : index
    %120 = vector.load %arg1[%c0_120, %c2_121, %c1_122, %c0_123] : memref<2x12x12x32xf32, #tpu.memory_space<vmem>>, vector<1x8x8x32xf32>
    %121 = vector.shape_cast %120 : vector<1x8x8x32xf32> to vector<8x8x32xf32>
    %122 = vector.shape_cast %121 : vector<8x8x32xf32> to vector<64x32xf32>
    %c1_124 = arith.constant 1 : index
    %c2_125 = arith.constant 2 : index
    %c1_126 = arith.constant 1 : index
    %c0_127 = arith.constant 0 : index
    %123 = vector.load %arg1[%c1_124, %c2_125, %c1_126, %c0_127] : memref<2x12x12x32xf32, #tpu.memory_space<vmem>>, vector<1x8x8x32xf32>
    %124 = vector.shape_cast %123 : vector<1x8x8x32xf32> to vector<8x8x32xf32>
    %125 = vector.shape_cast %124 : vector<8x8x32xf32> to vector<64x32xf32>
    %126 = tpu.concatenate %122, %125 in 0 : vector<64x32xf32>, vector<64x32xf32> -> vector<128x32xf32>
    %c11 = arith.constant 11 : index
    %c0_128 = arith.constant 0 : index
    %c0_129 = arith.constant 0 : index
    %127 = vector.load %arg2[%c11, %c0_128, %c0_129] : memref<25x32x64xf32, #tpu.memory_space<vmem>>, vector<1x32x64xf32>
    %128 = vector.shape_cast %127 : vector<1x32x64xf32> to vector<32x64xf32>
    %cst_130 = arith.constant dense<0.000000e+00> : vector<128x64xf32>
    %129 = tpu.matmul %126, %128, %cst_130 {dimension_numbers = #tpu.dot_dimension_numbers<[1], [0], [0], [1], [0, 0, 1, 1], [], []>} : vector<128x32xf32>, vector<32x64xf32>, vector<128x64xf32> -> vector<128x64xf32>
    %130 = arith.addf %119, %129 : vector<128x64xf32>
    %c0_131 = arith.constant 0 : index
    %c2_132 = arith.constant 2 : index
    %c2_133 = arith.constant 2 : index
    %c0_134 = arith.constant 0 : index
    %131 = vector.load %arg1[%c0_131, %c2_132, %c2_133, %c0_134] : memref<2x12x12x32xf32, #tpu.memory_space<vmem>>, vector<1x8x8x32xf32>
    %132 = vector.shape_cast %131 : vector<1x8x8x32xf32> to vector<8x8x32xf32>
    %133 = vector.shape_cast %132 : vector<8x8x32xf32> to vector<64x32xf32>
    %c1_135 = arith.constant 1 : index
    %c2_136 = arith.constant 2 : index
    %c2_137 = arith.constant 2 : index
    %c0_138 = arith.constant 0 : index
    %134 = vector.load %arg1[%c1_135, %c2_136, %c2_137, %c0_138] : memref<2x12x12x32xf32, #tpu.memory_space<vmem>>, vector<1x8x8x32xf32>
    %135 = vector.shape_cast %134 : vector<1x8x8x32xf32> to vector<8x8x32xf32>
    %136 = vector.shape_cast %135 : vector<8x8x32xf32> to vector<64x32xf32>
    %137 = tpu.concatenate %133, %136 in 0 : vector<64x32xf32>, vector<64x32xf32> -> vector<128x32xf32>
    %c12 = arith.constant 12 : index
    %c0_139 = arith.constant 0 : index
    %c0_140 = arith.constant 0 : index
    %138 = vector.load %arg2[%c12, %c0_139, %c0_140] : memref<25x32x64xf32, #tpu.memory_space<vmem>>, vector<1x32x64xf32>
    %139 = vector.shape_cast %138 : vector<1x32x64xf32> to vector<32x64xf32>
    %cst_141 = arith.constant dense<0.000000e+00> : vector<128x64xf32>
    %140 = tpu.matmul %137, %139, %cst_141 {dimension_numbers = #tpu.dot_dimension_numbers<[1], [0], [0], [1], [0, 0, 1, 1], [], []>} : vector<128x32xf32>, vector<32x64xf32>, vector<128x64xf32> -> vector<128x64xf32>
    %141 = arith.addf %130, %140 : vector<128x64xf32>
    %c0_142 = arith.constant 0 : index
    %c2_143 = arith.constant 2 : index
    %c3_144 = arith.constant 3 : index
    %c0_145 = arith.constant 0 : index
    %142 = vector.load %arg1[%c0_142, %c2_143, %c3_144, %c0_145] : memref<2x12x12x32xf32, #tpu.memory_space<vmem>>, vector<1x8x8x32xf32>
    %143 = vector.shape_cast %142 : vector<1x8x8x32xf32> to vector<8x8x32xf32>
    %144 = vector.shape_cast %143 : vector<8x8x32xf32> to vector<64x32xf32>
    %c1_146 = arith.constant 1 : index
    %c2_147 = arith.constant 2 : index
    %c3_148 = arith.constant 3 : index
    %c0_149 = arith.constant 0 : index
    %145 = vector.load %arg1[%c1_146, %c2_147, %c3_148, %c0_149] : memref<2x12x12x32xf32, #tpu.memory_space<vmem>>, vector<1x8x8x32xf32>
    %146 = vector.shape_cast %145 : vector<1x8x8x32xf32> to vector<8x8x32xf32>
    %147 = vector.shape_cast %146 : vector<8x8x32xf32> to vector<64x32xf32>
    %148 = tpu.concatenate %144, %147 in 0 : vector<64x32xf32>, vector<64x32xf32> -> vector<128x32xf32>
    %c13 = arith.constant 13 : index
    %c0_150 = arith.constant 0 : index
    %c0_151 = arith.constant 0 : index
    %149 = vector.load %arg2[%c13, %c0_150, %c0_151] : memref<25x32x64xf32, #tpu.memory_space<vmem>>, vector<1x32x64xf32>
    %150 = vector.shape_cast %149 : vector<1x32x64xf32> to vector<32x64xf32>
    %cst_152 = arith.constant dense<0.000000e+00> : vector<128x64xf32>
    %151 = tpu.matmul %148, %150, %cst_152 {dimension_numbers = #tpu.dot_dimension_numbers<[1], [0], [0], [1], [0, 0, 1, 1], [], []>} : vector<128x32xf32>, vector<32x64xf32>, vector<128x64xf32> -> vector<128x64xf32>
    %152 = arith.addf %141, %151 : vector<128x64xf32>
    %c0_153 = arith.constant 0 : index
    %c2_154 = arith.constant 2 : index
    %c4_155 = arith.constant 4 : index
    %c0_156 = arith.constant 0 : index
    %153 = vector.load %arg1[%c0_153, %c2_154, %c4_155, %c0_156] : memref<2x12x12x32xf32, #tpu.memory_space<vmem>>, vector<1x8x8x32xf32>
    %154 = vector.shape_cast %153 : vector<1x8x8x32xf32> to vector<8x8x32xf32>
    %155 = vector.shape_cast %154 : vector<8x8x32xf32> to vector<64x32xf32>
    %c1_157 = arith.constant 1 : index
    %c2_158 = arith.constant 2 : index
    %c4_159 = arith.constant 4 : index
    %c0_160 = arith.constant 0 : index
    %156 = vector.load %arg1[%c1_157, %c2_158, %c4_159, %c0_160] : memref<2x12x12x32xf32, #tpu.memory_space<vmem>>, vector<1x8x8x32xf32>
    %157 = vector.shape_cast %156 : vector<1x8x8x32xf32> to vector<8x8x32xf32>
    %158 = vector.shape_cast %157 : vector<8x8x32xf32> to vector<64x32xf32>
    %159 = tpu.concatenate %155, %158 in 0 : vector<64x32xf32>, vector<64x32xf32> -> vector<128x32xf32>
    %c14 = arith.constant 14 : index
    %c0_161 = arith.constant 0 : index
    %c0_162 = arith.constant 0 : index
    %160 = vector.load %arg2[%c14, %c0_161, %c0_162] : memref<25x32x64xf32, #tpu.memory_space<vmem>>, vector<1x32x64xf32>
    %161 = vector.shape_cast %160 : vector<1x32x64xf32> to vector<32x64xf32>
    %cst_163 = arith.constant dense<0.000000e+00> : vector<128x64xf32>
    %162 = tpu.matmul %159, %161, %cst_163 {dimension_numbers = #tpu.dot_dimension_numbers<[1], [0], [0], [1], [0, 0, 1, 1], [], []>} : vector<128x32xf32>, vector<32x64xf32>, vector<128x64xf32> -> vector<128x64xf32>
    %163 = arith.addf %152, %162 : vector<128x64xf32>
    %c0_164 = arith.constant 0 : index
    %c3_165 = arith.constant 3 : index
    %c0_166 = arith.constant 0 : index
    %c0_167 = arith.constant 0 : index
    %164 = vector.load %arg1[%c0_164, %c3_165, %c0_166, %c0_167] : memref<2x12x12x32xf32, #tpu.memory_space<vmem>>, vector<1x8x8x32xf32>
    %165 = vector.shape_cast %164 : vector<1x8x8x32xf32> to vector<8x8x32xf32>
    %166 = vector.shape_cast %165 : vector<8x8x32xf32> to vector<64x32xf32>
    %c1_168 = arith.constant 1 : index
    %c3_169 = arith.constant 3 : index
    %c0_170 = arith.constant 0 : index
    %c0_171 = arith.constant 0 : index
    %167 = vector.load %arg1[%c1_168, %c3_169, %c0_170, %c0_171] : memref<2x12x12x32xf32, #tpu.memory_space<vmem>>, vector<1x8x8x32xf32>
    %168 = vector.shape_cast %167 : vector<1x8x8x32xf32> to vector<8x8x32xf32>
    %169 = vector.shape_cast %168 : vector<8x8x32xf32> to vector<64x32xf32>
    %170 = tpu.concatenate %166, %169 in 0 : vector<64x32xf32>, vector<64x32xf32> -> vector<128x32xf32>
    %c15 = arith.constant 15 : index
    %c0_172 = arith.constant 0 : index
    %c0_173 = arith.constant 0 : index
    %171 = vector.load %arg2[%c15, %c0_172, %c0_173] : memref<25x32x64xf32, #tpu.memory_space<vmem>>, vector<1x32x64xf32>
    %172 = vector.shape_cast %171 : vector<1x32x64xf32> to vector<32x64xf32>
    %cst_174 = arith.constant dense<0.000000e+00> : vector<128x64xf32>
    %173 = tpu.matmul %170, %172, %cst_174 {dimension_numbers = #tpu.dot_dimension_numbers<[1], [0], [0], [1], [0, 0, 1, 1], [], []>} : vector<128x32xf32>, vector<32x64xf32>, vector<128x64xf32> -> vector<128x64xf32>
    %174 = arith.addf %163, %173 : vector<128x64xf32>
    %c0_175 = arith.constant 0 : index
    %c3_176 = arith.constant 3 : index
    %c1_177 = arith.constant 1 : index
    %c0_178 = arith.constant 0 : index
    %175 = vector.load %arg1[%c0_175, %c3_176, %c1_177, %c0_178] : memref<2x12x12x32xf32, #tpu.memory_space<vmem>>, vector<1x8x8x32xf32>
    %176 = vector.shape_cast %175 : vector<1x8x8x32xf32> to vector<8x8x32xf32>
    %177 = vector.shape_cast %176 : vector<8x8x32xf32> to vector<64x32xf32>
    %c1_179 = arith.constant 1 : index
    %c3_180 = arith.constant 3 : index
    %c1_181 = arith.constant 1 : index
    %c0_182 = arith.constant 0 : index
    %178 = vector.load %arg1[%c1_179, %c3_180, %c1_181, %c0_182] : memref<2x12x12x32xf32, #tpu.memory_space<vmem>>, vector<1x8x8x32xf32>
    %179 = vector.shape_cast %178 : vector<1x8x8x32xf32> to vector<8x8x32xf32>
    %180 = vector.shape_cast %179 : vector<8x8x32xf32> to vector<64x32xf32>
    %181 = tpu.concatenate %177, %180 in 0 : vector<64x32xf32>, vector<64x32xf32> -> vector<128x32xf32>
    %c16 = arith.constant 16 : index
    %c0_183 = arith.constant 0 : index
    %c0_184 = arith.constant 0 : index
    %182 = vector.load %arg2[%c16, %c0_183, %c0_184] : memref<25x32x64xf32, #tpu.memory_space<vmem>>, vector<1x32x64xf32>
    %183 = vector.shape_cast %182 : vector<1x32x64xf32> to vector<32x64xf32>
    %cst_185 = arith.constant dense<0.000000e+00> : vector<128x64xf32>
    %184 = tpu.matmul %181, %183, %cst_185 {dimension_numbers = #tpu.dot_dimension_numbers<[1], [0], [0], [1], [0, 0, 1, 1], [], []>} : vector<128x32xf32>, vector<32x64xf32>, vector<128x64xf32> -> vector<128x64xf32>
    %185 = arith.addf %174, %184 : vector<128x64xf32>
    %c0_186 = arith.constant 0 : index
    %c3_187 = arith.constant 3 : index
    %c2_188 = arith.constant 2 : index
    %c0_189 = arith.constant 0 : index
    %186 = vector.load %arg1[%c0_186, %c3_187, %c2_188, %c0_189] : memref<2x12x12x32xf32, #tpu.memory_space<vmem>>, vector<1x8x8x32xf32>
    %187 = vector.shape_cast %186 : vector<1x8x8x32xf32> to vector<8x8x32xf32>
    %188 = vector.shape_cast %187 : vector<8x8x32xf32> to vector<64x32xf32>
    %c1_190 = arith.constant 1 : index
    %c3_191 = arith.constant 3 : index
    %c2_192 = arith.constant 2 : index
    %c0_193 = arith.constant 0 : index
    %189 = vector.load %arg1[%c1_190, %c3_191, %c2_192, %c0_193] : memref<2x12x12x32xf32, #tpu.memory_space<vmem>>, vector<1x8x8x32xf32>
    %190 = vector.shape_cast %189 : vector<1x8x8x32xf32> to vector<8x8x32xf32>
    %191 = vector.shape_cast %190 : vector<8x8x32xf32> to vector<64x32xf32>
    %192 = tpu.concatenate %188, %191 in 0 : vector<64x32xf32>, vector<64x32xf32> -> vector<128x32xf32>
    %c17 = arith.constant 17 : index
    %c0_194 = arith.constant 0 : index
    %c0_195 = arith.constant 0 : index
    %193 = vector.load %arg2[%c17, %c0_194, %c0_195] : memref<25x32x64xf32, #tpu.memory_space<vmem>>, vector<1x32x64xf32>
    %194 = vector.shape_cast %193 : vector<1x32x64xf32> to vector<32x64xf32>
    %cst_196 = arith.constant dense<0.000000e+00> : vector<128x64xf32>
    %195 = tpu.matmul %192, %194, %cst_196 {dimension_numbers = #tpu.dot_dimension_numbers<[1], [0], [0], [1], [0, 0, 1, 1], [], []>} : vector<128x32xf32>, vector<32x64xf32>, vector<128x64xf32> -> vector<128x64xf32>
    %196 = arith.addf %185, %195 : vector<128x64xf32>
    %c0_197 = arith.constant 0 : index
    %c3_198 = arith.constant 3 : index
    %c3_199 = arith.constant 3 : index
    %c0_200 = arith.constant 0 : index
    %197 = vector.load %arg1[%c0_197, %c3_198, %c3_199, %c0_200] : memref<2x12x12x32xf32, #tpu.memory_space<vmem>>, vector<1x8x8x32xf32>
    %198 = vector.shape_cast %197 : vector<1x8x8x32xf32> to vector<8x8x32xf32>
    %199 = vector.shape_cast %198 : vector<8x8x32xf32> to vector<64x32xf32>
    %c1_201 = arith.constant 1 : index
    %c3_202 = arith.constant 3 : index
    %c3_203 = arith.constant 3 : index
    %c0_204 = arith.constant 0 : index
    %200 = vector.load %arg1[%c1_201, %c3_202, %c3_203, %c0_204] : memref<2x12x12x32xf32, #tpu.memory_space<vmem>>, vector<1x8x8x32xf32>
    %201 = vector.shape_cast %200 : vector<1x8x8x32xf32> to vector<8x8x32xf32>
    %202 = vector.shape_cast %201 : vector<8x8x32xf32> to vector<64x32xf32>
    %203 = tpu.concatenate %199, %202 in 0 : vector<64x32xf32>, vector<64x32xf32> -> vector<128x32xf32>
    %c18 = arith.constant 18 : index
    %c0_205 = arith.constant 0 : index
    %c0_206 = arith.constant 0 : index
    %204 = vector.load %arg2[%c18, %c0_205, %c0_206] : memref<25x32x64xf32, #tpu.memory_space<vmem>>, vector<1x32x64xf32>
    %205 = vector.shape_cast %204 : vector<1x32x64xf32> to vector<32x64xf32>
    %cst_207 = arith.constant dense<0.000000e+00> : vector<128x64xf32>
    %206 = tpu.matmul %203, %205, %cst_207 {dimension_numbers = #tpu.dot_dimension_numbers<[1], [0], [0], [1], [0, 0, 1, 1], [], []>} : vector<128x32xf32>, vector<32x64xf32>, vector<128x64xf32> -> vector<128x64xf32>
    %207 = arith.addf %196, %206 : vector<128x64xf32>
    %c0_208 = arith.constant 0 : index
    %c3_209 = arith.constant 3 : index
    %c4_210 = arith.constant 4 : index
    %c0_211 = arith.constant 0 : index
    %208 = vector.load %arg1[%c0_208, %c3_209, %c4_210, %c0_211] : memref<2x12x12x32xf32, #tpu.memory_space<vmem>>, vector<1x8x8x32xf32>
    %209 = vector.shape_cast %208 : vector<1x8x8x32xf32> to vector<8x8x32xf32>
    %210 = vector.shape_cast %209 : vector<8x8x32xf32> to vector<64x32xf32>
    %c1_212 = arith.constant 1 : index
    %c3_213 = arith.constant 3 : index
    %c4_214 = arith.constant 4 : index
    %c0_215 = arith.constant 0 : index
    %211 = vector.load %arg1[%c1_212, %c3_213, %c4_214, %c0_215] : memref<2x12x12x32xf32, #tpu.memory_space<vmem>>, vector<1x8x8x32xf32>
    %212 = vector.shape_cast %211 : vector<1x8x8x32xf32> to vector<8x8x32xf32>
    %213 = vector.shape_cast %212 : vector<8x8x32xf32> to vector<64x32xf32>
    %214 = tpu.concatenate %210, %213 in 0 : vector<64x32xf32>, vector<64x32xf32> -> vector<128x32xf32>
    %c19 = arith.constant 19 : index
    %c0_216 = arith.constant 0 : index
    %c0_217 = arith.constant 0 : index
    %215 = vector.load %arg2[%c19, %c0_216, %c0_217] : memref<25x32x64xf32, #tpu.memory_space<vmem>>, vector<1x32x64xf32>
    %216 = vector.shape_cast %215 : vector<1x32x64xf32> to vector<32x64xf32>
    %cst_218 = arith.constant dense<0.000000e+00> : vector<128x64xf32>
    %217 = tpu.matmul %214, %216, %cst_218 {dimension_numbers = #tpu.dot_dimension_numbers<[1], [0], [0], [1], [0, 0, 1, 1], [], []>} : vector<128x32xf32>, vector<32x64xf32>, vector<128x64xf32> -> vector<128x64xf32>
    %218 = arith.addf %207, %217 : vector<128x64xf32>
    %c0_219 = arith.constant 0 : index
    %c4_220 = arith.constant 4 : index
    %c0_221 = arith.constant 0 : index
    %c0_222 = arith.constant 0 : index
    %219 = vector.load %arg1[%c0_219, %c4_220, %c0_221, %c0_222] : memref<2x12x12x32xf32, #tpu.memory_space<vmem>>, vector<1x8x8x32xf32>
    %220 = vector.shape_cast %219 : vector<1x8x8x32xf32> to vector<8x8x32xf32>
    %221 = vector.shape_cast %220 : vector<8x8x32xf32> to vector<64x32xf32>
    %c1_223 = arith.constant 1 : index
    %c4_224 = arith.constant 4 : index
    %c0_225 = arith.constant 0 : index
    %c0_226 = arith.constant 0 : index
    %222 = vector.load %arg1[%c1_223, %c4_224, %c0_225, %c0_226] : memref<2x12x12x32xf32, #tpu.memory_space<vmem>>, vector<1x8x8x32xf32>
    %223 = vector.shape_cast %222 : vector<1x8x8x32xf32> to vector<8x8x32xf32>
    %224 = vector.shape_cast %223 : vector<8x8x32xf32> to vector<64x32xf32>
    %225 = tpu.concatenate %221, %224 in 0 : vector<64x32xf32>, vector<64x32xf32> -> vector<128x32xf32>
    %c20 = arith.constant 20 : index
    %c0_227 = arith.constant 0 : index
    %c0_228 = arith.constant 0 : index
    %226 = vector.load %arg2[%c20, %c0_227, %c0_228] : memref<25x32x64xf32, #tpu.memory_space<vmem>>, vector<1x32x64xf32>
    %227 = vector.shape_cast %226 : vector<1x32x64xf32> to vector<32x64xf32>
    %cst_229 = arith.constant dense<0.000000e+00> : vector<128x64xf32>
    %228 = tpu.matmul %225, %227, %cst_229 {dimension_numbers = #tpu.dot_dimension_numbers<[1], [0], [0], [1], [0, 0, 1, 1], [], []>} : vector<128x32xf32>, vector<32x64xf32>, vector<128x64xf32> -> vector<128x64xf32>
    %229 = arith.addf %218, %228 : vector<128x64xf32>
    %c0_230 = arith.constant 0 : index
    %c4_231 = arith.constant 4 : index
    %c1_232 = arith.constant 1 : index
    %c0_233 = arith.constant 0 : index
    %230 = vector.load %arg1[%c0_230, %c4_231, %c1_232, %c0_233] : memref<2x12x12x32xf32, #tpu.memory_space<vmem>>, vector<1x8x8x32xf32>
    %231 = vector.shape_cast %230 : vector<1x8x8x32xf32> to vector<8x8x32xf32>
    %232 = vector.shape_cast %231 : vector<8x8x32xf32> to vector<64x32xf32>
    %c1_234 = arith.constant 1 : index
    %c4_235 = arith.constant 4 : index
    %c1_236 = arith.constant 1 : index
    %c0_237 = arith.constant 0 : index
    %233 = vector.load %arg1[%c1_234, %c4_235, %c1_236, %c0_237] : memref<2x12x12x32xf32, #tpu.memory_space<vmem>>, vector<1x8x8x32xf32>
    %234 = vector.shape_cast %233 : vector<1x8x8x32xf32> to vector<8x8x32xf32>
    %235 = vector.shape_cast %234 : vector<8x8x32xf32> to vector<64x32xf32>
    %236 = tpu.concatenate %232, %235 in 0 : vector<64x32xf32>, vector<64x32xf32> -> vector<128x32xf32>
    %c21 = arith.constant 21 : index
    %c0_238 = arith.constant 0 : index
    %c0_239 = arith.constant 0 : index
    %237 = vector.load %arg2[%c21, %c0_238, %c0_239] : memref<25x32x64xf32, #tpu.memory_space<vmem>>, vector<1x32x64xf32>
    %238 = vector.shape_cast %237 : vector<1x32x64xf32> to vector<32x64xf32>
    %cst_240 = arith.constant dense<0.000000e+00> : vector<128x64xf32>
    %239 = tpu.matmul %236, %238, %cst_240 {dimension_numbers = #tpu.dot_dimension_numbers<[1], [0], [0], [1], [0, 0, 1, 1], [], []>} : vector<128x32xf32>, vector<32x64xf32>, vector<128x64xf32> -> vector<128x64xf32>
    %240 = arith.addf %229, %239 : vector<128x64xf32>
    %c0_241 = arith.constant 0 : index
    %c4_242 = arith.constant 4 : index
    %c2_243 = arith.constant 2 : index
    %c0_244 = arith.constant 0 : index
    %241 = vector.load %arg1[%c0_241, %c4_242, %c2_243, %c0_244] : memref<2x12x12x32xf32, #tpu.memory_space<vmem>>, vector<1x8x8x32xf32>
    %242 = vector.shape_cast %241 : vector<1x8x8x32xf32> to vector<8x8x32xf32>
    %243 = vector.shape_cast %242 : vector<8x8x32xf32> to vector<64x32xf32>
    %c1_245 = arith.constant 1 : index
    %c4_246 = arith.constant 4 : index
    %c2_247 = arith.constant 2 : index
    %c0_248 = arith.constant 0 : index
    %244 = vector.load %arg1[%c1_245, %c4_246, %c2_247, %c0_248] : memref<2x12x12x32xf32, #tpu.memory_space<vmem>>, vector<1x8x8x32xf32>
    %245 = vector.shape_cast %244 : vector<1x8x8x32xf32> to vector<8x8x32xf32>
    %246 = vector.shape_cast %245 : vector<8x8x32xf32> to vector<64x32xf32>
    %247 = tpu.concatenate %243, %246 in 0 : vector<64x32xf32>, vector<64x32xf32> -> vector<128x32xf32>
    %c22 = arith.constant 22 : index
    %c0_249 = arith.constant 0 : index
    %c0_250 = arith.constant 0 : index
    %248 = vector.load %arg2[%c22, %c0_249, %c0_250] : memref<25x32x64xf32, #tpu.memory_space<vmem>>, vector<1x32x64xf32>
    %249 = vector.shape_cast %248 : vector<1x32x64xf32> to vector<32x64xf32>
    %cst_251 = arith.constant dense<0.000000e+00> : vector<128x64xf32>
    %250 = tpu.matmul %247, %249, %cst_251 {dimension_numbers = #tpu.dot_dimension_numbers<[1], [0], [0], [1], [0, 0, 1, 1], [], []>} : vector<128x32xf32>, vector<32x64xf32>, vector<128x64xf32> -> vector<128x64xf32>
    %251 = arith.addf %240, %250 : vector<128x64xf32>
    %c0_252 = arith.constant 0 : index
    %c4_253 = arith.constant 4 : index
    %c3_254 = arith.constant 3 : index
    %c0_255 = arith.constant 0 : index
    %252 = vector.load %arg1[%c0_252, %c4_253, %c3_254, %c0_255] : memref<2x12x12x32xf32, #tpu.memory_space<vmem>>, vector<1x8x8x32xf32>
    %253 = vector.shape_cast %252 : vector<1x8x8x32xf32> to vector<8x8x32xf32>
    %254 = vector.shape_cast %253 : vector<8x8x32xf32> to vector<64x32xf32>
    %c1_256 = arith.constant 1 : index
    %c4_257 = arith.constant 4 : index
    %c3_258 = arith.constant 3 : index
    %c0_259 = arith.constant 0 : index
    %255 = vector.load %arg1[%c1_256, %c4_257, %c3_258, %c0_259] : memref<2x12x12x32xf32, #tpu.memory_space<vmem>>, vector<1x8x8x32xf32>
    %256 = vector.shape_cast %255 : vector<1x8x8x32xf32> to vector<8x8x32xf32>
    %257 = vector.shape_cast %256 : vector<8x8x32xf32> to vector<64x32xf32>
    %258 = tpu.concatenate %254, %257 in 0 : vector<64x32xf32>, vector<64x32xf32> -> vector<128x32xf32>
    %c23 = arith.constant 23 : index
    %c0_260 = arith.constant 0 : index
    %c0_261 = arith.constant 0 : index
    %259 = vector.load %arg2[%c23, %c0_260, %c0_261] : memref<25x32x64xf32, #tpu.memory_space<vmem>>, vector<1x32x64xf32>
    %260 = vector.shape_cast %259 : vector<1x32x64xf32> to vector<32x64xf32>
    %cst_262 = arith.constant dense<0.000000e+00> : vector<128x64xf32>
    %261 = tpu.matmul %258, %260, %cst_262 {dimension_numbers = #tpu.dot_dimension_numbers<[1], [0], [0], [1], [0, 0, 1, 1], [], []>} : vector<128x32xf32>, vector<32x64xf32>, vector<128x64xf32> -> vector<128x64xf32>
    %262 = arith.addf %251, %261 : vector<128x64xf32>
    %c0_263 = arith.constant 0 : index
    %c4_264 = arith.constant 4 : index
    %c4_265 = arith.constant 4 : index
    %c0_266 = arith.constant 0 : index
    %263 = vector.load %arg1[%c0_263, %c4_264, %c4_265, %c0_266] : memref<2x12x12x32xf32, #tpu.memory_space<vmem>>, vector<1x8x8x32xf32>
    %264 = vector.shape_cast %263 : vector<1x8x8x32xf32> to vector<8x8x32xf32>
    %265 = vector.shape_cast %264 : vector<8x8x32xf32> to vector<64x32xf32>
    %c1_267 = arith.constant 1 : index
    %c4_268 = arith.constant 4 : index
    %c4_269 = arith.constant 4 : index
    %c0_270 = arith.constant 0 : index
    %266 = vector.load %arg1[%c1_267, %c4_268, %c4_269, %c0_270] : memref<2x12x12x32xf32, #tpu.memory_space<vmem>>, vector<1x8x8x32xf32>
    %267 = vector.shape_cast %266 : vector<1x8x8x32xf32> to vector<8x8x32xf32>
    %268 = vector.shape_cast %267 : vector<8x8x32xf32> to vector<64x32xf32>
    %269 = tpu.concatenate %265, %268 in 0 : vector<64x32xf32>, vector<64x32xf32> -> vector<128x32xf32>
    %c24 = arith.constant 24 : index
    %c0_271 = arith.constant 0 : index
    %c0_272 = arith.constant 0 : index
    %270 = vector.load %arg2[%c24, %c0_271, %c0_272] : memref<25x32x64xf32, #tpu.memory_space<vmem>>, vector<1x32x64xf32>
    %271 = vector.shape_cast %270 : vector<1x32x64xf32> to vector<32x64xf32>
    %cst_273 = arith.constant dense<0.000000e+00> : vector<128x64xf32>
    %272 = tpu.matmul %269, %271, %cst_273 {dimension_numbers = #tpu.dot_dimension_numbers<[1], [0], [0], [1], [0, 0, 1, 1], [], []>} : vector<128x32xf32>, vector<32x64xf32>, vector<128x64xf32> -> vector<128x64xf32>
    %273 = arith.addf %262, %272 : vector<128x64xf32>
    %c0_274 = arith.constant 0 : index
    %c0_275 = arith.constant 0 : index
    %274 = vector.load %arg5[%c0_274, %c0_275] : memref<128x64xf32, #tpu.memory_space<vmem>>, vector<128x64xf32>
    tpu.vector_store %arg5[%c0_274, %c0_275], %273 {strides = array<i32>} : memref<128x64xf32, #tpu.memory_space<vmem>>, vector<128x64xf32>,
    %c0_276 = arith.constant 0 : index
    %c0_277 = arith.constant 0 : index
    %275 = vector.load %arg3[%c0_276, %c0_277] : memref<1x64xf32, #tpu.memory_space<vmem>>, vector<1x64xf32>
    %276 = vector.shape_cast %275 : vector<1x64xf32> to vector<1x64xf32>
    %277 = vector.broadcast %276 : vector<1x64xf32> to vector<4x64xf32>
    %c0_278 = arith.constant 0 : index
    %c0_279 = arith.constant 0 : index
    %278 = tpu.strided_load %arg5[%c0_278, %c0_279] {strides = array<i32: 2, 1>} : memref<128x64xf32, #tpu.memory_space<vmem>>, vector<4x64xf32>
    %c1_280 = arith.constant 1 : index
    %c0_281 = arith.constant 0 : index
    %279 = tpu.strided_load %arg5[%c1_280, %c0_281] {strides = array<i32: 2, 1>} : memref<128x64xf32, #tpu.memory_space<vmem>>, vector<4x64xf32>
    %c8_282 = arith.constant 8 : index
    %c0_283 = arith.constant 0 : index
    %280 = tpu.strided_load %arg5[%c8_282, %c0_283] {strides = array<i32: 2, 1>} : memref<128x64xf32, #tpu.memory_space<vmem>>, vector<4x64xf32>
    %c9_284 = arith.constant 9 : index
    %c0_285 = arith.constant 0 : index
    %281 = tpu.strided_load %arg5[%c9_284, %c0_285] {strides = array<i32: 2, 1>} : memref<128x64xf32, #tpu.memory_space<vmem>>, vector<4x64xf32>
    %282 = arith.maximumf %278, %279 : vector<4x64xf32>
    %283 = arith.maximumf %280, %281 : vector<4x64xf32>
    %284 = arith.maximumf %282, %283 : vector<4x64xf32>
    %285 = arith.addf %284, %277 : vector<4x64xf32>
    %cst_286 = arith.constant 0.000000e+00 : f32
    %286 = vector.broadcast %cst_286 : f32 to vector<4x64xf32>
    %287 = arith.maximumf %285, %286 : vector<4x64xf32>
    %c0_287 = arith.constant 0 : index
    %c0_288 = arith.constant 0 : index
    %c0_289 = arith.constant 0 : index
    %c0_290 = arith.constant 0 : index
    %288 = vector.load %arg4[%c0_287, %c0_288, %c0_289, %c0_290] : memref<2x4x4x64xf32, #tpu.memory_space<vmem>>, vector<1x1x4x64xf32>
    %289 = vector.shape_cast %288 : vector<1x1x4x64xf32> to vector<4x64xf32>
    %290 = vector.shape_cast %287 : vector<4x64xf32> to vector<1x1x4x64xf32>
    tpu.vector_store %arg4[%c0_287, %c0_288, %c0_289, %c0_290], %290 {strides = array<i32>} : memref<2x4x4x64xf32, #tpu.memory_space<vmem>>, vector<1x1x4x64xf32>,
    %c16_291 = arith.constant 16 : index
    %c0_292 = arith.constant 0 : index
    %291 = tpu.strided_load %arg5[%c16_291, %c0_292] {strides = array<i32: 2, 1>} : memref<128x64xf32, #tpu.memory_space<vmem>>, vector<4x64xf32>
    %c17_293 = arith.constant 17 : index
    %c0_294 = arith.constant 0 : index
    %292 = tpu.strided_load %arg5[%c17_293, %c0_294] {strides = array<i32: 2, 1>} : memref<128x64xf32, #tpu.memory_space<vmem>>, vector<4x64xf32>
    %c24_295 = arith.constant 24 : index
    %c0_296 = arith.constant 0 : index
    %293 = tpu.strided_load %arg5[%c24_295, %c0_296] {strides = array<i32: 2, 1>} : memref<128x64xf32, #tpu.memory_space<vmem>>, vector<4x64xf32>
    %c25 = arith.constant 25 : index
    %c0_297 = arith.constant 0 : index
    %294 = tpu.strided_load %arg5[%c25, %c0_297] {strides = array<i32: 2, 1>} : memref<128x64xf32, #tpu.memory_space<vmem>>, vector<4x64xf32>
    %295 = arith.maximumf %291, %292 : vector<4x64xf32>
    %296 = arith.maximumf %293, %294 : vector<4x64xf32>
    %297 = arith.maximumf %295, %296 : vector<4x64xf32>
    %298 = arith.addf %297, %277 : vector<4x64xf32>
    %cst_298 = arith.constant 0.000000e+00 : f32
    %299 = vector.broadcast %cst_298 : f32 to vector<4x64xf32>
    %300 = arith.maximumf %298, %299 : vector<4x64xf32>
    %c0_299 = arith.constant 0 : index
    %c1_300 = arith.constant 1 : index
    %c0_301 = arith.constant 0 : index
    %c0_302 = arith.constant 0 : index
    %301 = vector.load %arg4[%c0_299, %c1_300, %c0_301, %c0_302] : memref<2x4x4x64xf32, #tpu.memory_space<vmem>>, vector<1x1x4x64xf32>
    %302 = vector.shape_cast %301 : vector<1x1x4x64xf32> to vector<4x64xf32>
    %303 = vector.shape_cast %300 : vector<4x64xf32> to vector<1x1x4x64xf32>
    tpu.vector_store %arg4[%c0_299, %c1_300, %c0_301, %c0_302], %303 {strides = array<i32>} : memref<2x4x4x64xf32, #tpu.memory_space<vmem>>, vector<1x1x4x64xf32>,
    %c32 = arith.constant 32 : index
    %c0_303 = arith.constant 0 : index
    %304 = tpu.strided_load %arg5[%c32, %c0_303] {strides = array<i32: 2, 1>} : memref<128x64xf32, #tpu.memory_space<vmem>>, vector<4x64xf32>
    %c33 = arith.constant 33 : index
    %c0_304 = arith.constant 0 : index
    %305 = tpu.strided_load %arg5[%c33, %c0_304] {strides = array<i32: 2, 1>} : memref<128x64xf32, #tpu.memory_space<vmem>>, vector<4x64xf32>
    %c40 = arith.constant 40 : index
    %c0_305 = arith.constant 0 : index
    %306 = tpu.strided_load %arg5[%c40, %c0_305] {strides = array<i32: 2, 1>} : memref<128x64xf32, #tpu.memory_space<vmem>>, vector<4x64xf32>
    %c41 = arith.constant 41 : index
    %c0_306 = arith.constant 0 : index
    %307 = tpu.strided_load %arg5[%c41, %c0_306] {strides = array<i32: 2, 1>} : memref<128x64xf32, #tpu.memory_space<vmem>>, vector<4x64xf32>
    %308 = arith.maximumf %304, %305 : vector<4x64xf32>
    %309 = arith.maximumf %306, %307 : vector<4x64xf32>
    %310 = arith.maximumf %308, %309 : vector<4x64xf32>
    %311 = arith.addf %310, %277 : vector<4x64xf32>
    %cst_307 = arith.constant 0.000000e+00 : f32
    %312 = vector.broadcast %cst_307 : f32 to vector<4x64xf32>
    %313 = arith.maximumf %311, %312 : vector<4x64xf32>
    %c0_308 = arith.constant 0 : index
    %c2_309 = arith.constant 2 : index
    %c0_310 = arith.constant 0 : index
    %c0_311 = arith.constant 0 : index
    %314 = vector.load %arg4[%c0_308, %c2_309, %c0_310, %c0_311] : memref<2x4x4x64xf32, #tpu.memory_space<vmem>>, vector<1x1x4x64xf32>
    %315 = vector.shape_cast %314 : vector<1x1x4x64xf32> to vector<4x64xf32>
    %316 = vector.shape_cast %313 : vector<4x64xf32> to vector<1x1x4x64xf32>
    tpu.vector_store %arg4[%c0_308, %c2_309, %c0_310, %c0_311], %316 {strides = array<i32>} : memref<2x4x4x64xf32, #tpu.memory_space<vmem>>, vector<1x1x4x64xf32>,
    %c48 = arith.constant 48 : index
    %c0_312 = arith.constant 0 : index
    %317 = tpu.strided_load %arg5[%c48, %c0_312] {strides = array<i32: 2, 1>} : memref<128x64xf32, #tpu.memory_space<vmem>>, vector<4x64xf32>
    %c49 = arith.constant 49 : index
    %c0_313 = arith.constant 0 : index
    %318 = tpu.strided_load %arg5[%c49, %c0_313] {strides = array<i32: 2, 1>} : memref<128x64xf32, #tpu.memory_space<vmem>>, vector<4x64xf32>
    %c56 = arith.constant 56 : index
    %c0_314 = arith.constant 0 : index
    %319 = tpu.strided_load %arg5[%c56, %c0_314] {strides = array<i32: 2, 1>} : memref<128x64xf32, #tpu.memory_space<vmem>>, vector<4x64xf32>
    %c57 = arith.constant 57 : index
    %c0_315 = arith.constant 0 : index
    %320 = tpu.strided_load %arg5[%c57, %c0_315] {strides = array<i32: 2, 1>} : memref<128x64xf32, #tpu.memory_space<vmem>>, vector<4x64xf32>
    %321 = arith.maximumf %317, %318 : vector<4x64xf32>
    %322 = arith.maximumf %319, %320 : vector<4x64xf32>
    %323 = arith.maximumf %321, %322 : vector<4x64xf32>
    %324 = arith.addf %323, %277 : vector<4x64xf32>
    %cst_316 = arith.constant 0.000000e+00 : f32
    %325 = vector.broadcast %cst_316 : f32 to vector<4x64xf32>
    %326 = arith.maximumf %324, %325 : vector<4x64xf32>
    %c0_317 = arith.constant 0 : index
    %c3_318 = arith.constant 3 : index
    %c0_319 = arith.constant 0 : index
    %c0_320 = arith.constant 0 : index
    %327 = vector.load %arg4[%c0_317, %c3_318, %c0_319, %c0_320] : memref<2x4x4x64xf32, #tpu.memory_space<vmem>>, vector<1x1x4x64xf32>
    %328 = vector.shape_cast %327 : vector<1x1x4x64xf32> to vector<4x64xf32>
    %329 = vector.shape_cast %326 : vector<4x64xf32> to vector<1x1x4x64xf32>
    tpu.vector_store %arg4[%c0_317, %c3_318, %c0_319, %c0_320], %329 {strides = array<i32>} : memref<2x4x4x64xf32, #tpu.memory_space<vmem>>, vector<1x1x4x64xf32>,
    %c64 = arith.constant 64 : index
    %c0_321 = arith.constant 0 : index
    %330 = tpu.strided_load %arg5[%c64, %c0_321] {strides = array<i32: 2, 1>} : memref<128x64xf32, #tpu.memory_space<vmem>>, vector<4x64xf32>
    %c65 = arith.constant 65 : index
    %c0_322 = arith.constant 0 : index
    %331 = tpu.strided_load %arg5[%c65, %c0_322] {strides = array<i32: 2, 1>} : memref<128x64xf32, #tpu.memory_space<vmem>>, vector<4x64xf32>
    %c72 = arith.constant 72 : index
    %c0_323 = arith.constant 0 : index
    %332 = tpu.strided_load %arg5[%c72, %c0_323] {strides = array<i32: 2, 1>} : memref<128x64xf32, #tpu.memory_space<vmem>>, vector<4x64xf32>
    %c73 = arith.constant 73 : index
    %c0_324 = arith.constant 0 : index
    %333 = tpu.strided_load %arg5[%c73, %c0_324] {strides = array<i32: 2, 1>} : memref<128x64xf32, #tpu.memory_space<vmem>>, vector<4x64xf32>
    %334 = arith.maximumf %330, %331 : vector<4x64xf32>
    %335 = arith.maximumf %332, %333 : vector<4x64xf32>
    %336 = arith.maximumf %334, %335 : vector<4x64xf32>
    %337 = arith.addf %336, %277 : vector<4x64xf32>
    %cst_325 = arith.constant 0.000000e+00 : f32
    %338 = vector.broadcast %cst_325 : f32 to vector<4x64xf32>
    %339 = arith.maximumf %337, %338 : vector<4x64xf32>
    %c1_326 = arith.constant 1 : index
    %c0_327 = arith.constant 0 : index
    %c0_328 = arith.constant 0 : index
    %c0_329 = arith.constant 0 : index
    %340 = vector.load %arg4[%c1_326, %c0_327, %c0_328, %c0_329] : memref<2x4x4x64xf32, #tpu.memory_space<vmem>>, vector<1x1x4x64xf32>
    %341 = vector.shape_cast %340 : vector<1x1x4x64xf32> to vector<4x64xf32>
    %342 = vector.shape_cast %339 : vector<4x64xf32> to vector<1x1x4x64xf32>
    tpu.vector_store %arg4[%c1_326, %c0_327, %c0_328, %c0_329], %342 {strides = array<i32>} : memref<2x4x4x64xf32, #tpu.memory_space<vmem>>, vector<1x1x4x64xf32>,
    %c80 = arith.constant 80 : index
    %c0_330 = arith.constant 0 : index
    %343 = tpu.strided_load %arg5[%c80, %c0_330] {strides = array<i32: 2, 1>} : memref<128x64xf32, #tpu.memory_space<vmem>>, vector<4x64xf32>
    %c81 = arith.constant 81 : index
    %c0_331 = arith.constant 0 : index
    %344 = tpu.strided_load %arg5[%c81, %c0_331] {strides = array<i32: 2, 1>} : memref<128x64xf32, #tpu.memory_space<vmem>>, vector<4x64xf32>
    %c88 = arith.constant 88 : index
    %c0_332 = arith.constant 0 : index
    %345 = tpu.strided_load %arg5[%c88, %c0_332] {strides = array<i32: 2, 1>} : memref<128x64xf32, #tpu.memory_space<vmem>>, vector<4x64xf32>
    %c89 = arith.constant 89 : index
    %c0_333 = arith.constant 0 : index
    %346 = tpu.strided_load %arg5[%c89, %c0_333] {strides = array<i32: 2, 1>} : memref<128x64xf32, #tpu.memory_space<vmem>>, vector<4x64xf32>
    %347 = arith.maximumf %343, %344 : vector<4x64xf32>
    %348 = arith.maximumf %345, %346 : vector<4x64xf32>
    %349 = arith.maximumf %347, %348 : vector<4x64xf32>
    %350 = arith.addf %349, %277 : vector<4x64xf32>
    %cst_334 = arith.constant 0.000000e+00 : f32
    %351 = vector.broadcast %cst_334 : f32 to vector<4x64xf32>
    %352 = arith.maximumf %350, %351 : vector<4x64xf32>
    %c1_335 = arith.constant 1 : index
    %c1_336 = arith.constant 1 : index
    %c0_337 = arith.constant 0 : index
    %c0_338 = arith.constant 0 : index
    %353 = vector.load %arg4[%c1_335, %c1_336, %c0_337, %c0_338] : memref<2x4x4x64xf32, #tpu.memory_space<vmem>>, vector<1x1x4x64xf32>
    %354 = vector.shape_cast %353 : vector<1x1x4x64xf32> to vector<4x64xf32>
    %355 = vector.shape_cast %352 : vector<4x64xf32> to vector<1x1x4x64xf32>
    tpu.vector_store %arg4[%c1_335, %c1_336, %c0_337, %c0_338], %355 {strides = array<i32>} : memref<2x4x4x64xf32, #tpu.memory_space<vmem>>, vector<1x1x4x64xf32>,
    %c96 = arith.constant 96 : index
    %c0_339 = arith.constant 0 : index
    %356 = tpu.strided_load %arg5[%c96, %c0_339] {strides = array<i32: 2, 1>} : memref<128x64xf32, #tpu.memory_space<vmem>>, vector<4x64xf32>
    %c97 = arith.constant 97 : index
    %c0_340 = arith.constant 0 : index
    %357 = tpu.strided_load %arg5[%c97, %c0_340] {strides = array<i32: 2, 1>} : memref<128x64xf32, #tpu.memory_space<vmem>>, vector<4x64xf32>
    %c104 = arith.constant 104 : index
    %c0_341 = arith.constant 0 : index
    %358 = tpu.strided_load %arg5[%c104, %c0_341] {strides = array<i32: 2, 1>} : memref<128x64xf32, #tpu.memory_space<vmem>>, vector<4x64xf32>
    %c105 = arith.constant 105 : index
    %c0_342 = arith.constant 0 : index
    %359 = tpu.strided_load %arg5[%c105, %c0_342] {strides = array<i32: 2, 1>} : memref<128x64xf32, #tpu.memory_space<vmem>>, vector<4x64xf32>
    %360 = arith.maximumf %356, %357 : vector<4x64xf32>
    %361 = arith.maximumf %358, %359 : vector<4x64xf32>
    %362 = arith.maximumf %360, %361 : vector<4x64xf32>
    %363 = arith.addf %362, %277 : vector<4x64xf32>
    %cst_343 = arith.constant 0.000000e+00 : f32
    %364 = vector.broadcast %cst_343 : f32 to vector<4x64xf32>
    %365 = arith.maximumf %363, %364 : vector<4x64xf32>
    %c1_344 = arith.constant 1 : index
    %c2_345 = arith.constant 2 : index
    %c0_346 = arith.constant 0 : index
    %c0_347 = arith.constant 0 : index
    %366 = vector.load %arg4[%c1_344, %c2_345, %c0_346, %c0_347] : memref<2x4x4x64xf32, #tpu.memory_space<vmem>>, vector<1x1x4x64xf32>
    %367 = vector.shape_cast %366 : vector<1x1x4x64xf32> to vector<4x64xf32>
    %368 = vector.shape_cast %365 : vector<4x64xf32> to vector<1x1x4x64xf32>
    tpu.vector_store %arg4[%c1_344, %c2_345, %c0_346, %c0_347], %368 {strides = array<i32>} : memref<2x4x4x64xf32, #tpu.memory_space<vmem>>, vector<1x1x4x64xf32>,
    %c112 = arith.constant 112 : index
    %c0_348 = arith.constant 0 : index
    %369 = tpu.strided_load %arg5[%c112, %c0_348] {strides = array<i32: 2, 1>} : memref<128x64xf32, #tpu.memory_space<vmem>>, vector<4x64xf32>
    %c113 = arith.constant 113 : index
    %c0_349 = arith.constant 0 : index
    %370 = tpu.strided_load %arg5[%c113, %c0_349] {strides = array<i32: 2, 1>} : memref<128x64xf32, #tpu.memory_space<vmem>>, vector<4x64xf32>
    %c120 = arith.constant 120 : index
    %c0_350 = arith.constant 0 : index
    %371 = tpu.strided_load %arg5[%c120, %c0_350] {strides = array<i32: 2, 1>} : memref<128x64xf32, #tpu.memory_space<vmem>>, vector<4x64xf32>
    %c121 = arith.constant 121 : index
    %c0_351 = arith.constant 0 : index
    %372 = tpu.strided_load %arg5[%c121, %c0_351] {strides = array<i32: 2, 1>} : memref<128x64xf32, #tpu.memory_space<vmem>>, vector<4x64xf32>
    %373 = arith.maximumf %369, %370 : vector<4x64xf32>
    %374 = arith.maximumf %371, %372 : vector<4x64xf32>
    %375 = arith.maximumf %373, %374 : vector<4x64xf32>
    %376 = arith.addf %375, %277 : vector<4x64xf32>
    %cst_352 = arith.constant 0.000000e+00 : f32
    %377 = vector.broadcast %cst_352 : f32 to vector<4x64xf32>
    %378 = arith.maximumf %376, %377 : vector<4x64xf32>
    %c1_353 = arith.constant 1 : index
    %c3_354 = arith.constant 3 : index
    %c0_355 = arith.constant 0 : index
    %c0_356 = arith.constant 0 : index
    %379 = vector.load %arg4[%c1_353, %c3_354, %c0_355, %c0_356] : memref<2x4x4x64xf32, #tpu.memory_space<vmem>>, vector<1x1x4x64xf32>
    %380 = vector.shape_cast %379 : vector<1x1x4x64xf32> to vector<4x64xf32>
    %381 = vector.shape_cast %378 : vector<4x64xf32> to vector<1x1x4x64xf32>
    tpu.vector_store %arg4[%c1_353, %c3_354, %c0_355, %c0_356], %381 {strides = array<i32>} : memref<2x4x4x64xf32, #tpu.memory_space<vmem>>, vector<1x1x4x64xf32>,
    return
  }
  func.func @transform_0(%arg0: i32) -> (i32, i32, i32, i32) {
    %c0_i32 = arith.constant 0 : i32
    %c0_i32_0 = arith.constant 0 : i32
    %c0_i32_1 = arith.constant 0 : i32
    %c0_i32_2 = arith.constant 0 : i32
    return %arg0, %c0_i32, %c0_i32_0, %c0_i32_1 : i32, i32, i32, i32
  }
  func.func @transform_1(%arg0: i32) -> (i32, i32, i32) {
    %c0_i32 = arith.constant 0 : i32
    %c0_i32_0 = arith.constant 0 : i32
    %c0_i32_1 = arith.constant 0 : i32
    %c0_i32_2 = arith.constant 0 : i32
    return %c0_i32, %c0_i32_0, %c0_i32_1 : i32, i32, i32
  }
  func.func @transform_2(%arg0: i32) -> (i32, i32) {
    %c0_i32 = arith.constant 0 : i32
    %c0_i32_0 = arith.constant 0 : i32
    %c0_i32_1 = arith.constant 0 : i32
    return %c0_i32, %c0_i32_0 : i32, i32
  }
  func.func @transform_3(%arg0: i32) -> (i32, i32, i32, i32) {
    %c0_i32 = arith.constant 0 : i32
    %c0_i32_0 = arith.constant 0 : i32
    %c0_i32_1 = arith.constant 0 : i32
    %c0_i32_2 = arith.constant 0 : i32
    return %arg0, %c0_i32, %c0_i32_0, %c0_i32_1 : i32, i32, i32, i32
  }
}

</mosaic_0001>

<llo_original>
// kernel: net_forward.3
$region0: #{net_forward.3}
  #allocation0 [shape = 'u32[]', space=smem, size = 0x4, offset = 0x4, fixed_abs, tag = 'smem constant byte address 0x4 - core index']
  #allocation1 [shape = 'u32[72,128]{1,0:T(1,128)}', space=vmem, size = 0x9000, scoped, tag = 'internal scratch']
  #allocation2 [shape = 'f32[1152,32]{1,0:T(8,128)}', space=vmem, size = 0x90000, scoped, tag = 'scratch operand']
  %s0 = inlined_call_operand.vmem [shape: f32[1152,32], index: 0, kind: input, shape index: {}]
  %s1 = inlined_call_operand.vmem [shape: f32[32,32], index: 1, kind: input, shape index: {}]
  %s2 = inlined_call_operand.vmem [shape: f32[1,32], index: 2, kind: input, shape index: {}]
  %s3 = inlined_call_operand.vmem [shape: f32[2,12,12,32], index: 3, kind: output, shape index: {}]
  %s4 = sld [smem:[#allocation0]]
  $region22: #{net_forward.3} parent=0
    _
  %s6 = ssub.s32 1, %s4
  %s7 = scalar_select 0, %s6, %s4
  // Predicated region
  $region2: #{net_forward.3} parent=0 // pred_check
    _
  $region3: #{net_forward.3} parent=0 // pred_check_branch
    %9 = sbr.rel (0) target = $region5
  $region4: #{net_forward.3} parent=0 // pred_region
    _
  $region5: #{net_forward.3} parent=0 // pred_fallthru
    _
  // Predicated region
  $region6: #{net_forward.3} parent=0 // pred_check
    _
  $region7: #{net_forward.3} parent=0 // pred_check_branch
    %11 = sbr.rel (0) target = $region9
  $region8: #{net_forward.3} parent=0 // pred_region
    _
  $region9: #{net_forward.3} parent=0 // pred_fallthru
    _
  // Predicated region
  $region10: #{net_forward.3} parent=0 // pred_check
    _
  $region11: #{net_forward.3} parent=0 // pred_check_branch
    %13 = sbr.rel (0) target = $region13
  $region12: #{net_forward.3} parent=0 // pred_region
    _
  $region13: #{net_forward.3} parent=0 // pred_fallthru
    _
  %v14 = vld [vmem:[%s0] sm:$0xff]
  %v15 = vld [vmem:[%s0 + $0x8] sm:$0xff]
  %v16 = vld [vmem:[%s0 + $0x10] sm:$0xff]
  %v17 = vld [vmem:[%s0 + $0x18] sm:$0xff]
  %v18 = vld [vmem:[%s0 + $0x20] sm:$0xff]
  %v19 = vld [vmem:[%s0 + $0x28] sm:$0xff]
  %v20 = vld [vmem:[%s0 + $0x30] sm:$0xff]
  %v21 = vld [vmem:[%s0 + $0x38] sm:$0xff]
  %v22 = vld [vmem:[%s0 + $0x40] sm:$0xff]
  %v23 = vld [vmem:[%s0 + $0x48] sm:$0xff]
  %v24 = vld [vmem:[%s0 + $0x50] sm:$0xff]
  %v25 = vld [vmem:[%s0 + $0x58] sm:$0xff]
  %v26 = vld [vmem:[%s0 + $0x60] sm:$0xff]
  %v27 = vld [vmem:[%s0 + $0x68] sm:$0xff]
  %v28 = vld [vmem:[%s0 + $0x70] sm:$0xff]
  %v29 = vld [vmem:[%s0 + $0x78] sm:$0xff]
  %v30 = vld [vmem:[%s0 + $0x80] sm:$0xff]
  %v31 = vld [vmem:[%s0 + $0x88] sm:$0xff]
  %v32 = vld [vmem:[%s0 + $0x90] sm:$0xff]
  %v33 = vld [vmem:[%s0 + $0x98] sm:$0xff]
  %v34 = vld [vmem:[%s0 + $0xa0] sm:$0xff]
  %v35 = vld [vmem:[%s0 + $0xa8] sm:$0xff]
  %v36 = vld [vmem:[%s0 + $0xb0] sm:$0xff]
  %v37 = vld [vmem:[%s0 + $0xb8] sm:$0xff]
  %v38 = vld [vmem:[%s0 + $0xc0] sm:$0xff]
  %v39 = vld [vmem:[%s0 + $0xc8] sm:$0xff]
  %v40 = vld [vmem:[%s0 + $0xd0] sm:$0xff]
  %v41 = vld [vmem:[%s0 + $0xd8] sm:$0xff]
  %v42 = vld [vmem:[%s0 + $0xe0] sm:$0xff]
  %v43 = vld [vmem:[%s0 + $0xe8] sm:$0xff]
  %v44 = vld [vmem:[%s0 + $0xf0] sm:$0xff]
  %v45 = vld [vmem:[%s0 + $0xf8] sm:$0xff]
  %v46 = vld [vmem:[%s0 + $0x100] sm:$0xff]
  %v47 = vld [vmem:[%s0 + $0x108] sm:$0xff]
  %v48 = vld [vmem:[%s0 + $0x110] sm:$0xff]
  %v49 = vld [vmem:[%s0 + $0x118] sm:$0xff]
  %v50 = vld [vmem:[%s0 + $0x120] sm:$0xff]
  %v51 = vld [vmem:[%s0 + $0x128] sm:$0xff]
  %v52 = vld [vmem:[%s0 + $0x130] sm:$0xff]
  %v53 = vld [vmem:[%s0 + $0x138] sm:$0xff]
  %v54 = vld [vmem:[%s0 + $0x140] sm:$0xff]
  %v55 = vld [vmem:[%s0 + $0x148] sm:$0xff]
  %v56 = vld [vmem:[%s0 + $0x150] sm:$0xff]
  %v57 = vld [vmem:[%s0 + $0x158] sm:$0xff]
  %v58 = vld [vmem:[%s0 + $0x160] sm:$0xff]
  %v59 = vld [vmem:[%s0 + $0x168] sm:$0xff]
  %v60 = vld [vmem:[%s0 + $0x170] sm:$0xff]
  %v61 = vld [vmem:[%s0 + $0x178] sm:$0xff]
  %v62 = vld [vmem:[%s0 + $0x180] sm:$0xff]
  %v63 = vld [vmem:[%s0 + $0x188] sm:$0xff]
  %v64 = vld [vmem:[%s0 + $0x190] sm:$0xff]
  %v65 = vld [vmem:[%s0 + $0x198] sm:$0xff]
  %v66 = vld [vmem:[%s0 + $0x1a0] sm:$0xff]
  %v67 = vld [vmem:[%s0 + $0x1a8] sm:$0xff]
  %v68 = vld [vmem:[%s0 + $0x1b0] sm:$0xff]
  %v69 = vld [vmem:[%s0 + $0x1b8] sm:$0xff]
  %v70 = vld [vmem:[%s0 + $0x1c0] sm:$0xff]
  %v71 = vld [vmem:[%s0 + $0x1c8] sm:$0xff]
  %v72 = vld [vmem:[%s0 + $0x1d0] sm:$0xff]
  %v73 = vld [vmem:[%s0 + $0x1d8] sm:$0xff]
  %v74 = vld [vmem:[%s0 + $0x1e0] sm:$0xff]
  %v75 = vld [vmem:[%s0 + $0x1e8] sm:$0xff]
  %v76 = vld [vmem:[%s0 + $0x1f0] sm:$0xff]
  %v77 = vld [vmem:[%s0 + $0x1f8] sm:$0xff]
  %v78 = vld [vmem:[%s0 + $0x200] sm:$0xff]
  %v79 = vld [vmem:[%s0 + $0x208] sm:$0xff]
  %v80 = vld [vmem:[%s0 + $0x210] sm:$0xff]
  %v81 = vld [vmem:[%s0 + $0x218] sm:$0xff]
  %v82 = vld [vmem:[%s0 + $0x220] sm:$0xff]
  %v83 = vld [vmem:[%s0 + $0x228] sm:$0xff]
  %v84 = vld [vmem:[%s0 + $0x230] sm:$0xff]
  %v85 = vld [vmem:[%s0 + $0x238] sm:$0xff]
  %v86 = vld [vmem:[%s0 + $0x240] sm:$0xff]
  %v87 = vld [vmem:[%s0 + $0x248] sm:$0xff]
  %v88 = vld [vmem:[%s0 + $0x250] sm:$0xff]
  %v89 = vld [vmem:[%s0 + $0x258] sm:$0xff]
  %v90 = vld [vmem:[%s0 + $0x260] sm:$0xff]
  %v91 = vld [vmem:[%s0 + $0x268] sm:$0xff]
  %v92 = vld [vmem:[%s0 + $0x270] sm:$0xff]
  %v93 = vld [vmem:[%s0 + $0x278] sm:$0xff]
  %v94 = vld [vmem:[%s0 + $0x280] sm:$0xff]
  %v95 = vld [vmem:[%s0 + $0x288] sm:$0xff]
  %v96 = vld [vmem:[%s0 + $0x290] sm:$0xff]
  %v97 = vld [vmem:[%s0 + $0x298] sm:$0xff]
  %v98 = vld [vmem:[%s0 + $0x2a0] sm:$0xff]
  %v99 = vld [vmem:[%s0 + $0x2a8] sm:$0xff]
  %v100 = vld [vmem:[%s0 + $0x2b0] sm:$0xff]
  %v101 = vld [vmem:[%s0 + $0x2b8] sm:$0xff]
  %v102 = vld [vmem:[%s0 + $0x2c0] sm:$0xff]
  %v103 = vld [vmem:[%s0 + $0x2c8] sm:$0xff]
  %v104 = vld [vmem:[%s0 + $0x2d0] sm:$0xff]
  %v105 = vld [vmem:[%s0 + $0x2d8] sm:$0xff]
  %v106 = vld [vmem:[%s0 + $0x2e0] sm:$0xff]
  %v107 = vld [vmem:[%s0 + $0x2e8] sm:$0xff]
  %v108 = vld [vmem:[%s0 + $0x2f0] sm:$0xff]
  %v109 = vld [vmem:[%s0 + $0x2f8] sm:$0xff]
  %v110 = vld [vmem:[%s0 + $0x300] sm:$0xff]
  %v111 = vld [vmem:[%s0 + $0x308] sm:$0xff]
  %v112 = vld [vmem:[%s0 + $0x310] sm:$0xff]
  %v113 = vld [vmem:[%s0 + $0x318] sm:$0xff]
  %v114 = vld [vmem:[%s0 + $0x320] sm:$0xff]
  %v115 = vld [vmem:[%s0 + $0x328] sm:$0xff]
  %v116 = vld [vmem:[%s0 + $0x330] sm:$0xff]
  %v117 = vld [vmem:[%s0 + $0x338] sm:$0xff]
  %v118 = vld [vmem:[%s0 + $0x340] sm:$0xff]
  %v119 = vld [vmem:[%s0 + $0x348] sm:$0xff]
  %v120 = vld [vmem:[%s0 + $0x350] sm:$0xff]
  %v121 = vld [vmem:[%s0 + $0x358] sm:$0xff]
  %v122 = vld [vmem:[%s0 + $0x360] sm:$0xff]
  %v123 = vld [vmem:[%s0 + $0x368] sm:$0xff]
  %v124 = vld [vmem:[%s0 + $0x370] sm:$0xff]
  %v125 = vld [vmem:[%s0 + $0x378] sm:$0xff]
  %v126 = vld [vmem:[%s0 + $0x380] sm:$0xff]
  %v127 = vld [vmem:[%s0 + $0x388] sm:$0xff]
  %v128 = vld [vmem:[%s0 + $0x390] sm:$0xff]
  %v129 = vld [vmem:[%s0 + $0x398] sm:$0xff]
  %v130 = vld [vmem:[%s0 + $0x3a0] sm:$0xff]
  %v131 = vld [vmem:[%s0 + $0x3a8] sm:$0xff]
  %v132 = vld [vmem:[%s0 + $0x3b0] sm:$0xff]
  %v133 = vld [vmem:[%s0 + $0x3b8] sm:$0xff]
  %v134 = vld [vmem:[%s0 + $0x3c0] sm:$0xff]
  %v135 = vld [vmem:[%s0 + $0x3c8] sm:$0xff]
  %v136 = vld [vmem:[%s0 + $0x3d0] sm:$0xff]
  %v137 = vld [vmem:[%s0 + $0x3d8] sm:$0xff]
  %v138 = vld [vmem:[%s0 + $0x3e0] sm:$0xff]
  %v139 = vld [vmem:[%s0 + $0x3e8] sm:$0xff]
  %v140 = vld [vmem:[%s0 + $0x3f0] sm:$0xff]
  %v141 = vld [vmem:[%s0 + $0x3f8] sm:$0xff]
  %v142 = vld [vmem:[%s0 + $0x400] sm:$0xff]
  %v143 = vld [vmem:[%s0 + $0x408] sm:$0xff]
  %v144 = vld [vmem:[%s0 + $0x410] sm:$0xff]
  %v145 = vld [vmem:[%s0 + $0x418] sm:$0xff]
  %v146 = vld [vmem:[%s0 + $0x420] sm:$0xff]
  %v147 = vld [vmem:[%s0 + $0x428] sm:$0xff]
  %v148 = vld [vmem:[%s0 + $0x430] sm:$0xff]
  %v149 = vld [vmem:[%s0 + $0x438] sm:$0xff]
  %v150 = vld [vmem:[%s0 + $0x440] sm:$0xff]
  %v151 = vld [vmem:[%s0 + $0x448] sm:$0xff]
  %v152 = vld [vmem:[%s0 + $0x450] sm:$0xff]
  %v153 = vld [vmem:[%s0 + $0x458] sm:$0xff]
  %v154 = vld [vmem:[%s0 + $0x460] sm:$0xff]
  %v155 = vld [vmem:[%s0 + $0x468] sm:$0xff]
  %v156 = vld [vmem:[%s0 + $0x470] sm:$0xff]
  %v157 = vld [vmem:[%s0 + $0x478] sm:$0xff]
  %v158 = vld [vmem:[%s1] sm:$0xff]
  %v159 = vld [vmem:[%s1 + $0x8] sm:$0xff]
  %v160 = vld [vmem:[%s1 + $0x10] sm:$0xff]
  %v161 = vld [vmem:[%s1 + $0x18] sm:$0xff]
  %vm162 = vcmask 261120
  %v164 = vsel %vm162, %v14, 0
  %v167 = vsel %vm162, %v15, 0
  %v170 = vsel %vm162, %v16, 0
  %v173 = vsel %vm162, %v17, 0
  %v176 = vsel %vm162, %v18, 0
  %v179 = vsel %vm162, %v19, 0
  %v182 = vsel %vm162, %v20, 0
  %v185 = vsel %vm162, %v21, 0
  %v188 = vsel %vm162, %v22, 0
  %v191 = vsel %vm162, %v23, 0
  %v194 = vsel %vm162, %v24, 0
  %v197 = vsel %vm162, %v25, 0
  %v200 = vsel %vm162, %v26, 0
  %v203 = vsel %vm162, %v27, 0
  %v206 = vsel %vm162, %v28, 0
  %v209 = vsel %vm162, %v29, 0
  %v212 = vsel %vm162, %v30, 0
  %v215 = vsel %vm162, %v31, 0
  %v218 = vsel %vm162, %v32, 0
  %v221 = vsel %vm162, %v33, 0
  %v224 = vsel %vm162, %v34, 0
  %v227 = vsel %vm162, %v35, 0
  %v230 = vsel %vm162, %v36, 0
  %v233 = vsel %vm162, %v37, 0
  %v236 = vsel %vm162, %v38, 0
  %v239 = vsel %vm162, %v39, 0
  %v242 = vsel %vm162, %v40, 0
  %v245 = vsel %vm162, %v41, 0
  %v248 = vsel %vm162, %v42, 0
  %v251 = vsel %vm162, %v43, 0
  %v254 = vsel %vm162, %v44, 0
  %v257 = vsel %vm162, %v45, 0
  %v260 = vsel %vm162, %v46, 0
  %v263 = vsel %vm162, %v47, 0
  %v266 = vsel %vm162, %v48, 0
  %v269 = vsel %vm162, %v49, 0
  %v272 = vsel %vm162, %v50, 0
  %v275 = vsel %vm162, %v51, 0
  %v278 = vsel %vm162, %v52, 0
  %v281 = vsel %vm162, %v53, 0
  %v284 = vsel %vm162, %v54, 0
  %v287 = vsel %vm162, %v55, 0
  %v290 = vsel %vm162, %v56, 0
  %v293 = vsel %vm162, %v57, 0
  %v296 = vsel %vm162, %v58, 0
  %v299 = vsel %vm162, %v59, 0
  %v302 = vsel %vm162, %v60, 0
  %v305 = vsel %vm162, %v61, 0
  %v308 = vsel %vm162, %v62, 0
  %v311 = vsel %vm162, %v63, 0
  %v314 = vsel %vm162, %v64, 0
  %v317 = vsel %vm162, %v65, 0
  %v320 = vsel %vm162, %v66, 0
  %v323 = vsel %vm162, %v67, 0
  %v326 = vsel %vm162, %v68, 0
  %v329 = vsel %vm162, %v69, 0
  %v332 = vsel %vm162, %v70, 0
  %v335 = vsel %vm162, %v71, 0
  %v338 = vsel %vm162, %v72, 0
  %v341 = vsel %vm162, %v73, 0
  %v344 = vsel %vm162, %v74, 0
  %v347 = vsel %vm162, %v75, 0
  %v350 = vsel %vm162, %v76, 0
  %v353 = vsel %vm162, %v77, 0
  %v356 = vsel %vm162, %v78, 0
  %v359 = vsel %vm162, %v79, 0
  %v362 = vsel %vm162, %v80, 0
  %v365 = vsel %vm162, %v81, 0
  %v368 = vsel %vm162, %v82, 0
  %v371 = vsel %vm162, %v83, 0
  %v374 = vsel %vm162, %v84, 0
  %v377 = vsel %vm162, %v85, 0
  %v380 = vsel %vm162, %v86, 0
  %v383 = vsel %vm162, %v87, 0
  %v386 = vsel %vm162, %v88, 0
  %v389 = vsel %vm162, %v89, 0
  %v392 = vsel %vm162, %v90, 0
  %v395 = vsel %vm162, %v91, 0
  %v398 = vsel %vm162, %v92, 0
  %v401 = vsel %vm162, %v93, 0
  %v404 = vsel %vm162, %v94, 0
  %v407 = vsel %vm162, %v95, 0
  %v410 = vsel %vm162, %v96, 0
  %v413 = vsel %vm162, %v97, 0
  %v416 = vsel %vm162, %v98, 0
  %v419 = vsel %vm162, %v99, 0
  %v422 = vsel %vm162, %v100, 0
  %v425 = vsel %vm162, %v101, 0
  %v428 = vsel %vm162, %v102, 0
  %v431 = vsel %vm162, %v103, 0
  %v434 = vsel %vm162, %v104, 0
  %v437 = vsel %vm162, %v105, 0
  %v440 = vsel %vm162, %v106, 0
  %v443 = vsel %vm162, %v107, 0
  %v446 = vsel %vm162, %v108, 0
  %v449 = vsel %vm162, %v109, 0
  %v452 = vsel %vm162, %v110, 0
  %v455 = vsel %vm162, %v111, 0
  %v458 = vsel %vm162, %v112, 0
  %v461 = vsel %vm162, %v113, 0
  %v464 = vsel %vm162, %v114, 0
  %v467 = vsel %vm162, %v115, 0
  %v470 = vsel %vm162, %v116, 0
  %v473 = vsel %vm162, %v117, 0
  %v476 = vsel %vm162, %v118, 0
  %v479 = vsel %vm162, %v119, 0
  %v482 = vsel %vm162, %v120, 0
  %v485 = vsel %vm162, %v121, 0
  %v488 = vsel %vm162, %v122, 0
  %v491 = vsel %vm162, %v123, 0
  %v494 = vsel %vm162, %v124, 0
  %v497 = vsel %vm162, %v125, 0
  %v500 = vsel %vm162, %v126, 0
  %v503 = vsel %vm162, %v127, 0
  %v506 = vsel %vm162, %v128, 0
  %v509 = vsel %vm162, %v129, 0
  %v512 = vsel %vm162, %v130, 0
  %v515 = vsel %vm162, %v131, 0
  %v518 = vsel %vm162, %v132, 0
  %v521 = vsel %vm162, %v133, 0
  %v524 = vsel %vm162, %v134, 0
  %v527 = vsel %vm162, %v135, 0
  %v530 = vsel %vm162, %v136, 0
  %v533 = vsel %vm162, %v137, 0
  %v536 = vsel %vm162, %v138, 0
  %v539 = vsel %vm162, %v139, 0
  %v542 = vsel %vm162, %v140, 0
  %v545 = vsel %vm162, %v141, 0
  %v548 = vsel %vm162, %v142, 0
  %v551 = vsel %vm162, %v143, 0
  %v554 = vsel %vm162, %v144, 0
  %v557 = vsel %vm162, %v145, 0
  %v560 = vsel %vm162, %v146, 0
  %v563 = vsel %vm162, %v147, 0
  %v566 = vsel %vm162, %v148, 0
  %v569 = vsel %vm162, %v149, 0
  %v572 = vsel %vm162, %v150, 0
  %v575 = vsel %vm162, %v151, 0
  %v578 = vsel %vm162, %v152, 0
  %v581 = vsel %vm162, %v153, 0
  %v584 = vsel %vm162, %v154, 0
  %v587 = vsel %vm162, %v155, 0
  %v590 = vsel %vm162, %v156, 0
  %v593 = vsel %vm162, %v157, 0
  %595 = vmatpush.msra.mxu0 0.0
  %596 = vmatpush.msra.mxu0 0.0
  %597 = vmatpush.msra.mxu0 0.0
  %598 = vmatpush.msra.mxu0 0.0
  %599 = vmatpush.msra.mxu0 0.0
  %600 = vmatpush.msra.mxu0 0.0
  %601 = vmatpush.msra.mxu0 0.0
  %602 = vmatpush.msra.mxu0 0.0
  %603 = vmatpush.msra.mxu0 0.0
  %604 = vmatpush.msra.mxu0 0.0
  %605 = vmatpush.msra.mxu0 0.0
  %606 = vmatpush.msra.mxu0 0.0
  %607 = vmatpush.msra.mxu0 %v161
  %608 = vmatpush.msra.mxu0 %v160
  %609 = vmatpush.msra.mxu0 %v159
  %610 = vmatpush.msra.mxu0 %v158
  %611 = vmatmul.f32.gmra.mxu0 %v164
  %v612 = vpop.f32.mrf.mxu0
  %v613 = vadd.f32 0.0, %v612
  %614 = vmatmul.f32.gmra.mxu0 %v167
  %v615 = vpop.f32.mrf.mxu0
  %v616 = vadd.f32 0.0, %v615
  %617 = vmatmul.f32.gmra.mxu0 %v170
  %v618 = vpop.f32.mrf.mxu0
  %v619 = vadd.f32 0.0, %v618
  %620 = vmatmul.f32.gmra.mxu0 %v173
  %v621 = vpop.f32.mrf.mxu0
  %v622 = vadd.f32 0.0, %v621
  %623 = vmatmul.f32.gmra.mxu0 %v176
  %v624 = vpop.f32.mrf.mxu0
  %v625 = vadd.f32 0.0, %v624
  %626 = vmatmul.f32.gmra.mxu0 %v179
  %v627 = vpop.f32.mrf.mxu0
  %v628 = vadd.f32 0.0, %v627
  %629 = vmatmul.f32.gmra.mxu0 %v182
  %v630 = vpop.f32.mrf.mxu0
  %v631 = vadd.f32 0.0, %v630
  %632 = vmatmul.f32.gmra.mxu0 %v185
  %v633 = vpop.f32.mrf.mxu0
  %v634 = vadd.f32 0.0, %v633
  %635 = vmatmul.f32.gmra.mxu0 %v188
  %v636 = vpop.f32.mrf.mxu0
  %v637 = vadd.f32 0.0, %v636
  %638 = vmatmul.f32.gmra.mxu0 %v191
  %v639 = vpop.f32.mrf.mxu0
  %v640 = vadd.f32 0.0, %v639
  %641 = vmatmul.f32.gmra.mxu0 %v194
  %v642 = vpop.f32.mrf.mxu0
  %v643 = vadd.f32 0.0, %v642
  %644 = vmatmul.f32.gmra.mxu0 %v197
  %v645 = vpop.f32.mrf.mxu0
  %v646 = vadd.f32 0.0, %v645
  %647 = vmatmul.f32.gmra.mxu0 %v200
  %v648 = vpop.f32.mrf.mxu0
  %v649 = vadd.f32 0.0, %v648
  %650 = vmatmul.f32.gmra.mxu0 %v203
  %v651 = vpop.f32.mrf.mxu0
  %v652 = vadd.f32 0.0, %v651
  %653 = vmatmul.f32.gmra.mxu0 %v206
  %v654 = vpop.f32.mrf.mxu0
  %v655 = vadd.f32 0.0, %v654
  %656 = vmatmul.f32.gmra.mxu0 %v209
  %v657 = vpop.f32.mrf.mxu0
  %v658 = vadd.f32 0.0, %v657
  %659 = vmatmul.f32.gmra.mxu0 %v212
  %v660 = vpop.f32.mrf.mxu0
  %v661 = vadd.f32 0.0, %v660
  %662 = vmatmul.f32.gmra.mxu0 %v215
  %v663 = vpop.f32.mrf.mxu0
  %v664 = vadd.f32 0.0, %v663
  %665 = vmatmul.f32.gmra.mxu0 %v218
  %v666 = vpop.f32.mrf.mxu0
  %v667 = vadd.f32 0.0, %v666
  %668 = vmatmul.f32.gmra.mxu0 %v221
  %v669 = vpop.f32.mrf.mxu0
  %v670 = vadd.f32 0.0, %v669
  %671 = vmatmul.f32.gmra.mxu0 %v224
  %v672 = vpop.f32.mrf.mxu0
  %v673 = vadd.f32 0.0, %v672
  %674 = vmatmul.f32.gmra.mxu0 %v227
  %v675 = vpop.f32.mrf.mxu0
  %v676 = vadd.f32 0.0, %v675
  %677 = vmatmul.f32.gmra.mxu0 %v230
  %v678 = vpop.f32.mrf.mxu0
  %v679 = vadd.f32 0.0, %v678
  %680 = vmatmul.f32.gmra.mxu0 %v233
  %v681 = vpop.f32.mrf.mxu0
  %v682 = vadd.f32 0.0, %v681
  %683 = vmatmul.f32.gmra.mxu0 %v236
  %v684 = vpop.f32.mrf.mxu0
  %v685 = vadd.f32 0.0, %v684
  %686 = vmatmul.f32.gmra.mxu0 %v239
  %v687 = vpop.f32.mrf.mxu0
  %v688 = vadd.f32 0.0, %v687
  %689 = vmatmul.f32.gmra.mxu0 %v242
  %v690 = vpop.f32.mrf.mxu0
  %v691 = vadd.f32 0.0, %v690
  %692 = vmatmul.f32.gmra.mxu0 %v245
  %v693 = vpop.f32.mrf.mxu0
  %v694 = vadd.f32 0.0, %v693
  %695 = vmatmul.f32.gmra.mxu0 %v248
  %v696 = vpop.f32.mrf.mxu0
  %v697 = vadd.f32 0.0, %v696
  %698 = vmatmul.f32.gmra.mxu0 %v251
  %v699 = vpop.f32.mrf.mxu0
  %v700 = vadd.f32 0.0, %v699
  %701 = vmatmul.f32.gmra.mxu0 %v254
  %v702 = vpop.f32.mrf.mxu0
  %v703 = vadd.f32 0.0, %v702
  %704 = vmatmul.f32.gmra.mxu0 %v257
  %v705 = vpop.f32.mrf.mxu0
  %v706 = vadd.f32 0.0, %v705
  %707 = vmatmul.f32.gmra.mxu0 %v260
  %v708 = vpop.f32.mrf.mxu0
  %v709 = vadd.f32 0.0, %v708
  %710 = vmatmul.f32.gmra.mxu0 %v263
  %v711 = vpop.f32.mrf.mxu0
  %v712 = vadd.f32 0.0, %v711
  %713 = vmatmul.f32.gmra.mxu0 %v266
  %v714 = vpop.f32.mrf.mxu0
  %v715 = vadd.f32 0.0, %v714
  %716 = vmatmul.f32.gmra.mxu0 %v269
  %v717 = vpop.f32.mrf.mxu0
  %v718 = vadd.f32 0.0, %v717
  %719 = vmatmul.f32.gmra.mxu0 %v272
  %v720 = vpop.f32.mrf.mxu0
  %v721 = vadd.f32 0.0, %v720
  %722 = vmatmul.f32.gmra.mxu0 %v275
  %v723 = vpop.f32.mrf.mxu0
  %v724 = vadd.f32 0.0, %v723
  %725 = vmatmul.f32.gmra.mxu0 %v278
  %v726 = vpop.f32.mrf.mxu0
  %v727 = vadd.f32 0.0, %v726
  %728 = vmatmul.f32.gmra.mxu0 %v281
  %v729 = vpop.f32.mrf.mxu0
  %v730 = vadd.f32 0.0, %v729
  %731 = vmatmul.f32.gmra.mxu0 %v284
  %v732 = vpop.f32.mrf.mxu0
  %v733 = vadd.f32 0.0, %v732
  %734 = vmatmul.f32.gmra.mxu0 %v287
  %v735 = vpop.f32.mrf.mxu0
  %v736 = vadd.f32 0.0, %v735
  %737 = vmatmul.f32.gmra.mxu0 %v290
  %v738 = vpop.f32.mrf.mxu0
  %v739 = vadd.f32 0.0, %v738
  %740 = vmatmul.f32.gmra.mxu0 %v293
  %v741 = vpop.f32.mrf.mxu0
  %v742 = vadd.f32 0.0, %v741
  %743 = vmatmul.f32.gmra.mxu0 %v296
  %v744 = vpop.f32.mrf.mxu0
  %v745 = vadd.f32 0.0, %v744
  %746 = vmatmul.f32.gmra.mxu0 %v299
  %v747 = vpop.f32.mrf.mxu0
  %v748 = vadd.f32 0.0, %v747
  %749 = vmatmul.f32.gmra.mxu0 %v302
  %v750 = vpop.f32.mrf.mxu0
  %v751 = vadd.f32 0.0, %v750
  %752 = vmatmul.f32.gmra.mxu0 %v305
  %v753 = vpop.f32.mrf.mxu0
  %v754 = vadd.f32 0.0, %v753
  %755 = vmatmul.f32.gmra.mxu0 %v308
  %v756 = vpop.f32.mrf.mxu0
  %v757 = vadd.f32 0.0, %v756
  %758 = vmatmul.f32.gmra.mxu0 %v311
  %v759 = vpop.f32.mrf.mxu0
  %v760 = vadd.f32 0.0, %v759
  %761 = vmatmul.f32.gmra.mxu0 %v314
  %v762 = vpop.f32.mrf.mxu0
  %v763 = vadd.f32 0.0, %v762
  %764 = vmatmul.f32.gmra.mxu0 %v317
  %v765 = vpop.f32.mrf.mxu0
  %v766 = vadd.f32 0.0, %v765
  %767 = vmatmul.f32.gmra.mxu0 %v320
  %v768 = vpop.f32.mrf.mxu0
  %v769 = vadd.f32 0.0, %v768
  %770 = vmatmul.f32.gmra.mxu0 %v323
  %v771 = vpop.f32.mrf.mxu0
  %v772 = vadd.f32 0.0, %v771
  %773 = vmatmul.f32.gmra.mxu0 %v326
  %v774 = vpop.f32.mrf.mxu0
  %v775 = vadd.f32 0.0, %v774
  %776 = vmatmul.f32.gmra.mxu0 %v329
  %v777 = vpop.f32.mrf.mxu0
  %v778 = vadd.f32 0.0, %v777
  %779 = vmatmul.f32.gmra.mxu0 %v332
  %v780 = vpop.f32.mrf.mxu0
  %v781 = vadd.f32 0.0, %v780
  %782 = vmatmul.f32.gmra.mxu0 %v335
  %v783 = vpop.f32.mrf.mxu0
  %v784 = vadd.f32 0.0, %v783
  %785 = vmatmul.f32.gmra.mxu0 %v338
  %v786 = vpop.f32.mrf.mxu0
  %v787 = vadd.f32 0.0, %v786
  %788 = vmatmul.f32.gmra.mxu0 %v341
  %v789 = vpop.f32.mrf.mxu0
  %v790 = vadd.f32 0.0, %v789
  %791 = vmatmul.f32.gmra.mxu0 %v344
  %v792 = vpop.f32.mrf.mxu0
  %v793 = vadd.f32 0.0, %v792
  %794 = vmatmul.f32.gmra.mxu0 %v347
  %v795 = vpop.f32.mrf.mxu0
  %v796 = vadd.f32 0.0, %v795
  %797 = vmatmul.f32.gmra.mxu0 %v350
  %v798 = vpop.f32.mrf.mxu0
  %v799 = vadd.f32 0.0, %v798
  %800 = vmatmul.f32.gmra.mxu0 %v353
  %v801 = vpop.f32.mrf.mxu0
  %v802 = vadd.f32 0.0, %v801
  %803 = vmatmul.f32.gmra.mxu0 %v356
  %v804 = vpop.f32.mrf.mxu0
  %v805 = vadd.f32 0.0, %v804
  %806 = vmatmul.f32.gmra.mxu0 %v359
  %v807 = vpop.f32.mrf.mxu0
  %v808 = vadd.f32 0.0, %v807
  %809 = vmatmul.f32.gmra.mxu0 %v362
  %v810 = vpop.f32.mrf.mxu0
  %v811 = vadd.f32 0.0, %v810
  %812 = vmatmul.f32.gmra.mxu0 %v365
  %v813 = vpop.f32.mrf.mxu0
  %v814 = vadd.f32 0.0, %v813
  %815 = vmatmul.f32.gmra.mxu0 %v368
  %v816 = vpop.f32.mrf.mxu0
  %v817 = vadd.f32 0.0, %v816
  %818 = vmatmul.f32.gmra.mxu0 %v371
  %v819 = vpop.f32.mrf.mxu0
  %v820 = vadd.f32 0.0, %v819
  %821 = vmatmul.f32.gmra.mxu0 %v374
  %v822 = vpop.f32.mrf.mxu0
  %v823 = vadd.f32 0.0, %v822
  %824 = vmatmul.f32.gmra.mxu0 %v377
  %v825 = vpop.f32.mrf.mxu0
  %v826 = vadd.f32 0.0, %v825
  %827 = vmatmul.f32.gmra.mxu0 %v380
  %v828 = vpop.f32.mrf.mxu0
  %v829 = vadd.f32 0.0, %v828
  %830 = vmatmul.f32.gmra.mxu0 %v383
  %v831 = vpop.f32.mrf.mxu0
  %v832 = vadd.f32 0.0, %v831
  %833 = vmatmul.f32.gmra.mxu0 %v386
  %v834 = vpop.f32.mrf.mxu0
  %v835 = vadd.f32 0.0, %v834
  %836 = vmatmul.f32.gmra.mxu0 %v389
  %v837 = vpop.f32.mrf.mxu0
  %v838 = vadd.f32 0.0, %v837
  %839 = vmatmul.f32.gmra.mxu0 %v392
  %v840 = vpop.f32.mrf.mxu0
  %v841 = vadd.f32 0.0, %v840
  %842 = vmatmul.f32.gmra.mxu0 %v395
  %v843 = vpop.f32.mrf.mxu0
  %v844 = vadd.f32 0.0, %v843
  %845 = vmatmul.f32.gmra.mxu0 %v398
  %v846 = vpop.f32.mrf.mxu0
  %v847 = vadd.f32 0.0, %v846
  %848 = vmatmul.f32.gmra.mxu0 %v401
  %v849 = vpop.f32.mrf.mxu0
  %v850 = vadd.f32 0.0, %v849
  %851 = vmatmul.f32.gmra.mxu0 %v404
  %v852 = vpop.f32.mrf.mxu0
  %v853 = vadd.f32 0.0, %v852
  %854 = vmatmul.f32.gmra.mxu0 %v407
  %v855 = vpop.f32.mrf.mxu0
  %v856 = vadd.f32 0.0, %v855
  %857 = vmatmul.f32.gmra.mxu0 %v410
  %v858 = vpop.f32.mrf.mxu0
  %v859 = vadd.f32 0.0, %v858
  %860 = vmatmul.f32.gmra.mxu0 %v413
  %v861 = vpop.f32.mrf.mxu0
  %v862 = vadd.f32 0.0, %v861
  %863 = vmatmul.f32.gmra.mxu0 %v416
  %v864 = vpop.f32.mrf.mxu0
  %v865 = vadd.f32 0.0, %v864
  %866 = vmatmul.f32.gmra.mxu0 %v419
  %v867 = vpop.f32.mrf.mxu0
  %v868 = vadd.f32 0.0, %v867
  %869 = vmatmul.f32.gmra.mxu0 %v422
  %v870 = vpop.f32.mrf.mxu0
  %v871 = vadd.f32 0.0, %v870
  %872 = vmatmul.f32.gmra.mxu0 %v425
  %v873 = vpop.f32.mrf.mxu0
  %v874 = vadd.f32 0.0, %v873
  %875 = vmatmul.f32.gmra.mxu0 %v428
  %v876 = vpop.f32.mrf.mxu0
  %v877 = vadd.f32 0.0, %v876
  %878 = vmatmul.f32.gmra.mxu0 %v431
  %v879 = vpop.f32.mrf.mxu0
  %v880 = vadd.f32 0.0, %v879
  %881 = vmatmul.f32.gmra.mxu0 %v434
  %v882 = vpop.f32.mrf.mxu0
  %v883 = vadd.f32 0.0, %v882
  %884 = vmatmul.f32.gmra.mxu0 %v437
  %v885 = vpop.f32.mrf.mxu0
  %v886 = vadd.f32 0.0, %v885
  %887 = vmatmul.f32.gmra.mxu0 %v440
  %v888 = vpop.f32.mrf.mxu0
  %v889 = vadd.f32 0.0, %v888
  %890 = vmatmul.f32.gmra.mxu0 %v443
  %v891 = vpop.f32.mrf.mxu0
  %v892 = vadd.f32 0.0, %v891
  %893 = vmatmul.f32.gmra.mxu0 %v446
  %v894 = vpop.f32.mrf.mxu0
  %v895 = vadd.f32 0.0, %v894
  %896 = vmatmul.f32.gmra.mxu0 %v449
  %v897 = vpop.f32.mrf.mxu0
  %v898 = vadd.f32 0.0, %v897
  %899 = vmatmul.f32.gmra.mxu0 %v452
  %v900 = vpop.f32.mrf.mxu0
  %v901 = vadd.f32 0.0, %v900
  %902 = vmatmul.f32.gmra.mxu0 %v455
  %v903 = vpop.f32.mrf.mxu0
  %v904 = vadd.f32 0.0, %v903
  %905 = vmatmul.f32.gmra.mxu0 %v458
  %v906 = vpop.f32.mrf.mxu0
  %v907 = vadd.f32 0.0, %v906
  %908 = vmatmul.f32.gmra.mxu0 %v461
  %v909 = vpop.f32.mrf.mxu0
  %v910 = vadd.f32 0.0, %v909
  %911 = vmatmul.f32.gmra.mxu0 %v464
  %v912 = vpop.f32.mrf.mxu0
  %v913 = vadd.f32 0.0, %v912
  %914 = vmatmul.f32.gmra.mxu0 %v467
  %v915 = vpop.f32.mrf.mxu0
  %v916 = vadd.f32 0.0, %v915
  %917 = vmatmul.f32.gmra.mxu0 %v470
  %v918 = vpop.f32.mrf.mxu0
  %v919 = vadd.f32 0.0, %v918
  %920 = vmatmul.f32.gmra.mxu0 %v473
  %v921 = vpop.f32.mrf.mxu0
  %v922 = vadd.f32 0.0, %v921
  %923 = vmatmul.f32.gmra.mxu0 %v476
  %v924 = vpop.f32.mrf.mxu0
  %v925 = vadd.f32 0.0, %v924
  %926 = vmatmul.f32.gmra.mxu0 %v479
  %v927 = vpop.f32.mrf.mxu0
  %v928 = vadd.f32 0.0, %v927
  %929 = vmatmul.f32.gmra.mxu0 %v482
  %v930 = vpop.f32.mrf.mxu0
  %v931 = vadd.f32 0.0, %v930
  %932 = vmatmul.f32.gmra.mxu0 %v485
  %v933 = vpop.f32.mrf.mxu0
  %v934 = vadd.f32 0.0, %v933
  %935 = vmatmul.f32.gmra.mxu0 %v488
  %v936 = vpop.f32.mrf.mxu0
  %v937 = vadd.f32 0.0, %v936
  %938 = vmatmul.f32.gmra.mxu0 %v491
  %v939 = vpop.f32.mrf.mxu0
  %v940 = vadd.f32 0.0, %v939
  %941 = vmatmul.f32.gmra.mxu0 %v494
  %v942 = vpop.f32.mrf.mxu0
  %v943 = vadd.f32 0.0, %v942
  %944 = vmatmul.f32.gmra.mxu0 %v497
  %v945 = vpop.f32.mrf.mxu0
  %v946 = vadd.f32 0.0, %v945
  %947 = vmatmul.f32.gmra.mxu0 %v500
  %v948 = vpop.f32.mrf.mxu0
  %v949 = vadd.f32 0.0, %v948
  %950 = vmatmul.f32.gmra.mxu0 %v503
  %v951 = vpop.f32.mrf.mxu0
  %v952 = vadd.f32 0.0, %v951
  %953 = vmatmul.f32.gmra.mxu0 %v506
  %v954 = vpop.f32.mrf.mxu0
  %v955 = vadd.f32 0.0, %v954
  %956 = vmatmul.f32.gmra.mxu0 %v509
  %v957 = vpop.f32.mrf.mxu0
  %v958 = vadd.f32 0.0, %v957
  %959 = vmatmul.f32.gmra.mxu0 %v512
  %v960 = vpop.f32.mrf.mxu0
  %v961 = vadd.f32 0.0, %v960
  %962 = vmatmul.f32.gmra.mxu0 %v515
  %v963 = vpop.f32.mrf.mxu0
  %v964 = vadd.f32 0.0, %v963
  %965 = vmatmul.f32.gmra.mxu0 %v518
  %v966 = vpop.f32.mrf.mxu0
  %v967 = vadd.f32 0.0, %v966
  %968 = vmatmul.f32.gmra.mxu0 %v521
  %v969 = vpop.f32.mrf.mxu0
  %v970 = vadd.f32 0.0, %v969
  %971 = vmatmul.f32.gmra.mxu0 %v524
  %v972 = vpop.f32.mrf.mxu0
  %v973 = vadd.f32 0.0, %v972
  %974 = vmatmul.f32.gmra.mxu0 %v527
  %v975 = vpop.f32.mrf.mxu0
  %v976 = vadd.f32 0.0, %v975
  %977 = vmatmul.f32.gmra.mxu0 %v530
  %v978 = vpop.f32.mrf.mxu0
  %v979 = vadd.f32 0.0, %v978
  %980 = vmatmul.f32.gmra.mxu0 %v533
  %v981 = vpop.f32.mrf.mxu0
  %v982 = vadd.f32 0.0, %v981
  %983 = vmatmul.f32.gmra.mxu0 %v536
  %v984 = vpop.f32.mrf.mxu0
  %v985 = vadd.f32 0.0, %v984
  %986 = vmatmul.f32.gmra.mxu0 %v539
  %v987 = vpop.f32.mrf.mxu0
  %v988 = vadd.f32 0.0, %v987
  %989 = vmatmul.f32.gmra.mxu0 %v542
  %v990 = vpop.f32.mrf.mxu0
  %v991 = vadd.f32 0.0, %v990
  %992 = vmatmul.f32.gmra.mxu0 %v545
  %v993 = vpop.f32.mrf.mxu0
  %v994 = vadd.f32 0.0, %v993
  %995 = vmatmul.f32.gmra.mxu0 %v548
  %v996 = vpop.f32.mrf.mxu0
  %v997 = vadd.f32 0.0, %v996
  %998 = vmatmul.f32.gmra.mxu0 %v551
  %v999 = vpop.f32.mrf.mxu0
  %v1000 = vadd.f32 0.0, %v999
  %1001 = vmatmul.f32.gmra.mxu0 %v554
  %v1002 = vpop.f32.mrf.mxu0
  %v1003 = vadd.f32 0.0, %v1002
  %1004 = vmatmul.f32.gmra.mxu0 %v557
  %v1005 = vpop.f32.mrf.mxu0
  %v1006 = vadd.f32 0.0, %v1005
  %1007 = vmatmul.f32.gmra.mxu0 %v560
  %v1008 = vpop.f32.mrf.mxu0
  %v1009 = vadd.f32 0.0, %v1008
  %1010 = vmatmul.f32.gmra.mxu0 %v563
  %v1011 = vpop.f32.mrf.mxu0
  %v1012 = vadd.f32 0.0, %v1011
  %1013 = vmatmul.f32.gmra.mxu0 %v566
  %v1014 = vpop.f32.mrf.mxu0
  %v1015 = vadd.f32 0.0, %v1014
  %1016 = vmatmul.f32.gmra.mxu0 %v569
  %v1017 = vpop.f32.mrf.mxu0
  %v1018 = vadd.f32 0.0, %v1017
  %1019 = vmatmul.f32.gmra.mxu0 %v572
  %v1020 = vpop.f32.mrf.mxu0
  %v1021 = vadd.f32 0.0, %v1020
  %1022 = vmatmul.f32.gmra.mxu0 %v575
  %v1023 = vpop.f32.mrf.mxu0
  %v1024 = vadd.f32 0.0, %v1023
  %1025 = vmatmul.f32.gmra.mxu0 %v578
  %v1026 = vpop.f32.mrf.mxu0
  %v1027 = vadd.f32 0.0, %v1026
  %1028 = vmatmul.f32.gmra.mxu0 %v581
  %v1029 = vpop.f32.mrf.mxu0
  %v1030 = vadd.f32 0.0, %v1029
  %1031 = vmatmul.f32.gmra.mxu0 %v584
  %v1032 = vpop.f32.mrf.mxu0
  %v1033 = vadd.f32 0.0, %v1032
  %1034 = vmatmul.f32.gmra.mxu0 %v587
  %v1035 = vpop.f32.mrf.mxu0
  %v1036 = vadd.f32 0.0, %v1035
  %1037 = vmatmul.f32.gmra.mxu0 %v590
  %v1038 = vpop.f32.mrf.mxu0
  %v1039 = vadd.f32 0.0, %v1038
  %1040 = vmatmul.f32.gmra.mxu0 %v593
  %v1041 = vpop.f32.mrf.mxu0
  %v1042 = vadd.f32 0.0, %v1041
  %1043 = vdwg.mxu0
  %1044 = vst.msk [vmem:[#allocation2] sm:$0xff] %vm162, %v613
  %1045 = vst.msk [vmem:[#allocation2 + $0x8] sm:$0xff] %vm162, %v616
  %1046 = vst.msk [vmem:[#allocation2 + $0x10] sm:$0xff] %vm162, %v619
  %1047 = vst.msk [vmem:[#allocation2 + $0x18] sm:$0xff] %vm162, %v622
  %1048 = vst.msk [vmem:[#allocation2 + $0x20] sm:$0xff] %vm162, %v625
  %1049 = vst.msk [vmem:[#allocation2 + $0x28] sm:$0xff] %vm162, %v628
  %1050 = vst.msk [vmem:[#allocation2 + $0x30] sm:$0xff] %vm162, %v631
  %1051 = vst.msk [vmem:[#allocation2 + $0x38] sm:$0xff] %vm162, %v634
  %1052 = vst.msk [vmem:[#allocation2 + $0x40] sm:$0xff] %vm162, %v637
  %1053 = vst.msk [vmem:[#allocation2 + $0x48] sm:$0xff] %vm162, %v640
  %1054 = vst.msk [vmem:[#allocation2 + $0x50] sm:$0xff] %vm162, %v643
  %1055 = vst.msk [vmem:[#allocation2 + $0x58] sm:$0xff] %vm162, %v646
  %1056 = vst.msk [vmem:[#allocation2 + $0x60] sm:$0xff] %vm162, %v649
  %1057 = vst.msk [vmem:[#allocation2 + $0x68] sm:$0xff] %vm162, %v652
  %1058 = vst.msk [vmem:[#allocation2 + $0x70] sm:$0xff] %vm162, %v655
  %1059 = vst.msk [vmem:[#allocation2 + $0x78] sm:$0xff] %vm162, %v658
  %1060 = vst.msk [vmem:[#allocation2 + $0x80] sm:$0xff] %vm162, %v661
  %1061 = vst.msk [vmem:[#allocation2 + $0x88] sm:$0xff] %vm162, %v664
  %1062 = vst.msk [vmem:[#allocation2 + $0x90] sm:$0xff] %vm162, %v667
  %1063 = vst.msk [vmem:[#allocation2 + $0x98] sm:$0xff] %vm162, %v670
  %1064 = vst.msk [vmem:[#allocation2 + $0xa0] sm:$0xff] %vm162, %v673
  %1065 = vst.msk [vmem:[#allocation2 + $0xa8] sm:$0xff] %vm162, %v676
  %1066 = vst.msk [vmem:[#allocation2 + $0xb0] sm:$0xff] %vm162, %v679
  %1067 = vst.msk [vmem:[#allocation2 + $0xb8] sm:$0xff] %vm162, %v682
  %1068 = vst.msk [vmem:[#allocation2 + $0xc0] sm:$0xff] %vm162, %v685
  %1069 = vst.msk [vmem:[#allocation2 + $0xc8] sm:$0xff] %vm162, %v688
  %1070 = vst.msk [vmem:[#allocation2 + $0xd0] sm:$0xff] %vm162, %v691
  %1071 = vst.msk [vmem:[#allocation2 + $0xd8] sm:$0xff] %vm162, %v694
  %1072 = vst.msk [vmem:[#allocation2 + $0xe0] sm:$0xff] %vm162, %v697
  %1073 = vst.msk [vmem:[#allocation2 + $0xe8] sm:$0xff] %vm162, %v700
  %1074 = vst.msk [vmem:[#allocation2 + $0xf0] sm:$0xff] %vm162, %v703
  %1075 = vst.msk [vmem:[#allocation2 + $0xf8] sm:$0xff] %vm162, %v706
  %1076 = vst.msk [vmem:[#allocation2 + $0x100] sm:$0xff] %vm162, %v709
  %1077 = vst.msk [vmem:[#allocation2 + $0x108] sm:$0xff] %vm162, %v712
  %1078 = vst.msk [vmem:[#allocation2 + $0x110] sm:$0xff] %vm162, %v715
  %1079 = vst.msk [vmem:[#allocation2 + $0x118] sm:$0xff] %vm162, %v718
  %1080 = vst.msk [vmem:[#allocation2 + $0x120] sm:$0xff] %vm162, %v721
  %1081 = vst.msk [vmem:[#allocation2 + $0x128] sm:$0xff] %vm162, %v724
  %1082 = vst.msk [vmem:[#allocation2 + $0x130] sm:$0xff] %vm162, %v727
  %1083 = vst.msk [vmem:[#allocation2 + $0x138] sm:$0xff] %vm162, %v730
  %1084 = vst.msk [vmem:[#allocation2 + $0x140] sm:$0xff] %vm162, %v733
  %1085 = vst.msk [vmem:[#allocation2 + $0x148] sm:$0xff] %vm162, %v736
  %1086 = vst.msk [vmem:[#allocation2 + $0x150] sm:$0xff] %vm162, %v739
  %1087 = vst.msk [vmem:[#allocation2 + $0x158] sm:$0xff] %vm162, %v742
  %1088 = vst.msk [vmem:[#allocation2 + $0x160] sm:$0xff] %vm162, %v745
  %1089 = vst.msk [vmem:[#allocation2 + $0x168] sm:$0xff] %vm162, %v748
  %1090 = vst.msk [vmem:[#allocation2 + $0x170] sm:$0xff] %vm162, %v751
  %1091 = vst.msk [vmem:[#allocation2 + $0x178] sm:$0xff] %vm162, %v754
  %1092 = vst.msk [vmem:[#allocation2 + $0x180] sm:$0xff] %vm162, %v757
  %1093 = vst.msk [vmem:[#allocation2 + $0x188] sm:$0xff] %vm162, %v760
  %1094 = vst.msk [vmem:[#allocation2 + $0x190] sm:$0xff] %vm162, %v763
  %1095 = vst.msk [vmem:[#allocation2 + $0x198] sm:$0xff] %vm162, %v766
  %1096 = vst.msk [vmem:[#allocation2 + $0x1a0] sm:$0xff] %vm162, %v769
  %1097 = vst.msk [vmem:[#allocation2 + $0x1a8] sm:$0xff] %vm162, %v772
  %1098 = vst.msk [vmem:[#allocation2 + $0x1b0] sm:$0xff] %vm162, %v775
  %1099 = vst.msk [vmem:[#allocation2 + $0x1b8] sm:$0xff] %vm162, %v778
  %1100 = vst.msk [vmem:[#allocation2 + $0x1c0] sm:$0xff] %vm162, %v781
  %1101 = vst.msk [vmem:[#allocation2 + $0x1c8] sm:$0xff] %vm162, %v784
  %1102 = vst.msk [vmem:[#allocation2 + $0x1d0] sm:$0xff] %vm162, %v787
  %1103 = vst.msk [vmem:[#allocation2 + $0x1d8] sm:$0xff] %vm162, %v790
  %1104 = vst.msk [vmem:[#allocation2 + $0x1e0] sm:$0xff] %vm162, %v793
  %1105 = vst.msk [vmem:[#allocation2 + $0x1e8] sm:$0xff] %vm162, %v796
  %1106 = vst.msk [vmem:[#allocation2 + $0x1f0] sm:$0xff] %vm162, %v799
  %1107 = vst.msk [vmem:[#allocation2 + $0x1f8] sm:$0xff] %vm162, %v802
  %1108 = vst.msk [vmem:[#allocation2 + $0x200] sm:$0xff] %vm162, %v805
  %1109 = vst.msk [vmem:[#allocation2 + $0x208] sm:$0xff] %vm162, %v808
  %1110 = vst.msk [vmem:[#allocation2 + $0x210] sm:$0xff] %vm162, %v811
  %1111 = vst.msk [vmem:[#allocation2 + $0x218] sm:$0xff] %vm162, %v814
  %1112 = vst.msk [vmem:[#allocation2 + $0x220] sm:$0xff] %vm162, %v817
  %1113 = vst.msk [vmem:[#allocation2 + $0x228] sm:$0xff] %vm162, %v820
  %1114 = vst.msk [vmem:[#allocation2 + $0x230] sm:$0xff] %vm162, %v823
  %1115 = vst.msk [vmem:[#allocation2 + $0x238] sm:$0xff] %vm162, %v826
  %1116 = vst.msk [vmem:[#allocation2 + $0x240] sm:$0xff] %vm162, %v829
  %1117 = vst.msk [vmem:[#allocation2 + $0x248] sm:$0xff] %vm162, %v832
  %1118 = vst.msk [vmem:[#allocation2 + $0x250] sm:$0xff] %vm162, %v835
  %1119 = vst.msk [vmem:[#allocation2 + $0x258] sm:$0xff] %vm162, %v838
  %1120 = vst.msk [vmem:[#allocation2 + $0x260] sm:$0xff] %vm162, %v841
  %1121 = vst.msk [vmem:[#allocation2 + $0x268] sm:$0xff] %vm162, %v844
  %1122 = vst.msk [vmem:[#allocation2 + $0x270] sm:$0xff] %vm162, %v847
  %1123 = vst.msk [vmem:[#allocation2 + $0x278] sm:$0xff] %vm162, %v850
  %1124 = vst.msk [vmem:[#allocation2 + $0x280] sm:$0xff] %vm162, %v853
  %1125 = vst.msk [vmem:[#allocation2 + $0x288] sm:$0xff] %vm162, %v856
  %1126 = vst.msk [vmem:[#allocation2 + $0x290] sm:$0xff] %vm162, %v859
  %1127 = vst.msk [vmem:[#allocation2 + $0x298] sm:$0xff] %vm162, %v862
  %1128 = vst.msk [vmem:[#allocation2 + $0x2a0] sm:$0xff] %vm162, %v865
  %1129 = vst.msk [vmem:[#allocation2 + $0x2a8] sm:$0xff] %vm162, %v868
  %1130 = vst.msk [vmem:[#allocation2 + $0x2b0] sm:$0xff] %vm162, %v871
  %1131 = vst.msk [vmem:[#allocation2 + $0x2b8] sm:$0xff] %vm162, %v874
  %1132 = vst.msk [vmem:[#allocation2 + $0x2c0] sm:$0xff] %vm162, %v877
  %1133 = vst.msk [vmem:[#allocation2 + $0x2c8] sm:$0xff] %vm162, %v880
  %1134 = vst.msk [vmem:[#allocation2 + $0x2d0] sm:$0xff] %vm162, %v883
  %1135 = vst.msk [vmem:[#allocation2 + $0x2d8] sm:$0xff] %vm162, %v886
  %1136 = vst.msk [vmem:[#allocation2 + $0x2e0] sm:$0xff] %vm162, %v889
  %1137 = vst.msk [vmem:[#allocation2 + $0x2e8] sm:$0xff] %vm162, %v892
  %1138 = vst.msk [vmem:[#allocation2 + $0x2f0] sm:$0xff] %vm162, %v895
  %1139 = vst.msk [vmem:[#allocation2 + $0x2f8] sm:$0xff] %vm162, %v898
  %1140 = vst.msk [vmem:[#allocation2 + $0x300] sm:$0xff] %vm162, %v901
  %1141 = vst.msk [vmem:[#allocation2 + $0x308] sm:$0xff] %vm162, %v904
  %1142 = vst.msk [vmem:[#allocation2 + $0x310] sm:$0xff] %vm162, %v907
  %1143 = vst.msk [vmem:[#allocation2 + $0x318] sm:$0xff] %vm162, %v910
  %1144 = vst.msk [vmem:[#allocation2 + $0x320] sm:$0xff] %vm162, %v913
  %1145 = vst.msk [vmem:[#allocation2 + $0x328] sm:$0xff] %vm162, %v916
  %1146 = vst.msk [vmem:[#allocation2 + $0x330] sm:$0xff] %vm162, %v919
  %1147 = vst.msk [vmem:[#allocation2 + $0x338] sm:$0xff] %vm162, %v922
  %1148 = vst.msk [vmem:[#allocation2 + $0x340] sm:$0xff] %vm162, %v925
  %1149 = vst.msk [vmem:[#allocation2 + $0x348] sm:$0xff] %vm162, %v928
  %1150 = vst.msk [vmem:[#allocation2 + $0x350] sm:$0xff] %vm162, %v931
  %1151 = vst.msk [vmem:[#allocation2 + $0x358] sm:$0xff] %vm162, %v934
  %1152 = vst.msk [vmem:[#allocation2 + $0x360] sm:$0xff] %vm162, %v937
  %1153 = vst.msk [vmem:[#allocation2 + $0x368] sm:$0xff] %vm162, %v940
  %1154 = vst.msk [vmem:[#allocation2 + $0x370] sm:$0xff] %vm162, %v943
  %1155 = vst.msk [vmem:[#allocation2 + $0x378] sm:$0xff] %vm162, %v946
  %1156 = vst.msk [vmem:[#allocation2 + $0x380] sm:$0xff] %vm162, %v949
  %1157 = vst.msk [vmem:[#allocation2 + $0x388] sm:$0xff] %vm162, %v952
  %1158 = vst.msk [vmem:[#allocation2 + $0x390] sm:$0xff] %vm162, %v955
  %1159 = vst.msk [vmem:[#allocation2 + $0x398] sm:$0xff] %vm162, %v958
  %1160 = vst.msk [vmem:[#allocation2 + $0x3a0] sm:$0xff] %vm162, %v961
  %1161 = vst.msk [vmem:[#allocation2 + $0x3a8] sm:$0xff] %vm162, %v964
  %1162 = vst.msk [vmem:[#allocation2 + $0x3b0] sm:$0xff] %vm162, %v967
  %1163 = vst.msk [vmem:[#allocation2 + $0x3b8] sm:$0xff] %vm162, %v970
  %1164 = vst.msk [vmem:[#allocation2 + $0x3c0] sm:$0xff] %vm162, %v973
  %1165 = vst.msk [vmem:[#allocation2 + $0x3c8] sm:$0xff] %vm162, %v976
  %1166 = vst.msk [vmem:[#allocation2 + $0x3d0] sm:$0xff] %vm162, %v979
  %1167 = vst.msk [vmem:[#allocation2 + $0x3d8] sm:$0xff] %vm162, %v982
  %1168 = vst.msk [vmem:[#allocation2 + $0x3e0] sm:$0xff] %vm162, %v985
  %1169 = vst.msk [vmem:[#allocation2 + $0x3e8] sm:$0xff] %vm162, %v988
  %1170 = vst.msk [vmem:[#allocation2 + $0x3f0] sm:$0xff] %vm162, %v991
  %1171 = vst.msk [vmem:[#allocation2 + $0x3f8] sm:$0xff] %vm162, %v994
  %1172 = vst.msk [vmem:[#allocation2 + $0x400] sm:$0xff] %vm162, %v997
  %1173 = vst.msk [vmem:[#allocation2 + $0x408] sm:$0xff] %vm162, %v1000
  %1174 = vst.msk [vmem:[#allocation2 + $0x410] sm:$0xff] %vm162, %v1003
  %1175 = vst.msk [vmem:[#allocation2 + $0x418] sm:$0xff] %vm162, %v1006
  %1176 = vst.msk [vmem:[#allocation2 + $0x420] sm:$0xff] %vm162, %v1009
  %1177 = vst.msk [vmem:[#allocation2 + $0x428] sm:$0xff] %vm162, %v1012
  %1178 = vst.msk [vmem:[#allocation2 + $0x430] sm:$0xff] %vm162, %v1015
  %1179 = vst.msk [vmem:[#allocation2 + $0x438] sm:$0xff] %vm162, %v1018
  %1180 = vst.msk [vmem:[#allocation2 + $0x440] sm:$0xff] %vm162, %v1021
  %1181 = vst.msk [vmem:[#allocation2 + $0x448] sm:$0xff] %vm162, %v1024
  %1182 = vst.msk [vmem:[#allocation2 + $0x450] sm:$0xff] %vm162, %v1027
  %1183 = vst.msk [vmem:[#allocation2 + $0x458] sm:$0xff] %vm162, %v1030
  %1184 = vst.msk [vmem:[#allocation2 + $0x460] sm:$0xff] %vm162, %v1033
  %1185 = vst.msk [vmem:[#allocation2 + $0x468] sm:$0xff] %vm162, %v1036
  %1186 = vst.msk [vmem:[#allocation2 + $0x470] sm:$0xff] %vm162, %v1039
  %1187 = vst.msk [vmem:[#allocation2 + $0x478] sm:$0xff] %vm162, %v1042
  %v1188 = vld [vmem:[%s2] sm:$0x1]
  %v1190 = vperm.slane %v1188, 0
  %v1192 = vld [vmem:[#allocation2] ss:$2 sm:$0xff]
  %s1193 = scalar_lea.vmem [#allocation2], 16
  %v1194 = vld [vmem:[%s1193] ss:$2 sm:$0xf]
  %s1195 = scalar_lea.vmem [#allocation2], 1
  %v1196 = vld [vmem:[%s1195] ss:$2 sm:$0xff]
  %s1197 = scalar_lea.vmem [#allocation2], 17
  %v1198 = vld [vmem:[%s1197] ss:$2 sm:$0xf]
  %s1199 = scalar_lea.vmem [#allocation2], 24
  %v1200 = vld [vmem:[%s1199] ss:$2 sm:$0xff]
  %s1201 = scalar_lea.vmem [#allocation2], 40
  %v1202 = vld [vmem:[%s1201] ss:$2 sm:$0xf]
  %s1203 = scalar_lea.vmem [#allocation2], 25
  %v1204 = vld [vmem:[%s1203] ss:$2 sm:$0xff]
  %s1205 = scalar_lea.vmem [#allocation2], 41
  %v1206 = vld [vmem:[%s1205] ss:$2 sm:$0xf]
  %v1207 = vmax.f32 %v1192, %v1196
  %v1208 = vmax.f32 %v1194, %v1198
  %v1209 = vmax.f32 %v1200, %v1204
  %v1210 = vmax.f32 %v1202, %v1206
  %v1211 = vmax.f32 %v1207, %v1209
  %v1212 = vmax.f32 %v1208, %v1210
  %v1213 = vadd.f32 %v1211, %v1190
  %v1214 = vadd.f32 %v1212, %v1190
  %v1215 = vmax.f32 %v1213, 0.0
  %v1216 = vmax.f32 %v1214, 0.0
  %1217 = vst.msk [vmem:[%s3] sm:$0xff] %vm162, %v1215
  %vm1218 = vcmask 257024
  %1219 = vst.msk [vmem:[%s3 + $0x8] sm:$0xf] %vm1218, %v1216
  %s1220 = scalar_lea.vmem [#allocation2], 48
  %v1221 = vld [vmem:[%s1220] ss:$2 sm:$0xff]
  %s1222 = scalar_lea.vmem [#allocation2], 64
  %v1223 = vld [vmem:[%s1222] ss:$2 sm:$0xf]
  %s1224 = scalar_lea.vmem [#allocation2], 49
  %v1225 = vld [vmem:[%s1224] ss:$2 sm:$0xff]
  %s1226 = scalar_lea.vmem [#allocation2], 65
  %v1227 = vld [vmem:[%s1226] ss:$2 sm:$0xf]
  %s1228 = scalar_lea.vmem [#allocation2], 72
  %v1229 = vld [vmem:[%s1228] ss:$2 sm:$0xff]
  %s1230 = scalar_lea.vmem [#allocation2], 88
  %v1231 = vld [vmem:[%s1230] ss:$2 sm:$0xf]
  %s1232 = scalar_lea.vmem [#allocation2], 73
  %v1233 = vld [vmem:[%s1232] ss:$2 sm:$0xff]
  %s1234 = scalar_lea.vmem [#allocation2], 89
  %v1235 = vld [vmem:[%s1234] ss:$2 sm:$0xf]
  %v1236 = vmax.f32 %v1221, %v1225
  %v1237 = vmax.f32 %v1223, %v1227
  %v1238 = vmax.f32 %v1229, %v1233
  %v1239 = vmax.f32 %v1231, %v1235
  %v1240 = vmax.f32 %v1236, %v1238
  %v1241 = vmax.f32 %v1237, %v1239
  %v1242 = vadd.f32 %v1240, %v1190
  %v1243 = vadd.f32 %v1241, %v1190
  %v1244 = vmax.f32 %v1242, 0.0
  %v1245 = vmax.f32 %v1243, 0.0
  %s1246 = scalar_lea.vmem %s3, 16
  %1247 = vst.msk [vmem:[%s1246] sm:$0xff] %vm162, %v1244
  %1248 = vst.msk [vmem:[%s1246 + $0x8] sm:$0xf] %vm1218, %v1245
  %s1249 = scalar_lea.vmem [#allocation2], 96
  %v1250 = vld [vmem:[%s1249] ss:$2 sm:$0xff]
  %s1251 = scalar_lea.vmem [#allocation2], 112
  %v1252 = vld [vmem:[%s1251] ss:$2 sm:$0xf]
  %s1253 = scalar_lea.vmem [#allocation2], 97
  %v1254 = vld [vmem:[%s1253] ss:$2 sm:$0xff]
  %s1255 = scalar_lea.vmem [#allocation2], 113
  %v1256 = vld [vmem:[%s1255] ss:$2 sm:$0xf]
  %s1257 = scalar_lea.vmem [#allocation2], 120
  %v1258 = vld [vmem:[%s1257] ss:$2 sm:$0xff]
  %s1259 = scalar_lea.vmem [#allocation2], 136
  %v1260 = vld [vmem:[%s1259] ss:$2 sm:$0xf]
  %s1261 = scalar_lea.vmem [#allocation2], 121
  %v1262 = vld [vmem:[%s1261] ss:$2 sm:$0xff]
  %s1263 = scalar_lea.vmem [#allocation2], 137
  %v1264 = vld [vmem:[%s1263] ss:$2 sm:$0xf]
  %v1265 = vmax.f32 %v1250, %v1254
  %v1266 = vmax.f32 %v1252, %v1256
  %v1267 = vmax.f32 %v1258, %v1262
  %v1268 = vmax.f32 %v1260, %v1264
  %v1269 = vmax.f32 %v1265, %v1267
  %v1270 = vmax.f32 %v1266, %v1268
  %v1271 = vadd.f32 %v1269, %v1190
  %v1272 = vadd.f32 %v1270, %v1190
  %v1273 = vmax.f32 %v1271, 0.0
  %v1274 = vmax.f32 %v1272, 0.0
  %s1275 = scalar_lea.vmem %s3, 32
  %1276 = vst.msk [vmem:[%s1275] sm:$0xff] %vm162, %v1273
  %1277 = vst.msk [vmem:[%s1275 + $0x8] sm:$0xf] %vm1218, %v1274
  %s1278 = scalar_lea.vmem [#allocation2], 144
  %v1279 = vld [vmem:[%s1278] ss:$2 sm:$0xff]
  %s1280 = scalar_lea.vmem [#allocation2], 160
  %v1281 = vld [vmem:[%s1280] ss:$2 sm:$0xf]
  %s1282 = scalar_lea.vmem [#allocation2], 145
  %v1283 = vld [vmem:[%s1282] ss:$2 sm:$0xff]
  %s1284 = scalar_lea.vmem [#allocation2], 161
  %v1285 = vld [vmem:[%s1284] ss:$2 sm:$0xf]
  %s1286 = scalar_lea.vmem [#allocation2], 168
  %v1287 = vld [vmem:[%s1286] ss:$2 sm:$0xff]
  %s1288 = scalar_lea.vmem [#allocation2], 184
  %v1289 = vld [vmem:[%s1288] ss:$2 sm:$0xf]
  %s1290 = scalar_lea.vmem [#allocation2], 169
  %v1291 = vld [vmem:[%s1290] ss:$2 sm:$0xff]
  %s1292 = scalar_lea.vmem [#allocation2], 185
  %v1293 = vld [vmem:[%s1292] ss:$2 sm:$0xf]
  %v1294 = vmax.f32 %v1279, %v1283
  %v1295 = vmax.f32 %v1281, %v1285
  %v1296 = vmax.f32 %v1287, %v1291
  %v1297 = vmax.f32 %v1289, %v1293
  %v1298 = vmax.f32 %v1294, %v1296
  %v1299 = vmax.f32 %v1295, %v1297
  %v1300 = vadd.f32 %v1298, %v1190
  %v1301 = vadd.f32 %v1299, %v1190
  %v1302 = vmax.f32 %v1300, 0.0
  %v1303 = vmax.f32 %v1301, 0.0
  %s1304 = scalar_lea.vmem %s3, 48
  %1305 = vst.msk [vmem:[%s1304] sm:$0xff] %vm162, %v1302
  %1306 = vst.msk [vmem:[%s1304 + $0x8] sm:$0xf] %vm1218, %v1303
  %s1307 = scalar_lea.vmem [#allocation2], 192
  %v1308 = vld [vmem:[%s1307] ss:$2 sm:$0xff]
  %s1309 = scalar_lea.vmem [#allocation2], 208
  %v1310 = vld [vmem:[%s1309] ss:$2 sm:$0xf]
  %s1311 = scalar_lea.vmem [#allocation2], 193
  %v1312 = vld [vmem:[%s1311] ss:$2 sm:$0xff]
  %s1313 = scalar_lea.vmem [#allocation2], 209
  %v1314 = vld [vmem:[%s1313] ss:$2 sm:$0xf]
  %s1315 = scalar_lea.vmem [#allocation2], 216
  %v1316 = vld [vmem:[%s1315] ss:$2 sm:$0xff]
  %s1317 = scalar_lea.vmem [#allocation2], 232
  %v1318 = vld [vmem:[%s1317] ss:$2 sm:$0xf]
  %s1319 = scalar_lea.vmem [#allocation2], 217
  %v1320 = vld [vmem:[%s1319] ss:$2 sm:$0xff]
  %s1321 = scalar_lea.vmem [#allocation2], 233
  %v1322 = vld [vmem:[%s1321] ss:$2 sm:$0xf]
  %v1323 = vmax.f32 %v1308, %v1312
  %v1324 = vmax.f32 %v1310, %v1314
  %v1325 = vmax.f32 %v1316, %v1320
  %v1326 = vmax.f32 %v1318, %v1322
  %v1327 = vmax.f32 %v1323, %v1325
  %v1328 = vmax.f32 %v1324, %v1326
  %v1329 = vadd.f32 %v1327, %v1190
  %v1330 = vadd.f32 %v1328, %v1190
  %v1331 = vmax.f32 %v1329, 0.0
  %v1332 = vmax.f32 %v1330, 0.0
  %s1333 = scalar_lea.vmem %s3, 64
  %1334 = vst.msk [vmem:[%s1333] sm:$0xff] %vm162, %v1331
  %1335 = vst.msk [vmem:[%s1333 + $0x8] sm:$0xf] %vm1218, %v1332
  %s1336 = scalar_lea.vmem [#allocation2], 240
  %v1337 = vld [vmem:[%s1336] ss:$2 sm:$0xff]
  %s1338 = scalar_lea.vmem [#allocation2], 256
  %v1339 = vld [vmem:[%s1338] ss:$2 sm:$0xf]
  %s1340 = scalar_lea.vmem [#allocation2], 241
  %v1341 = vld [vmem:[%s1340] ss:$2 sm:$0xff]
  %s1342 = scalar_lea.vmem [#allocation2], 257
  %v1343 = vld [vmem:[%s1342] ss:$2 sm:$0xf]
  %s1344 = scalar_lea.vmem [#allocation2], 264
  %v1345 = vld [vmem:[%s1344] ss:$2 sm:$0xff]
  %s1346 = scalar_lea.vmem [#allocation2], 280
  %v1347 = vld [vmem:[%s1346] ss:$2 sm:$0xf]
  %s1348 = scalar_lea.vmem [#allocation2], 265
  %v1349 = vld [vmem:[%s1348] ss:$2 sm:$0xff]
  %s1350 = scalar_lea.vmem [#allocation2], 281
  %v1351 = vld [vmem:[%s1350] ss:$2 sm:$0xf]
  %v1352 = vmax.f32 %v1337, %v1341
  %v1353 = vmax.f32 %v1339, %v1343
  %v1354 = vmax.f32 %v1345, %v1349
  %v1355 = vmax.f32 %v1347, %v1351
  %v1356 = vmax.f32 %v1352, %v1354
  %v1357 = vmax.f32 %v1353, %v1355
  %v1358 = vadd.f32 %v1356, %v1190
  %v1359 = vadd.f32 %v1357, %v1190
  %v1360 = vmax.f32 %v1358, 0.0
  %v1361 = vmax.f32 %v1359, 0.0
  %s1362 = scalar_lea.vmem %s3, 80
  %1363 = vst.msk [vmem:[%s1362] sm:$0xff] %vm162, %v1360
  %1364 = vst.msk [vmem:[%s1362 + $0x8] sm:$0xf] %vm1218, %v1361
  %s1365 = scalar_lea.vmem [#allocation2], 288
  %v1366 = vld [vmem:[%s1365] ss:$2 sm:$0xff]
  %s1367 = scalar_lea.vmem [#allocation2], 304
  %v1368 = vld [vmem:[%s1367] ss:$2 sm:$0xf]
  %s1369 = scalar_lea.vmem [#allocation2], 289
  %v1370 = vld [vmem:[%s1369] ss:$2 sm:$0xff]
  %s1371 = scalar_lea.vmem [#allocation2], 305
  %v1372 = vld [vmem:[%s1371] ss:$2 sm:$0xf]
  %s1373 = scalar_lea.vmem [#allocation2], 312
  %v1374 = vld [vmem:[%s1373] ss:$2 sm:$0xff]
  %s1375 = scalar_lea.vmem [#allocation2], 328
  %v1376 = vld [vmem:[%s1375] ss:$2 sm:$0xf]
  %s1377 = scalar_lea.vmem [#allocation2], 313
  %v1378 = vld [vmem:[%s1377] ss:$2 sm:$0xff]
  %s1379 = scalar_lea.vmem [#allocation2], 329
  %v1380 = vld [vmem:[%s1379] ss:$2 sm:$0xf]
  %v1381 = vmax.f32 %v1366, %v1370
  %v1382 = vmax.f32 %v1368, %v1372
  %v1383 = vmax.f32 %v1374, %v1378
  %v1384 = vmax.f32 %v1376, %v1380
  %v1385 = vmax.f32 %v1381, %v1383
  %v1386 = vmax.f32 %v1382, %v1384
  %v1387 = vadd.f32 %v1385, %v1190
  %v1388 = vadd.f32 %v1386, %v1190
  %v1389 = vmax.f32 %v1387, 0.0
  %v1390 = vmax.f32 %v1388, 0.0
  %s1391 = scalar_lea.vmem %s3, 96
  %1392 = vst.msk [vmem:[%s1391] sm:$0xff] %vm162, %v1389
  %1393 = vst.msk [vmem:[%s1391 + $0x8] sm:$0xf] %vm1218, %v1390
  %s1394 = scalar_lea.vmem [#allocation2], 336
  %v1395 = vld [vmem:[%s1394] ss:$2 sm:$0xff]
  %s1396 = scalar_lea.vmem [#allocation2], 352
  %v1397 = vld [vmem:[%s1396] ss:$2 sm:$0xf]
  %s1398 = scalar_lea.vmem [#allocation2], 337
  %v1399 = vld [vmem:[%s1398] ss:$2 sm:$0xff]
  %s1400 = scalar_lea.vmem [#allocation2], 353
  %v1401 = vld [vmem:[%s1400] ss:$2 sm:$0xf]
  %s1402 = scalar_lea.vmem [#allocation2], 360
  %v1403 = vld [vmem:[%s1402] ss:$2 sm:$0xff]
  %s1404 = scalar_lea.vmem [#allocation2], 376
  %v1405 = vld [vmem:[%s1404] ss:$2 sm:$0xf]
  %s1406 = scalar_lea.vmem [#allocation2], 361
  %v1407 = vld [vmem:[%s1406] ss:$2 sm:$0xff]
  %s1408 = scalar_lea.vmem [#allocation2], 377
  %v1409 = vld [vmem:[%s1408] ss:$2 sm:$0xf]
  %v1410 = vmax.f32 %v1395, %v1399
  %v1411 = vmax.f32 %v1397, %v1401
  %v1412 = vmax.f32 %v1403, %v1407
  %v1413 = vmax.f32 %v1405, %v1409
  %v1414 = vmax.f32 %v1410, %v1412
  %v1415 = vmax.f32 %v1411, %v1413
  %v1416 = vadd.f32 %v1414, %v1190
  %v1417 = vadd.f32 %v1415, %v1190
  %v1418 = vmax.f32 %v1416, 0.0
  %v1419 = vmax.f32 %v1417, 0.0
  %s1420 = scalar_lea.vmem %s3, 112
  %1421 = vst.msk [vmem:[%s1420] sm:$0xff] %vm162, %v1418
  %1422 = vst.msk [vmem:[%s1420 + $0x8] sm:$0xf] %vm1218, %v1419
  %s1423 = scalar_lea.vmem [#allocation2], 384
  %v1424 = vld [vmem:[%s1423] ss:$2 sm:$0xff]
  %s1425 = scalar_lea.vmem [#allocation2], 400
  %v1426 = vld [vmem:[%s1425] ss:$2 sm:$0xf]
  %s1427 = scalar_lea.vmem [#allocation2], 385
  %v1428 = vld [vmem:[%s1427] ss:$2 sm:$0xff]
  %s1429 = scalar_lea.vmem [#allocation2], 401
  %v1430 = vld [vmem:[%s1429] ss:$2 sm:$0xf]
  %s1431 = scalar_lea.vmem [#allocation2], 408
  %v1432 = vld [vmem:[%s1431] ss:$2 sm:$0xff]
  %s1433 = scalar_lea.vmem [#allocation2], 424
  %v1434 = vld [vmem:[%s1433] ss:$2 sm:$0xf]
  %s1435 = scalar_lea.vmem [#allocation2], 409
  %v1436 = vld [vmem:[%s1435] ss:$2 sm:$0xff]
  %s1437 = scalar_lea.vmem [#allocation2], 425
  %v1438 = vld [vmem:[%s1437] ss:$2 sm:$0xf]
  %v1439 = vmax.f32 %v1424, %v1428
  %v1440 = vmax.f32 %v1426, %v1430
  %v1441 = vmax.f32 %v1432, %v1436
  %v1442 = vmax.f32 %v1434, %v1438
  %v1443 = vmax.f32 %v1439, %v1441
  %v1444 = vmax.f32 %v1440, %v1442
  %v1445 = vadd.f32 %v1443, %v1190
  %v1446 = vadd.f32 %v1444, %v1190
  %v1447 = vmax.f32 %v1445, 0.0
  %v1448 = vmax.f32 %v1446, 0.0
  %s1449 = scalar_lea.vmem %s3, 128
  %1450 = vst.msk [vmem:[%s1449] sm:$0xff] %vm162, %v1447
  %1451 = vst.msk [vmem:[%s1449 + $0x8] sm:$0xf] %vm1218, %v1448
  %s1452 = scalar_lea.vmem [#allocation2], 432
  %v1453 = vld [vmem:[%s1452] ss:$2 sm:$0xff]
  %s1454 = scalar_lea.vmem [#allocation2], 448
  %v1455 = vld [vmem:[%s1454] ss:$2 sm:$0xf]
  %s1456 = scalar_lea.vmem [#allocation2], 433
  %v1457 = vld [vmem:[%s1456] ss:$2 sm:$0xff]
  %s1458 = scalar_lea.vmem [#allocation2], 449
  %v1459 = vld [vmem:[%s1458] ss:$2 sm:$0xf]
  %s1460 = scalar_lea.vmem [#allocation2], 456
  %v1461 = vld [vmem:[%s1460] ss:$2 sm:$0xff]
  %s1462 = scalar_lea.vmem [#allocation2], 472
  %v1463 = vld [vmem:[%s1462] ss:$2 sm:$0xf]
  %s1464 = scalar_lea.vmem [#allocation2], 457
  %v1465 = vld [vmem:[%s1464] ss:$2 sm:$0xff]
  %s1466 = scalar_lea.vmem [#allocation2], 473
  %v1467 = vld [vmem:[%s1466] ss:$2 sm:$0xf]
  %v1468 = vmax.f32 %v1453, %v1457
  %v1469 = vmax.f32 %v1455, %v1459
  %v1470 = vmax.f32 %v1461, %v1465
  %v1471 = vmax.f32 %v1463, %v1467
  %v1472 = vmax.f32 %v1468, %v1470
  %v1473 = vmax.f32 %v1469, %v1471
  %v1474 = vadd.f32 %v1472, %v1190
  %v1475 = vadd.f32 %v1473, %v1190
  %v1476 = vmax.f32 %v1474, 0.0
  %v1477 = vmax.f32 %v1475, 0.0
  %s1478 = scalar_lea.vmem %s3, 144
  %1479 = vst.msk [vmem:[%s1478] sm:$0xff] %vm162, %v1476
  %1480 = vst.msk [vmem:[%s1478 + $0x8] sm:$0xf] %vm1218, %v1477
  %s1481 = scalar_lea.vmem [#allocation2], 480
  %v1482 = vld [vmem:[%s1481] ss:$2 sm:$0xff]
  %s1483 = scalar_lea.vmem [#allocation2], 496
  %v1484 = vld [vmem:[%s1483] ss:$2 sm:$0xf]
  %s1485 = scalar_lea.vmem [#allocation2], 481
  %v1486 = vld [vmem:[%s1485] ss:$2 sm:$0xff]
  %s1487 = scalar_lea.vmem [#allocation2], 497
  %v1488 = vld [vmem:[%s1487] ss:$2 sm:$0xf]
  %s1489 = scalar_lea.vmem [#allocation2], 504
  %v1490 = vld [vmem:[%s1489] ss:$2 sm:$0xff]
  %s1491 = scalar_lea.vmem [#allocation2], 520
  %v1492 = vld [vmem:[%s1491] ss:$2 sm:$0xf]
  %s1493 = scalar_lea.vmem [#allocation2], 505
  %v1494 = vld [vmem:[%s1493] ss:$2 sm:$0xff]
  %s1495 = scalar_lea.vmem [#allocation2], 521
  %v1496 = vld [vmem:[%s1495] ss:$2 sm:$0xf]
  %v1497 = vmax.f32 %v1482, %v1486
  %v1498 = vmax.f32 %v1484, %v1488
  %v1499 = vmax.f32 %v1490, %v1494
  %v1500 = vmax.f32 %v1492, %v1496
  %v1501 = vmax.f32 %v1497, %v1499
  %v1502 = vmax.f32 %v1498, %v1500
  %v1503 = vadd.f32 %v1501, %v1190
  %v1504 = vadd.f32 %v1502, %v1190
  %v1505 = vmax.f32 %v1503, 0.0
  %v1506 = vmax.f32 %v1504, 0.0
  %s1507 = scalar_lea.vmem %s3, 160
  %1508 = vst.msk [vmem:[%s1507] sm:$0xff] %vm162, %v1505
  %1509 = vst.msk [vmem:[%s1507 + $0x8] sm:$0xf] %vm1218, %v1506
  %s1510 = scalar_lea.vmem [#allocation2], 528
  %v1511 = vld [vmem:[%s1510] ss:$2 sm:$0xff]
  %s1512 = scalar_lea.vmem [#allocation2], 544
  %v1513 = vld [vmem:[%s1512] ss:$2 sm:$0xf]
  %s1514 = scalar_lea.vmem [#allocation2], 529
  %v1515 = vld [vmem:[%s1514] ss:$2 sm:$0xff]
  %s1516 = scalar_lea.vmem [#allocation2], 545
  %v1517 = vld [vmem:[%s1516] ss:$2 sm:$0xf]
  %s1518 = scalar_lea.vmem [#allocation2], 552
  %v1519 = vld [vmem:[%s1518] ss:$2 sm:$0xff]
  %s1520 = scalar_lea.vmem [#allocation2], 568
  %v1521 = vld [vmem:[%s1520] ss:$2 sm:$0xf]
  %s1522 = scalar_lea.vmem [#allocation2], 553
  %v1523 = vld [vmem:[%s1522] ss:$2 sm:$0xff]
  %s1524 = scalar_lea.vmem [#allocation2], 569
  %v1525 = vld [vmem:[%s1524] ss:$2 sm:$0xf]
  %v1526 = vmax.f32 %v1511, %v1515
  %v1527 = vmax.f32 %v1513, %v1517
  %v1528 = vmax.f32 %v1519, %v1523
  %v1529 = vmax.f32 %v1521, %v1525
  %v1530 = vmax.f32 %v1526, %v1528
  %v1531 = vmax.f32 %v1527, %v1529
  %v1532 = vadd.f32 %v1530, %v1190
  %v1533 = vadd.f32 %v1531, %v1190
  %v1534 = vmax.f32 %v1532, 0.0
  %v1535 = vmax.f32 %v1533, 0.0
  %s1536 = scalar_lea.vmem %s3, 176
  %1537 = vst.msk [vmem:[%s1536] sm:$0xff] %vm162, %v1534
  %1538 = vst.msk [vmem:[%s1536 + $0x8] sm:$0xf] %vm1218, %v1535
  %s1539 = scalar_lea.vmem [#allocation2], 576
  %v1540 = vld [vmem:[%s1539] ss:$2 sm:$0xff]
  %s1541 = scalar_lea.vmem [#allocation2], 592
  %v1542 = vld [vmem:[%s1541] ss:$2 sm:$0xf]
  %s1543 = scalar_lea.vmem [#allocation2], 577
  %v1544 = vld [vmem:[%s1543] ss:$2 sm:$0xff]
  %s1545 = scalar_lea.vmem [#allocation2], 593
  %v1546 = vld [vmem:[%s1545] ss:$2 sm:$0xf]
  %s1547 = scalar_lea.vmem [#allocation2], 600
  %v1548 = vld [vmem:[%s1547] ss:$2 sm:$0xff]
  %s1549 = scalar_lea.vmem [#allocation2], 616
  %v1550 = vld [vmem:[%s1549] ss:$2 sm:$0xf]
  %s1551 = scalar_lea.vmem [#allocation2], 601
  %v1552 = vld [vmem:[%s1551] ss:$2 sm:$0xff]
  %s1553 = scalar_lea.vmem [#allocation2], 617
  %v1554 = vld [vmem:[%s1553] ss:$2 sm:$0xf]
  %v1555 = vmax.f32 %v1540, %v1544
  %v1556 = vmax.f32 %v1542, %v1546
  %v1557 = vmax.f32 %v1548, %v1552
  %v1558 = vmax.f32 %v1550, %v1554
  %v1559 = vmax.f32 %v1555, %v1557
  %v1560 = vmax.f32 %v1556, %v1558
  %v1561 = vadd.f32 %v1559, %v1190
  %v1562 = vadd.f32 %v1560, %v1190
  %v1563 = vmax.f32 %v1561, 0.0
  %v1564 = vmax.f32 %v1562, 0.0
  %s1565 = scalar_lea.vmem %s3, 192
  %1566 = vst.msk [vmem:[%s1565] sm:$0xff] %vm162, %v1563
  %1567 = vst.msk [vmem:[%s1565 + $0x8] sm:$0xf] %vm1218, %v1564
  %s1568 = scalar_lea.vmem [#allocation2], 624
  %v1569 = vld [vmem:[%s1568] ss:$2 sm:$0xff]
  %s1570 = scalar_lea.vmem [#allocation2], 640
  %v1571 = vld [vmem:[%s1570] ss:$2 sm:$0xf]
  %s1572 = scalar_lea.vmem [#allocation2], 625
  %v1573 = vld [vmem:[%s1572] ss:$2 sm:$0xff]
  %s1574 = scalar_lea.vmem [#allocation2], 641
  %v1575 = vld [vmem:[%s1574] ss:$2 sm:$0xf]
  %s1576 = scalar_lea.vmem [#allocation2], 648
  %v1577 = vld [vmem:[%s1576] ss:$2 sm:$0xff]
  %s1578 = scalar_lea.vmem [#allocation2], 664
  %v1579 = vld [vmem:[%s1578] ss:$2 sm:$0xf]
  %s1580 = scalar_lea.vmem [#allocation2], 649
  %v1581 = vld [vmem:[%s1580] ss:$2 sm:$0xff]
  %s1582 = scalar_lea.vmem [#allocation2], 665
  %v1583 = vld [vmem:[%s1582] ss:$2 sm:$0xf]
  %v1584 = vmax.f32 %v1569, %v1573
  %v1585 = vmax.f32 %v1571, %v1575
  %v1586 = vmax.f32 %v1577, %v1581
  %v1587 = vmax.f32 %v1579, %v1583
  %v1588 = vmax.f32 %v1584, %v1586
  %v1589 = vmax.f32 %v1585, %v1587
  %v1590 = vadd.f32 %v1588, %v1190
  %v1591 = vadd.f32 %v1589, %v1190
  %v1592 = vmax.f32 %v1590, 0.0
  %v1593 = vmax.f32 %v1591, 0.0
  %s1594 = scalar_lea.vmem %s3, 208
  %1595 = vst.msk [vmem:[%s1594] sm:$0xff] %vm162, %v1592
  %1596 = vst.msk [vmem:[%s1594 + $0x8] sm:$0xf] %vm1218, %v1593
  %s1597 = scalar_lea.vmem [#allocation2], 672
  %v1598 = vld [vmem:[%s1597] ss:$2 sm:$0xff]
  %s1599 = scalar_lea.vmem [#allocation2], 688
  %v1600 = vld [vmem:[%s1599] ss:$2 sm:$0xf]
  %s1601 = scalar_lea.vmem [#allocation2], 673
  %v1602 = vld [vmem:[%s1601] ss:$2 sm:$0xff]
  %s1603 = scalar_lea.vmem [#allocation2], 689
  %v1604 = vld [vmem:[%s1603] ss:$2 sm:$0xf]
  %s1605 = scalar_lea.vmem [#allocation2], 696
  %v1606 = vld [vmem:[%s1605] ss:$2 sm:$0xff]
  %s1607 = scalar_lea.vmem [#allocation2], 712
  %v1608 = vld [vmem:[%s1607] ss:$2 sm:$0xf]
  %s1609 = scalar_lea.vmem [#allocation2], 697
  %v1610 = vld [vmem:[%s1609] ss:$2 sm:$0xff]
  %s1611 = scalar_lea.vmem [#allocation2], 713
  %v1612 = vld [vmem:[%s1611] ss:$2 sm:$0xf]
  %v1613 = vmax.f32 %v1598, %v1602
  %v1614 = vmax.f32 %v1600, %v1604
  %v1615 = vmax.f32 %v1606, %v1610
  %v1616 = vmax.f32 %v1608, %v1612
  %v1617 = vmax.f32 %v1613, %v1615
  %v1618 = vmax.f32 %v1614, %v1616
  %v1619 = vadd.f32 %v1617, %v1190
  %v1620 = vadd.f32 %v1618, %v1190
  %v1621 = vmax.f32 %v1619, 0.0
  %v1622 = vmax.f32 %v1620, 0.0
  %s1623 = scalar_lea.vmem %s3, 224
  %1624 = vst.msk [vmem:[%s1623] sm:$0xff] %vm162, %v1621
  %1625 = vst.msk [vmem:[%s1623 + $0x8] sm:$0xf] %vm1218, %v1622
  %s1626 = scalar_lea.vmem [#allocation2], 720
  %v1627 = vld [vmem:[%s1626] ss:$2 sm:$0xff]
  %s1628 = scalar_lea.vmem [#allocation2], 736
  %v1629 = vld [vmem:[%s1628] ss:$2 sm:$0xf]
  %s1630 = scalar_lea.vmem [#allocation2], 721
  %v1631 = vld [vmem:[%s1630] ss:$2 sm:$0xff]
  %s1632 = scalar_lea.vmem [#allocation2], 737
  %v1633 = vld [vmem:[%s1632] ss:$2 sm:$0xf]
  %s1634 = scalar_lea.vmem [#allocation2], 744
  %v1635 = vld [vmem:[%s1634] ss:$2 sm:$0xff]
  %s1636 = scalar_lea.vmem [#allocation2], 760
  %v1637 = vld [vmem:[%s1636] ss:$2 sm:$0xf]
  %s1638 = scalar_lea.vmem [#allocation2], 745
  %v1639 = vld [vmem:[%s1638] ss:$2 sm:$0xff]
  %s1640 = scalar_lea.vmem [#allocation2], 761
  %v1641 = vld [vmem:[%s1640] ss:$2 sm:$0xf]
  %v1642 = vmax.f32 %v1627, %v1631
  %v1643 = vmax.f32 %v1629, %v1633
  %v1644 = vmax.f32 %v1635, %v1639
  %v1645 = vmax.f32 %v1637, %v1641
  %v1646 = vmax.f32 %v1642, %v1644
  %v1647 = vmax.f32 %v1643, %v1645
  %v1648 = vadd.f32 %v1646, %v1190
  %v1649 = vadd.f32 %v1647, %v1190
  %v1650 = vmax.f32 %v1648, 0.0
  %v1651 = vmax.f32 %v1649, 0.0
  %s1652 = scalar_lea.vmem %s3, 240
  %1653 = vst.msk [vmem:[%s1652] sm:$0xff] %vm162, %v1650
  %1654 = vst.msk [vmem:[%s1652 + $0x8] sm:$0xf] %vm1218, %v1651
  %s1655 = scalar_lea.vmem [#allocation2], 768
  %v1656 = vld [vmem:[%s1655] ss:$2 sm:$0xff]
  %s1657 = scalar_lea.vmem [#allocation2], 784
  %v1658 = vld [vmem:[%s1657] ss:$2 sm:$0xf]
  %s1659 = scalar_lea.vmem [#allocation2], 769
  %v1660 = vld [vmem:[%s1659] ss:$2 sm:$0xff]
  %s1661 = scalar_lea.vmem [#allocation2], 785
  %v1662 = vld [vmem:[%s1661] ss:$2 sm:$0xf]
  %s1663 = scalar_lea.vmem [#allocation2], 792
  %v1664 = vld [vmem:[%s1663] ss:$2 sm:$0xff]
  %s1665 = scalar_lea.vmem [#allocation2], 808
  %v1666 = vld [vmem:[%s1665] ss:$2 sm:$0xf]
  %s1667 = scalar_lea.vmem [#allocation2], 793
  %v1668 = vld [vmem:[%s1667] ss:$2 sm:$0xff]
  %s1669 = scalar_lea.vmem [#allocation2], 809
  %v1670 = vld [vmem:[%s1669] ss:$2 sm:$0xf]
  %v1671 = vmax.f32 %v1656, %v1660
  %v1672 = vmax.f32 %v1658, %v1662
  %v1673 = vmax.f32 %v1664, %v1668
  %v1674 = vmax.f32 %v1666, %v1670
  %v1675 = vmax.f32 %v1671, %v1673
  %v1676 = vmax.f32 %v1672, %v1674
  %v1677 = vadd.f32 %v1675, %v1190
  %v1678 = vadd.f32 %v1676, %v1190
  %v1679 = vmax.f32 %v1677, 0.0
  %v1680 = vmax.f32 %v1678, 0.0
  %s1681 = scalar_lea.vmem %s3, 256
  %1682 = vst.msk [vmem:[%s1681] sm:$0xff] %vm162, %v1679
  %1683 = vst.msk [vmem:[%s1681 + $0x8] sm:$0xf] %vm1218, %v1680
  %s1684 = scalar_lea.vmem [#allocation2], 816
  %v1685 = vld [vmem:[%s1684] ss:$2 sm:$0xff]
  %s1686 = scalar_lea.vmem [#allocation2], 832
  %v1687 = vld [vmem:[%s1686] ss:$2 sm:$0xf]
  %s1688 = scalar_lea.vmem [#allocation2], 817
  %v1689 = vld [vmem:[%s1688] ss:$2 sm:$0xff]
  %s1690 = scalar_lea.vmem [#allocation2], 833
  %v1691 = vld [vmem:[%s1690] ss:$2 sm:$0xf]
  %s1692 = scalar_lea.vmem [#allocation2], 840
  %v1693 = vld [vmem:[%s1692] ss:$2 sm:$0xff]
  %s1694 = scalar_lea.vmem [#allocation2], 856
  %v1695 = vld [vmem:[%s1694] ss:$2 sm:$0xf]
  %s1696 = scalar_lea.vmem [#allocation2], 841
  %v1697 = vld [vmem:[%s1696] ss:$2 sm:$0xff]
  %s1698 = scalar_lea.vmem [#allocation2], 857
  %v1699 = vld [vmem:[%s1698] ss:$2 sm:$0xf]
  %v1700 = vmax.f32 %v1685, %v1689
  %v1701 = vmax.f32 %v1687, %v1691
  %v1702 = vmax.f32 %v1693, %v1697
  %v1703 = vmax.f32 %v1695, %v1699
  %v1704 = vmax.f32 %v1700, %v1702
  %v1705 = vmax.f32 %v1701, %v1703
  %v1706 = vadd.f32 %v1704, %v1190
  %v1707 = vadd.f32 %v1705, %v1190
  %v1708 = vmax.f32 %v1706, 0.0
  %v1709 = vmax.f32 %v1707, 0.0
  %s1710 = scalar_lea.vmem %s3, 272
  %1711 = vst.msk [vmem:[%s1710] sm:$0xff] %vm162, %v1708
  %1712 = vst.msk [vmem:[%s1710 + $0x8] sm:$0xf] %vm1218, %v1709
  %s1713 = scalar_lea.vmem [#allocation2], 864
  %v1714 = vld [vmem:[%s1713] ss:$2 sm:$0xff]
  %s1715 = scalar_lea.vmem [#allocation2], 880
  %v1716 = vld [vmem:[%s1715] ss:$2 sm:$0xf]
  %s1717 = scalar_lea.vmem [#allocation2], 865
  %v1718 = vld [vmem:[%s1717] ss:$2 sm:$0xff]
  %s1719 = scalar_lea.vmem [#allocation2], 881
  %v1720 = vld [vmem:[%s1719] ss:$2 sm:$0xf]
  %s1721 = scalar_lea.vmem [#allocation2], 888
  %v1722 = vld [vmem:[%s1721] ss:$2 sm:$0xff]
  %s1723 = scalar_lea.vmem [#allocation2], 904
  %v1724 = vld [vmem:[%s1723] ss:$2 sm:$0xf]
  %s1725 = scalar_lea.vmem [#allocation2], 889
  %v1726 = vld [vmem:[%s1725] ss:$2 sm:$0xff]
  %s1727 = scalar_lea.vmem [#allocation2], 905
  %v1728 = vld [vmem:[%s1727] ss:$2 sm:$0xf]
  %v1729 = vmax.f32 %v1714, %v1718
  %v1730 = vmax.f32 %v1716, %v1720
  %v1731 = vmax.f32 %v1722, %v1726
  %v1732 = vmax.f32 %v1724, %v1728
  %v1733 = vmax.f32 %v1729, %v1731
  %v1734 = vmax.f32 %v1730, %v1732
  %v1735 = vadd.f32 %v1733, %v1190
  %v1736 = vadd.f32 %v1734, %v1190
  %v1737 = vmax.f32 %v1735, 0.0
  %v1738 = vmax.f32 %v1736, 0.0
  %s1739 = scalar_lea.vmem %s3, 288
  %1740 = vst.msk [vmem:[%s1739] sm:$0xff] %vm162, %v1737
  %1741 = vst.msk [vmem:[%s1739 + $0x8] sm:$0xf] %vm1218, %v1738
  %s1742 = scalar_lea.vmem [#allocation2], 912
  %v1743 = vld [vmem:[%s1742] ss:$2 sm:$0xff]
  %s1744 = scalar_lea.vmem [#allocation2], 928
  %v1745 = vld [vmem:[%s1744] ss:$2 sm:$0xf]
  %s1746 = scalar_lea.vmem [#allocation2], 913
  %v1747 = vld [vmem:[%s1746] ss:$2 sm:$0xff]
  %s1748 = scalar_lea.vmem [#allocation2], 929
  %v1749 = vld [vmem:[%s1748] ss:$2 sm:$0xf]
  %s1750 = scalar_lea.vmem [#allocation2], 936
  %v1751 = vld [vmem:[%s1750] ss:$2 sm:$0xff]
  %s1752 = scalar_lea.vmem [#allocation2], 952
  %v1753 = vld [vmem:[%s1752] ss:$2 sm:$0xf]
  %s1754 = scalar_lea.vmem [#allocation2], 937
  %v1755 = vld [vmem:[%s1754] ss:$2 sm:$0xff]
  %s1756 = scalar_lea.vmem [#allocation2], 953
  %v1757 = vld [vmem:[%s1756] ss:$2 sm:$0xf]
  %v1758 = vmax.f32 %v1743, %v1747
  %v1759 = vmax.f32 %v1745, %v1749
  %v1760 = vmax.f32 %v1751, %v1755
  %v1761 = vmax.f32 %v1753, %v1757
  %v1762 = vmax.f32 %v1758, %v1760
  %v1763 = vmax.f32 %v1759, %v1761
  %v1764 = vadd.f32 %v1762, %v1190
  %v1765 = vadd.f32 %v1763, %v1190
  %v1766 = vmax.f32 %v1764, 0.0
  %v1767 = vmax.f32 %v1765, 0.0
  %s1768 = scalar_lea.vmem %s3, 304
  %1769 = vst.msk [vmem:[%s1768] sm:$0xff] %vm162, %v1766
  %1770 = vst.msk [vmem:[%s1768 + $0x8] sm:$0xf] %vm1218, %v1767
  %s1771 = scalar_lea.vmem [#allocation2], 960
  %v1772 = vld [vmem:[%s1771] ss:$2 sm:$0xff]
  %s1773 = scalar_lea.vmem [#allocation2], 976
  %v1774 = vld [vmem:[%s1773] ss:$2 sm:$0xf]
  %s1775 = scalar_lea.vmem [#allocation2], 961
  %v1776 = vld [vmem:[%s1775] ss:$2 sm:$0xff]
  %s1777 = scalar_lea.vmem [#allocation2], 977
  %v1778 = vld [vmem:[%s1777] ss:$2 sm:$0xf]
  %s1779 = scalar_lea.vmem [#allocation2], 984
  %v1780 = vld [vmem:[%s1779] ss:$2 sm:$0xff]
  %s1781 = scalar_lea.vmem [#allocation2], 1000
  %v1782 = vld [vmem:[%s1781] ss:$2 sm:$0xf]
  %s1783 = scalar_lea.vmem [#allocation2], 985
  %v1784 = vld [vmem:[%s1783] ss:$2 sm:$0xff]
  %s1785 = scalar_lea.vmem [#allocation2], 1001
  %v1786 = vld [vmem:[%s1785] ss:$2 sm:$0xf]
  %v1787 = vmax.f32 %v1772, %v1776
  %v1788 = vmax.f32 %v1774, %v1778
  %v1789 = vmax.f32 %v1780, %v1784
  %v1790 = vmax.f32 %v1782, %v1786
  %v1791 = vmax.f32 %v1787, %v1789
  %v1792 = vmax.f32 %v1788, %v1790
  %v1793 = vadd.f32 %v1791, %v1190
  %v1794 = vadd.f32 %v1792, %v1190
  %v1795 = vmax.f32 %v1793, 0.0
  %v1796 = vmax.f32 %v1794, 0.0
  %s1797 = scalar_lea.vmem %s3, 320
  %1798 = vst.msk [vmem:[%s1797] sm:$0xff] %vm162, %v1795
  %1799 = vst.msk [vmem:[%s1797 + $0x8] sm:$0xf] %vm1218, %v1796
  %s1800 = scalar_lea.vmem [#allocation2], 1008
  %v1801 = vld [vmem:[%s1800] ss:$2 sm:$0xff]
  %s1802 = scalar_lea.vmem [#allocation2], 1024
  %v1803 = vld [vmem:[%s1802] ss:$2 sm:$0xf]
  %s1804 = scalar_lea.vmem [#allocation2], 1009
  %v1805 = vld [vmem:[%s1804] ss:$2 sm:$0xff]
  %s1806 = scalar_lea.vmem [#allocation2], 1025
  %v1807 = vld [vmem:[%s1806] ss:$2 sm:$0xf]
  %s1808 = scalar_lea.vmem [#allocation2], 1032
  %v1809 = vld [vmem:[%s1808] ss:$2 sm:$0xff]
  %s1810 = scalar_lea.vmem [#allocation2], 1048
  %v1811 = vld [vmem:[%s1810] ss:$2 sm:$0xf]
  %s1812 = scalar_lea.vmem [#allocation2], 1033
  %v1813 = vld [vmem:[%s1812] ss:$2 sm:$0xff]
  %s1814 = scalar_lea.vmem [#allocation2], 1049
  %v1815 = vld [vmem:[%s1814] ss:$2 sm:$0xf]
  %v1816 = vmax.f32 %v1801, %v1805
  %v1817 = vmax.f32 %v1803, %v1807
  %v1818 = vmax.f32 %v1809, %v1813
  %v1819 = vmax.f32 %v1811, %v1815
  %v1820 = vmax.f32 %v1816, %v1818
  %v1821 = vmax.f32 %v1817, %v1819
  %v1822 = vadd.f32 %v1820, %v1190
  %v1823 = vadd.f32 %v1821, %v1190
  %v1824 = vmax.f32 %v1822, 0.0
  %v1825 = vmax.f32 %v1823, 0.0
  %s1826 = scalar_lea.vmem %s3, 336
  %1827 = vst.msk [vmem:[%s1826] sm:$0xff] %vm162, %v1824
  %1828 = vst.msk [vmem:[%s1826 + $0x8] sm:$0xf] %vm1218, %v1825
  %s1829 = scalar_lea.vmem [#allocation2], 1056
  %v1830 = vld [vmem:[%s1829] ss:$2 sm:$0xff]
  %s1831 = scalar_lea.vmem [#allocation2], 1072
  %v1832 = vld [vmem:[%s1831] ss:$2 sm:$0xf]
  %s1833 = scalar_lea.vmem [#allocation2], 1057
  %v1834 = vld [vmem:[%s1833] ss:$2 sm:$0xff]
  %s1835 = scalar_lea.vmem [#allocation2], 1073
  %v1836 = vld [vmem:[%s1835] ss:$2 sm:$0xf]
  %s1837 = scalar_lea.vmem [#allocation2], 1080
  %v1838 = vld [vmem:[%s1837] ss:$2 sm:$0xff]
  %s1839 = scalar_lea.vmem [#allocation2], 1096
  %v1840 = vld [vmem:[%s1839] ss:$2 sm:$0xf]
  %s1841 = scalar_lea.vmem [#allocation2], 1081
  %v1842 = vld [vmem:[%s1841] ss:$2 sm:$0xff]
  %s1843 = scalar_lea.vmem [#allocation2], 1097
  %v1844 = vld [vmem:[%s1843] ss:$2 sm:$0xf]
  %v1845 = vmax.f32 %v1830, %v1834
  %v1846 = vmax.f32 %v1832, %v1836
  %v1847 = vmax.f32 %v1838, %v1842
  %v1848 = vmax.f32 %v1840, %v1844
  %v1849 = vmax.f32 %v1845, %v1847
  %v1850 = vmax.f32 %v1846, %v1848
  %v1851 = vadd.f32 %v1849, %v1190
  %v1852 = vadd.f32 %v1850, %v1190
  %v1853 = vmax.f32 %v1851, 0.0
  %v1854 = vmax.f32 %v1852, 0.0
  %s1855 = scalar_lea.vmem %s3, 352
  %1856 = vst.msk [vmem:[%s1855] sm:$0xff] %vm162, %v1853
  %1857 = vst.msk [vmem:[%s1855 + $0x8] sm:$0xf] %vm1218, %v1854
  %s1858 = scalar_lea.vmem [#allocation2], 1104
  %v1859 = vld [vmem:[%s1858] ss:$2 sm:$0xff]
  %s1860 = scalar_lea.vmem [#allocation2], 1120
  %v1861 = vld [vmem:[%s1860] ss:$2 sm:$0xf]
  %s1862 = scalar_lea.vmem [#allocation2], 1105
  %v1863 = vld [vmem:[%s1862] ss:$2 sm:$0xff]
  %s1864 = scalar_lea.vmem [#allocation2], 1121
  %v1865 = vld [vmem:[%s1864] ss:$2 sm:$0xf]
  %s1866 = scalar_lea.vmem [#allocation2], 1128
  %v1867 = vld [vmem:[%s1866] ss:$2 sm:$0xff]
  %s1868 = scalar_lea.vmem [#allocation2], 1144
  %v1869 = vld [vmem:[%s1868] ss:$2 sm:$0xf]
  %s1870 = scalar_lea.vmem [#allocation2], 1129
  %v1871 = vld [vmem:[%s1870] ss:$2 sm:$0xff]
  %s1872 = scalar_lea.vmem [#allocation2], 1145
  %v1873 = vld [vmem:[%s1872] ss:$2 sm:$0xf]
  %v1874 = vmax.f32 %v1859, %v1863
  %v1875 = vmax.f32 %v1861, %v1865
  %v1876 = vmax.f32 %v1867, %v1871
  %v1877 = vmax.f32 %v1869, %v1873
  %v1878 = vmax.f32 %v1874, %v1876
  %v1879 = vmax.f32 %v1875, %v1877
  %v1880 = vadd.f32 %v1878, %v1190
  %v1881 = vadd.f32 %v1879, %v1190
  %v1882 = vmax.f32 %v1880, 0.0
  %v1883 = vmax.f32 %v1881, 0.0
  %s1884 = scalar_lea.vmem %s3, 368
  %1885 = vst.msk [vmem:[%s1884] sm:$0xff] %vm162, %v1882
  %1886 = vst.msk [vmem:[%s1884 + $0x8] sm:$0xf] %vm1218, %v1883
  // Predicated region
  $region14: #{net_forward.3} parent=0 // pred_check
    _
  $region15: #{net_forward.3} parent=0 // pred_check_branch
    %1888 = sbr.rel (0) target = $region17
  $region16: #{net_forward.3} parent=0 // pred_region
    _
  $region17: #{net_forward.3} parent=0 // pred_fallthru
    _
  // Predicated region
  $region18: #{net_forward.3} parent=0 // pred_check
    _
  $region19: #{net_forward.3} parent=0 // pred_check_branch
    %1890 = sbr.rel (0) target = $region21
  $region20: #{net_forward.3} parent=0 // pred_region
    _
  $region21: #{net_forward.3} parent=0 // pred_fallthru
    _

// kernel: net_forward.5
$region0: #{net_forward.5}
  #allocation0 [shape = 'u32[]', space=smem, size = 0x4, offset = 0x4, fixed_abs, tag = 'smem constant byte address 0x4 - core index']
  #allocation1 [shape = 'u32[72,128]{1,0:T(1,128)}', space=vmem, size = 0x9000, scoped, tag = 'internal scratch']
  %s0 = inlined_call_operand.vmem [shape: f32[2,1024], index: 0, kind: input, shape index: {}]
  %s1 = inlined_call_operand.vmem [shape: f32[1024,512], index: 1, kind: input, shape index: {}]
  %s2 = inlined_call_operand.vmem [shape: f32[1,512], index: 2, kind: input, shape index: {}]
  %s3 = inlined_call_operand.vmem [shape: f32[512,128], index: 3, kind: input, shape index: {}]
  %s4 = inlined_call_operand.vmem [shape: f32[1,128], index: 4, kind: input, shape index: {}]
  %s5 = inlined_call_operand.hbm [shape: f32[2,128], index: 5, kind: output, shape index: {}]
  %s6 = sld [smem:[#allocation0]]
  $region30: #{net_forward.5} parent=0
    _
  %s8 = ssub.s32 1, %s6
  %s9 = scalar_select 0, %s8, %s6
  $region1: #{net_forward.5} parent=0
    #allocation2 [shape = 'u8[1024]{0}', space=vmem, size = 0x400, scoped, tag = 'output window, operand 0, single buffered']
    #allocation3 [shape = 's32[1]{0}', space=sflag, size = 0x4, scoped, tag = 'scoped memory for net_forward.5']
    %10 = vsyncpa [#allocation3], 0
    // Predicated region
    $region2: #{net_forward.5} parent=1 // pred_check
      _
    $region3: #{net_forward.5} parent=1 // pred_check_branch
      %12 = sbr.rel (0) target = $region5
    $region4: #{net_forward.5} parent=1 // pred_region
      _
    $region5: #{net_forward.5} parent=1 // pred_fallthru
      _
    // Predicated region
    $region6: #{net_forward.5} parent=1 // pred_check
      _
    $region7: #{net_forward.5} parent=1 // pred_check_branch
      %14 = sbr.rel (0) target = $region9
    $region8: #{net_forward.5} parent=1 // pred_region
      _
    $region9: #{net_forward.5} parent=1 // pred_fallthru
      _
    // Predicated region
    $region10: #{net_forward.5} parent=1 // pred_check
      _
    $region11: #{net_forward.5} parent=1 // pred_check_branch
      %16 = sbr.rel (0) target = $region13
    $region12: #{net_forward.5} parent=1 // pred_region
      _
    $region13: #{net_forward.5} parent=1 // pred_fallthru
      _
    // Predicated region
    $region14: #{net_forward.5} parent=1 // pred_check
      _
    $region15: #{net_forward.5} parent=1 // pred_check_branch
      %18 = sbr.rel (0) target = $region17
    $region16: #{net_forward.5} parent=1 // pred_region
      _
    $region17: #{net_forward.5} parent=1 // pred_fallthru
      _
    // Predicated region
    $region18: #{net_forward.5} parent=1 // pred_check
      _
    $region19: #{net_forward.5} parent=1 // pred_check_branch
      %20 = sbr.rel (0) target = $region21
    $region20: #{net_forward.5} parent=1 // pred_region
      _
    $region21: #{net_forward.5} parent=1 // pred_fallthru
      _
    %v21 = vld [vmem:[%s0] sm:$0xff]
    %v22 = vld [vmem:[%s0 + $0x8] sm:$0xff]
    %v23 = vld [vmem:[%s1] sm:$0xff]
    %v24 = vld [vmem:[%s1 + $0x8] sm:$0xff]
    %v25 = vld [vmem:[%s1 + $0x10] sm:$0xff]
    %v26 = vld [vmem:[%s1 + $0x18] sm:$0xff]
    %v27 = vld [vmem:[%s1 + $0x20] sm:$0xff]
    %v28 = vld [vmem:[%s1 + $0x28] sm:$0xff]
    %v29 = vld [vmem:[%s1 + $0x30] sm:$0xff]
    %v30 = vld [vmem:[%s1 + $0x38] sm:$0xff]
    %v31 = vld [vmem:[%s1 + $0x40] sm:$0xff]
    %v32 = vld [vmem:[%s1 + $0x48] sm:$0xff]
    %v33 = vld [vmem:[%s1 + $0x50] sm:$0xff]
    %v34 = vld [vmem:[%s1 + $0x58] sm:$0xff]
    %v35 = vld [vmem:[%s1 + $0x60] sm:$0xff]
    %v36 = vld [vmem:[%s1 + $0x68] sm:$0xff]
    %v37 = vld [vmem:[%s1 + $0x70] sm:$0xff]
    %v38 = vld [vmem:[%s1 + $0x78] sm:$0xff]
    %v39 = vld [vmem:[%s1 + $0x80] sm:$0xff]
    %v40 = vld [vmem:[%s1 + $0x88] sm:$0xff]
    %v41 = vld [vmem:[%s1 + $0x90] sm:$0xff]
    %v42 = vld [vmem:[%s1 + $0x98] sm:$0xff]
    %v43 = vld [vmem:[%s1 + $0xa0] sm:$0xff]
    %v44 = vld [vmem:[%s1 + $0xa8] sm:$0xff]
    %v45 = vld [vmem:[%s1 + $0xb0] sm:$0xff]
    %v46 = vld [vmem:[%s1 + $0xb8] sm:$0xff]
    %v47 = vld [vmem:[%s1 + $0xc0] sm:$0xff]
    %v48 = vld [vmem:[%s1 + $0xc8] sm:$0xff]
    %v49 = vld [vmem:[%s1 + $0xd0] sm:$0xff]
    %v50 = vld [vmem:[%s1 + $0xd8] sm:$0xff]
    %v51 = vld [vmem:[%s1 + $0xe0] sm:$0xff]
    %v52 = vld [vmem:[%s1 + $0xe8] sm:$0xff]
    %v53 = vld [vmem:[%s1 + $0xf0] sm:$0xff]
    %v54 = vld [vmem:[%s1 + $0xf8] sm:$0xff]
    %v55 = vld [vmem:[%s1 + $0x100] sm:$0xff]
    %v56 = vld [vmem:[%s1 + $0x108] sm:$0xff]
    %v57 = vld [vmem:[%s1 + $0x110] sm:$0xff]
    %v58 = vld [vmem:[%s1 + $0x118] sm:$0xff]
    %v59 = vld [vmem:[%s1 + $0x120] sm:$0xff]
    %v60 = vld [vmem:[%s1 + $0x128] sm:$0xff]
    %v61 = vld [vmem:[%s1 + $0x130] sm:$0xff]
    %v62 = vld [vmem:[%s1 + $0x138] sm:$0xff]
    %v63 = vld [vmem:[%s1 + $0x140] sm:$0xff]
    %v64 = vld [vmem:[%s1 + $0x148] sm:$0xff]
    %v65 = vld [vmem:[%s1 + $0x150] sm:$0xff]
    %v66 = vld [vmem:[%s1 + $0x158] sm:$0xff]
    %v67 = vld [vmem:[%s1 + $0x160] sm:$0xff]
    %v68 = vld [vmem:[%s1 + $0x168] sm:$0xff]
    %v69 = vld [vmem:[%s1 + $0x170] sm:$0xff]
    %v70 = vld [vmem:[%s1 + $0x178] sm:$0xff]
    %v71 = vld [vmem:[%s1 + $0x180] sm:$0xff]
    %v72 = vld [vmem:[%s1 + $0x188] sm:$0xff]
    %v73 = vld [vmem:[%s1 + $0x190] sm:$0xff]
    %v74 = vld [vmem:[%s1 + $0x198] sm:$0xff]
    %v75 = vld [vmem:[%s1 + $0x1a0] sm:$0xff]
    %v76 = vld [vmem:[%s1 + $0x1a8] sm:$0xff]
    %v77 = vld [vmem:[%s1 + $0x1b0] sm:$0xff]
    %v78 = vld [vmem:[%s1 + $0x1b8] sm:$0xff]
    %v79 = vld [vmem:[%s1 + $0x1c0] sm:$0xff]
    %v80 = vld [vmem:[%s1 + $0x1c8] sm:$0xff]
    %v81 = vld [vmem:[%s1 + $0x1d0] sm:$0xff]
    %v82 = vld [vmem:[%s1 + $0x1d8] sm:$0xff]
    %v83 = vld [vmem:[%s1 + $0x1e0] sm:$0xff]
    %v84 = vld [vmem:[%s1 + $0x1e8] sm:$0xff]
    %v85 = vld [vmem:[%s1 + $0x1f0] sm:$0xff]
    %v86 = vld [vmem:[%s1 + $0x1f8] sm:$0xff]
    %v87 = vld [vmem:[%s1 + $0x200] sm:$0xff]
    %v88 = vld [vmem:[%s1 + $0x208] sm:$0xff]
    %v89 = vld [vmem:[%s1 + $0x210] sm:$0xff]
    %v90 = vld [vmem:[%s1 + $0x218] sm:$0xff]
    %v91 = vld [vmem:[%s1 + $0x220] sm:$0xff]
    %v92 = vld [vmem:[%s1 + $0x228] sm:$0xff]
    %v93 = vld [vmem:[%s1 + $0x230] sm:$0xff]
    %v94 = vld [vmem:[%s1 + $0x238] sm:$0xff]
    %v95 = vld [vmem:[%s1 + $0x240] sm:$0xff]
    %v96 = vld [vmem:[%s1 + $0x248] sm:$0xff]
    %v97 = vld [vmem:[%s1 + $0x250] sm:$0xff]
    %v98 = vld [vmem:[%s1 + $0x258] sm:$0xff]
    %v99 = vld [vmem:[%s1 + $0x260] sm:$0xff]
    %v100 = vld [vmem:[%s1 + $0x268] sm:$0xff]
    %v101 = vld [vmem:[%s1 + $0x270] sm:$0xff]
    %v102 = vld [vmem:[%s1 + $0x278] sm:$0xff]
    %v103 = vld [vmem:[%s1 + $0x280] sm:$0xff]
    %v104 = vld [vmem:[%s1 + $0x288] sm:$0xff]
    %v105 = vld [vmem:[%s1 + $0x290] sm:$0xff]
    %v106 = vld [vmem:[%s1 + $0x298] sm:$0xff]
    %v107 = vld [vmem:[%s1 + $0x2a0] sm:$0xff]
    %v108 = vld [vmem:[%s1 + $0x2a8] sm:$0xff]
    %v109 = vld [vmem:[%s1 + $0x2b0] sm:$0xff]
    %v110 = vld [vmem:[%s1 + $0x2b8] sm:$0xff]
    %v111 = vld [vmem:[%s1 + $0x2c0] sm:$0xff]
    %v112 = vld [vmem:[%s1 + $0x2c8] sm:$0xff]
    %v113 = vld [vmem:[%s1 + $0x2d0] sm:$0xff]
    %v114 = vld [vmem:[%s1 + $0x2d8] sm:$0xff]
    %v115 = vld [vmem:[%s1 + $0x2e0] sm:$0xff]
    %v116 = vld [vmem:[%s1 + $0x2e8] sm:$0xff]
    %v117 = vld [vmem:[%s1 + $0x2f0] sm:$0xff]
    %v118 = vld [vmem:[%s1 + $0x2f8] sm:$0xff]
    %v119 = vld [vmem:[%s1 + $0x300] sm:$0xff]
    %v120 = vld [vmem:[%s1 + $0x308] sm:$0xff]
    %v121 = vld [vmem:[%s1 + $0x310] sm:$0xff]
    %v122 = vld [vmem:[%s1 + $0x318] sm:$0xff]
    %v123 = vld [vmem:[%s1 + $0x320] sm:$0xff]
    %v124 = vld [vmem:[%s1 + $0x328] sm:$0xff]
    %v125 = vld [vmem:[%s1 + $0x330] sm:$0xff]
    %v126 = vld [vmem:[%s1 + $0x338] sm:$0xff]
    %v127 = vld [vmem:[%s1 + $0x340] sm:$0xff]
    %v128 = vld [vmem:[%s1 + $0x348] sm:$0xff]
    %v129 = vld [vmem:[%s1 + $0x350] sm:$0xff]
    %v130 = vld [vmem:[%s1 + $0x358] sm:$0xff]
    %v131 = vld [vmem:[%s1 + $0x360] sm:$0xff]
    %v132 = vld [vmem:[%s1 + $0x368] sm:$0xff]
    %v133 = vld [vmem:[%s1 + $0x370] sm:$0xff]
    %v134 = vld [vmem:[%s1 + $0x378] sm:$0xff]
    %v135 = vld [vmem:[%s1 + $0x380] sm:$0xff]
    %v136 = vld [vmem:[%s1 + $0x388] sm:$0xff]
    %v137 = vld [vmem:[%s1 + $0x390] sm:$0xff]
    %v138 = vld [vmem:[%s1 + $0x398] sm:$0xff]
    %v139 = vld [vmem:[%s1 + $0x3a0] sm:$0xff]
    %v140 = vld [vmem:[%s1 + $0x3a8] sm:$0xff]
    %v141 = vld [vmem:[%s1 + $0x3b0] sm:$0xff]
    %v142 = vld [vmem:[%s1 + $0x3b8] sm:$0xff]
    %v143 = vld [vmem:[%s1 + $0x3c0] sm:$0xff]
    %v144 = vld [vmem:[%s1 + $0x3c8] sm:$0xff]
    %v145 = vld [vmem:[%s1 + $0x3d0] sm:$0xff]
    %v146 = vld [vmem:[%s1 + $0x3d8] sm:$0xff]
    %v147 = vld [vmem:[%s1 + $0x3e0] sm:$0xff]
    %v148 = vld [vmem:[%s1 + $0x3e8] sm:$0xff]
    %v149 = vld [vmem:[%s1 + $0x3f0] sm:$0xff]
    %v150 = vld [vmem:[%s1 + $0x3f8] sm:$0xff]
    %v151 = vld [vmem:[%s1 + $0x400] sm:$0xff]
    %v152 = vld [vmem:[%s1 + $0x408] sm:$0xff]
    %v153 = vld [vmem:[%s1 + $0x410] sm:$0xff]
    %v154 = vld [vmem:[%s1 + $0x418] sm:$0xff]
    %v155 = vld [vmem:[%s1 + $0x420] sm:$0xff]
    %v156 = vld [vmem:[%s1 + $0x428] sm:$0xff]
    %v157 = vld [vmem:[%s1 + $0x430] sm:$0xff]
    %v158 = vld [vmem:[%s1 + $0x438] sm:$0xff]
    %v159 = vld [vmem:[%s1 + $0x440] sm:$0xff]
    %v160 = vld [vmem:[%s1 + $0x448] sm:$0xff]
    %v161 = vld [vmem:[%s1 + $0x450] sm:$0xff]
    %v162 = vld [vmem:[%s1 + $0x458] sm:$0xff]
    %v163 = vld [vmem:[%s1 + $0x460] sm:$0xff]
    %v164 = vld [vmem:[%s1 + $0x468] sm:$0xff]
    %v165 = vld [vmem:[%s1 + $0x470] sm:$0xff]
    %v166 = vld [vmem:[%s1 + $0x478] sm:$0xff]
    %v167 = vld [vmem:[%s1 + $0x480] sm:$0xff]
    %v168 = vld [vmem:[%s1 + $0x488] sm:$0xff]
    %v169 = vld [vmem:[%s1 + $0x490] sm:$0xff]
    %v170 = vld [vmem:[%s1 + $0x498] sm:$0xff]
    %v171 = vld [vmem:[%s1 + $0x4a0] sm:$0xff]
    %v172 = vld [vmem:[%s1 + $0x4a8] sm:$0xff]
    %v173 = vld [vmem:[%s1 + $0x4b0] sm:$0xff]
    %v174 = vld [vmem:[%s1 + $0x4b8] sm:$0xff]
    %v175 = vld [vmem:[%s1 + $0x4c0] sm:$0xff]
    %v176 = vld [vmem:[%s1 + $0x4c8] sm:$0xff]
    %v177 = vld [vmem:[%s1 + $0x4d0] sm:$0xff]
    %v178 = vld [vmem:[%s1 + $0x4d8] sm:$0xff]
    %v179 = vld [vmem:[%s1 + $0x4e0] sm:$0xff]
    %v180 = vld [vmem:[%s1 + $0x4e8] sm:$0xff]
    %v181 = vld [vmem:[%s1 + $0x4f0] sm:$0xff]
    %v182 = vld [vmem:[%s1 + $0x4f8] sm:$0xff]
    %v183 = vld [vmem:[%s1 + $0x500] sm:$0xff]
    %v184 = vld [vmem:[%s1 + $0x508] sm:$0xff]
    %v185 = vld [vmem:[%s1 + $0x510] sm:$0xff]
    %v186 = vld [vmem:[%s1 + $0x518] sm:$0xff]
    %v187 = vld [vmem:[%s1 + $0x520] sm:$0xff]
    %v188 = vld [vmem:[%s1 + $0x528] sm:$0xff]
    %v189 = vld [vmem:[%s1 + $0x530] sm:$0xff]
    %v190 = vld [vmem:[%s1 + $0x538] sm:$0xff]
    %v191 = vld [vmem:[%s1 + $0x540] sm:$0xff]
    %v192 = vld [vmem:[%s1 + $0x548] sm:$0xff]
    %v193 = vld [vmem:[%s1 + $0x550] sm:$0xff]
    %v194 = vld [vmem:[%s1 + $0x558] sm:$0xff]
    %v195 = vld [vmem:[%s1 + $0x560] sm:$0xff]
    %v196 = vld [vmem:[%s1 + $0x568] sm:$0xff]
    %v197 = vld [vmem:[%s1 + $0x570] sm:$0xff]
    %v198 = vld [vmem:[%s1 + $0x578] sm:$0xff]
    %v199 = vld [vmem:[%s1 + $0x580] sm:$0xff]
    %v200 = vld [vmem:[%s1 + $0x588] sm:$0xff]
    %v201 = vld [vmem:[%s1 + $0x590] sm:$0xff]
    %v202 = vld [vmem:[%s1 + $0x598] sm:$0xff]
    %v203 = vld [vmem:[%s1 + $0x5a0] sm:$0xff]
    %v204 = vld [vmem:[%s1 + $0x5a8] sm:$0xff]
    %v205 = vld [vmem:[%s1 + $0x5b0] sm:$0xff]
    %v206 = vld [vmem:[%s1 + $0x5b8] sm:$0xff]
    %v207 = vld [vmem:[%s1 + $0x5c0] sm:$0xff]
    %v208 = vld [vmem:[%s1 + $0x5c8] sm:$0xff]
    %v209 = vld [vmem:[%s1 + $0x5d0] sm:$0xff]
    %v210 = vld [vmem:[%s1 + $0x5d8] sm:$0xff]
    %v211 = vld [vmem:[%s1 + $0x5e0] sm:$0xff]
    %v212 = vld [vmem:[%s1 + $0x5e8] sm:$0xff]
    %v213 = vld [vmem:[%s1 + $0x5f0] sm:$0xff]
    %v214 = vld [vmem:[%s1 + $0x5f8] sm:$0xff]
    %v215 = vld [vmem:[%s1 + $0x600] sm:$0xff]
    %v216 = vld [vmem:[%s1 + $0x608] sm:$0xff]
    %v217 = vld [vmem:[%s1 + $0x610] sm:$0xff]
    %v218 = vld [vmem:[%s1 + $0x618] sm:$0xff]
    %v219 = vld [vmem:[%s1 + $0x620] sm:$0xff]
    %v220 = vld [vmem:[%s1 + $0x628] sm:$0xff]
    %v221 = vld [vmem:[%s1 + $0x630] sm:$0xff]
    %v222 = vld [vmem:[%s1 + $0x638] sm:$0xff]
    %v223 = vld [vmem:[%s1 + $0x640] sm:$0xff]
    %v224 = vld [vmem:[%s1 + $0x648] sm:$0xff]
    %v225 = vld [vmem:[%s1 + $0x650] sm:$0xff]
    %v226 = vld [vmem:[%s1 + $0x658] sm:$0xff]
    %v227 = vld [vmem:[%s1 + $0x660] sm:$0xff]
    %v228 = vld [vmem:[%s1 + $0x668] sm:$0xff]
    %v229 = vld [vmem:[%s1 + $0x670] sm:$0xff]
    %v230 = vld [vmem:[%s1 + $0x678] sm:$0xff]
    %v231 = vld [vmem:[%s1 + $0x680] sm:$0xff]
    %v232 = vld [vmem:[%s1 + $0x688] sm:$0xff]
    %v233 = vld [vmem:[%s1 + $0x690] sm:$0xff]
    %v234 = vld [vmem:[%s1 + $0x698] sm:$0xff]
    %v235 = vld [vmem:[%s1 + $0x6a0] sm:$0xff]
    %v236 = vld [vmem:[%s1 + $0x6a8] sm:$0xff]
    %v237 = vld [vmem:[%s1 + $0x6b0] sm:$0xff]
    %v238 = vld [vmem:[%s1 + $0x6b8] sm:$0xff]
    %v239 = vld [vmem:[%s1 + $0x6c0] sm:$0xff]
    %v240 = vld [vmem:[%s1 + $0x6c8] sm:$0xff]
    %v241 = vld [vmem:[%s1 + $0x6d0] sm:$0xff]
    %v242 = vld [vmem:[%s1 + $0x6d8] sm:$0xff]
    %v243 = vld [vmem:[%s1 + $0x6e0] sm:$0xff]
    %v244 = vld [vmem:[%s1 + $0x6e8] sm:$0xff]
    %v245 = vld [vmem:[%s1 + $0x6f0] sm:$0xff]
    %v246 = vld [vmem:[%s1 + $0x6f8] sm:$0xff]
    %v247 = vld [vmem:[%s1 + $0x700] sm:$0xff]
    %v248 = vld [vmem:[%s1 + $0x708] sm:$0xff]
    %v249 = vld [vmem:[%s1 + $0x710] sm:$0xff]
    %v250 = vld [vmem:[%s1 + $0x718] sm:$0xff]
    %v251 = vld [vmem:[%s1 + $0x720] sm:$0xff]
    %v252 = vld [vmem:[%s1 + $0x728] sm:$0xff]
    %v253 = vld [vmem:[%s1 + $0x730] sm:$0xff]
    %v254 = vld [vmem:[%s1 + $0x738] sm:$0xff]
    %v255 = vld [vmem:[%s1 + $0x740] sm:$0xff]
    %v256 = vld [vmem:[%s1 + $0x748] sm:$0xff]
    %v257 = vld [vmem:[%s1 + $0x750] sm:$0xff]
    %v258 = vld [vmem:[%s1 + $0x758] sm:$0xff]
    %v259 = vld [vmem:[%s1 + $0x760] sm:$0xff]
    %v260 = vld [vmem:[%s1 + $0x768] sm:$0xff]
    %v261 = vld [vmem:[%s1 + $0x770] sm:$0xff]
    %v262 = vld [vmem:[%s1 + $0x778] sm:$0xff]
    %v263 = vld [vmem:[%s1 + $0x780] sm:$0xff]
    %v264 = vld [vmem:[%s1 + $0x788] sm:$0xff]
    %v265 = vld [vmem:[%s1 + $0x790] sm:$0xff]
    %v266 = vld [vmem:[%s1 + $0x798] sm:$0xff]
    %v267 = vld [vmem:[%s1 + $0x7a0] sm:$0xff]
    %v268 = vld [vmem:[%s1 + $0x7a8] sm:$0xff]
    %v269 = vld [vmem:[%s1 + $0x7b0] sm:$0xff]
    %v270 = vld [vmem:[%s1 + $0x7b8] sm:$0xff]
    %v271 = vld [vmem:[%s1 + $0x7c0] sm:$0xff]
    %v272 = vld [vmem:[%s1 + $0x7c8] sm:$0xff]
    %v273 = vld [vmem:[%s1 + $0x7d0] sm:$0xff]
    %v274 = vld [vmem:[%s1 + $0x7d8] sm:$0xff]
    %v275 = vld [vmem:[%s1 + $0x7e0] sm:$0xff]
    %v276 = vld [vmem:[%s1 + $0x7e8] sm:$0xff]
    %v277 = vld [vmem:[%s1 + $0x7f0] sm:$0xff]
    %v278 = vld [vmem:[%s1 + $0x7f8] sm:$0xff]
    %v279 = vld [vmem:[%s1 + $0x800] sm:$0xff]
    %v280 = vld [vmem:[%s1 + $0x808] sm:$0xff]
    %v281 = vld [vmem:[%s1 + $0x810] sm:$0xff]
    %v282 = vld [vmem:[%s1 + $0x818] sm:$0xff]
    %v283 = vld [vmem:[%s1 + $0x820] sm:$0xff]
    %v284 = vld [vmem:[%s1 + $0x828] sm:$0xff]
    %v285 = vld [vmem:[%s1 + $0x830] sm:$0xff]
    %v286 = vld [vmem:[%s1 + $0x838] sm:$0xff]
    %v287 = vld [vmem:[%s1 + $0x840] sm:$0xff]
    %v288 = vld [vmem:[%s1 + $0x848] sm:$0xff]
    %v289 = vld [vmem:[%s1 + $0x850] sm:$0xff]
    %v290 = vld [vmem:[%s1 + $0x858] sm:$0xff]
    %v291 = vld [vmem:[%s1 + $0x860] sm:$0xff]
    %v292 = vld [vmem:[%s1 + $0x868] sm:$0xff]
    %v293 = vld [vmem:[%s1 + $0x870] sm:$0xff]
    %v294 = vld [vmem:[%s1 + $0x878] sm:$0xff]
    %v295 = vld [vmem:[%s1 + $0x880] sm:$0xff]
    %v296 = vld [vmem:[%s1 + $0x888] sm:$0xff]
    %v297 = vld [vmem:[%s1 + $0x890] sm:$0xff]
    %v298 = vld [vmem:[%s1 + $0x898] sm:$0xff]
    %v299 = vld [vmem:[%s1 + $0x8a0] sm:$0xff]
    %v300 = vld [vmem:[%s1 + $0x8a8] sm:$0xff]
    %v301 = vld [vmem:[%s1 + $0x8b0] sm:$0xff]
    %v302 = vld [vmem:[%s1 + $0x8b8] sm:$0xff]
    %v303 = vld [vmem:[%s1 + $0x8c0] sm:$0xff]
    %v304 = vld [vmem:[%s1 + $0x8c8] sm:$0xff]
    %v305 = vld [vmem:[%s1 + $0x8d0] sm:$0xff]
    %v306 = vld [vmem:[%s1 + $0x8d8] sm:$0xff]
    %v307 = vld [vmem:[%s1 + $0x8e0] sm:$0xff]
    %v308 = vld [vmem:[%s1 + $0x8e8] sm:$0xff]
    %v309 = vld [vmem:[%s1 + $0x8f0] sm:$0xff]
    %v310 = vld [vmem:[%s1 + $0x8f8] sm:$0xff]
    %v311 = vld [vmem:[%s1 + $0x900] sm:$0xff]
    %v312 = vld [vmem:[%s1 + $0x908] sm:$0xff]
    %v313 = vld [vmem:[%s1 + $0x910] sm:$0xff]
    %v314 = vld [vmem:[%s1 + $0x918] sm:$0xff]
    %v315 = vld [vmem:[%s1 + $0x920] sm:$0xff]
    %v316 = vld [vmem:[%s1 + $0x928] sm:$0xff]
    %v317 = vld [vmem:[%s1 + $0x930] sm:$0xff]
    %v318 = vld [vmem:[%s1 + $0x938] sm:$0xff]
    %v319 = vld [vmem:[%s1 + $0x940] sm:$0xff]
    %v320 = vld [vmem:[%s1 + $0x948] sm:$0xff]
    %v321 = vld [vmem:[%s1 + $0x950] sm:$0xff]
    %v322 = vld [vmem:[%s1 + $0x958] sm:$0xff]
    %v323 = vld [vmem:[%s1 + $0x960] sm:$0xff]
    %v324 = vld [vmem:[%s1 + $0x968] sm:$0xff]
    %v325 = vld [vmem:[%s1 + $0x970] sm:$0xff]
    %v326 = vld [vmem:[%s1 + $0x978] sm:$0xff]
    %v327 = vld [vmem:[%s1 + $0x980] sm:$0xff]
    %v328 = vld [vmem:[%s1 + $0x988] sm:$0xff]
    %v329 = vld [vmem:[%s1 + $0x990] sm:$0xff]
    %v330 = vld [vmem:[%s1 + $0x998] sm:$0xff]
    %v331 = vld [vmem:[%s1 + $0x9a0] sm:$0xff]
    %v332 = vld [vmem:[%s1 + $0x9a8] sm:$0xff]
    %v333 = vld [vmem:[%s1 + $0x9b0] sm:$0xff]
    %v334 = vld [vmem:[%s1 + $0x9b8] sm:$0xff]
    %v335 = vld [vmem:[%s1 + $0x9c0] sm:$0xff]
    %v336 = vld [vmem:[%s1 + $0x9c8] sm:$0xff]
    %v337 = vld [vmem:[%s1 + $0x9d0] sm:$0xff]
    %v338 = vld [vmem:[%s1 + $0x9d8] sm:$0xff]
    %v339 = vld [vmem:[%s1 + $0x9e0] sm:$0xff]
    %v340 = vld [vmem:[%s1 + $0x9e8] sm:$0xff]
    %v341 = vld [vmem:[%s1 + $0x9f0] sm:$0xff]
    %v342 = vld [vmem:[%s1 + $0x9f8] sm:$0xff]
    %v343 = vld [vmem:[%s1 + $0xa00] sm:$0xff]
    %v344 = vld [vmem:[%s1 + $0xa08] sm:$0xff]
    %v345 = vld [vmem:[%s1 + $0xa10] sm:$0xff]
    %v346 = vld [vmem:[%s1 + $0xa18] sm:$0xff]
    %v347 = vld [vmem:[%s1 + $0xa20] sm:$0xff]
    %v348 = vld [vmem:[%s1 + $0xa28] sm:$0xff]
    %v349 = vld [vmem:[%s1 + $0xa30] sm:$0xff]
    %v350 = vld [vmem:[%s1 + $0xa38] sm:$0xff]
    %v351 = vld [vmem:[%s1 + $0xa40] sm:$0xff]
    %v352 = vld [vmem:[%s1 + $0xa48] sm:$0xff]
    %v353 = vld [vmem:[%s1 + $0xa50] sm:$0xff]
    %v354 = vld [vmem:[%s1 + $0xa58] sm:$0xff]
    %v355 = vld [vmem:[%s1 + $0xa60] sm:$0xff]
    %v356 = vld [vmem:[%s1 + $0xa68] sm:$0xff]
    %v357 = vld [vmem:[%s1 + $0xa70] sm:$0xff]
    %v358 = vld [vmem:[%s1 + $0xa78] sm:$0xff]
    %v359 = vld [vmem:[%s1 + $0xa80] sm:$0xff]
    %v360 = vld [vmem:[%s1 + $0xa88] sm:$0xff]
    %v361 = vld [vmem:[%s1 + $0xa90] sm:$0xff]
    %v362 = vld [vmem:[%s1 + $0xa98] sm:$0xff]
    %v363 = vld [vmem:[%s1 + $0xaa0] sm:$0xff]
    %v364 = vld [vmem:[%s1 + $0xaa8] sm:$0xff]
    %v365 = vld [vmem:[%s1 + $0xab0] sm:$0xff]
    %v366 = vld [vmem:[%s1 + $0xab8] sm:$0xff]
    %v367 = vld [vmem:[%s1 + $0xac0] sm:$0xff]
    %v368 = vld [vmem:[%s1 + $0xac8] sm:$0xff]
    %v369 = vld [vmem:[%s1 + $0xad0] sm:$0xff]
    %v370 = vld [vmem:[%s1 + $0xad8] sm:$0xff]
    %v371 = vld [vmem:[%s1 + $0xae0] sm:$0xff]
    %v372 = vld [vmem:[%s1 + $0xae8] sm:$0xff]
    %v373 = vld [vmem:[%s1 + $0xaf0] sm:$0xff]
    %v374 = vld [vmem:[%s1 + $0xaf8] sm:$0xff]
    %v375 = vld [vmem:[%s1 + $0xb00] sm:$0xff]
    %v376 = vld [vmem:[%s1 + $0xb08] sm:$0xff]
    %v377 = vld [vmem:[%s1 + $0xb10] sm:$0xff]
    %v378 = vld [vmem:[%s1 + $0xb18] sm:$0xff]
    %v379 = vld [vmem:[%s1 + $0xb20] sm:$0xff]
    %v380 = vld [vmem:[%s1 + $0xb28] sm:$0xff]
    %v381 = vld [vmem:[%s1 + $0xb30] sm:$0xff]
    %v382 = vld [vmem:[%s1 + $0xb38] sm:$0xff]
    %v383 = vld [vmem:[%s1 + $0xb40] sm:$0xff]
    %v384 = vld [vmem:[%s1 + $0xb48] sm:$0xff]
    %v385 = vld [vmem:[%s1 + $0xb50] sm:$0xff]
    %v386 = vld [vmem:[%s1 + $0xb58] sm:$0xff]
    %v387 = vld [vmem:[%s1 + $0xb60] sm:$0xff]
    %v388 = vld [vmem:[%s1 + $0xb68] sm:$0xff]
    %v389 = vld [vmem:[%s1 + $0xb70] sm:$0xff]
    %v390 = vld [vmem:[%s1 + $0xb78] sm:$0xff]
    %v391 = vld [vmem:[%s1 + $0xb80] sm:$0xff]
    %v392 = vld [vmem:[%s1 + $0xb88] sm:$0xff]
    %v393 = vld [vmem:[%s1 + $0xb90] sm:$0xff]
    %v394 = vld [vmem:[%s1 + $0xb98] sm:$0xff]
    %v395 = vld [vmem:[%s1 + $0xba0] sm:$0xff]
    %v396 = vld [vmem:[%s1 + $0xba8] sm:$0xff]
    %v397 = vld [vmem:[%s1 + $0xbb0] sm:$0xff]
    %v398 = vld [vmem:[%s1 + $0xbb8] sm:$0xff]
    %v399 = vld [vmem:[%s1 + $0xbc0] sm:$0xff]
    %v400 = vld [vmem:[%s1 + $0xbc8] sm:$0xff]
    %v401 = vld [vmem:[%s1 + $0xbd0] sm:$0xff]
    %v402 = vld [vmem:[%s1 + $0xbd8] sm:$0xff]
    %v403 = vld [vmem:[%s1 + $0xbe0] sm:$0xff]
    %v404 = vld [vmem:[%s1 + $0xbe8] sm:$0xff]
    %v405 = vld [vmem:[%s1 + $0xbf0] sm:$0xff]
    %v406 = vld [vmem:[%s1 + $0xbf8] sm:$0xff]
    %v407 = vld [vmem:[%s1 + $0xc00] sm:$0xff]
    %v408 = vld [vmem:[%s1 + $0xc08] sm:$0xff]
    %v409 = vld [vmem:[%s1 + $0xc10] sm:$0xff]
    %v410 = vld [vmem:[%s1 + $0xc18] sm:$0xff]
    %v411 = vld [vmem:[%s1 + $0xc20] sm:$0xff]
    %v412 = vld [vmem:[%s1 + $0xc28] sm:$0xff]
    %v413 = vld [vmem:[%s1 + $0xc30] sm:$0xff]
    %v414 = vld [vmem:[%s1 + $0xc38] sm:$0xff]
    %v415 = vld [vmem:[%s1 + $0xc40] sm:$0xff]
    %v416 = vld [vmem:[%s1 + $0xc48] sm:$0xff]
    %v417 = vld [vmem:[%s1 + $0xc50] sm:$0xff]
    %v418 = vld [vmem:[%s1 + $0xc58] sm:$0xff]
    %v419 = vld [vmem:[%s1 + $0xc60] sm:$0xff]
    %v420 = vld [vmem:[%s1 + $0xc68] sm:$0xff]
    %v421 = vld [vmem:[%s1 + $0xc70] sm:$0xff]
    %v422 = vld [vmem:[%s1 + $0xc78] sm:$0xff]
    %v423 = vld [vmem:[%s1 + $0xc80] sm:$0xff]
    %v424 = vld [vmem:[%s1 + $0xc88] sm:$0xff]
    %v425 = vld [vmem:[%s1 + $0xc90] sm:$0xff]
    %v426 = vld [vmem:[%s1 + $0xc98] sm:$0xff]
    %v427 = vld [vmem:[%s1 + $0xca0] sm:$0xff]
    %v428 = vld [vmem:[%s1 + $0xca8] sm:$0xff]
    %v429 = vld [vmem:[%s1 + $0xcb0] sm:$0xff]
    %v430 = vld [vmem:[%s1 + $0xcb8] sm:$0xff]
    %v431 = vld [vmem:[%s1 + $0xcc0] sm:$0xff]
    %v432 = vld [vmem:[%s1 + $0xcc8] sm:$0xff]
    %v433 = vld [vmem:[%s1 + $0xcd0] sm:$0xff]
    %v434 = vld [vmem:[%s1 + $0xcd8] sm:$0xff]
    %v435 = vld [vmem:[%s1 + $0xce0] sm:$0xff]
    %v436 = vld [vmem:[%s1 + $0xce8] sm:$0xff]
    %v437 = vld [vmem:[%s1 + $0xcf0] sm:$0xff]
    %v438 = vld [vmem:[%s1 + $0xcf8] sm:$0xff]
    %v439 = vld [vmem:[%s1 + $0xd00] sm:$0xff]
    %v440 = vld [vmem:[%s1 + $0xd08] sm:$0xff]
    %v441 = vld [vmem:[%s1 + $0xd10] sm:$0xff]
    %v442 = vld [vmem:[%s1 + $0xd18] sm:$0xff]
    %v443 = vld [vmem:[%s1 + $0xd20] sm:$0xff]
    %v444 = vld [vmem:[%s1 + $0xd28] sm:$0xff]
    %v445 = vld [vmem:[%s1 + $0xd30] sm:$0xff]
    %v446 = vld [vmem:[%s1 + $0xd38] sm:$0xff]
    %v447 = vld [vmem:[%s1 + $0xd40] sm:$0xff]
    %v448 = vld [vmem:[%s1 + $0xd48] sm:$0xff]
    %v449 = vld [vmem:[%s1 + $0xd50] sm:$0xff]
    %v450 = vld [vmem:[%s1 + $0xd58] sm:$0xff]
    %v451 = vld [vmem:[%s1 + $0xd60] sm:$0xff]
    %v452 = vld [vmem:[%s1 + $0xd68] sm:$0xff]
    %v453 = vld [vmem:[%s1 + $0xd70] sm:$0xff]
    %v454 = vld [vmem:[%s1 + $0xd78] sm:$0xff]
    %v455 = vld [vmem:[%s1 + $0xd80] sm:$0xff]
    %v456 = vld [vmem:[%s1 + $0xd88] sm:$0xff]
    %v457 = vld [vmem:[%s1 + $0xd90] sm:$0xff]
    %v458 = vld [vmem:[%s1 + $0xd98] sm:$0xff]
    %v459 = vld [vmem:[%s1 + $0xda0] sm:$0xff]
    %v460 = vld [vmem:[%s1 + $0xda8] sm:$0xff]
    %v461 = vld [vmem:[%s1 + $0xdb0] sm:$0xff]
    %v462 = vld [vmem:[%s1 + $0xdb8] sm:$0xff]
    %v463 = vld [vmem:[%s1 + $0xdc0] sm:$0xff]
    %v464 = vld [vmem:[%s1 + $0xdc8] sm:$0xff]
    %v465 = vld [vmem:[%s1 + $0xdd0] sm:$0xff]
    %v466 = vld [vmem:[%s1 + $0xdd8] sm:$0xff]
    %v467 = vld [vmem:[%s1 + $0xde0] sm:$0xff]
    %v468 = vld [vmem:[%s1 + $0xde8] sm:$0xff]
    %v469 = vld [vmem:[%s1 + $0xdf0] sm:$0xff]
    %v470 = vld [vmem:[%s1 + $0xdf8] sm:$0xff]
    %v471 = vld [vmem:[%s1 + $0xe00] sm:$0xff]
    %v472 = vld [vmem:[%s1 + $0xe08] sm:$0xff]
    %v473 = vld [vmem:[%s1 + $0xe10] sm:$0xff]
    %v474 = vld [vmem:[%s1 + $0xe18] sm:$0xff]
    %v475 = vld [vmem:[%s1 + $0xe20] sm:$0xff]
    %v476 = vld [vmem:[%s1 + $0xe28] sm:$0xff]
    %v477 = vld [vmem:[%s1 + $0xe30] sm:$0xff]
    %v478 = vld [vmem:[%s1 + $0xe38] sm:$0xff]
    %v479 = vld [vmem:[%s1 + $0xe40] sm:$0xff]
    %v480 = vld [vmem:[%s1 + $0xe48] sm:$0xff]
    %v481 = vld [vmem:[%s1 + $0xe50] sm:$0xff]
    %v482 = vld [vmem:[%s1 + $0xe58] sm:$0xff]
    %v483 = vld [vmem:[%s1 + $0xe60] sm:$0xff]
    %v484 = vld [vmem:[%s1 + $0xe68] sm:$0xff]
    %v485 = vld [vmem:[%s1 + $0xe70] sm:$0xff]
    %v486 = vld [vmem:[%s1 + $0xe78] sm:$0xff]
    %v487 = vld [vmem:[%s1 + $0xe80] sm:$0xff]
    %v488 = vld [vmem:[%s1 + $0xe88] sm:$0xff]
    %v489 = vld [vmem:[%s1 + $0xe90] sm:$0xff]
    %v490 = vld [vmem:[%s1 + $0xe98] sm:$0xff]
    %v491 = vld [vmem:[%s1 + $0xea0] sm:$0xff]
    %v492 = vld [vmem:[%s1 + $0xea8] sm:$0xff]
    %v493 = vld [vmem:[%s1 + $0xeb0] sm:$0xff]
    %v494 = vld [vmem:[%s1 + $0xeb8] sm:$0xff]
    %v495 = vld [vmem:[%s1 + $0xec0] sm:$0xff]
    %v496 = vld [vmem:[%s1 + $0xec8] sm:$0xff]
    %v497 = vld [vmem:[%s1 + $0xed0] sm:$0xff]
    %v498 = vld [vmem:[%s1 + $0xed8] sm:$0xff]
    %v499 = vld [vmem:[%s1 + $0xee0] sm:$0xff]
    %v500 = vld [vmem:[%s1 + $0xee8] sm:$0xff]
    %v501 = vld [vmem:[%s1 + $0xef0] sm:$0xff]
    %v502 = vld [vmem:[%s1 + $0xef8] sm:$0xff]
    %v503 = vld [vmem:[%s1 + $0xf00] sm:$0xff]
    %v504 = vld [vmem:[%s1 + $0xf08] sm:$0xff]
    %v505 = vld [vmem:[%s1 + $0xf10] sm:$0xff]
    %v506 = vld [vmem:[%s1 + $0xf18] sm:$0xff]
    %v507 = vld [vmem:[%s1 + $0xf20] sm:$0xff]
    %v508 = vld [vmem:[%s1 + $0xf28] sm:$0xff]
    %v509 = vld [vmem:[%s1 + $0xf30] sm:$0xff]
    %v510 = vld [vmem:[%s1 + $0xf38] sm:$0xff]
    %v511 = vld [vmem:[%s1 + $0xf40] sm:$0xff]
    %v512 = vld [vmem:[%s1 + $0xf48] sm:$0xff]
    %v513 = vld [vmem:[%s1 + $0xf50] sm:$0xff]
    %v514 = vld [vmem:[%s1 + $0xf58] sm:$0xff]
    %v515 = vld [vmem:[%s1 + $0xf60] sm:$0xff]
    %v516 = vld [vmem:[%s1 + $0xf68] sm:$0xff]
    %v517 = vld [vmem:[%s1 + $0xf70] sm:$0xff]
    %v518 = vld [vmem:[%s1 + $0xf78] sm:$0xff]
    %v519 = vld [vmem:[%s1 + $0xf80] sm:$0xff]
    %v520 = vld [vmem:[%s1 + $0xf88] sm:$0xff]
    %v521 = vld [vmem:[%s1 + $0xf90] sm:$0xff]
    %v522 = vld [vmem:[%s1 + $0xf98] sm:$0xff]
    %v523 = vld [vmem:[%s1 + $0xfa0] sm:$0xff]
    %v524 = vld [vmem:[%s1 + $0xfa8] sm:$0xff]
    %v525 = vld [vmem:[%s1 + $0xfb0] sm:$0xff]
    %v526 = vld [vmem:[%s1 + $0xfb8] sm:$0xff]
    %v527 = vld [vmem:[%s1 + $0xfc0] sm:$0xff]
    %v528 = vld [vmem:[%s1 + $0xfc8] sm:$0xff]
    %v529 = vld [vmem:[%s1 + $0xfd0] sm:$0xff]
    %v530 = vld [vmem:[%s1 + $0xfd8] sm:$0xff]
    %v531 = vld [vmem:[%s1 + $0xfe0] sm:$0xff]
    %v532 = vld [vmem:[%s1 + $0xfe8] sm:$0xff]
    %v533 = vld [vmem:[%s1 + $0xff0] sm:$0xff]
    %v534 = vld [vmem:[%s1 + $0xff8] sm:$0xff]
    %v535 = vld [vmem:[%s2] sm:$0xf]
    %v537 = vperm.slane %v535, 0
    %v538 = vperm.slane %v535, 1
    %v539 = vperm.slane %v535, 2
    %v540 = vperm.slane %v535, 3
    %547 = vst [vmem:[#allocation1] ss:$4 sm:$0xff] %v21
    %s548 = scalar_lea.vmem [#allocation1], 32
    %549 = vst [vmem:[%s548] ss:$4 sm:$0xff] %v22
    %v550 = vld.sshfl [vmem:[#allocation1] sm:$0xff pattern:$0x73625140]
    %v551 = vld.sshfl [vmem:[#allocation1 + $0x8] sm:$0xff pattern:$0x73625140]
    %v552 = vld.sshfl [vmem:[#allocation1 + $0x10] sm:$0xff pattern:$0x73625140]
    %v553 = vld.sshfl [vmem:[#allocation1 + $0x18] sm:$0xff pattern:$0x73625140]
    %v554 = vld.sshfl [vmem:[#allocation1 + $0x20] sm:$0xff pattern:$0x73625140]
    %v555 = vld.sshfl [vmem:[#allocation1 + $0x28] sm:$0xff pattern:$0x73625140]
    %v556 = vld.sshfl [vmem:[#allocation1 + $0x30] sm:$0xff pattern:$0x73625140]
    %v557 = vld.sshfl [vmem:[#allocation1 + $0x38] sm:$0xff pattern:$0x73625140]
    %566 = vmatpush.msra.mxu0 %v83
    %567 = vmatpush.msra.mxu0 %v79
    %568 = vmatpush.msra.mxu0 %v75
    %569 = vmatpush.msra.mxu0 %v71
    %570 = vmatpush.msra.mxu0 %v67
    %571 = vmatpush.msra.mxu0 %v63
    %572 = vmatpush.msra.mxu0 %v59
    %573 = vmatpush.msra.mxu0 %v55
    %574 = vmatpush.msra.mxu0 %v51
    %575 = vmatpush.msra.mxu0 %v47
    %576 = vmatpush.msra.mxu0 %v43
    %577 = vmatpush.msra.mxu0 %v39
    %578 = vmatpush.msra.mxu0 %v35
    %579 = vmatpush.msra.mxu0 %v31
    %580 = vmatpush.msra.mxu0 %v27
    %581 = vmatpush.msra.mxu0 %v23
    %582 = vmatmul.f32.gmra.mxu0 %v550
    %v583 = vpop.f32.mrf.mxu0
    %v584 = vadd.f32 %v537, %v583
    %585 = vdwg.mxu0
    %586 = vmatpush.msra.mxu0 %v147
    %587 = vmatpush.msra.mxu0 %v143
    %588 = vmatpush.msra.mxu0 %v139
    %589 = vmatpush.msra.mxu0 %v135
    %590 = vmatpush.msra.mxu0 %v131
    %591 = vmatpush.msra.mxu0 %v127
    %592 = vmatpush.msra.mxu0 %v123
    %593 = vmatpush.msra.mxu0 %v119
    %594 = vmatpush.msra.mxu0 %v115
    %595 = vmatpush.msra.mxu0 %v111
    %596 = vmatpush.msra.mxu0 %v107
    %597 = vmatpush.msra.mxu0 %v103
    %598 = vmatpush.msra.mxu0 %v99
    %599 = vmatpush.msra.mxu0 %v95
    %600 = vmatpush.msra.mxu0 %v91
    %601 = vmatpush.msra.mxu0 %v87
    %602 = vmatmul.f32.gmra.mxu0 %v551
    %v603 = vpop.f32.mrf.mxu0
    %v604 = vadd.f32 %v584, %v603
    %605 = vdwg.mxu0
    %606 = vmatpush.msra.mxu0 %v211
    %607 = vmatpush.msra.mxu0 %v207
    %608 = vmatpush.msra.mxu0 %v203
    %609 = vmatpush.msra.mxu0 %v199
    %610 = vmatpush.msra.mxu0 %v195
    %611 = vmatpush.msra.mxu0 %v191
    %612 = vmatpush.msra.mxu0 %v187
    %613 = vmatpush.msra.mxu0 %v183
    %614 = vmatpush.msra.mxu0 %v179
    %615 = vmatpush.msra.mxu0 %v175
    %616 = vmatpush.msra.mxu0 %v171
    %617 = vmatpush.msra.mxu0 %v167
    %618 = vmatpush.msra.mxu0 %v163
    %619 = vmatpush.msra.mxu0 %v159
    %620 = vmatpush.msra.mxu0 %v155
    %621 = vmatpush.msra.mxu0 %v151
    %622 = vmatmul.f32.gmra.mxu0 %v552
    %v623 = vpop.f32.mrf.mxu0
    %v624 = vadd.f32 %v604, %v623
    %625 = vdwg.mxu0
    %626 = vmatpush.msra.mxu0 %v275
    %627 = vmatpush.msra.mxu0 %v271
    %628 = vmatpush.msra.mxu0 %v267
    %629 = vmatpush.msra.mxu0 %v263
    %630 = vmatpush.msra.mxu0 %v259
    %631 = vmatpush.msra.mxu0 %v255
    %632 = vmatpush.msra.mxu0 %v251
    %633 = vmatpush.msra.mxu0 %v247
    %634 = vmatpush.msra.mxu0 %v243
    %635 = vmatpush.msra.mxu0 %v239
    %636 = vmatpush.msra.mxu0 %v235
    %637 = vmatpush.msra.mxu0 %v231
    %638 = vmatpush.msra.mxu0 %v227
    %639 = vmatpush.msra.mxu0 %v223
    %640 = vmatpush.msra.mxu0 %v219
    %641 = vmatpush.msra.mxu0 %v215
    %642 = vmatmul.f32.gmra.mxu0 %v553
    %v643 = vpop.f32.mrf.mxu0
    %v644 = vadd.f32 %v624, %v643
    %645 = vdwg.mxu0
    %646 = vmatpush.msra.mxu0 %v339
    %647 = vmatpush.msra.mxu0 %v335
    %648 = vmatpush.msra.mxu0 %v331
    %649 = vmatpush.msra.mxu0 %v327
    %650 = vmatpush.msra.mxu0 %v323
    %651 = vmatpush.msra.mxu0 %v319
    %652 = vmatpush.msra.mxu0 %v315
    %653 = vmatpush.msra.mxu0 %v311
    %654 = vmatpush.msra.mxu0 %v307
    %655 = vmatpush.msra.mxu0 %v303
    %656 = vmatpush.msra.mxu0 %v299
    %657 = vmatpush.msra.mxu0 %v295
    %658 = vmatpush.msra.mxu0 %v291
    %659 = vmatpush.msra.mxu0 %v287
    %660 = vmatpush.msra.mxu0 %v283
    %661 = vmatpush.msra.mxu0 %v279
    %662 = vmatmul.f32.gmra.mxu0 %v554
    %v663 = vpop.f32.mrf.mxu0
    %v664 = vadd.f32 %v644, %v663
    %665 = vdwg.mxu0
    %666 = vmatpush.msra.mxu0 %v403
    %667 = vmatpush.msra.mxu0 %v399
    %668 = vmatpush.msra.mxu0 %v395
    %669 = vmatpush.msra.mxu0 %v391
    %670 = vmatpush.msra.mxu0 %v387
    %671 = vmatpush.msra.mxu0 %v383
    %672 = vmatpush.msra.mxu0 %v379
    %673 = vmatpush.msra.mxu0 %v375
    %674 = vmatpush.msra.mxu0 %v371
    %675 = vmatpush.msra.mxu0 %v367
    %676 = vmatpush.msra.mxu0 %v363
    %677 = vmatpush.msra.mxu0 %v359
    %678 = vmatpush.msra.mxu0 %v355
    %679 = vmatpush.msra.mxu0 %v351
    %680 = vmatpush.msra.mxu0 %v347
    %681 = vmatpush.msra.mxu0 %v343
    %682 = vmatmul.f32.gmra.mxu0 %v555
    %v683 = vpop.f32.mrf.mxu0
    %v684 = vadd.f32 %v664, %v683
    %685 = vdwg.mxu0
    %686 = vmatpush.msra.mxu0 %v467
    %687 = vmatpush.msra.mxu0 %v463
    %688 = vmatpush.msra.mxu0 %v459
    %689 = vmatpush.msra.mxu0 %v455
    %690 = vmatpush.msra.mxu0 %v451
    %691 = vmatpush.msra.mxu0 %v447
    %692 = vmatpush.msra.mxu0 %v443
    %693 = vmatpush.msra.mxu0 %v439
    %694 = vmatpush.msra.mxu0 %v435
    %695 = vmatpush.msra.mxu0 %v431
    %696 = vmatpush.msra.mxu0 %v427
    %697 = vmatpush.msra.mxu0 %v423
    %698 = vmatpush.msra.mxu0 %v419
    %699 = vmatpush.msra.mxu0 %v415
    %700 = vmatpush.msra.mxu0 %v411
    %701 = vmatpush.msra.mxu0 %v407
    %702 = vmatmul.f32.gmra.mxu0 %v556
    %v703 = vpop.f32.mrf.mxu0
    %v704 = vadd.f32 %v684, %v703
    %705 = vdwg.mxu0
    %706 = vmatpush.msra.mxu0 %v531
    %707 = vmatpush.msra.mxu0 %v527
    %708 = vmatpush.msra.mxu0 %v523
    %709 = vmatpush.msra.mxu0 %v519
    %710 = vmatpush.msra.mxu0 %v515
    %711 = vmatpush.msra.mxu0 %v511
    %712 = vmatpush.msra.mxu0 %v507
    %713 = vmatpush.msra.mxu0 %v503
    %714 = vmatpush.msra.mxu0 %v499
    %715 = vmatpush.msra.mxu0 %v495
    %716 = vmatpush.msra.mxu0 %v491
    %717 = vmatpush.msra.mxu0 %v487
    %718 = vmatpush.msra.mxu0 %v483
    %719 = vmatpush.msra.mxu0 %v479
    %720 = vmatpush.msra.mxu0 %v475
    %721 = vmatpush.msra.mxu0 %v471
    %722 = vmatmul.f32.gmra.mxu0 %v557
    %v723 = vpop.f32.mrf.mxu0
    %v724 = vadd.f32 %v704, %v723
    %725 = vdwg.mxu0
    %726 = vmatpush.msra.mxu0 %v84
    %727 = vmatpush.msra.mxu0 %v80
    %728 = vmatpush.msra.mxu0 %v76
    %729 = vmatpush.msra.mxu0 %v72
    %730 = vmatpush.msra.mxu0 %v68
    %731 = vmatpush.msra.mxu0 %v64
    %732 = vmatpush.msra.mxu0 %v60
    %733 = vmatpush.msra.mxu0 %v56
    %734 = vmatpush.msra.mxu0 %v52
    %735 = vmatpush.msra.mxu0 %v48
    %736 = vmatpush.msra.mxu0 %v44
    %737 = vmatpush.msra.mxu0 %v40
    %738 = vmatpush.msra.mxu0 %v36
    %739 = vmatpush.msra.mxu0 %v32
    %740 = vmatpush.msra.mxu0 %v28
    %741 = vmatpush.msra.mxu0 %v24
    %742 = vmatmul.f32.gmra.mxu0 %v550
    %v743 = vpop.f32.mrf.mxu0
    %v744 = vadd.f32 %v538, %v743
    %745 = vdwg.mxu0
    %746 = vmatpush.msra.mxu0 %v148
    %747 = vmatpush.msra.mxu0 %v144
    %748 = vmatpush.msra.mxu0 %v140
    %749 = vmatpush.msra.mxu0 %v136
    %750 = vmatpush.msra.mxu0 %v132
    %751 = vmatpush.msra.mxu0 %v128
    %752 = vmatpush.msra.mxu0 %v124
    %753 = vmatpush.msra.mxu0 %v120
    %754 = vmatpush.msra.mxu0 %v116
    %755 = vmatpush.msra.mxu0 %v112
    %756 = vmatpush.msra.mxu0 %v108
    %757 = vmatpush.msra.mxu0 %v104
    %758 = vmatpush.msra.mxu0 %v100
    %759 = vmatpush.msra.mxu0 %v96
    %760 = vmatpush.msra.mxu0 %v92
    %761 = vmatpush.msra.mxu0 %v88
    %762 = vmatmul.f32.gmra.mxu0 %v551
    %v763 = vpop.f32.mrf.mxu0
    %v764 = vadd.f32 %v744, %v763
    %765 = vdwg.mxu0
    %766 = vmatpush.msra.mxu0 %v212
    %767 = vmatpush.msra.mxu0 %v208
    %768 = vmatpush.msra.mxu0 %v204
    %769 = vmatpush.msra.mxu0 %v200
    %770 = vmatpush.msra.mxu0 %v196
    %771 = vmatpush.msra.mxu0 %v192
    %772 = vmatpush.msra.mxu0 %v188
    %773 = vmatpush.msra.mxu0 %v184
    %774 = vmatpush.msra.mxu0 %v180
    %775 = vmatpush.msra.mxu0 %v176
    %776 = vmatpush.msra.mxu0 %v172
    %777 = vmatpush.msra.mxu0 %v168
    %778 = vmatpush.msra.mxu0 %v164
    %779 = vmatpush.msra.mxu0 %v160
    %780 = vmatpush.msra.mxu0 %v156
    %781 = vmatpush.msra.mxu0 %v152
    %782 = vmatmul.f32.gmra.mxu0 %v552
    %v783 = vpop.f32.mrf.mxu0
    %v784 = vadd.f32 %v764, %v783
    %785 = vdwg.mxu0
    %786 = vmatpush.msra.mxu0 %v276
    %787 = vmatpush.msra.mxu0 %v272
    %788 = vmatpush.msra.mxu0 %v268
    %789 = vmatpush.msra.mxu0 %v264
    %790 = vmatpush.msra.mxu0 %v260
    %791 = vmatpush.msra.mxu0 %v256
    %792 = vmatpush.msra.mxu0 %v252
    %793 = vmatpush.msra.mxu0 %v248
    %794 = vmatpush.msra.mxu0 %v244
    %795 = vmatpush.msra.mxu0 %v240
    %796 = vmatpush.msra.mxu0 %v236
    %797 = vmatpush.msra.mxu0 %v232
    %798 = vmatpush.msra.mxu0 %v228
    %799 = vmatpush.msra.mxu0 %v224
    %800 = vmatpush.msra.mxu0 %v220
    %801 = vmatpush.msra.mxu0 %v216
    %802 = vmatmul.f32.gmra.mxu0 %v553
    %v803 = vpop.f32.mrf.mxu0
    %v804 = vadd.f32 %v784, %v803
    %805 = vdwg.mxu0
    %806 = vmatpush.msra.mxu0 %v340
    %807 = vmatpush.msra.mxu0 %v336
    %808 = vmatpush.msra.mxu0 %v332
    %809 = vmatpush.msra.mxu0 %v328
    %810 = vmatpush.msra.mxu0 %v324
    %811 = vmatpush.msra.mxu0 %v320
    %812 = vmatpush.msra.mxu0 %v316
    %813 = vmatpush.msra.mxu0 %v312
    %814 = vmatpush.msra.mxu0 %v308
    %815 = vmatpush.msra.mxu0 %v304
    %816 = vmatpush.msra.mxu0 %v300
    %817 = vmatpush.msra.mxu0 %v296
    %818 = vmatpush.msra.mxu0 %v292
    %819 = vmatpush.msra.mxu0 %v288
    %820 = vmatpush.msra.mxu0 %v284
    %821 = vmatpush.msra.mxu0 %v280
    %822 = vmatmul.f32.gmra.mxu0 %v554
    %v823 = vpop.f32.mrf.mxu0
    %v824 = vadd.f32 %v804, %v823
    %825 = vdwg.mxu0
    %826 = vmatpush.msra.mxu0 %v404
    %827 = vmatpush.msra.mxu0 %v400
    %828 = vmatpush.msra.mxu0 %v396
    %829 = vmatpush.msra.mxu0 %v392
    %830 = vmatpush.msra.mxu0 %v388
    %831 = vmatpush.msra.mxu0 %v384
    %832 = vmatpush.msra.mxu0 %v380
    %833 = vmatpush.msra.mxu0 %v376
    %834 = vmatpush.msra.mxu0 %v372
    %835 = vmatpush.msra.mxu0 %v368
    %836 = vmatpush.msra.mxu0 %v364
    %837 = vmatpush.msra.mxu0 %v360
    %838 = vmatpush.msra.mxu0 %v356
    %839 = vmatpush.msra.mxu0 %v352
    %840 = vmatpush.msra.mxu0 %v348
    %841 = vmatpush.msra.mxu0 %v344
    %842 = vmatmul.f32.gmra.mxu0 %v555
    %v843 = vpop.f32.mrf.mxu0
    %v844 = vadd.f32 %v824, %v843
    %845 = vdwg.mxu0
    %846 = vmatpush.msra.mxu0 %v468
    %847 = vmatpush.msra.mxu0 %v464
    %848 = vmatpush.msra.mxu0 %v460
    %849 = vmatpush.msra.mxu0 %v456
    %850 = vmatpush.msra.mxu0 %v452
    %851 = vmatpush.msra.mxu0 %v448
    %852 = vmatpush.msra.mxu0 %v444
    %853 = vmatpush.msra.mxu0 %v440
    %854 = vmatpush.msra.mxu0 %v436
    %855 = vmatpush.msra.mxu0 %v432
    %856 = vmatpush.msra.mxu0 %v428
    %857 = vmatpush.msra.mxu0 %v424
    %858 = vmatpush.msra.mxu0 %v420
    %859 = vmatpush.msra.mxu0 %v416
    %860 = vmatpush.msra.mxu0 %v412
    %861 = vmatpush.msra.mxu0 %v408
    %862 = vmatmul.f32.gmra.mxu0 %v556
    %v863 = vpop.f32.mrf.mxu0
    %v864 = vadd.f32 %v844, %v863
    %865 = vdwg.mxu0
    %866 = vmatpush.msra.mxu0 %v532
    %867 = vmatpush.msra.mxu0 %v528
    %868 = vmatpush.msra.mxu0 %v524
    %869 = vmatpush.msra.mxu0 %v520
    %870 = vmatpush.msra.mxu0 %v516
    %871 = vmatpush.msra.mxu0 %v512
    %872 = vmatpush.msra.mxu0 %v508
    %873 = vmatpush.msra.mxu0 %v504
    %874 = vmatpush.msra.mxu0 %v500
    %875 = vmatpush.msra.mxu0 %v496
    %876 = vmatpush.msra.mxu0 %v492
    %877 = vmatpush.msra.mxu0 %v488
    %878 = vmatpush.msra.mxu0 %v484
    %879 = vmatpush.msra.mxu0 %v480
    %880 = vmatpush.msra.mxu0 %v476
    %881 = vmatpush.msra.mxu0 %v472
    %882 = vmatmul.f32.gmra.mxu0 %v557
    %v883 = vpop.f32.mrf.mxu0
    %v884 = vadd.f32 %v864, %v883
    %885 = vdwg.mxu0
    %886 = vmatpush.msra.mxu0 %v85
    %887 = vmatpush.msra.mxu0 %v81
    %888 = vmatpush.msra.mxu0 %v77
    %889 = vmatpush.msra.mxu0 %v73
    %890 = vmatpush.msra.mxu0 %v69
    %891 = vmatpush.msra.mxu0 %v65
    %892 = vmatpush.msra.mxu0 %v61
    %893 = vmatpush.msra.mxu0 %v57
    %894 = vmatpush.msra.mxu0 %v53
    %895 = vmatpush.msra.mxu0 %v49
    %896 = vmatpush.msra.mxu0 %v45
    %897 = vmatpush.msra.mxu0 %v41
    %898 = vmatpush.msra.mxu0 %v37
    %899 = vmatpush.msra.mxu0 %v33
    %900 = vmatpush.msra.mxu0 %v29
    %901 = vmatpush.msra.mxu0 %v25
    %902 = vmatmul.f32.gmra.mxu0 %v550
    %v903 = vpop.f32.mrf.mxu0
    %v904 = vadd.f32 %v539, %v903
    %905 = vdwg.mxu0
    %906 = vmatpush.msra.mxu0 %v149
    %907 = vmatpush.msra.mxu0 %v145
    %908 = vmatpush.msra.mxu0 %v141
    %909 = vmatpush.msra.mxu0 %v137
    %910 = vmatpush.msra.mxu0 %v133
    %911 = vmatpush.msra.mxu0 %v129
    %912 = vmatpush.msra.mxu0 %v125
    %913 = vmatpush.msra.mxu0 %v121
    %914 = vmatpush.msra.mxu0 %v117
    %915 = vmatpush.msra.mxu0 %v113
    %916 = vmatpush.msra.mxu0 %v109
    %917 = vmatpush.msra.mxu0 %v105
    %918 = vmatpush.msra.mxu0 %v101
    %919 = vmatpush.msra.mxu0 %v97
    %920 = vmatpush.msra.mxu0 %v93
    %921 = vmatpush.msra.mxu0 %v89
    %922 = vmatmul.f32.gmra.mxu0 %v551
    %v923 = vpop.f32.mrf.mxu0
    %v924 = vadd.f32 %v904, %v923
    %925 = vdwg.mxu0
    %926 = vmatpush.msra.mxu0 %v213
    %927 = vmatpush.msra.mxu0 %v209
    %928 = vmatpush.msra.mxu0 %v205
    %929 = vmatpush.msra.mxu0 %v201
    %930 = vmatpush.msra.mxu0 %v197
    %931 = vmatpush.msra.mxu0 %v193
    %932 = vmatpush.msra.mxu0 %v189
    %933 = vmatpush.msra.mxu0 %v185
    %934 = vmatpush.msra.mxu0 %v181
    %935 = vmatpush.msra.mxu0 %v177
    %936 = vmatpush.msra.mxu0 %v173
    %937 = vmatpush.msra.mxu0 %v169
    %938 = vmatpush.msra.mxu0 %v165
    %939 = vmatpush.msra.mxu0 %v161
    %940 = vmatpush.msra.mxu0 %v157
    %941 = vmatpush.msra.mxu0 %v153
    %942 = vmatmul.f32.gmra.mxu0 %v552
    %v943 = vpop.f32.mrf.mxu0
    %v944 = vadd.f32 %v924, %v943
    %945 = vdwg.mxu0
    %946 = vmatpush.msra.mxu0 %v277
    %947 = vmatpush.msra.mxu0 %v273
    %948 = vmatpush.msra.mxu0 %v269
    %949 = vmatpush.msra.mxu0 %v265
    %950 = vmatpush.msra.mxu0 %v261
    %951 = vmatpush.msra.mxu0 %v257
    %952 = vmatpush.msra.mxu0 %v253
    %953 = vmatpush.msra.mxu0 %v249
    %954 = vmatpush.msra.mxu0 %v245
    %955 = vmatpush.msra.mxu0 %v241
    %956 = vmatpush.msra.mxu0 %v237
    %957 = vmatpush.msra.mxu0 %v233
    %958 = vmatpush.msra.mxu0 %v229
    %959 = vmatpush.msra.mxu0 %v225
    %960 = vmatpush.msra.mxu0 %v221
    %961 = vmatpush.msra.mxu0 %v217
    %962 = vmatmul.f32.gmra.mxu0 %v553
    %v963 = vpop.f32.mrf.mxu0
    %v964 = vadd.f32 %v944, %v963
    %965 = vdwg.mxu0
    %966 = vmatpush.msra.mxu0 %v341
    %967 = vmatpush.msra.mxu0 %v337
    %968 = vmatpush.msra.mxu0 %v333
    %969 = vmatpush.msra.mxu0 %v329
    %970 = vmatpush.msra.mxu0 %v325
    %971 = vmatpush.msra.mxu0 %v321
    %972 = vmatpush.msra.mxu0 %v317
    %973 = vmatpush.msra.mxu0 %v313
    %974 = vmatpush.msra.mxu0 %v309
    %975 = vmatpush.msra.mxu0 %v305
    %976 = vmatpush.msra.mxu0 %v301
    %977 = vmatpush.msra.mxu0 %v297
    %978 = vmatpush.msra.mxu0 %v293
    %979 = vmatpush.msra.mxu0 %v289
    %980 = vmatpush.msra.mxu0 %v285
    %981 = vmatpush.msra.mxu0 %v281
    %982 = vmatmul.f32.gmra.mxu0 %v554
    %v983 = vpop.f32.mrf.mxu0
    %v984 = vadd.f32 %v964, %v983
    %985 = vdwg.mxu0
    %986 = vmatpush.msra.mxu0 %v405
    %987 = vmatpush.msra.mxu0 %v401
    %988 = vmatpush.msra.mxu0 %v397
    %989 = vmatpush.msra.mxu0 %v393
    %990 = vmatpush.msra.mxu0 %v389
    %991 = vmatpush.msra.mxu0 %v385
    %992 = vmatpush.msra.mxu0 %v381
    %993 = vmatpush.msra.mxu0 %v377
    %994 = vmatpush.msra.mxu0 %v373
    %995 = vmatpush.msra.mxu0 %v369
    %996 = vmatpush.msra.mxu0 %v365
    %997 = vmatpush.msra.mxu0 %v361
    %998 = vmatpush.msra.mxu0 %v357
    %999 = vmatpush.msra.mxu0 %v353
    %1000 = vmatpush.msra.mxu0 %v349
    %1001 = vmatpush.msra.mxu0 %v345
    %1002 = vmatmul.f32.gmra.mxu0 %v555
    %v1003 = vpop.f32.mrf.mxu0
    %v1004 = vadd.f32 %v984, %v1003
    %1005 = vdwg.mxu0
    %1006 = vmatpush.msra.mxu0 %v469
    %1007 = vmatpush.msra.mxu0 %v465
    %1008 = vmatpush.msra.mxu0 %v461
    %1009 = vmatpush.msra.mxu0 %v457
    %1010 = vmatpush.msra.mxu0 %v453
    %1011 = vmatpush.msra.mxu0 %v449
    %1012 = vmatpush.msra.mxu0 %v445
    %1013 = vmatpush.msra.mxu0 %v441
    %1014 = vmatpush.msra.mxu0 %v437
    %1015 = vmatpush.msra.mxu0 %v433
    %1016 = vmatpush.msra.mxu0 %v429
    %1017 = vmatpush.msra.mxu0 %v425
    %1018 = vmatpush.msra.mxu0 %v421
    %1019 = vmatpush.msra.mxu0 %v417
    %1020 = vmatpush.msra.mxu0 %v413
    %1021 = vmatpush.msra.mxu0 %v409
    %1022 = vmatmul.f32.gmra.mxu0 %v556
    %v1023 = vpop.f32.mrf.mxu0
    %v1024 = vadd.f32 %v1004, %v1023
    %1025 = vdwg.mxu0
    %1026 = vmatpush.msra.mxu0 %v533
    %1027 = vmatpush.msra.mxu0 %v529
    %1028 = vmatpush.msra.mxu0 %v525
    %1029 = vmatpush.msra.mxu0 %v521
    %1030 = vmatpush.msra.mxu0 %v517
    %1031 = vmatpush.msra.mxu0 %v513
    %1032 = vmatpush.msra.mxu0 %v509
    %1033 = vmatpush.msra.mxu0 %v505
    %1034 = vmatpush.msra.mxu0 %v501
    %1035 = vmatpush.msra.mxu0 %v497
    %1036 = vmatpush.msra.mxu0 %v493
    %1037 = vmatpush.msra.mxu0 %v489
    %1038 = vmatpush.msra.mxu0 %v485
    %1039 = vmatpush.msra.mxu0 %v481
    %1040 = vmatpush.msra.mxu0 %v477
    %1041 = vmatpush.msra.mxu0 %v473
    %1042 = vmatmul.f32.gmra.mxu0 %v557
    %v1043 = vpop.f32.mrf.mxu0
    %v1044 = vadd.f32 %v1024, %v1043
    %1045 = vdwg.mxu0
    %1046 = vmatpush.msra.mxu0 %v86
    %1047 = vmatpush.msra.mxu0 %v82
    %1048 = vmatpush.msra.mxu0 %v78
    %1049 = vmatpush.msra.mxu0 %v74
    %1050 = vmatpush.msra.mxu0 %v70
    %1051 = vmatpush.msra.mxu0 %v66
    %1052 = vmatpush.msra.mxu0 %v62
    %1053 = vmatpush.msra.mxu0 %v58
    %1054 = vmatpush.msra.mxu0 %v54
    %1055 = vmatpush.msra.mxu0 %v50
    %1056 = vmatpush.msra.mxu0 %v46
    %1057 = vmatpush.msra.mxu0 %v42
    %1058 = vmatpush.msra.mxu0 %v38
    %1059 = vmatpush.msra.mxu0 %v34
    %1060 = vmatpush.msra.mxu0 %v30
    %1061 = vmatpush.msra.mxu0 %v26
    %1062 = vmatmul.f32.gmra.mxu0 %v550
    %v1063 = vpop.f32.mrf.mxu0
    %v1064 = vadd.f32 %v540, %v1063
    %1065 = vdwg.mxu0
    %1066 = vmatpush.msra.mxu0 %v150
    %1067 = vmatpush.msra.mxu0 %v146
    %1068 = vmatpush.msra.mxu0 %v142
    %1069 = vmatpush.msra.mxu0 %v138
    %1070 = vmatpush.msra.mxu0 %v134
    %1071 = vmatpush.msra.mxu0 %v130
    %1072 = vmatpush.msra.mxu0 %v126
    %1073 = vmatpush.msra.mxu0 %v122
    %1074 = vmatpush.msra.mxu0 %v118
    %1075 = vmatpush.msra.mxu0 %v114
    %1076 = vmatpush.msra.mxu0 %v110
    %1077 = vmatpush.msra.mxu0 %v106
    %1078 = vmatpush.msra.mxu0 %v102
    %1079 = vmatpush.msra.mxu0 %v98
    %1080 = vmatpush.msra.mxu0 %v94
    %1081 = vmatpush.msra.mxu0 %v90
    %1082 = vmatmul.f32.gmra.mxu0 %v551
    %v1083 = vpop.f32.mrf.mxu0
    %v1084 = vadd.f32 %v1064, %v1083
    %1085 = vdwg.mxu0
    %1086 = vmatpush.msra.mxu0 %v214
    %1087 = vmatpush.msra.mxu0 %v210
    %1088 = vmatpush.msra.mxu0 %v206
    %1089 = vmatpush.msra.mxu0 %v202
    %1090 = vmatpush.msra.mxu0 %v198
    %1091 = vmatpush.msra.mxu0 %v194
    %1092 = vmatpush.msra.mxu0 %v190
    %1093 = vmatpush.msra.mxu0 %v186
    %1094 = vmatpush.msra.mxu0 %v182
    %1095 = vmatpush.msra.mxu0 %v178
    %1096 = vmatpush.msra.mxu0 %v174
    %1097 = vmatpush.msra.mxu0 %v170
    %1098 = vmatpush.msra.mxu0 %v166
    %1099 = vmatpush.msra.mxu0 %v162
    %1100 = vmatpush.msra.mxu0 %v158
    %1101 = vmatpush.msra.mxu0 %v154
    %1102 = vmatmul.f32.gmra.mxu0 %v552
    %v1103 = vpop.f32.mrf.mxu0
    %v1104 = vadd.f32 %v1084, %v1103
    %1105 = vdwg.mxu0
    %1106 = vmatpush.msra.mxu0 %v278
    %1107 = vmatpush.msra.mxu0 %v274
    %1108 = vmatpush.msra.mxu0 %v270
    %1109 = vmatpush.msra.mxu0 %v266
    %1110 = vmatpush.msra.mxu0 %v262
    %1111 = vmatpush.msra.mxu0 %v258
    %1112 = vmatpush.msra.mxu0 %v254
    %1113 = vmatpush.msra.mxu0 %v250
    %1114 = vmatpush.msra.mxu0 %v246
    %1115 = vmatpush.msra.mxu0 %v242
    %1116 = vmatpush.msra.mxu0 %v238
    %1117 = vmatpush.msra.mxu0 %v234
    %1118 = vmatpush.msra.mxu0 %v230
    %1119 = vmatpush.msra.mxu0 %v226
    %1120 = vmatpush.msra.mxu0 %v222
    %1121 = vmatpush.msra.mxu0 %v218
    %1122 = vmatmul.f32.gmra.mxu0 %v553
    %v1123 = vpop.f32.mrf.mxu0
    %v1124 = vadd.f32 %v1104, %v1123
    %1125 = vdwg.mxu0
    %1126 = vmatpush.msra.mxu0 %v342
    %1127 = vmatpush.msra.mxu0 %v338
    %1128 = vmatpush.msra.mxu0 %v334
    %1129 = vmatpush.msra.mxu0 %v330
    %1130 = vmatpush.msra.mxu0 %v326
    %1131 = vmatpush.msra.mxu0 %v322
    %1132 = vmatpush.msra.mxu0 %v318
    %1133 = vmatpush.msra.mxu0 %v314
    %1134 = vmatpush.msra.mxu0 %v310
    %1135 = vmatpush.msra.mxu0 %v306
    %1136 = vmatpush.msra.mxu0 %v302
    %1137 = vmatpush.msra.mxu0 %v298
    %1138 = vmatpush.msra.mxu0 %v294
    %1139 = vmatpush.msra.mxu0 %v290
    %1140 = vmatpush.msra.mxu0 %v286
    %1141 = vmatpush.msra.mxu0 %v282
    %1142 = vmatmul.f32.gmra.mxu0 %v554
    %v1143 = vpop.f32.mrf.mxu0
    %v1144 = vadd.f32 %v1124, %v1143
    %1145 = vdwg.mxu0
    %1146 = vmatpush.msra.mxu0 %v406
    %1147 = vmatpush.msra.mxu0 %v402
    %1148 = vmatpush.msra.mxu0 %v398
    %1149 = vmatpush.msra.mxu0 %v394
    %1150 = vmatpush.msra.mxu0 %v390
    %1151 = vmatpush.msra.mxu0 %v386
    %1152 = vmatpush.msra.mxu0 %v382
    %1153 = vmatpush.msra.mxu0 %v378
    %1154 = vmatpush.msra.mxu0 %v374
    %1155 = vmatpush.msra.mxu0 %v370
    %1156 = vmatpush.msra.mxu0 %v366
    %1157 = vmatpush.msra.mxu0 %v362
    %1158 = vmatpush.msra.mxu0 %v358
    %1159 = vmatpush.msra.mxu0 %v354
    %1160 = vmatpush.msra.mxu0 %v350
    %1161 = vmatpush.msra.mxu0 %v346
    %1162 = vmatmul.f32.gmra.mxu0 %v555
    %v1163 = vpop.f32.mrf.mxu0
    %v1164 = vadd.f32 %v1144, %v1163
    %1165 = vdwg.mxu0
    %1166 = vmatpush.msra.mxu0 %v470
    %1167 = vmatpush.msra.mxu0 %v466
    %1168 = vmatpush.msra.mxu0 %v462
    %1169 = vmatpush.msra.mxu0 %v458
    %1170 = vmatpush.msra.mxu0 %v454
    %1171 = vmatpush.msra.mxu0 %v450
    %1172 = vmatpush.msra.mxu0 %v446
    %1173 = vmatpush.msra.mxu0 %v442
    %1174 = vmatpush.msra.mxu0 %v438
    %1175 = vmatpush.msra.mxu0 %v434
    %1176 = vmatpush.msra.mxu0 %v430
    %1177 = vmatpush.msra.mxu0 %v426
    %1178 = vmatpush.msra.mxu0 %v422
    %1179 = vmatpush.msra.mxu0 %v418
    %1180 = vmatpush.msra.mxu0 %v414
    %1181 = vmatpush.msra.mxu0 %v410
    %1182 = vmatmul.f32.gmra.mxu0 %v556
    %v1183 = vpop.f32.mrf.mxu0
    %v1184 = vadd.f32 %v1164, %v1183
    %1185 = vdwg.mxu0
    %1186 = vmatpush.msra.mxu0 %v534
    %1187 = vmatpush.msra.mxu0 %v530
    %1188 = vmatpush.msra.mxu0 %v526
    %1189 = vmatpush.msra.mxu0 %v522
    %1190 = vmatpush.msra.mxu0 %v518
    %1191 = vmatpush.msra.mxu0 %v514
    %1192 = vmatpush.msra.mxu0 %v510
    %1193 = vmatpush.msra.mxu0 %v506
    %1194 = vmatpush.msra.mxu0 %v502
    %1195 = vmatpush.msra.mxu0 %v498
    %1196 = vmatpush.msra.mxu0 %v494
    %1197 = vmatpush.msra.mxu0 %v490
    %1198 = vmatpush.msra.mxu0 %v486
    %1199 = vmatpush.msra.mxu0 %v482
    %1200 = vmatpush.msra.mxu0 %v478
    %1201 = vmatpush.msra.mxu0 %v474
    %1202 = vmatmul.f32.gmra.mxu0 %v557
    %v1203 = vpop.f32.mrf.mxu0
    %v1204 = vadd.f32 %v1184, %v1203
    %1205 = vdwg.mxu0
    %v1206 = vmax.f32 %v724, 0.0
    %v1207 = vmax.f32 %v884, 0.0
    %v1208 = vmax.f32 %v1044, 0.0
    %v1209 = vmax.f32 %v1204, 0.0
    %v1210 = vld [vmem:[%s3] sm:$0xff]
    %v1211 = vld [vmem:[%s3 + $0x8] sm:$0xff]
    %v1212 = vld [vmem:[%s3 + $0x10] sm:$0xff]
    %v1213 = vld [vmem:[%s3 + $0x18] sm:$0xff]
    %v1214 = vld [vmem:[%s3 + $0x20] sm:$0xff]
    %v1215 = vld [vmem:[%s3 + $0x28] sm:$0xff]
    %v1216 = vld [vmem:[%s3 + $0x30] sm:$0xff]
    %v1217 = vld [vmem:[%s3 + $0x38] sm:$0xff]
    %v1218 = vld [vmem:[%s3 + $0x40] sm:$0xff]
    %v1219 = vld [vmem:[%s3 + $0x48] sm:$0xff]
    %v1220 = vld [vmem:[%s3 + $0x50] sm:$0xff]
    %v1221 = vld [vmem:[%s3 + $0x58] sm:$0xff]
    %v1222 = vld [vmem:[%s3 + $0x60] sm:$0xff]
    %v1223 = vld [vmem:[%s3 + $0x68] sm:$0xff]
    %v1224 = vld [vmem:[%s3 + $0x70] sm:$0xff]
    %v1225 = vld [vmem:[%s3 + $0x78] sm:$0xff]
    %v1226 = vld [vmem:[%s3 + $0x80] sm:$0xff]
    %v1227 = vld [vmem:[%s3 + $0x88] sm:$0xff]
    %v1228 = vld [vmem:[%s3 + $0x90] sm:$0xff]
    %v1229 = vld [vmem:[%s3 + $0x98] sm:$0xff]
    %v1230 = vld [vmem:[%s3 + $0xa0] sm:$0xff]
    %v1231 = vld [vmem:[%s3 + $0xa8] sm:$0xff]
    %v1232 = vld [vmem:[%s3 + $0xb0] sm:$0xff]
    %v1233 = vld [vmem:[%s3 + $0xb8] sm:$0xff]
    %v1234 = vld [vmem:[%s3 + $0xc0] sm:$0xff]
    %v1235 = vld [vmem:[%s3 + $0xc8] sm:$0xff]
    %v1236 = vld [vmem:[%s3 + $0xd0] sm:$0xff]
    %v1237 = vld [vmem:[%s3 + $0xd8] sm:$0xff]
    %v1238 = vld [vmem:[%s3 + $0xe0] sm:$0xff]
    %v1239 = vld [vmem:[%s3 + $0xe8] sm:$0xff]
    %v1240 = vld [vmem:[%s3 + $0xf0] sm:$0xff]
    %v1241 = vld [vmem:[%s3 + $0xf8] sm:$0xff]
    %v1242 = vld [vmem:[%s3 + $0x100] sm:$0xff]
    %v1243 = vld [vmem:[%s3 + $0x108] sm:$0xff]
    %v1244 = vld [vmem:[%s3 + $0x110] sm:$0xff]
    %v1245 = vld [vmem:[%s3 + $0x118] sm:$0xff]
    %v1246 = vld [vmem:[%s3 + $0x120] sm:$0xff]
    %v1247 = vld [vmem:[%s3 + $0x128] sm:$0xff]
    %v1248 = vld [vmem:[%s3 + $0x130] sm:$0xff]
    %v1249 = vld [vmem:[%s3 + $0x138] sm:$0xff]
    %v1250 = vld [vmem:[%s3 + $0x140] sm:$0xff]
    %v1251 = vld [vmem:[%s3 + $0x148] sm:$0xff]
    %v1252 = vld [vmem:[%s3 + $0x150] sm:$0xff]
    %v1253 = vld [vmem:[%s3 + $0x158] sm:$0xff]
    %v1254 = vld [vmem:[%s3 + $0x160] sm:$0xff]
    %v1255 = vld [vmem:[%s3 + $0x168] sm:$0xff]
    %v1256 = vld [vmem:[%s3 + $0x170] sm:$0xff]
    %v1257 = vld [vmem:[%s3 + $0x178] sm:$0xff]
    %v1258 = vld [vmem:[%s3 + $0x180] sm:$0xff]
    %v1259 = vld [vmem:[%s3 + $0x188] sm:$0xff]
    %v1260 = vld [vmem:[%s3 + $0x190] sm:$0xff]
    %v1261 = vld [vmem:[%s3 + $0x198] sm:$0xff]
    %v1262 = vld [vmem:[%s3 + $0x1a0] sm:$0xff]
    %v1263 = vld [vmem:[%s3 + $0x1a8] sm:$0xff]
    %v1264 = vld [vmem:[%s3 + $0x1b0] sm:$0xff]
    %v1265 = vld [vmem:[%s3 + $0x1b8] sm:$0xff]
    %v1266 = vld [vmem:[%s3 + $0x1c0] sm:$0xff]
    %v1267 = vld [vmem:[%s3 + $0x1c8] sm:$0xff]
    %v1268 = vld [vmem:[%s3 + $0x1d0] sm:$0xff]
    %v1269 = vld [vmem:[%s3 + $0x1d8] sm:$0xff]
    %v1270 = vld [vmem:[%s3 + $0x1e0] sm:$0xff]
    %v1271 = vld [vmem:[%s3 + $0x1e8] sm:$0xff]
    %v1272 = vld [vmem:[%s3 + $0x1f0] sm:$0xff]
    %v1273 = vld [vmem:[%s3 + $0x1f8] sm:$0xff]
    %v1274 = vld [vmem:[%s4] sm:$0x1]
    %v1276 = vperm.slane %v1274, 0
    %1278 = vmatpush.msra.mxu0 %v1225
    %1279 = vmatpush.msra.mxu0 %v1224
    %1280 = vmatpush.msra.mxu0 %v1223
    %1281 = vmatpush.msra.mxu0 %v1222
    %1282 = vmatpush.msra.mxu0 %v1221
    %1283 = vmatpush.msra.mxu0 %v1220
    %1284 = vmatpush.msra.mxu0 %v1219
    %1285 = vmatpush.msra.mxu0 %v1218
    %1286 = vmatpush.msra.mxu0 %v1217
    %1287 = vmatpush.msra.mxu0 %v1216
    %1288 = vmatpush.msra.mxu0 %v1215
    %1289 = vmatpush.msra.mxu0 %v1214
    %1290 = vmatpush.msra.mxu0 %v1213
    %1291 = vmatpush.msra.mxu0 %v1212
    %1292 = vmatpush.msra.mxu0 %v1211
    %1293 = vmatpush.msra.mxu0 %v1210
    %1294 = vmatmul.f32.gmra.mxu0 %v1206
    %v1295 = vpop.f32.mrf.mxu0
    %v1296 = vadd.f32 %v1276, %v1295
    %1297 = vdwg.mxu0
    %1298 = vmatpush.msra.mxu0 %v1241
    %1299 = vmatpush.msra.mxu0 %v1240
    %1300 = vmatpush.msra.mxu0 %v1239
    %1301 = vmatpush.msra.mxu0 %v1238
    %1302 = vmatpush.msra.mxu0 %v1237
    %1303 = vmatpush.msra.mxu0 %v1236
    %1304 = vmatpush.msra.mxu0 %v1235
    %1305 = vmatpush.msra.mxu0 %v1234
    %1306 = vmatpush.msra.mxu0 %v1233
    %1307 = vmatpush.msra.mxu0 %v1232
    %1308 = vmatpush.msra.mxu0 %v1231
    %1309 = vmatpush.msra.mxu0 %v1230
    %1310 = vmatpush.msra.mxu0 %v1229
    %1311 = vmatpush.msra.mxu0 %v1228
    %1312 = vmatpush.msra.mxu0 %v1227
    %1313 = vmatpush.msra.mxu0 %v1226
    %1314 = vmatmul.f32.gmra.mxu0 %v1207
    %v1315 = vpop.f32.mrf.mxu0
    %v1316 = vadd.f32 %v1296, %v1315
    %1317 = vdwg.mxu0
    %1318 = vmatpush.msra.mxu0 %v1257
    %1319 = vmatpush.msra.mxu0 %v1256
    %1320 = vmatpush.msra.mxu0 %v1255
    %1321 = vmatpush.msra.mxu0 %v1254
    %1322 = vmatpush.msra.mxu0 %v1253
    %1323 = vmatpush.msra.mxu0 %v1252
    %1324 = vmatpush.msra.mxu0 %v1251
    %1325 = vmatpush.msra.mxu0 %v1250
    %1326 = vmatpush.msra.mxu0 %v1249
    %1327 = vmatpush.msra.mxu0 %v1248
    %1328 = vmatpush.msra.mxu0 %v1247
    %1329 = vmatpush.msra.mxu0 %v1246
    %1330 = vmatpush.msra.mxu0 %v1245
    %1331 = vmatpush.msra.mxu0 %v1244
    %1332 = vmatpush.msra.mxu0 %v1243
    %1333 = vmatpush.msra.mxu0 %v1242
    %1334 = vmatmul.f32.gmra.mxu0 %v1208
    %v1335 = vpop.f32.mrf.mxu0
    %v1336 = vadd.f32 %v1316, %v1335
    %1337 = vdwg.mxu0
    %1338 = vmatpush.msra.mxu0 %v1273
    %1339 = vmatpush.msra.mxu0 %v1272
    %1340 = vmatpush.msra.mxu0 %v1271
    %1341 = vmatpush.msra.mxu0 %v1270
    %1342 = vmatpush.msra.mxu0 %v1269
    %1343 = vmatpush.msra.mxu0 %v1268
    %1344 = vmatpush.msra.mxu0 %v1267
    %1345 = vmatpush.msra.mxu0 %v1266
    %1346 = vmatpush.msra.mxu0 %v1265
    %1347 = vmatpush.msra.mxu0 %v1264
    %1348 = vmatpush.msra.mxu0 %v1263
    %1349 = vmatpush.msra.mxu0 %v1262
    %1350 = vmatpush.msra.mxu0 %v1261
    %1351 = vmatpush.msra.mxu0 %v1260
    %1352 = vmatpush.msra.mxu0 %v1259
    %1353 = vmatpush.msra.mxu0 %v1258
    %1354 = vmatmul.f32.gmra.mxu0 %v1209
    %v1355 = vpop.f32.mrf.mxu0
    %v1356 = vadd.f32 %v1336, %v1355
    %1357 = vdwg.mxu0
    %1358 = vst [vmem:[#allocation2] sm:$0x3] %v1356
    // Predicated region
    $region22: #{net_forward.5} parent=1 // pred_check
      _
    $region23: #{net_forward.5} parent=1 // pred_check_branch
      %1360 = sbr.rel (0) target = $region25
    $region24: #{net_forward.5} parent=1 // pred_region
      %1362 = vsyncadd [#allocation3], 0
      %s1364 = sshll.u32 [#allocation2], 4
      %s1365 = int_to_ptr.vmem [resolvable:$true] %s1364
      %s1366 = sshll.u32 %s5, 4
      %s1367 = int_to_ptr.hbm [resolvable:$true] %s1366
      %1369 = dma.vmem_to_hbm [thread:$0]  %s1365, 32, %s1367, [#allocation3]
    $region25: #{net_forward.5} parent=1 // pred_fallthru
      _
    // Predicated region
    $region26: #{net_forward.5} parent=1 // pred_check
      _
    $region27: #{net_forward.5} parent=1 // pred_check_branch
      %1371 = sbr.rel (0) target = $region29
    $region28: #{net_forward.5} parent=1 // pred_region
      %1373 = dma.done [#allocation3], 32
    $region29: #{net_forward.5} parent=1 // pred_fallthru
      _
    %1374 = vsyncpa [#allocation3], 1

// kernel: net_forward.4
$region0: #{net_forward.4}
  #allocation0 [shape = 'u32[]', space=smem, size = 0x4, offset = 0x4, fixed_abs, tag = 'smem constant byte address 0x4 - core index']
  #allocation1 [shape = 'u32[72,128]{1,0:T(1,128)}', space=vmem, size = 0x9000, scoped, tag = 'internal scratch']
  #allocation2 [shape = 'f32[128,64]{1,0:T(8,128)}', space=vmem, size = 0x10000, scoped, tag = 'scratch operand']
  %s0 = inlined_call_operand.vmem [shape: f32[2,12,12,32], index: 0, kind: input, shape index: {}]
  %s1 = inlined_call_operand.vmem [shape: f32[25,32,64], index: 1, kind: input, shape index: {}]
  %s2 = inlined_call_operand.vmem [shape: f32[1,64], index: 2, kind: input, shape index: {}]
  %s3 = inlined_call_operand.vmem [shape: f32[2,4,4,64], index: 3, kind: output, shape index: {}]
  %s4 = sld [smem:[#allocation0]]
  $region22: #{net_forward.4} parent=0
    _
  %s6 = ssub.s32 1, %s4
  %s7 = scalar_select 0, %s6, %s4
  // Predicated region
  $region2: #{net_forward.4} parent=0 // pred_check
    _
  $region3: #{net_forward.4} parent=0 // pred_check_branch
    %9 = sbr.rel (0) target = $region5
  $region4: #{net_forward.4} parent=0 // pred_region
    _
  $region5: #{net_forward.4} parent=0 // pred_fallthru
    _
  // Predicated region
  $region6: #{net_forward.4} parent=0 // pred_check
    _
  $region7: #{net_forward.4} parent=0 // pred_check_branch
    %11 = sbr.rel (0) target = $region9
  $region8: #{net_forward.4} parent=0 // pred_region
    _
  $region9: #{net_forward.4} parent=0 // pred_fallthru
    _
  // Predicated region
  $region10: #{net_forward.4} parent=0 // pred_check
    _
  $region11: #{net_forward.4} parent=0 // pred_check_branch
    %13 = sbr.rel (0) target = $region13
  $region12: #{net_forward.4} parent=0 // pred_region
    _
  $region13: #{net_forward.4} parent=0 // pred_fallthru
    _
  %v14 = vld [vmem:[%s0] sm:$0xff]
  %v15 = vld [vmem:[%s0 + $0x10] sm:$0xff]
  %v16 = vld [vmem:[%s0 + $0x20] sm:$0xff]
  %v17 = vld [vmem:[%s0 + $0x30] sm:$0xff]
  %v18 = vld [vmem:[%s0 + $0x40] sm:$0xff]
  %v19 = vld [vmem:[%s0 + $0x50] sm:$0xff]
  %v20 = vld [vmem:[%s0 + $0x60] sm:$0xff]
  %v21 = vld [vmem:[%s0 + $0x70] sm:$0xff]
  %s22 = scalar_lea.vmem %s0, 192
  %v23 = vld [vmem:[%s22] sm:$0xff]
  %v24 = vld [vmem:[%s22 + $0x10] sm:$0xff]
  %v25 = vld [vmem:[%s22 + $0x20] sm:$0xff]
  %v26 = vld [vmem:[%s22 + $0x30] sm:$0xff]
  %v27 = vld [vmem:[%s22 + $0x40] sm:$0xff]
  %v28 = vld [vmem:[%s22 + $0x50] sm:$0xff]
  %v29 = vld [vmem:[%s22 + $0x60] sm:$0xff]
  %v30 = vld [vmem:[%s22 + $0x70] sm:$0xff]
  %v31 = vld [vmem:[%s1] sm:$0xff]
  %v32 = vld [vmem:[%s1 + $0x8] sm:$0xff]
  %v33 = vld [vmem:[%s1 + $0x10] sm:$0xff]
  %v34 = vld [vmem:[%s1 + $0x18] sm:$0xff]
  %v35 = vld [vmem:[%s0 + $0x1] sm:$0xff]
  %v36 = vld [vmem:[%s0 + $0x11] sm:$0xff]
  %v37 = vld [vmem:[%s0 + $0x21] sm:$0xff]
  %v38 = vld [vmem:[%s0 + $0x31] sm:$0xff]
  %v39 = vld [vmem:[%s0 + $0x41] sm:$0xff]
  %v40 = vld [vmem:[%s0 + $0x51] sm:$0xff]
  %v41 = vld [vmem:[%s0 + $0x61] sm:$0xff]
  %v42 = vld [vmem:[%s0 + $0x71] sm:$0xff]
  %v43 = vld [vmem:[%s22 + $0x1] sm:$0xff]
  %v44 = vld [vmem:[%s22 + $0x11] sm:$0xff]
  %v45 = vld [vmem:[%s22 + $0x21] sm:$0xff]
  %v46 = vld [vmem:[%s22 + $0x31] sm:$0xff]
  %v47 = vld [vmem:[%s22 + $0x41] sm:$0xff]
  %v48 = vld [vmem:[%s22 + $0x51] sm:$0xff]
  %v49 = vld [vmem:[%s22 + $0x61] sm:$0xff]
  %v50 = vld [vmem:[%s22 + $0x71] sm:$0xff]
  %s51 = scalar_lea.vmem %s1, 32
  %v52 = vld [vmem:[%s51] sm:$0xff]
  %v53 = vld [vmem:[%s51 + $0x8] sm:$0xff]
  %v54 = vld [vmem:[%s51 + $0x10] sm:$0xff]
  %v55 = vld [vmem:[%s51 + $0x18] sm:$0xff]
  %vm56 = vcmask 261120
  %v58 = vsel %vm56, %v35, 0
  %v61 = vsel %vm56, %v36, 0
  %v64 = vsel %vm56, %v37, 0
  %v67 = vsel %vm56, %v38, 0
  %v70 = vsel %vm56, %v39, 0
  %v73 = vsel %vm56, %v40, 0
  %v76 = vsel %vm56, %v41, 0
  %v79 = vsel %vm56, %v42, 0
  %v82 = vsel %vm56, %v43, 0
  %v85 = vsel %vm56, %v44, 0
  %v88 = vsel %vm56, %v45, 0
  %v91 = vsel %vm56, %v46, 0
  %v94 = vsel %vm56, %v47, 0
  %v97 = vsel %vm56, %v48, 0
  %v100 = vsel %vm56, %v49, 0
  %v103 = vsel %vm56, %v50, 0
  %105 = vmatpush.msra.mxu0 0.0
  %106 = vmatpush.msra.mxu0 0.0
  %107 = vmatpush.msra.mxu0 0.0
  %108 = vmatpush.msra.mxu0 0.0
  %109 = vmatpush.msra.mxu0 0.0
  %110 = vmatpush.msra.mxu0 0.0
  %111 = vmatpush.msra.mxu0 0.0
  %112 = vmatpush.msra.mxu0 0.0
  %113 = vmatpush.msra.mxu0 0.0
  %114 = vmatpush.msra.mxu0 0.0
  %115 = vmatpush.msra.mxu0 0.0
  %116 = vmatpush.msra.mxu0 0.0
  %117 = vmatpush.msra.mxu0 %v55
  %118 = vmatpush.msra.mxu0 %v54
  %119 = vmatpush.msra.mxu0 %v53
  %120 = vmatpush.msra.mxu0 %v52
  %121 = vmatmul.f32.gmra.mxu0 %v58
  %v122 = vpop.f32.mrf.mxu0
  %v123 = vadd.f32 0.0, %v122
  %124 = vmatmul.f32.gmra.mxu0 %v61
  %v125 = vpop.f32.mrf.mxu0
  %v126 = vadd.f32 0.0, %v125
  %127 = vmatmul.f32.gmra.mxu0 %v64
  %v128 = vpop.f32.mrf.mxu0
  %v129 = vadd.f32 0.0, %v128
  %130 = vmatmul.f32.gmra.mxu0 %v67
  %v131 = vpop.f32.mrf.mxu0
  %v132 = vadd.f32 0.0, %v131
  %133 = vmatmul.f32.gmra.mxu0 %v70
  %v134 = vpop.f32.mrf.mxu0
  %v135 = vadd.f32 0.0, %v134
  %136 = vmatmul.f32.gmra.mxu0 %v73
  %v137 = vpop.f32.mrf.mxu0
  %v138 = vadd.f32 0.0, %v137
  %139 = vmatmul.f32.gmra.mxu0 %v76
  %v140 = vpop.f32.mrf.mxu0
  %v141 = vadd.f32 0.0, %v140
  %142 = vmatmul.f32.gmra.mxu0 %v79
  %v143 = vpop.f32.mrf.mxu0
  %v144 = vadd.f32 0.0, %v143
  %145 = vmatmul.f32.gmra.mxu0 %v82
  %v146 = vpop.f32.mrf.mxu0
  %v147 = vadd.f32 0.0, %v146
  %148 = vmatmul.f32.gmra.mxu0 %v85
  %v149 = vpop.f32.mrf.mxu0
  %v150 = vadd.f32 0.0, %v149
  %151 = vmatmul.f32.gmra.mxu0 %v88
  %v152 = vpop.f32.mrf.mxu0
  %v153 = vadd.f32 0.0, %v152
  %154 = vmatmul.f32.gmra.mxu0 %v91
  %v155 = vpop.f32.mrf.mxu0
  %v156 = vadd.f32 0.0, %v155
  %157 = vmatmul.f32.gmra.mxu0 %v94
  %v158 = vpop.f32.mrf.mxu0
  %v159 = vadd.f32 0.0, %v158
  %160 = vmatmul.f32.gmra.mxu0 %v97
  %v161 = vpop.f32.mrf.mxu0
  %v162 = vadd.f32 0.0, %v161
  %163 = vmatmul.f32.gmra.mxu0 %v100
  %v164 = vpop.f32.mrf.mxu0
  %v165 = vadd.f32 0.0, %v164
  %166 = vmatmul.f32.gmra.mxu0 %v103
  %v167 = vpop.f32.mrf.mxu0
  %v168 = vadd.f32 0.0, %v167
  %169 = vdwg.mxu0
  %v171 = vsel %vm56, %v14, 0
  %v174 = vsel %vm56, %v15, 0
  %v177 = vsel %vm56, %v16, 0
  %v180 = vsel %vm56, %v17, 0
  %v183 = vsel %vm56, %v18, 0
  %v186 = vsel %vm56, %v19, 0
  %v189 = vsel %vm56, %v20, 0
  %v192 = vsel %vm56, %v21, 0
  %v195 = vsel %vm56, %v23, 0
  %v198 = vsel %vm56, %v24, 0
  %v201 = vsel %vm56, %v25, 0
  %v204 = vsel %vm56, %v26, 0
  %v207 = vsel %vm56, %v27, 0
  %v210 = vsel %vm56, %v28, 0
  %v213 = vsel %vm56, %v29, 0
  %v216 = vsel %vm56, %v30, 0
  %218 = vmatpush.msra.mxu0 0.0
  %219 = vmatpush.msra.mxu0 0.0
  %220 = vmatpush.msra.mxu0 0.0
  %221 = vmatpush.msra.mxu0 0.0
  %222 = vmatpush.msra.mxu0 0.0
  %223 = vmatpush.msra.mxu0 0.0
  %224 = vmatpush.msra.mxu0 0.0
  %225 = vmatpush.msra.mxu0 0.0
  %226 = vmatpush.msra.mxu0 0.0
  %227 = vmatpush.msra.mxu0 0.0
  %228 = vmatpush.msra.mxu0 0.0
  %229 = vmatpush.msra.mxu0 0.0
  %230 = vmatpush.msra.mxu0 %v34
  %231 = vmatpush.msra.mxu0 %v33
  %232 = vmatpush.msra.mxu0 %v32
  %233 = vmatpush.msra.mxu0 %v31
  %234 = vmatmul.f32.gmra.mxu0 %v171
  %v235 = vpop.f32.mrf.mxu0
  %v236 = vadd.f32 %v123, %v235
  %237 = vmatmul.f32.gmra.mxu0 %v174
  %v238 = vpop.f32.mrf.mxu0
  %v239 = vadd.f32 %v126, %v238
  %240 = vmatmul.f32.gmra.mxu0 %v177
  %v241 = vpop.f32.mrf.mxu0
  %v242 = vadd.f32 %v129, %v241
  %243 = vmatmul.f32.gmra.mxu0 %v180
  %v244 = vpop.f32.mrf.mxu0
  %v245 = vadd.f32 %v132, %v244
  %246 = vmatmul.f32.gmra.mxu0 %v183
  %v247 = vpop.f32.mrf.mxu0
  %v248 = vadd.f32 %v135, %v247
  %249 = vmatmul.f32.gmra.mxu0 %v186
  %v250 = vpop.f32.mrf.mxu0
  %v251 = vadd.f32 %v138, %v250
  %252 = vmatmul.f32.gmra.mxu0 %v189
  %v253 = vpop.f32.mrf.mxu0
  %v254 = vadd.f32 %v141, %v253
  %255 = vmatmul.f32.gmra.mxu0 %v192
  %v256 = vpop.f32.mrf.mxu0
  %v257 = vadd.f32 %v144, %v256
  %258 = vmatmul.f32.gmra.mxu0 %v195
  %v259 = vpop.f32.mrf.mxu0
  %v260 = vadd.f32 %v147, %v259
  %261 = vmatmul.f32.gmra.mxu0 %v198
  %v262 = vpop.f32.mrf.mxu0
  %v263 = vadd.f32 %v150, %v262
  %264 = vmatmul.f32.gmra.mxu0 %v201
  %v265 = vpop.f32.mrf.mxu0
  %v266 = vadd.f32 %v153, %v265
  %267 = vmatmul.f32.gmra.mxu0 %v204
  %v268 = vpop.f32.mrf.mxu0
  %v269 = vadd.f32 %v156, %v268
  %270 = vmatmul.f32.gmra.mxu0 %v207
  %v271 = vpop.f32.mrf.mxu0
  %v272 = vadd.f32 %v159, %v271
  %273 = vmatmul.f32.gmra.mxu0 %v210
  %v274 = vpop.f32.mrf.mxu0
  %v275 = vadd.f32 %v162, %v274
  %276 = vmatmul.f32.gmra.mxu0 %v213
  %v277 = vpop.f32.mrf.mxu0
  %v278 = vadd.f32 %v165, %v277
  %279 = vmatmul.f32.gmra.mxu0 %v216
  %v280 = vpop.f32.mrf.mxu0
  %v281 = vadd.f32 %v168, %v280
  %282 = vdwg.mxu0
  %v283 = vld [vmem:[%s0 + $0x2] sm:$0xff]
  %v284 = vld [vmem:[%s0 + $0x12] sm:$0xff]
  %v285 = vld [vmem:[%s0 + $0x22] sm:$0xff]
  %v286 = vld [vmem:[%s0 + $0x32] sm:$0xff]
  %v287 = vld [vmem:[%s0 + $0x42] sm:$0xff]
  %v288 = vld [vmem:[%s0 + $0x52] sm:$0xff]
  %v289 = vld [vmem:[%s0 + $0x62] sm:$0xff]
  %v290 = vld [vmem:[%s0 + $0x72] sm:$0xff]
  %v291 = vld [vmem:[%s22 + $0x2] sm:$0xff]
  %v292 = vld [vmem:[%s22 + $0x12] sm:$0xff]
  %v293 = vld [vmem:[%s22 + $0x22] sm:$0xff]
  %v294 = vld [vmem:[%s22 + $0x32] sm:$0xff]
  %v295 = vld [vmem:[%s22 + $0x42] sm:$0xff]
  %v296 = vld [vmem:[%s22 + $0x52] sm:$0xff]
  %v297 = vld [vmem:[%s22 + $0x62] sm:$0xff]
  %v298 = vld [vmem:[%s22 + $0x72] sm:$0xff]
  %s299 = scalar_lea.vmem %s1, 64
  %v300 = vld [vmem:[%s299] sm:$0xff]
  %v301 = vld [vmem:[%s299 + $0x8] sm:$0xff]
  %v302 = vld [vmem:[%s299 + $0x10] sm:$0xff]
  %v303 = vld [vmem:[%s299 + $0x18] sm:$0xff]
  %v305 = vsel %vm56, %v283, 0
  %v308 = vsel %vm56, %v284, 0
  %v311 = vsel %vm56, %v285, 0
  %v314 = vsel %vm56, %v286, 0
  %v317 = vsel %vm56, %v287, 0
  %v320 = vsel %vm56, %v288, 0
  %v323 = vsel %vm56, %v289, 0
  %v326 = vsel %vm56, %v290, 0
  %v329 = vsel %vm56, %v291, 0
  %v332 = vsel %vm56, %v292, 0
  %v335 = vsel %vm56, %v293, 0
  %v338 = vsel %vm56, %v294, 0
  %v341 = vsel %vm56, %v295, 0
  %v344 = vsel %vm56, %v296, 0
  %v347 = vsel %vm56, %v297, 0
  %v350 = vsel %vm56, %v298, 0
  %352 = vmatpush.msra.mxu0 0.0
  %353 = vmatpush.msra.mxu0 0.0
  %354 = vmatpush.msra.mxu0 0.0
  %355 = vmatpush.msra.mxu0 0.0
  %356 = vmatpush.msra.mxu0 0.0
  %357 = vmatpush.msra.mxu0 0.0
  %358 = vmatpush.msra.mxu0 0.0
  %359 = vmatpush.msra.mxu0 0.0
  %360 = vmatpush.msra.mxu0 0.0
  %361 = vmatpush.msra.mxu0 0.0
  %362 = vmatpush.msra.mxu0 0.0
  %363 = vmatpush.msra.mxu0 0.0
  %364 = vmatpush.msra.mxu0 %v303
  %365 = vmatpush.msra.mxu0 %v302
  %366 = vmatpush.msra.mxu0 %v301
  %367 = vmatpush.msra.mxu0 %v300
  %368 = vmatmul.f32.gmra.mxu0 %v305
  %v369 = vpop.f32.mrf.mxu0
  %v370 = vadd.f32 0.0, %v369
  %371 = vmatmul.f32.gmra.mxu0 %v308
  %v372 = vpop.f32.mrf.mxu0
  %v373 = vadd.f32 0.0, %v372
  %374 = vmatmul.f32.gmra.mxu0 %v311
  %v375 = vpop.f32.mrf.mxu0
  %v376 = vadd.f32 0.0, %v375
  %377 = vmatmul.f32.gmra.mxu0 %v314
  %v378 = vpop.f32.mrf.mxu0
  %v379 = vadd.f32 0.0, %v378
  %380 = vmatmul.f32.gmra.mxu0 %v317
  %v381 = vpop.f32.mrf.mxu0
  %v382 = vadd.f32 0.0, %v381
  %383 = vmatmul.f32.gmra.mxu0 %v320
  %v384 = vpop.f32.mrf.mxu0
  %v385 = vadd.f32 0.0, %v384
  %386 = vmatmul.f32.gmra.mxu0 %v323
  %v387 = vpop.f32.mrf.mxu0
  %v388 = vadd.f32 0.0, %v387
  %389 = vmatmul.f32.gmra.mxu0 %v326
  %v390 = vpop.f32.mrf.mxu0
  %v391 = vadd.f32 0.0, %v390
  %392 = vmatmul.f32.gmra.mxu0 %v329
  %v393 = vpop.f32.mrf.mxu0
  %v394 = vadd.f32 0.0, %v393
  %395 = vmatmul.f32.gmra.mxu0 %v332
  %v396 = vpop.f32.mrf.mxu0
  %v397 = vadd.f32 0.0, %v396
  %398 = vmatmul.f32.gmra.mxu0 %v335
  %v399 = vpop.f32.mrf.mxu0
  %v400 = vadd.f32 0.0, %v399
  %401 = vmatmul.f32.gmra.mxu0 %v338
  %v402 = vpop.f32.mrf.mxu0
  %v403 = vadd.f32 0.0, %v402
  %404 = vmatmul.f32.gmra.mxu0 %v341
  %v405 = vpop.f32.mrf.mxu0
  %v406 = vadd.f32 0.0, %v405
  %407 = vmatmul.f32.gmra.mxu0 %v344
  %v408 = vpop.f32.mrf.mxu0
  %v409 = vadd.f32 0.0, %v408
  %410 = vmatmul.f32.gmra.mxu0 %v347
  %v411 = vpop.f32.mrf.mxu0
  %v412 = vadd.f32 0.0, %v411
  %413 = vmatmul.f32.gmra.mxu0 %v350
  %v414 = vpop.f32.mrf.mxu0
  %v415 = vadd.f32 0.0, %v414
  %416 = vdwg.mxu0
  %v417 = vadd.f32 %v236, %v370
  %v418 = vadd.f32 %v239, %v373
  %v419 = vadd.f32 %v242, %v376
  %v420 = vadd.f32 %v245, %v379
  %v421 = vadd.f32 %v248, %v382
  %v422 = vadd.f32 %v251, %v385
  %v423 = vadd.f32 %v254, %v388
  %v424 = vadd.f32 %v257, %v391
  %v425 = vadd.f32 %v260, %v394
  %v426 = vadd.f32 %v263, %v397
  %v427 = vadd.f32 %v266, %v400
  %v428 = vadd.f32 %v269, %v403
  %v429 = vadd.f32 %v272, %v406
  %v430 = vadd.f32 %v275, %v409
  %v431 = vadd.f32 %v278, %v412
  %v432 = vadd.f32 %v281, %v415
  %v433 = vld [vmem:[%s0 + $0x3] sm:$0xff]
  %v434 = vld [vmem:[%s0 + $0x13] sm:$0xff]
  %v435 = vld [vmem:[%s0 + $0x23] sm:$0xff]
  %v436 = vld [vmem:[%s0 + $0x33] sm:$0xff]
  %v437 = vld [vmem:[%s0 + $0x43] sm:$0xff]
  %v438 = vld [vmem:[%s0 + $0x53] sm:$0xff]
  %v439 = vld [vmem:[%s0 + $0x63] sm:$0xff]
  %v440 = vld [vmem:[%s0 + $0x73] sm:$0xff]
  %v441 = vld [vmem:[%s22 + $0x3] sm:$0xff]
  %v442 = vld [vmem:[%s22 + $0x13] sm:$0xff]
  %v443 = vld [vmem:[%s22 + $0x23] sm:$0xff]
  %v444 = vld [vmem:[%s22 + $0x33] sm:$0xff]
  %v445 = vld [vmem:[%s22 + $0x43] sm:$0xff]
  %v446 = vld [vmem:[%s22 + $0x53] sm:$0xff]
  %v447 = vld [vmem:[%s22 + $0x63] sm:$0xff]
  %v448 = vld [vmem:[%s22 + $0x73] sm:$0xff]
  %s449 = scalar_lea.vmem %s1, 96
  %v450 = vld [vmem:[%s449] sm:$0xff]
  %v451 = vld [vmem:[%s449 + $0x8] sm:$0xff]
  %v452 = vld [vmem:[%s449 + $0x10] sm:$0xff]
  %v453 = vld [vmem:[%s449 + $0x18] sm:$0xff]
  %v455 = vsel %vm56, %v433, 0
  %v458 = vsel %vm56, %v434, 0
  %v461 = vsel %vm56, %v435, 0
  %v464 = vsel %vm56, %v436, 0
  %v467 = vsel %vm56, %v437, 0
  %v470 = vsel %vm56, %v438, 0
  %v473 = vsel %vm56, %v439, 0
  %v476 = vsel %vm56, %v440, 0
  %v479 = vsel %vm56, %v441, 0
  %v482 = vsel %vm56, %v442, 0
  %v485 = vsel %vm56, %v443, 0
  %v488 = vsel %vm56, %v444, 0
  %v491 = vsel %vm56, %v445, 0
  %v494 = vsel %vm56, %v446, 0
  %v497 = vsel %vm56, %v447, 0
  %v500 = vsel %vm56, %v448, 0
  %502 = vmatpush.msra.mxu0 0.0
  %503 = vmatpush.msra.mxu0 0.0
  %504 = vmatpush.msra.mxu0 0.0
  %505 = vmatpush.msra.mxu0 0.0
  %506 = vmatpush.msra.mxu0 0.0
  %507 = vmatpush.msra.mxu0 0.0
  %508 = vmatpush.msra.mxu0 0.0
  %509 = vmatpush.msra.mxu0 0.0
  %510 = vmatpush.msra.mxu0 0.0
  %511 = vmatpush.msra.mxu0 0.0
  %512 = vmatpush.msra.mxu0 0.0
  %513 = vmatpush.msra.mxu0 0.0
  %514 = vmatpush.msra.mxu0 %v453
  %515 = vmatpush.msra.mxu0 %v452
  %516 = vmatpush.msra.mxu0 %v451
  %517 = vmatpush.msra.mxu0 %v450
  %518 = vmatmul.f32.gmra.mxu0 %v455
  %v519 = vpop.f32.mrf.mxu0
  %v520 = vadd.f32 0.0, %v519
  %521 = vmatmul.f32.gmra.mxu0 %v458
  %v522 = vpop.f32.mrf.mxu0
  %v523 = vadd.f32 0.0, %v522
  %524 = vmatmul.f32.gmra.mxu0 %v461
  %v525 = vpop.f32.mrf.mxu0
  %v526 = vadd.f32 0.0, %v525
  %527 = vmatmul.f32.gmra.mxu0 %v464
  %v528 = vpop.f32.mrf.mxu0
  %v529 = vadd.f32 0.0, %v528
  %530 = vmatmul.f32.gmra.mxu0 %v467
  %v531 = vpop.f32.mrf.mxu0
  %v532 = vadd.f32 0.0, %v531
  %533 = vmatmul.f32.gmra.mxu0 %v470
  %v534 = vpop.f32.mrf.mxu0
  %v535 = vadd.f32 0.0, %v534
  %536 = vmatmul.f32.gmra.mxu0 %v473
  %v537 = vpop.f32.mrf.mxu0
  %v538 = vadd.f32 0.0, %v537
  %539 = vmatmul.f32.gmra.mxu0 %v476
  %v540 = vpop.f32.mrf.mxu0
  %v541 = vadd.f32 0.0, %v540
  %542 = vmatmul.f32.gmra.mxu0 %v479
  %v543 = vpop.f32.mrf.mxu0
  %v544 = vadd.f32 0.0, %v543
  %545 = vmatmul.f32.gmra.mxu0 %v482
  %v546 = vpop.f32.mrf.mxu0
  %v547 = vadd.f32 0.0, %v546
  %548 = vmatmul.f32.gmra.mxu0 %v485
  %v549 = vpop.f32.mrf.mxu0
  %v550 = vadd.f32 0.0, %v549
  %551 = vmatmul.f32.gmra.mxu0 %v488
  %v552 = vpop.f32.mrf.mxu0
  %v553 = vadd.f32 0.0, %v552
  %554 = vmatmul.f32.gmra.mxu0 %v491
  %v555 = vpop.f32.mrf.mxu0
  %v556 = vadd.f32 0.0, %v555
  %557 = vmatmul.f32.gmra.mxu0 %v494
  %v558 = vpop.f32.mrf.mxu0
  %v559 = vadd.f32 0.0, %v558
  %560 = vmatmul.f32.gmra.mxu0 %v497
  %v561 = vpop.f32.mrf.mxu0
  %v562 = vadd.f32 0.0, %v561
  %563 = vmatmul.f32.gmra.mxu0 %v500
  %v564 = vpop.f32.mrf.mxu0
  %v565 = vadd.f32 0.0, %v564
  %566 = vdwg.mxu0
  %v567 = vadd.f32 %v417, %v520
  %v568 = vadd.f32 %v418, %v523
  %v569 = vadd.f32 %v419, %v526
  %v570 = vadd.f32 %v420, %v529
  %v571 = vadd.f32 %v421, %v532
  %v572 = vadd.f32 %v422, %v535
  %v573 = vadd.f32 %v423, %v538
  %v574 = vadd.f32 %v424, %v541
  %v575 = vadd.f32 %v425, %v544
  %v576 = vadd.f32 %v426, %v547
  %v577 = vadd.f32 %v427, %v550
  %v578 = vadd.f32 %v428, %v553
  %v579 = vadd.f32 %v429, %v556
  %v580 = vadd.f32 %v430, %v559
  %v581 = vadd.f32 %v431, %v562
  %v582 = vadd.f32 %v432, %v565
  %v583 = vld [vmem:[%s0 + $0x4] sm:$0xff]
  %v584 = vld [vmem:[%s0 + $0x14] sm:$0xff]
  %v585 = vld [vmem:[%s0 + $0x24] sm:$0xff]
  %v586 = vld [vmem:[%s0 + $0x34] sm:$0xff]
  %v587 = vld [vmem:[%s0 + $0x44] sm:$0xff]
  %v588 = vld [vmem:[%s0 + $0x54] sm:$0xff]
  %v589 = vld [vmem:[%s0 + $0x64] sm:$0xff]
  %v590 = vld [vmem:[%s0 + $0x74] sm:$0xff]
  %v591 = vld [vmem:[%s22 + $0x4] sm:$0xff]
  %v592 = vld [vmem:[%s22 + $0x14] sm:$0xff]
  %v593 = vld [vmem:[%s22 + $0x24] sm:$0xff]
  %v594 = vld [vmem:[%s22 + $0x34] sm:$0xff]
  %v595 = vld [vmem:[%s22 + $0x44] sm:$0xff]
  %v596 = vld [vmem:[%s22 + $0x54] sm:$0xff]
  %v597 = vld [vmem:[%s22 + $0x64] sm:$0xff]
  %v598 = vld [vmem:[%s22 + $0x74] sm:$0xff]
  %s599 = scalar_lea.vmem %s1, 128
  %v600 = vld [vmem:[%s599] sm:$0xff]
  %v601 = vld [vmem:[%s599 + $0x8] sm:$0xff]
  %v602 = vld [vmem:[%s599 + $0x10] sm:$0xff]
  %v603 = vld [vmem:[%s599 + $0x18] sm:$0xff]
  %v605 = vsel %vm56, %v583, 0
  %v608 = vsel %vm56, %v584, 0
  %v611 = vsel %vm56, %v585, 0
  %v614 = vsel %vm56, %v586, 0
  %v617 = vsel %vm56, %v587, 0
  %v620 = vsel %vm56, %v588, 0
  %v623 = vsel %vm56, %v589, 0
  %v626 = vsel %vm56, %v590, 0
  %v629 = vsel %vm56, %v591, 0
  %v632 = vsel %vm56, %v592, 0
  %v635 = vsel %vm56, %v593, 0
  %v638 = vsel %vm56, %v594, 0
  %v641 = vsel %vm56, %v595, 0
  %v644 = vsel %vm56, %v596, 0
  %v647 = vsel %vm56, %v597, 0
  %v650 = vsel %vm56, %v598, 0
  %652 = vmatpush.msra.mxu0 0.0
  %653 = vmatpush.msra.mxu0 0.0
  %654 = vmatpush.msra.mxu0 0.0
  %655 = vmatpush.msra.mxu0 0.0
  %656 = vmatpush.msra.mxu0 0.0
  %657 = vmatpush.msra.mxu0 0.0
  %658 = vmatpush.msra.mxu0 0.0
  %659 = vmatpush.msra.mxu0 0.0
  %660 = vmatpush.msra.mxu0 0.0
  %661 = vmatpush.msra.mxu0 0.0
  %662 = vmatpush.msra.mxu0 0.0
  %663 = vmatpush.msra.mxu0 0.0
  %664 = vmatpush.msra.mxu0 %v603
  %665 = vmatpush.msra.mxu0 %v602
  %666 = vmatpush.msra.mxu0 %v601
  %667 = vmatpush.msra.mxu0 %v600
  %668 = vmatmul.f32.gmra.mxu0 %v605
  %v669 = vpop.f32.mrf.mxu0
  %v670 = vadd.f32 0.0, %v669
  %671 = vmatmul.f32.gmra.mxu0 %v608
  %v672 = vpop.f32.mrf.mxu0
  %v673 = vadd.f32 0.0, %v672
  %674 = vmatmul.f32.gmra.mxu0 %v611
  %v675 = vpop.f32.mrf.mxu0
  %v676 = vadd.f32 0.0, %v675
  %677 = vmatmul.f32.gmra.mxu0 %v614
  %v678 = vpop.f32.mrf.mxu0
  %v679 = vadd.f32 0.0, %v678
  %680 = vmatmul.f32.gmra.mxu0 %v617
  %v681 = vpop.f32.mrf.mxu0
  %v682 = vadd.f32 0.0, %v681
  %683 = vmatmul.f32.gmra.mxu0 %v620
  %v684 = vpop.f32.mrf.mxu0
  %v685 = vadd.f32 0.0, %v684
  %686 = vmatmul.f32.gmra.mxu0 %v623
  %v687 = vpop.f32.mrf.mxu0
  %v688 = vadd.f32 0.0, %v687
  %689 = vmatmul.f32.gmra.mxu0 %v626
  %v690 = vpop.f32.mrf.mxu0
  %v691 = vadd.f32 0.0, %v690
  %692 = vmatmul.f32.gmra.mxu0 %v629
  %v693 = vpop.f32.mrf.mxu0
  %v694 = vadd.f32 0.0, %v693
  %695 = vmatmul.f32.gmra.mxu0 %v632
  %v696 = vpop.f32.mrf.mxu0
  %v697 = vadd.f32 0.0, %v696
  %698 = vmatmul.f32.gmra.mxu0 %v635
  %v699 = vpop.f32.mrf.mxu0
  %v700 = vadd.f32 0.0, %v699
  %701 = vmatmul.f32.gmra.mxu0 %v638
  %v702 = vpop.f32.mrf.mxu0
  %v703 = vadd.f32 0.0, %v702
  %704 = vmatmul.f32.gmra.mxu0 %v641
  %v705 = vpop.f32.mrf.mxu0
  %v706 = vadd.f32 0.0, %v705
  %707 = vmatmul.f32.gmra.mxu0 %v644
  %v708 = vpop.f32.mrf.mxu0
  %v709 = vadd.f32 0.0, %v708
  %710 = vmatmul.f32.gmra.mxu0 %v647
  %v711 = vpop.f32.mrf.mxu0
  %v712 = vadd.f32 0.0, %v711
  %713 = vmatmul.f32.gmra.mxu0 %v650
  %v714 = vpop.f32.mrf.mxu0
  %v715 = vadd.f32 0.0, %v714
  %716 = vdwg.mxu0
  %v717 = vadd.f32 %v567, %v670
  %v718 = vadd.f32 %v568, %v673
  %v719 = vadd.f32 %v569, %v676
  %v720 = vadd.f32 %v570, %v679
  %v721 = vadd.f32 %v571, %v682
  %v722 = vadd.f32 %v572, %v685
  %v723 = vadd.f32 %v573, %v688
  %v724 = vadd.f32 %v574, %v691
  %v725 = vadd.f32 %v575, %v694
  %v726 = vadd.f32 %v576, %v697
  %v727 = vadd.f32 %v577, %v700
  %v728 = vadd.f32 %v578, %v703
  %v729 = vadd.f32 %v579, %v706
  %v730 = vadd.f32 %v580, %v709
  %v731 = vadd.f32 %v581, %v712
  %v732 = vadd.f32 %v582, %v715
  %s733 = scalar_lea.vmem %s0, 16
  %v734 = vld [vmem:[%s733] sm:$0xff]
  %v735 = vld [vmem:[%s733 + $0x10] sm:$0xff]
  %v736 = vld [vmem:[%s733 + $0x20] sm:$0xff]
  %v737 = vld [vmem:[%s733 + $0x30] sm:$0xff]
  %v738 = vld [vmem:[%s733 + $0x40] sm:$0xff]
  %v739 = vld [vmem:[%s733 + $0x50] sm:$0xff]
  %v740 = vld [vmem:[%s733 + $0x60] sm:$0xff]
  %v741 = vld [vmem:[%s733 + $0x70] sm:$0xff]
  %s742 = scalar_lea.vmem %s0, 208
  %v743 = vld [vmem:[%s742] sm:$0xff]
  %v744 = vld [vmem:[%s742 + $0x10] sm:$0xff]
  %v745 = vld [vmem:[%s742 + $0x20] sm:$0xff]
  %v746 = vld [vmem:[%s742 + $0x30] sm:$0xff]
  %v747 = vld [vmem:[%s742 + $0x40] sm:$0xff]
  %v748 = vld [vmem:[%s742 + $0x50] sm:$0xff]
  %v749 = vld [vmem:[%s742 + $0x60] sm:$0xff]
  %v750 = vld [vmem:[%s742 + $0x70] sm:$0xff]
  %s751 = scalar_lea.vmem %s1, 160
  %v752 = vld [vmem:[%s751] sm:$0xff]
  %v753 = vld [vmem:[%s751 + $0x8] sm:$0xff]
  %v754 = vld [vmem:[%s751 + $0x10] sm:$0xff]
  %v755 = vld [vmem:[%s751 + $0x18] sm:$0xff]
  %v757 = vsel %vm56, %v734, 0
  %v760 = vsel %vm56, %v735, 0
  %v763 = vsel %vm56, %v736, 0
  %v766 = vsel %vm56, %v737, 0
  %v769 = vsel %vm56, %v738, 0
  %v772 = vsel %vm56, %v739, 0
  %v775 = vsel %vm56, %v740, 0
  %v778 = vsel %vm56, %v741, 0
  %v781 = vsel %vm56, %v743, 0
  %v784 = vsel %vm56, %v744, 0
  %v787 = vsel %vm56, %v745, 0
  %v790 = vsel %vm56, %v746, 0
  %v793 = vsel %vm56, %v747, 0
  %v796 = vsel %vm56, %v748, 0
  %v799 = vsel %vm56, %v749, 0
  %v802 = vsel %vm56, %v750, 0
  %804 = vmatpush.msra.mxu0 0.0
  %805 = vmatpush.msra.mxu0 0.0
  %806 = vmatpush.msra.mxu0 0.0
  %807 = vmatpush.msra.mxu0 0.0
  %808 = vmatpush.msra.mxu0 0.0
  %809 = vmatpush.msra.mxu0 0.0
  %810 = vmatpush.msra.mxu0 0.0
  %811 = vmatpush.msra.mxu0 0.0
  %812 = vmatpush.msra.mxu0 0.0
  %813 = vmatpush.msra.mxu0 0.0
  %814 = vmatpush.msra.mxu0 0.0
  %815 = vmatpush.msra.mxu0 0.0
  %816 = vmatpush.msra.mxu0 %v755
  %817 = vmatpush.msra.mxu0 %v754
  %818 = vmatpush.msra.mxu0 %v753
  %819 = vmatpush.msra.mxu0 %v752
  %820 = vmatmul.f32.gmra.mxu0 %v757
  %v821 = vpop.f32.mrf.mxu0
  %v822 = vadd.f32 0.0, %v821
  %823 = vmatmul.f32.gmra.mxu0 %v760
  %v824 = vpop.f32.mrf.mxu0
  %v825 = vadd.f32 0.0, %v824
  %826 = vmatmul.f32.gmra.mxu0 %v763
  %v827 = vpop.f32.mrf.mxu0
  %v828 = vadd.f32 0.0, %v827
  %829 = vmatmul.f32.gmra.mxu0 %v766
  %v830 = vpop.f32.mrf.mxu0
  %v831 = vadd.f32 0.0, %v830
  %832 = vmatmul.f32.gmra.mxu0 %v769
  %v833 = vpop.f32.mrf.mxu0
  %v834 = vadd.f32 0.0, %v833
  %835 = vmatmul.f32.gmra.mxu0 %v772
  %v836 = vpop.f32.mrf.mxu0
  %v837 = vadd.f32 0.0, %v836
  %838 = vmatmul.f32.gmra.mxu0 %v775
  %v839 = vpop.f32.mrf.mxu0
  %v840 = vadd.f32 0.0, %v839
  %841 = vmatmul.f32.gmra.mxu0 %v778
  %v842 = vpop.f32.mrf.mxu0
  %v843 = vadd.f32 0.0, %v842
  %844 = vmatmul.f32.gmra.mxu0 %v781
  %v845 = vpop.f32.mrf.mxu0
  %v846 = vadd.f32 0.0, %v845
  %847 = vmatmul.f32.gmra.mxu0 %v784
  %v848 = vpop.f32.mrf.mxu0
  %v849 = vadd.f32 0.0, %v848
  %850 = vmatmul.f32.gmra.mxu0 %v787
  %v851 = vpop.f32.mrf.mxu0
  %v852 = vadd.f32 0.0, %v851
  %853 = vmatmul.f32.gmra.mxu0 %v790
  %v854 = vpop.f32.mrf.mxu0
  %v855 = vadd.f32 0.0, %v854
  %856 = vmatmul.f32.gmra.mxu0 %v793
  %v857 = vpop.f32.mrf.mxu0
  %v858 = vadd.f32 0.0, %v857
  %859 = vmatmul.f32.gmra.mxu0 %v796
  %v860 = vpop.f32.mrf.mxu0
  %v861 = vadd.f32 0.0, %v860
  %862 = vmatmul.f32.gmra.mxu0 %v799
  %v863 = vpop.f32.mrf.mxu0
  %v864 = vadd.f32 0.0, %v863
  %865 = vmatmul.f32.gmra.mxu0 %v802
  %v866 = vpop.f32.mrf.mxu0
  %v867 = vadd.f32 0.0, %v866
  %868 = vdwg.mxu0
  %v869 = vadd.f32 %v717, %v822
  %v870 = vadd.f32 %v718, %v825
  %v871 = vadd.f32 %v719, %v828
  %v872 = vadd.f32 %v720, %v831
  %v873 = vadd.f32 %v721, %v834
  %v874 = vadd.f32 %v722, %v837
  %v875 = vadd.f32 %v723, %v840
  %v876 = vadd.f32 %v724, %v843
  %v877 = vadd.f32 %v725, %v846
  %v878 = vadd.f32 %v726, %v849
  %v879 = vadd.f32 %v727, %v852
  %v880 = vadd.f32 %v728, %v855
  %v881 = vadd.f32 %v729, %v858
  %v882 = vadd.f32 %v730, %v861
  %v883 = vadd.f32 %v731, %v864
  %v884 = vadd.f32 %v732, %v867
  %v885 = vld [vmem:[%s733 + $0x1] sm:$0xff]
  %v886 = vld [vmem:[%s733 + $0x11] sm:$0xff]
  %v887 = vld [vmem:[%s733 + $0x21] sm:$0xff]
  %v888 = vld [vmem:[%s733 + $0x31] sm:$0xff]
  %v889 = vld [vmem:[%s733 + $0x41] sm:$0xff]
  %v890 = vld [vmem:[%s733 + $0x51] sm:$0xff]
  %v891 = vld [vmem:[%s733 + $0x61] sm:$0xff]
  %v892 = vld [vmem:[%s733 + $0x71] sm:$0xff]
  %v893 = vld [vmem:[%s742 + $0x1] sm:$0xff]
  %v894 = vld [vmem:[%s742 + $0x11] sm:$0xff]
  %v895 = vld [vmem:[%s742 + $0x21] sm:$0xff]
  %v896 = vld [vmem:[%s742 + $0x31] sm:$0xff]
  %v897 = vld [vmem:[%s742 + $0x41] sm:$0xff]
  %v898 = vld [vmem:[%s742 + $0x51] sm:$0xff]
  %v899 = vld [vmem:[%s742 + $0x61] sm:$0xff]
  %v900 = vld [vmem:[%s742 + $0x71] sm:$0xff]
  %s901 = scalar_lea.vmem %s1, 192
  %v902 = vld [vmem:[%s901] sm:$0xff]
  %v903 = vld [vmem:[%s901 + $0x8] sm:$0xff]
  %v904 = vld [vmem:[%s901 + $0x10] sm:$0xff]
  %v905 = vld [vmem:[%s901 + $0x18] sm:$0xff]
  %v907 = vsel %vm56, %v885, 0
  %v910 = vsel %vm56, %v886, 0
  %v913 = vsel %vm56, %v887, 0
  %v916 = vsel %vm56, %v888, 0
  %v919 = vsel %vm56, %v889, 0
  %v922 = vsel %vm56, %v890, 0
  %v925 = vsel %vm56, %v891, 0
  %v928 = vsel %vm56, %v892, 0
  %v931 = vsel %vm56, %v893, 0
  %v934 = vsel %vm56, %v894, 0
  %v937 = vsel %vm56, %v895, 0
  %v940 = vsel %vm56, %v896, 0
  %v943 = vsel %vm56, %v897, 0
  %v946 = vsel %vm56, %v898, 0
  %v949 = vsel %vm56, %v899, 0
  %v952 = vsel %vm56, %v900, 0
  %954 = vmatpush.msra.mxu0 0.0
  %955 = vmatpush.msra.mxu0 0.0
  %956 = vmatpush.msra.mxu0 0.0
  %957 = vmatpush.msra.mxu0 0.0
  %958 = vmatpush.msra.mxu0 0.0
  %959 = vmatpush.msra.mxu0 0.0
  %960 = vmatpush.msra.mxu0 0.0
  %961 = vmatpush.msra.mxu0 0.0
  %962 = vmatpush.msra.mxu0 0.0
  %963 = vmatpush.msra.mxu0 0.0
  %964 = vmatpush.msra.mxu0 0.0
  %965 = vmatpush.msra.mxu0 0.0
  %966 = vmatpush.msra.mxu0 %v905
  %967 = vmatpush.msra.mxu0 %v904
  %968 = vmatpush.msra.mxu0 %v903
  %969 = vmatpush.msra.mxu0 %v902
  %970 = vmatmul.f32.gmra.mxu0 %v907
  %v971 = vpop.f32.mrf.mxu0
  %v972 = vadd.f32 0.0, %v971
  %973 = vmatmul.f32.gmra.mxu0 %v910
  %v974 = vpop.f32.mrf.mxu0
  %v975 = vadd.f32 0.0, %v974
  %976 = vmatmul.f32.gmra.mxu0 %v913
  %v977 = vpop.f32.mrf.mxu0
  %v978 = vadd.f32 0.0, %v977
  %979 = vmatmul.f32.gmra.mxu0 %v916
  %v980 = vpop.f32.mrf.mxu0
  %v981 = vadd.f32 0.0, %v980
  %982 = vmatmul.f32.gmra.mxu0 %v919
  %v983 = vpop.f32.mrf.mxu0
  %v984 = vadd.f32 0.0, %v983
  %985 = vmatmul.f32.gmra.mxu0 %v922
  %v986 = vpop.f32.mrf.mxu0
  %v987 = vadd.f32 0.0, %v986
  %988 = vmatmul.f32.gmra.mxu0 %v925
  %v989 = vpop.f32.mrf.mxu0
  %v990 = vadd.f32 0.0, %v989
  %991 = vmatmul.f32.gmra.mxu0 %v928
  %v992 = vpop.f32.mrf.mxu0
  %v993 = vadd.f32 0.0, %v992
  %994 = vmatmul.f32.gmra.mxu0 %v931
  %v995 = vpop.f32.mrf.mxu0
  %v996 = vadd.f32 0.0, %v995
  %997 = vmatmul.f32.gmra.mxu0 %v934
  %v998 = vpop.f32.mrf.mxu0
  %v999 = vadd.f32 0.0, %v998
  %1000 = vmatmul.f32.gmra.mxu0 %v937
  %v1001 = vpop.f32.mrf.mxu0
  %v1002 = vadd.f32 0.0, %v1001
  %1003 = vmatmul.f32.gmra.mxu0 %v940
  %v1004 = vpop.f32.mrf.mxu0
  %v1005 = vadd.f32 0.0, %v1004
  %1006 = vmatmul.f32.gmra.mxu0 %v943
  %v1007 = vpop.f32.mrf.mxu0
  %v1008 = vadd.f32 0.0, %v1007
  %1009 = vmatmul.f32.gmra.mxu0 %v946
  %v1010 = vpop.f32.mrf.mxu0
  %v1011 = vadd.f32 0.0, %v1010
  %1012 = vmatmul.f32.gmra.mxu0 %v949
  %v1013 = vpop.f32.mrf.mxu0
  %v1014 = vadd.f32 0.0, %v1013
  %1015 = vmatmul.f32.gmra.mxu0 %v952
  %v1016 = vpop.f32.mrf.mxu0
  %v1017 = vadd.f32 0.0, %v1016
  %1018 = vdwg.mxu0
  %v1019 = vadd.f32 %v869, %v972
  %v1020 = vadd.f32 %v870, %v975
  %v1021 = vadd.f32 %v871, %v978
  %v1022 = vadd.f32 %v872, %v981
  %v1023 = vadd.f32 %v873, %v984
  %v1024 = vadd.f32 %v874, %v987
  %v1025 = vadd.f32 %v875, %v990
  %v1026 = vadd.f32 %v876, %v993
  %v1027 = vadd.f32 %v877, %v996
  %v1028 = vadd.f32 %v878, %v999
  %v1029 = vadd.f32 %v879, %v1002
  %v1030 = vadd.f32 %v880, %v1005
  %v1031 = vadd.f32 %v881, %v1008
  %v1032 = vadd.f32 %v882, %v1011
  %v1033 = vadd.f32 %v883, %v1014
  %v1034 = vadd.f32 %v884, %v1017
  %v1035 = vld [vmem:[%s733 + $0x2] sm:$0xff]
  %v1036 = vld [vmem:[%s733 + $0x12] sm:$0xff]
  %v1037 = vld [vmem:[%s733 + $0x22] sm:$0xff]
  %v1038 = vld [vmem:[%s733 + $0x32] sm:$0xff]
  %v1039 = vld [vmem:[%s733 + $0x42] sm:$0xff]
  %v1040 = vld [vmem:[%s733 + $0x52] sm:$0xff]
  %v1041 = vld [vmem:[%s733 + $0x62] sm:$0xff]
  %v1042 = vld [vmem:[%s733 + $0x72] sm:$0xff]
  %v1043 = vld [vmem:[%s742 + $0x2] sm:$0xff]
  %v1044 = vld [vmem:[%s742 + $0x12] sm:$0xff]
  %v1045 = vld [vmem:[%s742 + $0x22] sm:$0xff]
  %v1046 = vld [vmem:[%s742 + $0x32] sm:$0xff]
  %v1047 = vld [vmem:[%s742 + $0x42] sm:$0xff]
  %v1048 = vld [vmem:[%s742 + $0x52] sm:$0xff]
  %v1049 = vld [vmem:[%s742 + $0x62] sm:$0xff]
  %v1050 = vld [vmem:[%s742 + $0x72] sm:$0xff]
  %s1051 = scalar_lea.vmem %s1, 224
  %v1052 = vld [vmem:[%s1051] sm:$0xff]
  %v1053 = vld [vmem:[%s1051 + $0x8] sm:$0xff]
  %v1054 = vld [vmem:[%s1051 + $0x10] sm:$0xff]
  %v1055 = vld [vmem:[%s1051 + $0x18] sm:$0xff]
  %v1057 = vsel %vm56, %v1035, 0
  %v1060 = vsel %vm56, %v1036, 0
  %v1063 = vsel %vm56, %v1037, 0
  %v1066 = vsel %vm56, %v1038, 0
  %v1069 = vsel %vm56, %v1039, 0
  %v1072 = vsel %vm56, %v1040, 0
  %v1075 = vsel %vm56, %v1041, 0
  %v1078 = vsel %vm56, %v1042, 0
  %v1081 = vsel %vm56, %v1043, 0
  %v1084 = vsel %vm56, %v1044, 0
  %v1087 = vsel %vm56, %v1045, 0
  %v1090 = vsel %vm56, %v1046, 0
  %v1093 = vsel %vm56, %v1047, 0
  %v1096 = vsel %vm56, %v1048, 0
  %v1099 = vsel %vm56, %v1049, 0
  %v1102 = vsel %vm56, %v1050, 0
  %1104 = vmatpush.msra.mxu0 0.0
  %1105 = vmatpush.msra.mxu0 0.0
  %1106 = vmatpush.msra.mxu0 0.0
  %1107 = vmatpush.msra.mxu0 0.0
  %1108 = vmatpush.msra.mxu0 0.0
  %1109 = vmatpush.msra.mxu0 0.0
  %1110 = vmatpush.msra.mxu0 0.0
  %1111 = vmatpush.msra.mxu0 0.0
  %1112 = vmatpush.msra.mxu0 0.0
  %1113 = vmatpush.msra.mxu0 0.0
  %1114 = vmatpush.msra.mxu0 0.0
  %1115 = vmatpush.msra.mxu0 0.0
  %1116 = vmatpush.msra.mxu0 %v1055
  %1117 = vmatpush.msra.mxu0 %v1054
  %1118 = vmatpush.msra.mxu0 %v1053
  %1119 = vmatpush.msra.mxu0 %v1052
  %1120 = vmatmul.f32.gmra.mxu0 %v1057
  %v1121 = vpop.f32.mrf.mxu0
  %v1122 = vadd.f32 0.0, %v1121
  %1123 = vmatmul.f32.gmra.mxu0 %v1060
  %v1124 = vpop.f32.mrf.mxu0
  %v1125 = vadd.f32 0.0, %v1124
  %1126 = vmatmul.f32.gmra.mxu0 %v1063
  %v1127 = vpop.f32.mrf.mxu0
  %v1128 = vadd.f32 0.0, %v1127
  %1129 = vmatmul.f32.gmra.mxu0 %v1066
  %v1130 = vpop.f32.mrf.mxu0
  %v1131 = vadd.f32 0.0, %v1130
  %1132 = vmatmul.f32.gmra.mxu0 %v1069
  %v1133 = vpop.f32.mrf.mxu0
  %v1134 = vadd.f32 0.0, %v1133
  %1135 = vmatmul.f32.gmra.mxu0 %v1072
  %v1136 = vpop.f32.mrf.mxu0
  %v1137 = vadd.f32 0.0, %v1136
  %1138 = vmatmul.f32.gmra.mxu0 %v1075
  %v1139 = vpop.f32.mrf.mxu0
  %v1140 = vadd.f32 0.0, %v1139
  %1141 = vmatmul.f32.gmra.mxu0 %v1078
  %v1142 = vpop.f32.mrf.mxu0
  %v1143 = vadd.f32 0.0, %v1142
  %1144 = vmatmul.f32.gmra.mxu0 %v1081
  %v1145 = vpop.f32.mrf.mxu0
  %v1146 = vadd.f32 0.0, %v1145
  %1147 = vmatmul.f32.gmra.mxu0 %v1084
  %v1148 = vpop.f32.mrf.mxu0
  %v1149 = vadd.f32 0.0, %v1148
  %1150 = vmatmul.f32.gmra.mxu0 %v1087
  %v1151 = vpop.f32.mrf.mxu0
  %v1152 = vadd.f32 0.0, %v1151
  %1153 = vmatmul.f32.gmra.mxu0 %v1090
  %v1154 = vpop.f32.mrf.mxu0
  %v1155 = vadd.f32 0.0, %v1154
  %1156 = vmatmul.f32.gmra.mxu0 %v1093
  %v1157 = vpop.f32.mrf.mxu0
  %v1158 = vadd.f32 0.0, %v1157
  %1159 = vmatmul.f32.gmra.mxu0 %v1096
  %v1160 = vpop.f32.mrf.mxu0
  %v1161 = vadd.f32 0.0, %v1160
  %1162 = vmatmul.f32.gmra.mxu0 %v1099
  %v1163 = vpop.f32.mrf.mxu0
  %v1164 = vadd.f32 0.0, %v1163
  %1165 = vmatmul.f32.gmra.mxu0 %v1102
  %v1166 = vpop.f32.mrf.mxu0
  %v1167 = vadd.f32 0.0, %v1166
  %1168 = vdwg.mxu0
  %v1169 = vadd.f32 %v1019, %v1122
  %v1170 = vadd.f32 %v1020, %v1125
  %v1171 = vadd.f32 %v1021, %v1128
  %v1172 = vadd.f32 %v1022, %v1131
  %v1173 = vadd.f32 %v1023, %v1134
  %v1174 = vadd.f32 %v1024, %v1137
  %v1175 = vadd.f32 %v1025, %v1140
  %v1176 = vadd.f32 %v1026, %v1143
  %v1177 = vadd.f32 %v1027, %v1146
  %v1178 = vadd.f32 %v1028, %v1149
  %v1179 = vadd.f32 %v1029, %v1152
  %v1180 = vadd.f32 %v1030, %v1155
  %v1181 = vadd.f32 %v1031, %v1158
  %v1182 = vadd.f32 %v1032, %v1161
  %v1183 = vadd.f32 %v1033, %v1164
  %v1184 = vadd.f32 %v1034, %v1167
  %v1185 = vld [vmem:[%s733 + $0x3] sm:$0xff]
  %v1186 = vld [vmem:[%s733 + $0x13] sm:$0xff]
  %v1187 = vld [vmem:[%s733 + $0x23] sm:$0xff]
  %v1188 = vld [vmem:[%s733 + $0x33] sm:$0xff]
  %v1189 = vld [vmem:[%s733 + $0x43] sm:$0xff]
  %v1190 = vld [vmem:[%s733 + $0x53] sm:$0xff]
  %v1191 = vld [vmem:[%s733 + $0x63] sm:$0xff]
  %v1192 = vld [vmem:[%s733 + $0x73] sm:$0xff]
  %v1193 = vld [vmem:[%s742 + $0x3] sm:$0xff]
  %v1194 = vld [vmem:[%s742 + $0x13] sm:$0xff]
  %v1195 = vld [vmem:[%s742 + $0x23] sm:$0xff]
  %v1196 = vld [vmem:[%s742 + $0x33] sm:$0xff]
  %v1197 = vld [vmem:[%s742 + $0x43] sm:$0xff]
  %v1198 = vld [vmem:[%s742 + $0x53] sm:$0xff]
  %v1199 = vld [vmem:[%s742 + $0x63] sm:$0xff]
  %v1200 = vld [vmem:[%s742 + $0x73] sm:$0xff]
  %s1201 = scalar_lea.vmem %s1, 256
  %v1202 = vld [vmem:[%s1201] sm:$0xff]
  %v1203 = vld [vmem:[%s1201 + $0x8] sm:$0xff]
  %v1204 = vld [vmem:[%s1201 + $0x10] sm:$0xff]
  %v1205 = vld [vmem:[%s1201 + $0x18] sm:$0xff]
  %v1207 = vsel %vm56, %v1185, 0
  %v1210 = vsel %vm56, %v1186, 0
  %v1213 = vsel %vm56, %v1187, 0
  %v1216 = vsel %vm56, %v1188, 0
  %v1219 = vsel %vm56, %v1189, 0
  %v1222 = vsel %vm56, %v1190, 0
  %v1225 = vsel %vm56, %v1191, 0
  %v1228 = vsel %vm56, %v1192, 0
  %v1231 = vsel %vm56, %v1193, 0
  %v1234 = vsel %vm56, %v1194, 0
  %v1237 = vsel %vm56, %v1195, 0
  %v1240 = vsel %vm56, %v1196, 0
  %v1243 = vsel %vm56, %v1197, 0
  %v1246 = vsel %vm56, %v1198, 0
  %v1249 = vsel %vm56, %v1199, 0
  %v1252 = vsel %vm56, %v1200, 0
  %1254 = vmatpush.msra.mxu0 0.0
  %1255 = vmatpush.msra.mxu0 0.0
  %1256 = vmatpush.msra.mxu0 0.0
  %1257 = vmatpush.msra.mxu0 0.0
  %1258 = vmatpush.msra.mxu0 0.0
  %1259 = vmatpush.msra.mxu0 0.0
  %1260 = vmatpush.msra.mxu0 0.0
  %1261 = vmatpush.msra.mxu0 0.0
  %1262 = vmatpush.msra.mxu0 0.0
  %1263 = vmatpush.msra.mxu0 0.0
  %1264 = vmatpush.msra.mxu0 0.0
  %1265 = vmatpush.msra.mxu0 0.0
  %1266 = vmatpush.msra.mxu0 %v1205
  %1267 = vmatpush.msra.mxu0 %v1204
  %1268 = vmatpush.msra.mxu0 %v1203
  %1269 = vmatpush.msra.mxu0 %v1202
  %1270 = vmatmul.f32.gmra.mxu0 %v1207
  %v1271 = vpop.f32.mrf.mxu0
  %v1272 = vadd.f32 0.0, %v1271
  %1273 = vmatmul.f32.gmra.mxu0 %v1210
  %v1274 = vpop.f32.mrf.mxu0
  %v1275 = vadd.f32 0.0, %v1274
  %1276 = vmatmul.f32.gmra.mxu0 %v1213
  %v1277 = vpop.f32.mrf.mxu0
  %v1278 = vadd.f32 0.0, %v1277
  %1279 = vmatmul.f32.gmra.mxu0 %v1216
  %v1280 = vpop.f32.mrf.mxu0
  %v1281 = vadd.f32 0.0, %v1280
  %1282 = vmatmul.f32.gmra.mxu0 %v1219
  %v1283 = vpop.f32.mrf.mxu0
  %v1284 = vadd.f32 0.0, %v1283
  %1285 = vmatmul.f32.gmra.mxu0 %v1222
  %v1286 = vpop.f32.mrf.mxu0
  %v1287 = vadd.f32 0.0, %v1286
  %1288 = vmatmul.f32.gmra.mxu0 %v1225
  %v1289 = vpop.f32.mrf.mxu0
  %v1290 = vadd.f32 0.0, %v1289
  %1291 = vmatmul.f32.gmra.mxu0 %v1228
  %v1292 = vpop.f32.mrf.mxu0
  %v1293 = vadd.f32 0.0, %v1292
  %1294 = vmatmul.f32.gmra.mxu0 %v1231
  %v1295 = vpop.f32.mrf.mxu0
  %v1296 = vadd.f32 0.0, %v1295
  %1297 = vmatmul.f32.gmra.mxu0 %v1234
  %v1298 = vpop.f32.mrf.mxu0
  %v1299 = vadd.f32 0.0, %v1298
  %1300 = vmatmul.f32.gmra.mxu0 %v1237
  %v1301 = vpop.f32.mrf.mxu0
  %v1302 = vadd.f32 0.0, %v1301
  %1303 = vmatmul.f32.gmra.mxu0 %v1240
  %v1304 = vpop.f32.mrf.mxu0
  %v1305 = vadd.f32 0.0, %v1304
  %1306 = vmatmul.f32.gmra.mxu0 %v1243
  %v1307 = vpop.f32.mrf.mxu0
  %v1308 = vadd.f32 0.0, %v1307
  %1309 = vmatmul.f32.gmra.mxu0 %v1246
  %v1310 = vpop.f32.mrf.mxu0
  %v1311 = vadd.f32 0.0, %v1310
  %1312 = vmatmul.f32.gmra.mxu0 %v1249
  %v1313 = vpop.f32.mrf.mxu0
  %v1314 = vadd.f32 0.0, %v1313
  %1315 = vmatmul.f32.gmra.mxu0 %v1252
  %v1316 = vpop.f32.mrf.mxu0
  %v1317 = vadd.f32 0.0, %v1316
  %1318 = vdwg.mxu0
  %v1319 = vadd.f32 %v1169, %v1272
  %v1320 = vadd.f32 %v1170, %v1275
  %v1321 = vadd.f32 %v1171, %v1278
  %v1322 = vadd.f32 %v1172, %v1281
  %v1323 = vadd.f32 %v1173, %v1284
  %v1324 = vadd.f32 %v1174, %v1287
  %v1325 = vadd.f32 %v1175, %v1290
  %v1326 = vadd.f32 %v1176, %v1293
  %v1327 = vadd.f32 %v1177, %v1296
  %v1328 = vadd.f32 %v1178, %v1299
  %v1329 = vadd.f32 %v1179, %v1302
  %v1330 = vadd.f32 %v1180, %v1305
  %v1331 = vadd.f32 %v1181, %v1308
  %v1332 = vadd.f32 %v1182, %v1311
  %v1333 = vadd.f32 %v1183, %v1314
  %v1334 = vadd.f32 %v1184, %v1317
  %v1335 = vld [vmem:[%s733 + $0x4] sm:$0xff]
  %v1336 = vld [vmem:[%s733 + $0x14] sm:$0xff]
  %v1337 = vld [vmem:[%s733 + $0x24] sm:$0xff]
  %v1338 = vld [vmem:[%s733 + $0x34] sm:$0xff]
  %v1339 = vld [vmem:[%s733 + $0x44] sm:$0xff]
  %v1340 = vld [vmem:[%s733 + $0x54] sm:$0xff]
  %v1341 = vld [vmem:[%s733 + $0x64] sm:$0xff]
  %v1342 = vld [vmem:[%s733 + $0x74] sm:$0xff]
  %v1343 = vld [vmem:[%s742 + $0x4] sm:$0xff]
  %v1344 = vld [vmem:[%s742 + $0x14] sm:$0xff]
  %v1345 = vld [vmem:[%s742 + $0x24] sm:$0xff]
  %v1346 = vld [vmem:[%s742 + $0x34] sm:$0xff]
  %v1347 = vld [vmem:[%s742 + $0x44] sm:$0xff]
  %v1348 = vld [vmem:[%s742 + $0x54] sm:$0xff]
  %v1349 = vld [vmem:[%s742 + $0x64] sm:$0xff]
  %v1350 = vld [vmem:[%s742 + $0x74] sm:$0xff]
  %s1351 = scalar_lea.vmem %s1, 288
  %v1352 = vld [vmem:[%s1351] sm:$0xff]
  %v1353 = vld [vmem:[%s1351 + $0x8] sm:$0xff]
  %v1354 = vld [vmem:[%s1351 + $0x10] sm:$0xff]
  %v1355 = vld [vmem:[%s1351 + $0x18] sm:$0xff]
  %v1357 = vsel %vm56, %v1335, 0
  %v1360 = vsel %vm56, %v1336, 0
  %v1363 = vsel %vm56, %v1337, 0
  %v1366 = vsel %vm56, %v1338, 0
  %v1369 = vsel %vm56, %v1339, 0
  %v1372 = vsel %vm56, %v1340, 0
  %v1375 = vsel %vm56, %v1341, 0
  %v1378 = vsel %vm56, %v1342, 0
  %v1381 = vsel %vm56, %v1343, 0
  %v1384 = vsel %vm56, %v1344, 0
  %v1387 = vsel %vm56, %v1345, 0
  %v1390 = vsel %vm56, %v1346, 0
  %v1393 = vsel %vm56, %v1347, 0
  %v1396 = vsel %vm56, %v1348, 0
  %v1399 = vsel %vm56, %v1349, 0
  %v1402 = vsel %vm56, %v1350, 0
  %1404 = vmatpush.msra.mxu0 0.0
  %1405 = vmatpush.msra.mxu0 0.0
  %1406 = vmatpush.msra.mxu0 0.0
  %1407 = vmatpush.msra.mxu0 0.0
  %1408 = vmatpush.msra.mxu0 0.0
  %1409 = vmatpush.msra.mxu0 0.0
  %1410 = vmatpush.msra.mxu0 0.0
  %1411 = vmatpush.msra.mxu0 0.0
  %1412 = vmatpush.msra.mxu0 0.0
  %1413 = vmatpush.msra.mxu0 0.0
  %1414 = vmatpush.msra.mxu0 0.0
  %1415 = vmatpush.msra.mxu0 0.0
  %1416 = vmatpush.msra.mxu0 %v1355
  %1417 = vmatpush.msra.mxu0 %v1354
  %1418 = vmatpush.msra.mxu0 %v1353
  %1419 = vmatpush.msra.mxu0 %v1352
  %1420 = vmatmul.f32.gmra.mxu0 %v1357
  %v1421 = vpop.f32.mrf.mxu0
  %v1422 = vadd.f32 0.0, %v1421
  %1423 = vmatmul.f32.gmra.mxu0 %v1360
  %v1424 = vpop.f32.mrf.mxu0
  %v1425 = vadd.f32 0.0, %v1424
  %1426 = vmatmul.f32.gmra.mxu0 %v1363
  %v1427 = vpop.f32.mrf.mxu0
  %v1428 = vadd.f32 0.0, %v1427
  %1429 = vmatmul.f32.gmra.mxu0 %v1366
  %v1430 = vpop.f32.mrf.mxu0
  %v1431 = vadd.f32 0.0, %v1430
  %1432 = vmatmul.f32.gmra.mxu0 %v1369
  %v1433 = vpop.f32.mrf.mxu0
  %v1434 = vadd.f32 0.0, %v1433
  %1435 = vmatmul.f32.gmra.mxu0 %v1372
  %v1436 = vpop.f32.mrf.mxu0
  %v1437 = vadd.f32 0.0, %v1436
  %1438 = vmatmul.f32.gmra.mxu0 %v1375
  %v1439 = vpop.f32.mrf.mxu0
  %v1440 = vadd.f32 0.0, %v1439
  %1441 = vmatmul.f32.gmra.mxu0 %v1378
  %v1442 = vpop.f32.mrf.mxu0
  %v1443 = vadd.f32 0.0, %v1442
  %1444 = vmatmul.f32.gmra.mxu0 %v1381
  %v1445 = vpop.f32.mrf.mxu0
  %v1446 = vadd.f32 0.0, %v1445
  %1447 = vmatmul.f32.gmra.mxu0 %v1384
  %v1448 = vpop.f32.mrf.mxu0
  %v1449 = vadd.f32 0.0, %v1448
  %1450 = vmatmul.f32.gmra.mxu0 %v1387
  %v1451 = vpop.f32.mrf.mxu0
  %v1452 = vadd.f32 0.0, %v1451
  %1453 = vmatmul.f32.gmra.mxu0 %v1390
  %v1454 = vpop.f32.mrf.mxu0
  %v1455 = vadd.f32 0.0, %v1454
  %1456 = vmatmul.f32.gmra.mxu0 %v1393
  %v1457 = vpop.f32.mrf.mxu0
  %v1458 = vadd.f32 0.0, %v1457
  %1459 = vmatmul.f32.gmra.mxu0 %v1396
  %v1460 = vpop.f32.mrf.mxu0
  %v1461 = vadd.f32 0.0, %v1460
  %1462 = vmatmul.f32.gmra.mxu0 %v1399
  %v1463 = vpop.f32.mrf.mxu0
  %v1464 = vadd.f32 0.0, %v1463
  %1465 = vmatmul.f32.gmra.mxu0 %v1402
  %v1466 = vpop.f32.mrf.mxu0
  %v1467 = vadd.f32 0.0, %v1466
  %1468 = vdwg.mxu0
  %v1469 = vadd.f32 %v1319, %v1422
  %v1470 = vadd.f32 %v1320, %v1425
  %v1471 = vadd.f32 %v1321, %v1428
  %v1472 = vadd.f32 %v1322, %v1431
  %v1473 = vadd.f32 %v1323, %v1434
  %v1474 = vadd.f32 %v1324, %v1437
  %v1475 = vadd.f32 %v1325, %v1440
  %v1476 = vadd.f32 %v1326, %v1443
  %v1477 = vadd.f32 %v1327, %v1446
  %v1478 = vadd.f32 %v1328, %v1449
  %v1479 = vadd.f32 %v1329, %v1452
  %v1480 = vadd.f32 %v1330, %v1455
  %v1481 = vadd.f32 %v1331, %v1458
  %v1482 = vadd.f32 %v1332, %v1461
  %v1483 = vadd.f32 %v1333, %v1464
  %v1484 = vadd.f32 %v1334, %v1467
  %s1485 = scalar_lea.vmem %s0, 32
  %v1486 = vld [vmem:[%s1485] sm:$0xff]
  %v1487 = vld [vmem:[%s1485 + $0x10] sm:$0xff]
  %v1488 = vld [vmem:[%s1485 + $0x20] sm:$0xff]
  %v1489 = vld [vmem:[%s1485 + $0x30] sm:$0xff]
  %v1490 = vld [vmem:[%s1485 + $0x40] sm:$0xff]
  %v1491 = vld [vmem:[%s1485 + $0x50] sm:$0xff]
  %v1492 = vld [vmem:[%s1485 + $0x60] sm:$0xff]
  %v1493 = vld [vmem:[%s1485 + $0x70] sm:$0xff]
  %s1494 = scalar_lea.vmem %s0, 224
  %v1495 = vld [vmem:[%s1494] sm:$0xff]
  %v1496 = vld [vmem:[%s1494 + $0x10] sm:$0xff]
  %v1497 = vld [vmem:[%s1494 + $0x20] sm:$0xff]
  %v1498 = vld [vmem:[%s1494 + $0x30] sm:$0xff]
  %v1499 = vld [vmem:[%s1494 + $0x40] sm:$0xff]
  %v1500 = vld [vmem:[%s1494 + $0x50] sm:$0xff]
  %v1501 = vld [vmem:[%s1494 + $0x60] sm:$0xff]
  %v1502 = vld [vmem:[%s1494 + $0x70] sm:$0xff]
  %s1503 = scalar_lea.vmem %s1, 320
  %v1504 = vld [vmem:[%s1503] sm:$0xff]
  %v1505 = vld [vmem:[%s1503 + $0x8] sm:$0xff]
  %v1506 = vld [vmem:[%s1503 + $0x10] sm:$0xff]
  %v1507 = vld [vmem:[%s1503 + $0x18] sm:$0xff]
  %v1509 = vsel %vm56, %v1486, 0
  %v1512 = vsel %vm56, %v1487, 0
  %v1515 = vsel %vm56, %v1488, 0
  %v1518 = vsel %vm56, %v1489, 0
  %v1521 = vsel %vm56, %v1490, 0
  %v1524 = vsel %vm56, %v1491, 0
  %v1527 = vsel %vm56, %v1492, 0
  %v1530 = vsel %vm56, %v1493, 0
  %v1533 = vsel %vm56, %v1495, 0
  %v1536 = vsel %vm56, %v1496, 0
  %v1539 = vsel %vm56, %v1497, 0
  %v1542 = vsel %vm56, %v1498, 0
  %v1545 = vsel %vm56, %v1499, 0
  %v1548 = vsel %vm56, %v1500, 0
  %v1551 = vsel %vm56, %v1501, 0
  %v1554 = vsel %vm56, %v1502, 0
  %1556 = vmatpush.msra.mxu0 0.0
  %1557 = vmatpush.msra.mxu0 0.0
  %1558 = vmatpush.msra.mxu0 0.0
  %1559 = vmatpush.msra.mxu0 0.0
  %1560 = vmatpush.msra.mxu0 0.0
  %1561 = vmatpush.msra.mxu0 0.0
  %1562 = vmatpush.msra.mxu0 0.0
  %1563 = vmatpush.msra.mxu0 0.0
  %1564 = vmatpush.msra.mxu0 0.0
  %1565 = vmatpush.msra.mxu0 0.0
  %1566 = vmatpush.msra.mxu0 0.0
  %1567 = vmatpush.msra.mxu0 0.0
  %1568 = vmatpush.msra.mxu0 %v1507
  %1569 = vmatpush.msra.mxu0 %v1506
  %1570 = vmatpush.msra.mxu0 %v1505
  %1571 = vmatpush.msra.mxu0 %v1504
  %1572 = vmatmul.f32.gmra.mxu0 %v1509
  %v1573 = vpop.f32.mrf.mxu0
  %v1574 = vadd.f32 0.0, %v1573
  %1575 = vmatmul.f32.gmra.mxu0 %v1512
  %v1576 = vpop.f32.mrf.mxu0
  %v1577 = vadd.f32 0.0, %v1576
  %1578 = vmatmul.f32.gmra.mxu0 %v1515
  %v1579 = vpop.f32.mrf.mxu0
  %v1580 = vadd.f32 0.0, %v1579
  %1581 = vmatmul.f32.gmra.mxu0 %v1518
  %v1582 = vpop.f32.mrf.mxu0
  %v1583 = vadd.f32 0.0, %v1582
  %1584 = vmatmul.f32.gmra.mxu0 %v1521
  %v1585 = vpop.f32.mrf.mxu0
  %v1586 = vadd.f32 0.0, %v1585
  %1587 = vmatmul.f32.gmra.mxu0 %v1524
  %v1588 = vpop.f32.mrf.mxu0
  %v1589 = vadd.f32 0.0, %v1588
  %1590 = vmatmul.f32.gmra.mxu0 %v1527
  %v1591 = vpop.f32.mrf.mxu0
  %v1592 = vadd.f32 0.0, %v1591
  %1593 = vmatmul.f32.gmra.mxu0 %v1530
  %v1594 = vpop.f32.mrf.mxu0
  %v1595 = vadd.f32 0.0, %v1594
  %1596 = vmatmul.f32.gmra.mxu0 %v1533
  %v1597 = vpop.f32.mrf.mxu0
  %v1598 = vadd.f32 0.0, %v1597
  %1599 = vmatmul.f32.gmra.mxu0 %v1536
  %v1600 = vpop.f32.mrf.mxu0
  %v1601 = vadd.f32 0.0, %v1600
  %1602 = vmatmul.f32.gmra.mxu0 %v1539
  %v1603 = vpop.f32.mrf.mxu0
  %v1604 = vadd.f32 0.0, %v1603
  %1605 = vmatmul.f32.gmra.mxu0 %v1542
  %v1606 = vpop.f32.mrf.mxu0
  %v1607 = vadd.f32 0.0, %v1606
  %1608 = vmatmul.f32.gmra.mxu0 %v1545
  %v1609 = vpop.f32.mrf.mxu0
  %v1610 = vadd.f32 0.0, %v1609
  %1611 = vmatmul.f32.gmra.mxu0 %v1548
  %v1612 = vpop.f32.mrf.mxu0
  %v1613 = vadd.f32 0.0, %v1612
  %1614 = vmatmul.f32.gmra.mxu0 %v1551
  %v1615 = vpop.f32.mrf.mxu0
  %v1616 = vadd.f32 0.0, %v1615
  %1617 = vmatmul.f32.gmra.mxu0 %v1554
  %v1618 = vpop.f32.mrf.mxu0
  %v1619 = vadd.f32 0.0, %v1618
  %1620 = vdwg.mxu0
  %v1621 = vadd.f32 %v1469, %v1574
  %v1622 = vadd.f32 %v1470, %v1577
  %v1623 = vadd.f32 %v1471, %v1580
  %v1624 = vadd.f32 %v1472, %v1583
  %v1625 = vadd.f32 %v1473, %v1586
  %v1626 = vadd.f32 %v1474, %v1589
  %v1627 = vadd.f32 %v1475, %v1592
  %v1628 = vadd.f32 %v1476, %v1595
  %v1629 = vadd.f32 %v1477, %v1598
  %v1630 = vadd.f32 %v1478, %v1601
  %v1631 = vadd.f32 %v1479, %v1604
  %v1632 = vadd.f32 %v1480, %v1607
  %v1633 = vadd.f32 %v1481, %v1610
  %v1634 = vadd.f32 %v1482, %v1613
  %v1635 = vadd.f32 %v1483, %v1616
  %v1636 = vadd.f32 %v1484, %v1619
  %v1637 = vld [vmem:[%s1485 + $0x1] sm:$0xff]
  %v1638 = vld [vmem:[%s1485 + $0x11] sm:$0xff]
  %v1639 = vld [vmem:[%s1485 + $0x21] sm:$0xff]
  %v1640 = vld [vmem:[%s1485 + $0x31] sm:$0xff]
  %v1641 = vld [vmem:[%s1485 + $0x41] sm:$0xff]
  %v1642 = vld [vmem:[%s1485 + $0x51] sm:$0xff]
  %v1643 = vld [vmem:[%s1485 + $0x61] sm:$0xff]
  %v1644 = vld [vmem:[%s1485 + $0x71] sm:$0xff]
  %v1645 = vld [vmem:[%s1494 + $0x1] sm:$0xff]
  %v1646 = vld [vmem:[%s1494 + $0x11] sm:$0xff]
  %v1647 = vld [vmem:[%s1494 + $0x21] sm:$0xff]
  %v1648 = vld [vmem:[%s1494 + $0x31] sm:$0xff]
  %v1649 = vld [vmem:[%s1494 + $0x41] sm:$0xff]
  %v1650 = vld [vmem:[%s1494 + $0x51] sm:$0xff]
  %v1651 = vld [vmem:[%s1494 + $0x61] sm:$0xff]
  %v1652 = vld [vmem:[%s1494 + $0x71] sm:$0xff]
  %s1653 = scalar_lea.vmem %s1, 352
  %v1654 = vld [vmem:[%s1653] sm:$0xff]
  %v1655 = vld [vmem:[%s1653 + $0x8] sm:$0xff]
  %v1656 = vld [vmem:[%s1653 + $0x10] sm:$0xff]
  %v1657 = vld [vmem:[%s1653 + $0x18] sm:$0xff]
  %v1659 = vsel %vm56, %v1637, 0
  %v1662 = vsel %vm56, %v1638, 0
  %v1665 = vsel %vm56, %v1639, 0
  %v1668 = vsel %vm56, %v1640, 0
  %v1671 = vsel %vm56, %v1641, 0
  %v1674 = vsel %vm56, %v1642, 0
  %v1677 = vsel %vm56, %v1643, 0
  %v1680 = vsel %vm56, %v1644, 0
  %v1683 = vsel %vm56, %v1645, 0
  %v1686 = vsel %vm56, %v1646, 0
  %v1689 = vsel %vm56, %v1647, 0
  %v1692 = vsel %vm56, %v1648, 0
  %v1695 = vsel %vm56, %v1649, 0
  %v1698 = vsel %vm56, %v1650, 0
  %v1701 = vsel %vm56, %v1651, 0
  %v1704 = vsel %vm56, %v1652, 0
  %1706 = vmatpush.msra.mxu0 0.0
  %1707 = vmatpush.msra.mxu0 0.0
  %1708 = vmatpush.msra.mxu0 0.0
  %1709 = vmatpush.msra.mxu0 0.0
  %1710 = vmatpush.msra.mxu0 0.0
  %1711 = vmatpush.msra.mxu0 0.0
  %1712 = vmatpush.msra.mxu0 0.0
  %1713 = vmatpush.msra.mxu0 0.0
  %1714 = vmatpush.msra.mxu0 0.0
  %1715 = vmatpush.msra.mxu0 0.0
  %1716 = vmatpush.msra.mxu0 0.0
  %1717 = vmatpush.msra.mxu0 0.0
  %1718 = vmatpush.msra.mxu0 %v1657
  %1719 = vmatpush.msra.mxu0 %v1656
  %1720 = vmatpush.msra.mxu0 %v1655
  %1721 = vmatpush.msra.mxu0 %v1654
  %1722 = vmatmul.f32.gmra.mxu0 %v1659
  %v1723 = vpop.f32.mrf.mxu0
  %v1724 = vadd.f32 0.0, %v1723
  %1725 = vmatmul.f32.gmra.mxu0 %v1662
  %v1726 = vpop.f32.mrf.mxu0
  %v1727 = vadd.f32 0.0, %v1726
  %1728 = vmatmul.f32.gmra.mxu0 %v1665
  %v1729 = vpop.f32.mrf.mxu0
  %v1730 = vadd.f32 0.0, %v1729
  %1731 = vmatmul.f32.gmra.mxu0 %v1668
  %v1732 = vpop.f32.mrf.mxu0
  %v1733 = vadd.f32 0.0, %v1732
  %1734 = vmatmul.f32.gmra.mxu0 %v1671
  %v1735 = vpop.f32.mrf.mxu0
  %v1736 = vadd.f32 0.0, %v1735
  %1737 = vmatmul.f32.gmra.mxu0 %v1674
  %v1738 = vpop.f32.mrf.mxu0
  %v1739 = vadd.f32 0.0, %v1738
  %1740 = vmatmul.f32.gmra.mxu0 %v1677
  %v1741 = vpop.f32.mrf.mxu0
  %v1742 = vadd.f32 0.0, %v1741
  %1743 = vmatmul.f32.gmra.mxu0 %v1680
  %v1744 = vpop.f32.mrf.mxu0
  %v1745 = vadd.f32 0.0, %v1744
  %1746 = vmatmul.f32.gmra.mxu0 %v1683
  %v1747 = vpop.f32.mrf.mxu0
  %v1748 = vadd.f32 0.0, %v1747
  %1749 = vmatmul.f32.gmra.mxu0 %v1686
  %v1750 = vpop.f32.mrf.mxu0
  %v1751 = vadd.f32 0.0, %v1750
  %1752 = vmatmul.f32.gmra.mxu0 %v1689
  %v1753 = vpop.f32.mrf.mxu0
  %v1754 = vadd.f32 0.0, %v1753
  %1755 = vmatmul.f32.gmra.mxu0 %v1692
  %v1756 = vpop.f32.mrf.mxu0
  %v1757 = vadd.f32 0.0, %v1756
  %1758 = vmatmul.f32.gmra.mxu0 %v1695
  %v1759 = vpop.f32.mrf.mxu0
  %v1760 = vadd.f32 0.0, %v1759
  %1761 = vmatmul.f32.gmra.mxu0 %v1698
  %v1762 = vpop.f32.mrf.mxu0
  %v1763 = vadd.f32 0.0, %v1762
  %1764 = vmatmul.f32.gmra.mxu0 %v1701
  %v1765 = vpop.f32.mrf.mxu0
  %v1766 = vadd.f32 0.0, %v1765
  %1767 = vmatmul.f32.gmra.mxu0 %v1704
  %v1768 = vpop.f32.mrf.mxu0
  %v1769 = vadd.f32 0.0, %v1768
  %1770 = vdwg.mxu0
  %v1771 = vadd.f32 %v1621, %v1724
  %v1772 = vadd.f32 %v1622, %v1727
  %v1773 = vadd.f32 %v1623, %v1730
  %v1774 = vadd.f32 %v1624, %v1733
  %v1775 = vadd.f32 %v1625, %v1736
  %v1776 = vadd.f32 %v1626, %v1739
  %v1777 = vadd.f32 %v1627, %v1742
  %v1778 = vadd.f32 %v1628, %v1745
  %v1779 = vadd.f32 %v1629, %v1748
  %v1780 = vadd.f32 %v1630, %v1751
  %v1781 = vadd.f32 %v1631, %v1754
  %v1782 = vadd.f32 %v1632, %v1757
  %v1783 = vadd.f32 %v1633, %v1760
  %v1784 = vadd.f32 %v1634, %v1763
  %v1785 = vadd.f32 %v1635, %v1766
  %v1786 = vadd.f32 %v1636, %v1769
  %v1787 = vld [vmem:[%s1485 + $0x2] sm:$0xff]
  %v1788 = vld [vmem:[%s1485 + $0x12] sm:$0xff]
  %v1789 = vld [vmem:[%s1485 + $0x22] sm:$0xff]
  %v1790 = vld [vmem:[%s1485 + $0x32] sm:$0xff]
  %v1791 = vld [vmem:[%s1485 + $0x42] sm:$0xff]
  %v1792 = vld [vmem:[%s1485 + $0x52] sm:$0xff]
  %v1793 = vld [vmem:[%s1485 + $0x62] sm:$0xff]
  %v1794 = vld [vmem:[%s1485 + $0x72] sm:$0xff]
  %v1795 = vld [vmem:[%s1494 + $0x2] sm:$0xff]
  %v1796 = vld [vmem:[%s1494 + $0x12] sm:$0xff]
  %v1797 = vld [vmem:[%s1494 + $0x22] sm:$0xff]
  %v1798 = vld [vmem:[%s1494 + $0x32] sm:$0xff]
  %v1799 = vld [vmem:[%s1494 + $0x42] sm:$0xff]
  %v1800 = vld [vmem:[%s1494 + $0x52] sm:$0xff]
  %v1801 = vld [vmem:[%s1494 + $0x62] sm:$0xff]
  %v1802 = vld [vmem:[%s1494 + $0x72] sm:$0xff]
  %s1803 = scalar_lea.vmem %s1, 384
  %v1804 = vld [vmem:[%s1803] sm:$0xff]
  %v1805 = vld [vmem:[%s1803 + $0x8] sm:$0xff]
  %v1806 = vld [vmem:[%s1803 + $0x10] sm:$0xff]
  %v1807 = vld [vmem:[%s1803 + $0x18] sm:$0xff]
  %v1809 = vsel %vm56, %v1787, 0
  %v1812 = vsel %vm56, %v1788, 0
  %v1815 = vsel %vm56, %v1789, 0
  %v1818 = vsel %vm56, %v1790, 0
  %v1821 = vsel %vm56, %v1791, 0
  %v1824 = vsel %vm56, %v1792, 0
  %v1827 = vsel %vm56, %v1793, 0
  %v1830 = vsel %vm56, %v1794, 0
  %v1833 = vsel %vm56, %v1795, 0
  %v1836 = vsel %vm56, %v1796, 0
  %v1839 = vsel %vm56, %v1797, 0
  %v1842 = vsel %vm56, %v1798, 0
  %v1845 = vsel %vm56, %v1799, 0
  %v1848 = vsel %vm56, %v1800, 0
  %v1851 = vsel %vm56, %v1801, 0
  %v1854 = vsel %vm56, %v1802, 0
  %1856 = vmatpush.msra.mxu0 0.0
  %1857 = vmatpush.msra.mxu0 0.0
  %1858 = vmatpush.msra.mxu0 0.0
  %1859 = vmatpush.msra.mxu0 0.0
  %1860 = vmatpush.msra.mxu0 0.0
  %1861 = vmatpush.msra.mxu0 0.0
  %1862 = vmatpush.msra.mxu0 0.0
  %1863 = vmatpush.msra.mxu0 0.0
  %1864 = vmatpush.msra.mxu0 0.0
  %1865 = vmatpush.msra.mxu0 0.0
  %1866 = vmatpush.msra.mxu0 0.0
  %1867 = vmatpush.msra.mxu0 0.0
  %1868 = vmatpush.msra.mxu0 %v1807
  %1869 = vmatpush.msra.mxu0 %v1806
  %1870 = vmatpush.msra.mxu0 %v1805
  %1871 = vmatpush.msra.mxu0 %v1804
  %1872 = vmatmul.f32.gmra.mxu0 %v1809
  %v1873 = vpop.f32.mrf.mxu0
  %v1874 = vadd.f32 0.0, %v1873
  %1875 = vmatmul.f32.gmra.mxu0 %v1812
  %v1876 = vpop.f32.mrf.mxu0
  %v1877 = vadd.f32 0.0, %v1876
  %1878 = vmatmul.f32.gmra.mxu0 %v1815
  %v1879 = vpop.f32.mrf.mxu0
  %v1880 = vadd.f32 0.0, %v1879
  %1881 = vmatmul.f32.gmra.mxu0 %v1818
  %v1882 = vpop.f32.mrf.mxu0
  %v1883 = vadd.f32 0.0, %v1882
  %1884 = vmatmul.f32.gmra.mxu0 %v1821
  %v1885 = vpop.f32.mrf.mxu0
  %v1886 = vadd.f32 0.0, %v1885
  %1887 = vmatmul.f32.gmra.mxu0 %v1824
  %v1888 = vpop.f32.mrf.mxu0
  %v1889 = vadd.f32 0.0, %v1888
  %1890 = vmatmul.f32.gmra.mxu0 %v1827
  %v1891 = vpop.f32.mrf.mxu0
  %v1892 = vadd.f32 0.0, %v1891
  %1893 = vmatmul.f32.gmra.mxu0 %v1830
  %v1894 = vpop.f32.mrf.mxu0
  %v1895 = vadd.f32 0.0, %v1894
  %1896 = vmatmul.f32.gmra.mxu0 %v1833
  %v1897 = vpop.f32.mrf.mxu0
  %v1898 = vadd.f32 0.0, %v1897
  %1899 = vmatmul.f32.gmra.mxu0 %v1836
  %v1900 = vpop.f32.mrf.mxu0
  %v1901 = vadd.f32 0.0, %v1900
  %1902 = vmatmul.f32.gmra.mxu0 %v1839
  %v1903 = vpop.f32.mrf.mxu0
  %v1904 = vadd.f32 0.0, %v1903
  %1905 = vmatmul.f32.gmra.mxu0 %v1842
  %v1906 = vpop.f32.mrf.mxu0
  %v1907 = vadd.f32 0.0, %v1906
  %1908 = vmatmul.f32.gmra.mxu0 %v1845
  %v1909 = vpop.f32.mrf.mxu0
  %v1910 = vadd.f32 0.0, %v1909
  %1911 = vmatmul.f32.gmra.mxu0 %v1848
  %v1912 = vpop.f32.mrf.mxu0
  %v1913 = vadd.f32 0.0, %v1912
  %1914 = vmatmul.f32.gmra.mxu0 %v1851
  %v1915 = vpop.f32.mrf.mxu0
  %v1916 = vadd.f32 0.0, %v1915
  %1917 = vmatmul.f32.gmra.mxu0 %v1854
  %v1918 = vpop.f32.mrf.mxu0
  %v1919 = vadd.f32 0.0, %v1918
  %1920 = vdwg.mxu0
  %v1921 = vadd.f32 %v1771, %v1874
  %v1922 = vadd.f32 %v1772, %v1877
  %v1923 = vadd.f32 %v1773, %v1880
  %v1924 = vadd.f32 %v1774, %v1883
  %v1925 = vadd.f32 %v1775, %v1886
  %v1926 = vadd.f32 %v1776, %v1889
  %v1927 = vadd.f32 %v1777, %v1892
  %v1928 = vadd.f32 %v1778, %v1895
  %v1929 = vadd.f32 %v1779, %v1898
  %v1930 = vadd.f32 %v1780, %v1901
  %v1931 = vadd.f32 %v1781, %v1904
  %v1932 = vadd.f32 %v1782, %v1907
  %v1933 = vadd.f32 %v1783, %v1910
  %v1934 = vadd.f32 %v1784, %v1913
  %v1935 = vadd.f32 %v1785, %v1916
  %v1936 = vadd.f32 %v1786, %v1919
  %v1937 = vld [vmem:[%s1485 + $0x3] sm:$0xff]
  %v1938 = vld [vmem:[%s1485 + $0x13] sm:$0xff]
  %v1939 = vld [vmem:[%s1485 + $0x23] sm:$0xff]
  %v1940 = vld [vmem:[%s1485 + $0x33] sm:$0xff]
  %v1941 = vld [vmem:[%s1485 + $0x43] sm:$0xff]
  %v1942 = vld [vmem:[%s1485 + $0x53] sm:$0xff]
  %v1943 = vld [vmem:[%s1485 + $0x63] sm:$0xff]
  %v1944 = vld [vmem:[%s1485 + $0x73] sm:$0xff]
  %v1945 = vld [vmem:[%s1494 + $0x3] sm:$0xff]
  %v1946 = vld [vmem:[%s1494 + $0x13] sm:$0xff]
  %v1947 = vld [vmem:[%s1494 + $0x23] sm:$0xff]
  %v1948 = vld [vmem:[%s1494 + $0x33] sm:$0xff]
  %v1949 = vld [vmem:[%s1494 + $0x43] sm:$0xff]
  %v1950 = vld [vmem:[%s1494 + $0x53] sm:$0xff]
  %v1951 = vld [vmem:[%s1494 + $0x63] sm:$0xff]
  %v1952 = vld [vmem:[%s1494 + $0x73] sm:$0xff]
  %s1953 = scalar_lea.vmem %s1, 416
  %v1954 = vld [vmem:[%s1953] sm:$0xff]
  %v1955 = vld [vmem:[%s1953 + $0x8] sm:$0xff]
  %v1956 = vld [vmem:[%s1953 + $0x10] sm:$0xff]
  %v1957 = vld [vmem:[%s1953 + $0x18] sm:$0xff]
  %v1959 = vsel %vm56, %v1937, 0
  %v1962 = vsel %vm56, %v1938, 0
  %v1965 = vsel %vm56, %v1939, 0
  %v1968 = vsel %vm56, %v1940, 0
  %v1971 = vsel %vm56, %v1941, 0
  %v1974 = vsel %vm56, %v1942, 0
  %v1977 = vsel %vm56, %v1943, 0
  %v1980 = vsel %vm56, %v1944, 0
  %v1983 = vsel %vm56, %v1945, 0
  %v1986 = vsel %vm56, %v1946, 0
  %v1989 = vsel %vm56, %v1947, 0
  %v1992 = vsel %vm56, %v1948, 0
  %v1995 = vsel %vm56, %v1949, 0
  %v1998 = vsel %vm56, %v1950, 0
  %v2001 = vsel %vm56, %v1951, 0
  %v2004 = vsel %vm56, %v1952, 0
  %2006 = vmatpush.msra.mxu0 0.0
  %2007 = vmatpush.msra.mxu0 0.0
  %2008 = vmatpush.msra.mxu0 0.0
  %2009 = vmatpush.msra.mxu0 0.0
  %2010 = vmatpush.msra.mxu0 0.0
  %2011 = vmatpush.msra.mxu0 0.0
  %2012 = vmatpush.msra.mxu0 0.0
  %2013 = vmatpush.msra.mxu0 0.0
  %2014 = vmatpush.msra.mxu0 0.0
  %2015 = vmatpush.msra.mxu0 0.0
  %2016 = vmatpush.msra.mxu0 0.0
  %2017 = vmatpush.msra.mxu0 0.0
  %2018 = vmatpush.msra.mxu0 %v1957
  %2019 = vmatpush.msra.mxu0 %v1956
  %2020 = vmatpush.msra.mxu0 %v1955
  %2021 = vmatpush.msra.mxu0 %v1954
  %2022 = vmatmul.f32.gmra.mxu0 %v1959
  %v2023 = vpop.f32.mrf.mxu0
  %v2024 = vadd.f32 0.0, %v2023
  %2025 = vmatmul.f32.gmra.mxu0 %v1962
  %v2026 = vpop.f32.mrf.mxu0
  %v2027 = vadd.f32 0.0, %v2026
  %2028 = vmatmul.f32.gmra.mxu0 %v1965
  %v2029 = vpop.f32.mrf.mxu0
  %v2030 = vadd.f32 0.0, %v2029
  %2031 = vmatmul.f32.gmra.mxu0 %v1968
  %v2032 = vpop.f32.mrf.mxu0
  %v2033 = vadd.f32 0.0, %v2032
  %2034 = vmatmul.f32.gmra.mxu0 %v1971
  %v2035 = vpop.f32.mrf.mxu0
  %v2036 = vadd.f32 0.0, %v2035
  %2037 = vmatmul.f32.gmra.mxu0 %v1974
  %v2038 = vpop.f32.mrf.mxu0
  %v2039 = vadd.f32 0.0, %v2038
  %2040 = vmatmul.f32.gmra.mxu0 %v1977
  %v2041 = vpop.f32.mrf.mxu0
  %v2042 = vadd.f32 0.0, %v2041
  %2043 = vmatmul.f32.gmra.mxu0 %v1980
  %v2044 = vpop.f32.mrf.mxu0
  %v2045 = vadd.f32 0.0, %v2044
  %2046 = vmatmul.f32.gmra.mxu0 %v1983
  %v2047 = vpop.f32.mrf.mxu0
  %v2048 = vadd.f32 0.0, %v2047
  %2049 = vmatmul.f32.gmra.mxu0 %v1986
  %v2050 = vpop.f32.mrf.mxu0
  %v2051 = vadd.f32 0.0, %v2050
  %2052 = vmatmul.f32.gmra.mxu0 %v1989
  %v2053 = vpop.f32.mrf.mxu0
  %v2054 = vadd.f32 0.0, %v2053
  %2055 = vmatmul.f32.gmra.mxu0 %v1992
  %v2056 = vpop.f32.mrf.mxu0
  %v2057 = vadd.f32 0.0, %v2056
  %2058 = vmatmul.f32.gmra.mxu0 %v1995
  %v2059 = vpop.f32.mrf.mxu0
  %v2060 = vadd.f32 0.0, %v2059
  %2061 = vmatmul.f32.gmra.mxu0 %v1998
  %v2062 = vpop.f32.mrf.mxu0
  %v2063 = vadd.f32 0.0, %v2062
  %2064 = vmatmul.f32.gmra.mxu0 %v2001
  %v2065 = vpop.f32.mrf.mxu0
  %v2066 = vadd.f32 0.0, %v2065
  %2067 = vmatmul.f32.gmra.mxu0 %v2004
  %v2068 = vpop.f32.mrf.mxu0
  %v2069 = vadd.f32 0.0, %v2068
  %2070 = vdwg.mxu0
  %v2071 = vadd.f32 %v1921, %v2024
  %v2072 = vadd.f32 %v1922, %v2027
  %v2073 = vadd.f32 %v1923, %v2030
  %v2074 = vadd.f32 %v1924, %v2033
  %v2075 = vadd.f32 %v1925, %v2036
  %v2076 = vadd.f32 %v1926, %v2039
  %v2077 = vadd.f32 %v1927, %v2042
  %v2078 = vadd.f32 %v1928, %v2045
  %v2079 = vadd.f32 %v1929, %v2048
  %v2080 = vadd.f32 %v1930, %v2051
  %v2081 = vadd.f32 %v1931, %v2054
  %v2082 = vadd.f32 %v1932, %v2057
  %v2083 = vadd.f32 %v1933, %v2060
  %v2084 = vadd.f32 %v1934, %v2063
  %v2085 = vadd.f32 %v1935, %v2066
  %v2086 = vadd.f32 %v1936, %v2069
  %v2087 = vld [vmem:[%s1485 + $0x4] sm:$0xff]
  %v2088 = vld [vmem:[%s1485 + $0x14] sm:$0xff]
  %v2089 = vld [vmem:[%s1485 + $0x24] sm:$0xff]
  %v2090 = vld [vmem:[%s1485 + $0x34] sm:$0xff]
  %v2091 = vld [vmem:[%s1485 + $0x44] sm:$0xff]
  %v2092 = vld [vmem:[%s1485 + $0x54] sm:$0xff]
  %v2093 = vld [vmem:[%s1485 + $0x64] sm:$0xff]
  %v2094 = vld [vmem:[%s1485 + $0x74] sm:$0xff]
  %v2095 = vld [vmem:[%s1494 + $0x4] sm:$0xff]
  %v2096 = vld [vmem:[%s1494 + $0x14] sm:$0xff]
  %v2097 = vld [vmem:[%s1494 + $0x24] sm:$0xff]
  %v2098 = vld [vmem:[%s1494 + $0x34] sm:$0xff]
  %v2099 = vld [vmem:[%s1494 + $0x44] sm:$0xff]
  %v2100 = vld [vmem:[%s1494 + $0x54] sm:$0xff]
  %v2101 = vld [vmem:[%s1494 + $0x64] sm:$0xff]
  %v2102 = vld [vmem:[%s1494 + $0x74] sm:$0xff]
  %s2103 = scalar_lea.vmem %s1, 448
  %v2104 = vld [vmem:[%s2103] sm:$0xff]
  %v2105 = vld [vmem:[%s2103 + $0x8] sm:$0xff]
  %v2106 = vld [vmem:[%s2103 + $0x10] sm:$0xff]
  %v2107 = vld [vmem:[%s2103 + $0x18] sm:$0xff]
  %v2109 = vsel %vm56, %v2087, 0
  %v2112 = vsel %vm56, %v2088, 0
  %v2115 = vsel %vm56, %v2089, 0
  %v2118 = vsel %vm56, %v2090, 0
  %v2121 = vsel %vm56, %v2091, 0
  %v2124 = vsel %vm56, %v2092, 0
  %v2127 = vsel %vm56, %v2093, 0
  %v2130 = vsel %vm56, %v2094, 0
  %v2133 = vsel %vm56, %v2095, 0
  %v2136 = vsel %vm56, %v2096, 0
  %v2139 = vsel %vm56, %v2097, 0
  %v2142 = vsel %vm56, %v2098, 0
  %v2145 = vsel %vm56, %v2099, 0
  %v2148 = vsel %vm56, %v2100, 0
  %v2151 = vsel %vm56, %v2101, 0
  %v2154 = vsel %vm56, %v2102, 0
  %2156 = vmatpush.msra.mxu0 0.0
  %2157 = vmatpush.msra.mxu0 0.0
  %2158 = vmatpush.msra.mxu0 0.0
  %2159 = vmatpush.msra.mxu0 0.0
  %2160 = vmatpush.msra.mxu0 0.0
  %2161 = vmatpush.msra.mxu0 0.0
  %2162 = vmatpush.msra.mxu0 0.0
  %2163 = vmatpush.msra.mxu0 0.0
  %2164 = vmatpush.msra.mxu0 0.0
  %2165 = vmatpush.msra.mxu0 0.0
  %2166 = vmatpush.msra.mxu0 0.0
  %2167 = vmatpush.msra.mxu0 0.0
  %2168 = vmatpush.msra.mxu0 %v2107
  %2169 = vmatpush.msra.mxu0 %v2106
  %2170 = vmatpush.msra.mxu0 %v2105
  %2171 = vmatpush.msra.mxu0 %v2104
  %2172 = vmatmul.f32.gmra.mxu0 %v2109
  %v2173 = vpop.f32.mrf.mxu0
  %v2174 = vadd.f32 0.0, %v2173
  %2175 = vmatmul.f32.gmra.mxu0 %v2112
  %v2176 = vpop.f32.mrf.mxu0
  %v2177 = vadd.f32 0.0, %v2176
  %2178 = vmatmul.f32.gmra.mxu0 %v2115
  %v2179 = vpop.f32.mrf.mxu0
  %v2180 = vadd.f32 0.0, %v2179
  %2181 = vmatmul.f32.gmra.mxu0 %v2118
  %v2182 = vpop.f32.mrf.mxu0
  %v2183 = vadd.f32 0.0, %v2182
  %2184 = vmatmul.f32.gmra.mxu0 %v2121
  %v2185 = vpop.f32.mrf.mxu0
  %v2186 = vadd.f32 0.0, %v2185
  %2187 = vmatmul.f32.gmra.mxu0 %v2124
  %v2188 = vpop.f32.mrf.mxu0
  %v2189 = vadd.f32 0.0, %v2188
  %2190 = vmatmul.f32.gmra.mxu0 %v2127
  %v2191 = vpop.f32.mrf.mxu0
  %v2192 = vadd.f32 0.0, %v2191
  %2193 = vmatmul.f32.gmra.mxu0 %v2130
  %v2194 = vpop.f32.mrf.mxu0
  %v2195 = vadd.f32 0.0, %v2194
  %2196 = vmatmul.f32.gmra.mxu0 %v2133
  %v2197 = vpop.f32.mrf.mxu0
  %v2198 = vadd.f32 0.0, %v2197
  %2199 = vmatmul.f32.gmra.mxu0 %v2136
  %v2200 = vpop.f32.mrf.mxu0
  %v2201 = vadd.f32 0.0, %v2200
  %2202 = vmatmul.f32.gmra.mxu0 %v2139
  %v2203 = vpop.f32.mrf.mxu0
  %v2204 = vadd.f32 0.0, %v2203
  %2205 = vmatmul.f32.gmra.mxu0 %v2142
  %v2206 = vpop.f32.mrf.mxu0
  %v2207 = vadd.f32 0.0, %v2206
  %2208 = vmatmul.f32.gmra.mxu0 %v2145
  %v2209 = vpop.f32.mrf.mxu0
  %v2210 = vadd.f32 0.0, %v2209
  %2211 = vmatmul.f32.gmra.mxu0 %v2148
  %v2212 = vpop.f32.mrf.mxu0
  %v2213 = vadd.f32 0.0, %v2212
  %2214 = vmatmul.f32.gmra.mxu0 %v2151
  %v2215 = vpop.f32.mrf.mxu0
  %v2216 = vadd.f32 0.0, %v2215
  %2217 = vmatmul.f32.gmra.mxu0 %v2154
  %v2218 = vpop.f32.mrf.mxu0
  %v2219 = vadd.f32 0.0, %v2218
  %2220 = vdwg.mxu0
  %v2221 = vadd.f32 %v2071, %v2174
  %v2222 = vadd.f32 %v2072, %v2177
  %v2223 = vadd.f32 %v2073, %v2180
  %v2224 = vadd.f32 %v2074, %v2183
  %v2225 = vadd.f32 %v2075, %v2186
  %v2226 = vadd.f32 %v2076, %v2189
  %v2227 = vadd.f32 %v2077, %v2192
  %v2228 = vadd.f32 %v2078, %v2195
  %v2229 = vadd.f32 %v2079, %v2198
  %v2230 = vadd.f32 %v2080, %v2201
  %v2231 = vadd.f32 %v2081, %v2204
  %v2232 = vadd.f32 %v2082, %v2207
  %v2233 = vadd.f32 %v2083, %v2210
  %v2234 = vadd.f32 %v2084, %v2213
  %v2235 = vadd.f32 %v2085, %v2216
  %v2236 = vadd.f32 %v2086, %v2219
  %s2237 = scalar_lea.vmem %s0, 48
  %v2238 = vld [vmem:[%s2237] sm:$0xff]
  %v2239 = vld [vmem:[%s2237 + $0x10] sm:$0xff]
  %v2240 = vld [vmem:[%s2237 + $0x20] sm:$0xff]
  %v2241 = vld [vmem:[%s2237 + $0x30] sm:$0xff]
  %v2242 = vld [vmem:[%s2237 + $0x40] sm:$0xff]
  %v2243 = vld [vmem:[%s2237 + $0x50] sm:$0xff]
  %v2244 = vld [vmem:[%s2237 + $0x60] sm:$0xff]
  %v2245 = vld [vmem:[%s2237 + $0x70] sm:$0xff]
  %s2246 = scalar_lea.vmem %s0, 240
  %v2247 = vld [vmem:[%s2246] sm:$0xff]
  %v2248 = vld [vmem:[%s2246 + $0x10] sm:$0xff]
  %v2249 = vld [vmem:[%s2246 + $0x20] sm:$0xff]
  %v2250 = vld [vmem:[%s2246 + $0x30] sm:$0xff]
  %v2251 = vld [vmem:[%s2246 + $0x40] sm:$0xff]
  %v2252 = vld [vmem:[%s2246 + $0x50] sm:$0xff]
  %v2253 = vld [vmem:[%s2246 + $0x60] sm:$0xff]
  %v2254 = vld [vmem:[%s2246 + $0x70] sm:$0xff]
  %s2255 = scalar_lea.vmem %s1, 480
  %v2256 = vld [vmem:[%s2255] sm:$0xff]
  %v2257 = vld [vmem:[%s2255 + $0x8] sm:$0xff]
  %v2258 = vld [vmem:[%s2255 + $0x10] sm:$0xff]
  %v2259 = vld [vmem:[%s2255 + $0x18] sm:$0xff]
  %v2261 = vsel %vm56, %v2238, 0
  %v2264 = vsel %vm56, %v2239, 0
  %v2267 = vsel %vm56, %v2240, 0
  %v2270 = vsel %vm56, %v2241, 0
  %v2273 = vsel %vm56, %v2242, 0
  %v2276 = vsel %vm56, %v2243, 0
  %v2279 = vsel %vm56, %v2244, 0
  %v2282 = vsel %vm56, %v2245, 0
  %v2285 = vsel %vm56, %v2247, 0
  %v2288 = vsel %vm56, %v2248, 0
  %v2291 = vsel %vm56, %v2249, 0
  %v2294 = vsel %vm56, %v2250, 0
  %v2297 = vsel %vm56, %v2251, 0
  %v2300 = vsel %vm56, %v2252, 0
  %v2303 = vsel %vm56, %v2253, 0
  %v2306 = vsel %vm56, %v2254, 0
  %2308 = vmatpush.msra.mxu0 0.0
  %2309 = vmatpush.msra.mxu0 0.0
  %2310 = vmatpush.msra.mxu0 0.0
  %2311 = vmatpush.msra.mxu0 0.0
  %2312 = vmatpush.msra.mxu0 0.0
  %2313 = vmatpush.msra.mxu0 0.0
  %2314 = vmatpush.msra.mxu0 0.0
  %2315 = vmatpush.msra.mxu0 0.0
  %2316 = vmatpush.msra.mxu0 0.0
  %2317 = vmatpush.msra.mxu0 0.0
  %2318 = vmatpush.msra.mxu0 0.0
  %2319 = vmatpush.msra.mxu0 0.0
  %2320 = vmatpush.msra.mxu0 %v2259
  %2321 = vmatpush.msra.mxu0 %v2258
  %2322 = vmatpush.msra.mxu0 %v2257
  %2323 = vmatpush.msra.mxu0 %v2256
  %2324 = vmatmul.f32.gmra.mxu0 %v2261
  %v2325 = vpop.f32.mrf.mxu0
  %v2326 = vadd.f32 0.0, %v2325
  %2327 = vmatmul.f32.gmra.mxu0 %v2264
  %v2328 = vpop.f32.mrf.mxu0
  %v2329 = vadd.f32 0.0, %v2328
  %2330 = vmatmul.f32.gmra.mxu0 %v2267
  %v2331 = vpop.f32.mrf.mxu0
  %v2332 = vadd.f32 0.0, %v2331
  %2333 = vmatmul.f32.gmra.mxu0 %v2270
  %v2334 = vpop.f32.mrf.mxu0
  %v2335 = vadd.f32 0.0, %v2334
  %2336 = vmatmul.f32.gmra.mxu0 %v2273
  %v2337 = vpop.f32.mrf.mxu0
  %v2338 = vadd.f32 0.0, %v2337
  %2339 = vmatmul.f32.gmra.mxu0 %v2276
  %v2340 = vpop.f32.mrf.mxu0
  %v2341 = vadd.f32 0.0, %v2340
  %2342 = vmatmul.f32.gmra.mxu0 %v2279
  %v2343 = vpop.f32.mrf.mxu0
  %v2344 = vadd.f32 0.0, %v2343
  %2345 = vmatmul.f32.gmra.mxu0 %v2282
  %v2346 = vpop.f32.mrf.mxu0
  %v2347 = vadd.f32 0.0, %v2346
  %2348 = vmatmul.f32.gmra.mxu0 %v2285
  %v2349 = vpop.f32.mrf.mxu0
  %v2350 = vadd.f32 0.0, %v2349
  %2351 = vmatmul.f32.gmra.mxu0 %v2288
  %v2352 = vpop.f32.mrf.mxu0
  %v2353 = vadd.f32 0.0, %v2352
  %2354 = vmatmul.f32.gmra.mxu0 %v2291
  %v2355 = vpop.f32.mrf.mxu0
  %v2356 = vadd.f32 0.0, %v2355
  %2357 = vmatmul.f32.gmra.mxu0 %v2294
  %v2358 = vpop.f32.mrf.mxu0
  %v2359 = vadd.f32 0.0, %v2358
  %2360 = vmatmul.f32.gmra.mxu0 %v2297
  %v2361 = vpop.f32.mrf.mxu0
  %v2362 = vadd.f32 0.0, %v2361
  %2363 = vmatmul.f32.gmra.mxu0 %v2300
  %v2364 = vpop.f32.mrf.mxu0
  %v2365 = vadd.f32 0.0, %v2364
  %2366 = vmatmul.f32.gmra.mxu0 %v2303
  %v2367 = vpop.f32.mrf.mxu0
  %v2368 = vadd.f32 0.0, %v2367
  %2369 = vmatmul.f32.gmra.mxu0 %v2306
  %v2370 = vpop.f32.mrf.mxu0
  %v2371 = vadd.f32 0.0, %v2370
  %2372 = vdwg.mxu0
  %v2373 = vadd.f32 %v2221, %v2326
  %v2374 = vadd.f32 %v2222, %v2329
  %v2375 = vadd.f32 %v2223, %v2332
  %v2376 = vadd.f32 %v2224, %v2335
  %v2377 = vadd.f32 %v2225, %v2338
  %v2378 = vadd.f32 %v2226, %v2341
  %v2379 = vadd.f32 %v2227, %v2344
  %v2380 = vadd.f32 %v2228, %v2347
  %v2381 = vadd.f32 %v2229, %v2350
  %v2382 = vadd.f32 %v2230, %v2353
  %v2383 = vadd.f32 %v2231, %v2356
  %v2384 = vadd.f32 %v2232, %v2359
  %v2385 = vadd.f32 %v2233, %v2362
  %v2386 = vadd.f32 %v2234, %v2365
  %v2387 = vadd.f32 %v2235, %v2368
  %v2388 = vadd.f32 %v2236, %v2371
  %v2389 = vld [vmem:[%s2237 + $0x1] sm:$0xff]
  %v2390 = vld [vmem:[%s2237 + $0x11] sm:$0xff]
  %v2391 = vld [vmem:[%s2237 + $0x21] sm:$0xff]
  %v2392 = vld [vmem:[%s2237 + $0x31] sm:$0xff]
  %v2393 = vld [vmem:[%s2237 + $0x41] sm:$0xff]
  %v2394 = vld [vmem:[%s2237 + $0x51] sm:$0xff]
  %v2395 = vld [vmem:[%s2237 + $0x61] sm:$0xff]
  %v2396 = vld [vmem:[%s2237 + $0x71] sm:$0xff]
  %v2397 = vld [vmem:[%s2246 + $0x1] sm:$0xff]
  %v2398 = vld [vmem:[%s2246 + $0x11] sm:$0xff]
  %v2399 = vld [vmem:[%s2246 + $0x21] sm:$0xff]
  %v2400 = vld [vmem:[%s2246 + $0x31] sm:$0xff]
  %v2401 = vld [vmem:[%s2246 + $0x41] sm:$0xff]
  %v2402 = vld [vmem:[%s2246 + $0x51] sm:$0xff]
  %v2403 = vld [vmem:[%s2246 + $0x61] sm:$0xff]
  %v2404 = vld [vmem:[%s2246 + $0x71] sm:$0xff]
  %s2405 = scalar_lea.vmem %s1, 512
  %v2406 = vld [vmem:[%s2405] sm:$0xff]
  %v2407 = vld [vmem:[%s2405 + $0x8] sm:$0xff]
  %v2408 = vld [vmem:[%s2405 + $0x10] sm:$0xff]
  %v2409 = vld [vmem:[%s2405 + $0x18] sm:$0xff]
  %v2411 = vsel %vm56, %v2389, 0
  %v2414 = vsel %vm56, %v2390, 0
  %v2417 = vsel %vm56, %v2391, 0
  %v2420 = vsel %vm56, %v2392, 0
  %v2423 = vsel %vm56, %v2393, 0
  %v2426 = vsel %vm56, %v2394, 0
  %v2429 = vsel %vm56, %v2395, 0
  %v2432 = vsel %vm56, %v2396, 0
  %v2435 = vsel %vm56, %v2397, 0
  %v2438 = vsel %vm56, %v2398, 0
  %v2441 = vsel %vm56, %v2399, 0
  %v2444 = vsel %vm56, %v2400, 0
  %v2447 = vsel %vm56, %v2401, 0
  %v2450 = vsel %vm56, %v2402, 0
  %v2453 = vsel %vm56, %v2403, 0
  %v2456 = vsel %vm56, %v2404, 0
  %2458 = vmatpush.msra.mxu0 0.0
  %2459 = vmatpush.msra.mxu0 0.0
  %2460 = vmatpush.msra.mxu0 0.0
  %2461 = vmatpush.msra.mxu0 0.0
  %2462 = vmatpush.msra.mxu0 0.0
  %2463 = vmatpush.msra.mxu0 0.0
  %2464 = vmatpush.msra.mxu0 0.0
  %2465 = vmatpush.msra.mxu0 0.0
  %2466 = vmatpush.msra.mxu0 0.0
  %2467 = vmatpush.msra.mxu0 0.0
  %2468 = vmatpush.msra.mxu0 0.0
  %2469 = vmatpush.msra.mxu0 0.0
  %2470 = vmatpush.msra.mxu0 %v2409
  %2471 = vmatpush.msra.mxu0 %v2408
  %2472 = vmatpush.msra.mxu0 %v2407
  %2473 = vmatpush.msra.mxu0 %v2406
  %2474 = vmatmul.f32.gmra.mxu0 %v2411
  %v2475 = vpop.f32.mrf.mxu0
  %v2476 = vadd.f32 0.0, %v2475
  %2477 = vmatmul.f32.gmra.mxu0 %v2414
  %v2478 = vpop.f32.mrf.mxu0
  %v2479 = vadd.f32 0.0, %v2478
  %2480 = vmatmul.f32.gmra.mxu0 %v2417
  %v2481 = vpop.f32.mrf.mxu0
  %v2482 = vadd.f32 0.0, %v2481
  %2483 = vmatmul.f32.gmra.mxu0 %v2420
  %v2484 = vpop.f32.mrf.mxu0
  %v2485 = vadd.f32 0.0, %v2484
  %2486 = vmatmul.f32.gmra.mxu0 %v2423
  %v2487 = vpop.f32.mrf.mxu0
  %v2488 = vadd.f32 0.0, %v2487
  %2489 = vmatmul.f32.gmra.mxu0 %v2426
  %v2490 = vpop.f32.mrf.mxu0
  %v2491 = vadd.f32 0.0, %v2490
  %2492 = vmatmul.f32.gmra.mxu0 %v2429
  %v2493 = vpop.f32.mrf.mxu0
  %v2494 = vadd.f32 0.0, %v2493
  %2495 = vmatmul.f32.gmra.mxu0 %v2432
  %v2496 = vpop.f32.mrf.mxu0
  %v2497 = vadd.f32 0.0, %v2496
  %2498 = vmatmul.f32.gmra.mxu0 %v2435
  %v2499 = vpop.f32.mrf.mxu0
  %v2500 = vadd.f32 0.0, %v2499
  %2501 = vmatmul.f32.gmra.mxu0 %v2438
  %v2502 = vpop.f32.mrf.mxu0
  %v2503 = vadd.f32 0.0, %v2502
  %2504 = vmatmul.f32.gmra.mxu0 %v2441
  %v2505 = vpop.f32.mrf.mxu0
  %v2506 = vadd.f32 0.0, %v2505
  %2507 = vmatmul.f32.gmra.mxu0 %v2444
  %v2508 = vpop.f32.mrf.mxu0
  %v2509 = vadd.f32 0.0, %v2508
  %2510 = vmatmul.f32.gmra.mxu0 %v2447
  %v2511 = vpop.f32.mrf.mxu0
  %v2512 = vadd.f32 0.0, %v2511
  %2513 = vmatmul.f32.gmra.mxu0 %v2450
  %v2514 = vpop.f32.mrf.mxu0
  %v2515 = vadd.f32 0.0, %v2514
  %2516 = vmatmul.f32.gmra.mxu0 %v2453
  %v2517 = vpop.f32.mrf.mxu0
  %v2518 = vadd.f32 0.0, %v2517
  %2519 = vmatmul.f32.gmra.mxu0 %v2456
  %v2520 = vpop.f32.mrf.mxu0
  %v2521 = vadd.f32 0.0, %v2520
  %2522 = vdwg.mxu0
  %v2523 = vadd.f32 %v2373, %v2476
  %v2524 = vadd.f32 %v2374, %v2479
  %v2525 = vadd.f32 %v2375, %v2482
  %v2526 = vadd.f32 %v2376, %v2485
  %v2527 = vadd.f32 %v2377, %v2488
  %v2528 = vadd.f32 %v2378, %v2491
  %v2529 = vadd.f32 %v2379, %v2494
  %v2530 = vadd.f32 %v2380, %v2497
  %v2531 = vadd.f32 %v2381, %v2500
  %v2532 = vadd.f32 %v2382, %v2503
  %v2533 = vadd.f32 %v2383, %v2506
  %v2534 = vadd.f32 %v2384, %v2509
  %v2535 = vadd.f32 %v2385, %v2512
  %v2536 = vadd.f32 %v2386, %v2515
  %v2537 = vadd.f32 %v2387, %v2518
  %v2538 = vadd.f32 %v2388, %v2521
  %v2539 = vld [vmem:[%s2237 + $0x2] sm:$0xff]
  %v2540 = vld [vmem:[%s2237 + $0x12] sm:$0xff]
  %v2541 = vld [vmem:[%s2237 + $0x22] sm:$0xff]
  %v2542 = vld [vmem:[%s2237 + $0x32] sm:$0xff]
  %v2543 = vld [vmem:[%s2237 + $0x42] sm:$0xff]
  %v2544 = vld [vmem:[%s2237 + $0x52] sm:$0xff]
  %v2545 = vld [vmem:[%s2237 + $0x62] sm:$0xff]
  %v2546 = vld [vmem:[%s2237 + $0x72] sm:$0xff]
  %v2547 = vld [vmem:[%s2246 + $0x2] sm:$0xff]
  %v2548 = vld [vmem:[%s2246 + $0x12] sm:$0xff]
  %v2549 = vld [vmem:[%s2246 + $0x22] sm:$0xff]
  %v2550 = vld [vmem:[%s2246 + $0x32] sm:$0xff]
  %v2551 = vld [vmem:[%s2246 + $0x42] sm:$0xff]
  %v2552 = vld [vmem:[%s2246 + $0x52] sm:$0xff]
  %v2553 = vld [vmem:[%s2246 + $0x62] sm:$0xff]
  %v2554 = vld [vmem:[%s2246 + $0x72] sm:$0xff]
  %s2555 = scalar_lea.vmem %s1, 544
  %v2556 = vld [vmem:[%s2555] sm:$0xff]
  %v2557 = vld [vmem:[%s2555 + $0x8] sm:$0xff]
  %v2558 = vld [vmem:[%s2555 + $0x10] sm:$0xff]
  %v2559 = vld [vmem:[%s2555 + $0x18] sm:$0xff]
  %v2561 = vsel %vm56, %v2539, 0
  %v2564 = vsel %vm56, %v2540, 0
  %v2567 = vsel %vm56, %v2541, 0
  %v2570 = vsel %vm56, %v2542, 0
  %v2573 = vsel %vm56, %v2543, 0
  %v2576 = vsel %vm56, %v2544, 0
  %v2579 = vsel %vm56, %v2545, 0
  %v2582 = vsel %vm56, %v2546, 0
  %v2585 = vsel %vm56, %v2547, 0
  %v2588 = vsel %vm56, %v2548, 0
  %v2591 = vsel %vm56, %v2549, 0
  %v2594 = vsel %vm56, %v2550, 0
  %v2597 = vsel %vm56, %v2551, 0
  %v2600 = vsel %vm56, %v2552, 0
  %v2603 = vsel %vm56, %v2553, 0
  %v2606 = vsel %vm56, %v2554, 0
  %2608 = vmatpush.msra.mxu0 0.0
  %2609 = vmatpush.msra.mxu0 0.0
  %2610 = vmatpush.msra.mxu0 0.0
  %2611 = vmatpush.msra.mxu0 0.0
  %2612 = vmatpush.msra.mxu0 0.0
  %2613 = vmatpush.msra.mxu0 0.0
  %2614 = vmatpush.msra.mxu0 0.0
  %2615 = vmatpush.msra.mxu0 0.0
  %2616 = vmatpush.msra.mxu0 0.0
  %2617 = vmatpush.msra.mxu0 0.0
  %2618 = vmatpush.msra.mxu0 0.0
  %2619 = vmatpush.msra.mxu0 0.0
  %2620 = vmatpush.msra.mxu0 %v2559
  %2621 = vmatpush.msra.mxu0 %v2558
  %2622 = vmatpush.msra.mxu0 %v2557
  %2623 = vmatpush.msra.mxu0 %v2556
  %2624 = vmatmul.f32.gmra.mxu0 %v2561
  %v2625 = vpop.f32.mrf.mxu0
  %v2626 = vadd.f32 0.0, %v2625
  %2627 = vmatmul.f32.gmra.mxu0 %v2564
  %v2628 = vpop.f32.mrf.mxu0
  %v2629 = vadd.f32 0.0, %v2628
  %2630 = vmatmul.f32.gmra.mxu0 %v2567
  %v2631 = vpop.f32.mrf.mxu0
  %v2632 = vadd.f32 0.0, %v2631
  %2633 = vmatmul.f32.gmra.mxu0 %v2570
  %v2634 = vpop.f32.mrf.mxu0
  %v2635 = vadd.f32 0.0, %v2634
  %2636 = vmatmul.f32.gmra.mxu0 %v2573
  %v2637 = vpop.f32.mrf.mxu0
  %v2638 = vadd.f32 0.0, %v2637
  %2639 = vmatmul.f32.gmra.mxu0 %v2576
  %v2640 = vpop.f32.mrf.mxu0
  %v2641 = vadd.f32 0.0, %v2640
  %2642 = vmatmul.f32.gmra.mxu0 %v2579
  %v2643 = vpop.f32.mrf.mxu0
  %v2644 = vadd.f32 0.0, %v2643
  %2645 = vmatmul.f32.gmra.mxu0 %v2582
  %v2646 = vpop.f32.mrf.mxu0
  %v2647 = vadd.f32 0.0, %v2646
  %2648 = vmatmul.f32.gmra.mxu0 %v2585
  %v2649 = vpop.f32.mrf.mxu0
  %v2650 = vadd.f32 0.0, %v2649
  %2651 = vmatmul.f32.gmra.mxu0 %v2588
  %v2652 = vpop.f32.mrf.mxu0
  %v2653 = vadd.f32 0.0, %v2652
  %2654 = vmatmul.f32.gmra.mxu0 %v2591
  %v2655 = vpop.f32.mrf.mxu0
  %v2656 = vadd.f32 0.0, %v2655
  %2657 = vmatmul.f32.gmra.mxu0 %v2594
  %v2658 = vpop.f32.mrf.mxu0
  %v2659 = vadd.f32 0.0, %v2658
  %2660 = vmatmul.f32.gmra.mxu0 %v2597
  %v2661 = vpop.f32.mrf.mxu0
  %v2662 = vadd.f32 0.0, %v2661
  %2663 = vmatmul.f32.gmra.mxu0 %v2600
  %v2664 = vpop.f32.mrf.mxu0
  %v2665 = vadd.f32 0.0, %v2664
  %2666 = vmatmul.f32.gmra.mxu0 %v2603
  %v2667 = vpop.f32.mrf.mxu0
  %v2668 = vadd.f32 0.0, %v2667
  %2669 = vmatmul.f32.gmra.mxu0 %v2606
  %v2670 = vpop.f32.mrf.mxu0
  %v2671 = vadd.f32 0.0, %v2670
  %2672 = vdwg.mxu0
  %v2673 = vadd.f32 %v2523, %v2626
  %v2674 = vadd.f32 %v2524, %v2629
  %v2675 = vadd.f32 %v2525, %v2632
  %v2676 = vadd.f32 %v2526, %v2635
  %v2677 = vadd.f32 %v2527, %v2638
  %v2678 = vadd.f32 %v2528, %v2641
  %v2679 = vadd.f32 %v2529, %v2644
  %v2680 = vadd.f32 %v2530, %v2647
  %v2681 = vadd.f32 %v2531, %v2650
  %v2682 = vadd.f32 %v2532, %v2653
  %v2683 = vadd.f32 %v2533, %v2656
  %v2684 = vadd.f32 %v2534, %v2659
  %v2685 = vadd.f32 %v2535, %v2662
  %v2686 = vadd.f32 %v2536, %v2665
  %v2687 = vadd.f32 %v2537, %v2668
  %v2688 = vadd.f32 %v2538, %v2671
  %v2689 = vld [vmem:[%s2237 + $0x3] sm:$0xff]
  %v2690 = vld [vmem:[%s2237 + $0x13] sm:$0xff]
  %v2691 = vld [vmem:[%s2237 + $0x23] sm:$0xff]
  %v2692 = vld [vmem:[%s2237 + $0x33] sm:$0xff]
  %v2693 = vld [vmem:[%s2237 + $0x43] sm:$0xff]
  %v2694 = vld [vmem:[%s2237 + $0x53] sm:$0xff]
  %v2695 = vld [vmem:[%s2237 + $0x63] sm:$0xff]
  %v2696 = vld [vmem:[%s2237 + $0x73] sm:$0xff]
  %v2697 = vld [vmem:[%s2246 + $0x3] sm:$0xff]
  %v2698 = vld [vmem:[%s2246 + $0x13] sm:$0xff]
  %v2699 = vld [vmem:[%s2246 + $0x23] sm:$0xff]
  %v2700 = vld [vmem:[%s2246 + $0x33] sm:$0xff]
  %v2701 = vld [vmem:[%s2246 + $0x43] sm:$0xff]
  %v2702 = vld [vmem:[%s2246 + $0x53] sm:$0xff]
  %v2703 = vld [vmem:[%s2246 + $0x63] sm:$0xff]
  %v2704 = vld [vmem:[%s2246 + $0x73] sm:$0xff]
  %s2705 = scalar_lea.vmem %s1, 576
  %v2706 = vld [vmem:[%s2705] sm:$0xff]
  %v2707 = vld [vmem:[%s2705 + $0x8] sm:$0xff]
  %v2708 = vld [vmem:[%s2705 + $0x10] sm:$0xff]
  %v2709 = vld [vmem:[%s2705 + $0x18] sm:$0xff]
  %v2711 = vsel %vm56, %v2689, 0
  %v2714 = vsel %vm56, %v2690, 0
  %v2717 = vsel %vm56, %v2691, 0
  %v2720 = vsel %vm56, %v2692, 0
  %v2723 = vsel %vm56, %v2693, 0
  %v2726 = vsel %vm56, %v2694, 0
  %v2729 = vsel %vm56, %v2695, 0
  %v2732 = vsel %vm56, %v2696, 0
  %v2735 = vsel %vm56, %v2697, 0
  %v2738 = vsel %vm56, %v2698, 0
  %v2741 = vsel %vm56, %v2699, 0
  %v2744 = vsel %vm56, %v2700, 0
  %v2747 = vsel %vm56, %v2701, 0
  %v2750 = vsel %vm56, %v2702, 0
  %v2753 = vsel %vm56, %v2703, 0
  %v2756 = vsel %vm56, %v2704, 0
  %2758 = vmatpush.msra.mxu0 0.0
  %2759 = vmatpush.msra.mxu0 0.0
  %2760 = vmatpush.msra.mxu0 0.0
  %2761 = vmatpush.msra.mxu0 0.0
  %2762 = vmatpush.msra.mxu0 0.0
  %2763 = vmatpush.msra.mxu0 0.0
  %2764 = vmatpush.msra.mxu0 0.0
  %2765 = vmatpush.msra.mxu0 0.0
  %2766 = vmatpush.msra.mxu0 0.0
  %2767 = vmatpush.msra.mxu0 0.0
  %2768 = vmatpush.msra.mxu0 0.0
  %2769 = vmatpush.msra.mxu0 0.0
  %2770 = vmatpush.msra.mxu0 %v2709
  %2771 = vmatpush.msra.mxu0 %v2708
  %2772 = vmatpush.msra.mxu0 %v2707
  %2773 = vmatpush.msra.mxu0 %v2706
  %2774 = vmatmul.f32.gmra.mxu0 %v2711
  %v2775 = vpop.f32.mrf.mxu0
  %v2776 = vadd.f32 0.0, %v2775
  %2777 = vmatmul.f32.gmra.mxu0 %v2714
  %v2778 = vpop.f32.mrf.mxu0
  %v2779 = vadd.f32 0.0, %v2778
  %2780 = vmatmul.f32.gmra.mxu0 %v2717
  %v2781 = vpop.f32.mrf.mxu0
  %v2782 = vadd.f32 0.0, %v2781
  %2783 = vmatmul.f32.gmra.mxu0 %v2720
  %v2784 = vpop.f32.mrf.mxu0
  %v2785 = vadd.f32 0.0, %v2784
  %2786 = vmatmul.f32.gmra.mxu0 %v2723
  %v2787 = vpop.f32.mrf.mxu0
  %v2788 = vadd.f32 0.0, %v2787
  %2789 = vmatmul.f32.gmra.mxu0 %v2726
  %v2790 = vpop.f32.mrf.mxu0
  %v2791 = vadd.f32 0.0, %v2790
  %2792 = vmatmul.f32.gmra.mxu0 %v2729
  %v2793 = vpop.f32.mrf.mxu0
  %v2794 = vadd.f32 0.0, %v2793
  %2795 = vmatmul.f32.gmra.mxu0 %v2732
  %v2796 = vpop.f32.mrf.mxu0
  %v2797 = vadd.f32 0.0, %v2796
  %2798 = vmatmul.f32.gmra.mxu0 %v2735
  %v2799 = vpop.f32.mrf.mxu0
  %v2800 = vadd.f32 0.0, %v2799
  %2801 = vmatmul.f32.gmra.mxu0 %v2738
  %v2802 = vpop.f32.mrf.mxu0
  %v2803 = vadd.f32 0.0, %v2802
  %2804 = vmatmul.f32.gmra.mxu0 %v2741
  %v2805 = vpop.f32.mrf.mxu0
  %v2806 = vadd.f32 0.0, %v2805
  %2807 = vmatmul.f32.gmra.mxu0 %v2744
  %v2808 = vpop.f32.mrf.mxu0
  %v2809 = vadd.f32 0.0, %v2808
  %2810 = vmatmul.f32.gmra.mxu0 %v2747
  %v2811 = vpop.f32.mrf.mxu0
  %v2812 = vadd.f32 0.0, %v2811
  %2813 = vmatmul.f32.gmra.mxu0 %v2750
  %v2814 = vpop.f32.mrf.mxu0
  %v2815 = vadd.f32 0.0, %v2814
  %2816 = vmatmul.f32.gmra.mxu0 %v2753
  %v2817 = vpop.f32.mrf.mxu0
  %v2818 = vadd.f32 0.0, %v2817
  %2819 = vmatmul.f32.gmra.mxu0 %v2756
  %v2820 = vpop.f32.mrf.mxu0
  %v2821 = vadd.f32 0.0, %v2820
  %2822 = vdwg.mxu0
  %v2823 = vadd.f32 %v2673, %v2776
  %v2824 = vadd.f32 %v2674, %v2779
  %v2825 = vadd.f32 %v2675, %v2782
  %v2826 = vadd.f32 %v2676, %v2785
  %v2827 = vadd.f32 %v2677, %v2788
  %v2828 = vadd.f32 %v2678, %v2791
  %v2829 = vadd.f32 %v2679, %v2794
  %v2830 = vadd.f32 %v2680, %v2797
  %v2831 = vadd.f32 %v2681, %v2800
  %v2832 = vadd.f32 %v2682, %v2803
  %v2833 = vadd.f32 %v2683, %v2806
  %v2834 = vadd.f32 %v2684, %v2809
  %v2835 = vadd.f32 %v2685, %v2812
  %v2836 = vadd.f32 %v2686, %v2815
  %v2837 = vadd.f32 %v2687, %v2818
  %v2838 = vadd.f32 %v2688, %v2821
  %v2839 = vld [vmem:[%s2237 + $0x4] sm:$0xff]
  %v2840 = vld [vmem:[%s2237 + $0x14] sm:$0xff]
  %v2841 = vld [vmem:[%s2237 + $0x24] sm:$0xff]
  %v2842 = vld [vmem:[%s2237 + $0x34] sm:$0xff]
  %v2843 = vld [vmem:[%s2237 + $0x44] sm:$0xff]
  %v2844 = vld [vmem:[%s2237 + $0x54] sm:$0xff]
  %v2845 = vld [vmem:[%s2237 + $0x64] sm:$0xff]
  %v2846 = vld [vmem:[%s2237 + $0x74] sm:$0xff]
  %v2847 = vld [vmem:[%s2246 + $0x4] sm:$0xff]
  %v2848 = vld [vmem:[%s2246 + $0x14] sm:$0xff]
  %v2849 = vld [vmem:[%s2246 + $0x24] sm:$0xff]
  %v2850 = vld [vmem:[%s2246 + $0x34] sm:$0xff]
  %v2851 = vld [vmem:[%s2246 + $0x44] sm:$0xff]
  %v2852 = vld [vmem:[%s2246 + $0x54] sm:$0xff]
  %v2853 = vld [vmem:[%s2246 + $0x64] sm:$0xff]
  %v2854 = vld [vmem:[%s2246 + $0x74] sm:$0xff]
  %s2855 = scalar_lea.vmem %s1, 608
  %v2856 = vld [vmem:[%s2855] sm:$0xff]
  %v2857 = vld [vmem:[%s2855 + $0x8] sm:$0xff]
  %v2858 = vld [vmem:[%s2855 + $0x10] sm:$0xff]
  %v2859 = vld [vmem:[%s2855 + $0x18] sm:$0xff]
  %v2861 = vsel %vm56, %v2839, 0
  %v2864 = vsel %vm56, %v2840, 0
  %v2867 = vsel %vm56, %v2841, 0
  %v2870 = vsel %vm56, %v2842, 0
  %v2873 = vsel %vm56, %v2843, 0
  %v2876 = vsel %vm56, %v2844, 0
  %v2879 = vsel %vm56, %v2845, 0
  %v2882 = vsel %vm56, %v2846, 0
  %v2885 = vsel %vm56, %v2847, 0
  %v2888 = vsel %vm56, %v2848, 0
  %v2891 = vsel %vm56, %v2849, 0
  %v2894 = vsel %vm56, %v2850, 0
  %v2897 = vsel %vm56, %v2851, 0
  %v2900 = vsel %vm56, %v2852, 0
  %v2903 = vsel %vm56, %v2853, 0
  %v2906 = vsel %vm56, %v2854, 0
  %2908 = vmatpush.msra.mxu0 0.0
  %2909 = vmatpush.msra.mxu0 0.0
  %2910 = vmatpush.msra.mxu0 0.0
  %2911 = vmatpush.msra.mxu0 0.0
  %2912 = vmatpush.msra.mxu0 0.0
  %2913 = vmatpush.msra.mxu0 0.0
  %2914 = vmatpush.msra.mxu0 0.0
  %2915 = vmatpush.msra.mxu0 0.0
  %2916 = vmatpush.msra.mxu0 0.0
  %2917 = vmatpush.msra.mxu0 0.0
  %2918 = vmatpush.msra.mxu0 0.0
  %2919 = vmatpush.msra.mxu0 0.0
  %2920 = vmatpush.msra.mxu0 %v2859
  %2921 = vmatpush.msra.mxu0 %v2858
  %2922 = vmatpush.msra.mxu0 %v2857
  %2923 = vmatpush.msra.mxu0 %v2856
  %2924 = vmatmul.f32.gmra.mxu0 %v2861
  %v2925 = vpop.f32.mrf.mxu0
  %v2926 = vadd.f32 0.0, %v2925
  %2927 = vmatmul.f32.gmra.mxu0 %v2864
  %v2928 = vpop.f32.mrf.mxu0
  %v2929 = vadd.f32 0.0, %v2928
  %2930 = vmatmul.f32.gmra.mxu0 %v2867
  %v2931 = vpop.f32.mrf.mxu0
  %v2932 = vadd.f32 0.0, %v2931
  %2933 = vmatmul.f32.gmra.mxu0 %v2870
  %v2934 = vpop.f32.mrf.mxu0
  %v2935 = vadd.f32 0.0, %v2934
  %2936 = vmatmul.f32.gmra.mxu0 %v2873
  %v2937 = vpop.f32.mrf.mxu0
  %v2938 = vadd.f32 0.0, %v2937
  %2939 = vmatmul.f32.gmra.mxu0 %v2876
  %v2940 = vpop.f32.mrf.mxu0
  %v2941 = vadd.f32 0.0, %v2940
  %2942 = vmatmul.f32.gmra.mxu0 %v2879
  %v2943 = vpop.f32.mrf.mxu0
  %v2944 = vadd.f32 0.0, %v2943
  %2945 = vmatmul.f32.gmra.mxu0 %v2882
  %v2946 = vpop.f32.mrf.mxu0
  %v2947 = vadd.f32 0.0, %v2946
  %2948 = vmatmul.f32.gmra.mxu0 %v2885
  %v2949 = vpop.f32.mrf.mxu0
  %v2950 = vadd.f32 0.0, %v2949
  %2951 = vmatmul.f32.gmra.mxu0 %v2888
  %v2952 = vpop.f32.mrf.mxu0
  %v2953 = vadd.f32 0.0, %v2952
  %2954 = vmatmul.f32.gmra.mxu0 %v2891
  %v2955 = vpop.f32.mrf.mxu0
  %v2956 = vadd.f32 0.0, %v2955
  %2957 = vmatmul.f32.gmra.mxu0 %v2894
  %v2958 = vpop.f32.mrf.mxu0
  %v2959 = vadd.f32 0.0, %v2958
  %2960 = vmatmul.f32.gmra.mxu0 %v2897
  %v2961 = vpop.f32.mrf.mxu0
  %v2962 = vadd.f32 0.0, %v2961
  %2963 = vmatmul.f32.gmra.mxu0 %v2900
  %v2964 = vpop.f32.mrf.mxu0
  %v2965 = vadd.f32 0.0, %v2964
  %2966 = vmatmul.f32.gmra.mxu0 %v2903
  %v2967 = vpop.f32.mrf.mxu0
  %v2968 = vadd.f32 0.0, %v2967
  %2969 = vmatmul.f32.gmra.mxu0 %v2906
  %v2970 = vpop.f32.mrf.mxu0
  %v2971 = vadd.f32 0.0, %v2970
  %2972 = vdwg.mxu0
  %v2973 = vadd.f32 %v2823, %v2926
  %v2974 = vadd.f32 %v2824, %v2929
  %v2975 = vadd.f32 %v2825, %v2932
  %v2976 = vadd.f32 %v2826, %v2935
  %v2977 = vadd.f32 %v2827, %v2938
  %v2978 = vadd.f32 %v2828, %v2941
  %v2979 = vadd.f32 %v2829, %v2944
  %v2980 = vadd.f32 %v2830, %v2947
  %v2981 = vadd.f32 %v2831, %v2950
  %v2982 = vadd.f32 %v2832, %v2953
  %v2983 = vadd.f32 %v2833, %v2956
  %v2984 = vadd.f32 %v2834, %v2959
  %v2985 = vadd.f32 %v2835, %v2962
  %v2986 = vadd.f32 %v2836, %v2965
  %v2987 = vadd.f32 %v2837, %v2968
  %v2988 = vadd.f32 %v2838, %v2971
  %s2989 = scalar_lea.vmem %s0, 64
  %v2990 = vld [vmem:[%s2989] sm:$0xff]
  %v2991 = vld [vmem:[%s2989 + $0x10] sm:$0xff]
  %v2992 = vld [vmem:[%s2989 + $0x20] sm:$0xff]
  %v2993 = vld [vmem:[%s2989 + $0x30] sm:$0xff]
  %v2994 = vld [vmem:[%s2989 + $0x40] sm:$0xff]
  %v2995 = vld [vmem:[%s2989 + $0x50] sm:$0xff]
  %v2996 = vld [vmem:[%s2989 + $0x60] sm:$0xff]
  %v2997 = vld [vmem:[%s2989 + $0x70] sm:$0xff]
  %s2998 = scalar_lea.vmem %s0, 256
  %v2999 = vld [vmem:[%s2998] sm:$0xff]
  %v3000 = vld [vmem:[%s2998 + $0x10] sm:$0xff]
  %v3001 = vld [vmem:[%s2998 + $0x20] sm:$0xff]
  %v3002 = vld [vmem:[%s2998 + $0x30] sm:$0xff]
  %v3003 = vld [vmem:[%s2998 + $0x40] sm:$0xff]
  %v3004 = vld [vmem:[%s2998 + $0x50] sm:$0xff]
  %v3005 = vld [vmem:[%s2998 + $0x60] sm:$0xff]
  %v3006 = vld [vmem:[%s2998 + $0x70] sm:$0xff]
  %s3007 = scalar_lea.vmem %s1, 640
  %v3008 = vld [vmem:[%s3007] sm:$0xff]
  %v3009 = vld [vmem:[%s3007 + $0x8] sm:$0xff]
  %v3010 = vld [vmem:[%s3007 + $0x10] sm:$0xff]
  %v3011 = vld [vmem:[%s3007 + $0x18] sm:$0xff]
  %v3013 = vsel %vm56, %v2990, 0
  %v3016 = vsel %vm56, %v2991, 0
  %v3019 = vsel %vm56, %v2992, 0
  %v3022 = vsel %vm56, %v2993, 0
  %v3025 = vsel %vm56, %v2994, 0
  %v3028 = vsel %vm56, %v2995, 0
  %v3031 = vsel %vm56, %v2996, 0
  %v3034 = vsel %vm56, %v2997, 0
  %v3037 = vsel %vm56, %v2999, 0
  %v3040 = vsel %vm56, %v3000, 0
  %v3043 = vsel %vm56, %v3001, 0
  %v3046 = vsel %vm56, %v3002, 0
  %v3049 = vsel %vm56, %v3003, 0
  %v3052 = vsel %vm56, %v3004, 0
  %v3055 = vsel %vm56, %v3005, 0
  %v3058 = vsel %vm56, %v3006, 0
  %3060 = vmatpush.msra.mxu0 0.0
  %3061 = vmatpush.msra.mxu0 0.0
  %3062 = vmatpush.msra.mxu0 0.0
  %3063 = vmatpush.msra.mxu0 0.0
  %3064 = vmatpush.msra.mxu0 0.0
  %3065 = vmatpush.msra.mxu0 0.0
  %3066 = vmatpush.msra.mxu0 0.0
  %3067 = vmatpush.msra.mxu0 0.0
  %3068 = vmatpush.msra.mxu0 0.0
  %3069 = vmatpush.msra.mxu0 0.0
  %3070 = vmatpush.msra.mxu0 0.0
  %3071 = vmatpush.msra.mxu0 0.0
  %3072 = vmatpush.msra.mxu0 %v3011
  %3073 = vmatpush.msra.mxu0 %v3010
  %3074 = vmatpush.msra.mxu0 %v3009
  %3075 = vmatpush.msra.mxu0 %v3008
  %3076 = vmatmul.f32.gmra.mxu0 %v3013
  %v3077 = vpop.f32.mrf.mxu0
  %v3078 = vadd.f32 0.0, %v3077
  %3079 = vmatmul.f32.gmra.mxu0 %v3016
  %v3080 = vpop.f32.mrf.mxu0
  %v3081 = vadd.f32 0.0, %v3080
  %3082 = vmatmul.f32.gmra.mxu0 %v3019
  %v3083 = vpop.f32.mrf.mxu0
  %v3084 = vadd.f32 0.0, %v3083
  %3085 = vmatmul.f32.gmra.mxu0 %v3022
  %v3086 = vpop.f32.mrf.mxu0
  %v3087 = vadd.f32 0.0, %v3086
  %3088 = vmatmul.f32.gmra.mxu0 %v3025
  %v3089 = vpop.f32.mrf.mxu0
  %v3090 = vadd.f32 0.0, %v3089
  %3091 = vmatmul.f32.gmra.mxu0 %v3028
  %v3092 = vpop.f32.mrf.mxu0
  %v3093 = vadd.f32 0.0, %v3092
  %3094 = vmatmul.f32.gmra.mxu0 %v3031
  %v3095 = vpop.f32.mrf.mxu0
  %v3096 = vadd.f32 0.0, %v3095
  %3097 = vmatmul.f32.gmra.mxu0 %v3034
  %v3098 = vpop.f32.mrf.mxu0
  %v3099 = vadd.f32 0.0, %v3098
  %3100 = vmatmul.f32.gmra.mxu0 %v3037
  %v3101 = vpop.f32.mrf.mxu0
  %v3102 = vadd.f32 0.0, %v3101
  %3103 = vmatmul.f32.gmra.mxu0 %v3040
  %v3104 = vpop.f32.mrf.mxu0
  %v3105 = vadd.f32 0.0, %v3104
  %3106 = vmatmul.f32.gmra.mxu0 %v3043
  %v3107 = vpop.f32.mrf.mxu0
  %v3108 = vadd.f32 0.0, %v3107
  %3109 = vmatmul.f32.gmra.mxu0 %v3046
  %v3110 = vpop.f32.mrf.mxu0
  %v3111 = vadd.f32 0.0, %v3110
  %3112 = vmatmul.f32.gmra.mxu0 %v3049
  %v3113 = vpop.f32.mrf.mxu0
  %v3114 = vadd.f32 0.0, %v3113
  %3115 = vmatmul.f32.gmra.mxu0 %v3052
  %v3116 = vpop.f32.mrf.mxu0
  %v3117 = vadd.f32 0.0, %v3116
  %3118 = vmatmul.f32.gmra.mxu0 %v3055
  %v3119 = vpop.f32.mrf.mxu0
  %v3120 = vadd.f32 0.0, %v3119
  %3121 = vmatmul.f32.gmra.mxu0 %v3058
  %v3122 = vpop.f32.mrf.mxu0
  %v3123 = vadd.f32 0.0, %v3122
  %3124 = vdwg.mxu0
  %v3125 = vadd.f32 %v2973, %v3078
  %v3126 = vadd.f32 %v2974, %v3081
  %v3127 = vadd.f32 %v2975, %v3084
  %v3128 = vadd.f32 %v2976, %v3087
  %v3129 = vadd.f32 %v2977, %v3090
  %v3130 = vadd.f32 %v2978, %v3093
  %v3131 = vadd.f32 %v2979, %v3096
  %v3132 = vadd.f32 %v2980, %v3099
  %v3133 = vadd.f32 %v2981, %v3102
  %v3134 = vadd.f32 %v2982, %v3105
  %v3135 = vadd.f32 %v2983, %v3108
  %v3136 = vadd.f32 %v2984, %v3111
  %v3137 = vadd.f32 %v2985, %v3114
  %v3138 = vadd.f32 %v2986, %v3117
  %v3139 = vadd.f32 %v2987, %v3120
  %v3140 = vadd.f32 %v2988, %v3123
  %v3141 = vld [vmem:[%s2989 + $0x1] sm:$0xff]
  %v3142 = vld [vmem:[%s2989 + $0x11] sm:$0xff]
  %v3143 = vld [vmem:[%s2989 + $0x21] sm:$0xff]
  %v3144 = vld [vmem:[%s2989 + $0x31] sm:$0xff]
  %v3145 = vld [vmem:[%s2989 + $0x41] sm:$0xff]
  %v3146 = vld [vmem:[%s2989 + $0x51] sm:$0xff]
  %v3147 = vld [vmem:[%s2989 + $0x61] sm:$0xff]
  %v3148 = vld [vmem:[%s2989 + $0x71] sm:$0xff]
  %v3149 = vld [vmem:[%s2998 + $0x1] sm:$0xff]
  %v3150 = vld [vmem:[%s2998 + $0x11] sm:$0xff]
  %v3151 = vld [vmem:[%s2998 + $0x21] sm:$0xff]
  %v3152 = vld [vmem:[%s2998 + $0x31] sm:$0xff]
  %v3153 = vld [vmem:[%s2998 + $0x41] sm:$0xff]
  %v3154 = vld [vmem:[%s2998 + $0x51] sm:$0xff]
  %v3155 = vld [vmem:[%s2998 + $0x61] sm:$0xff]
  %v3156 = vld [vmem:[%s2998 + $0x71] sm:$0xff]
  %s3157 = scalar_lea.vmem %s1, 672
  %v3158 = vld [vmem:[%s3157] sm:$0xff]
  %v3159 = vld [vmem:[%s3157 + $0x8] sm:$0xff]
  %v3160 = vld [vmem:[%s3157 + $0x10] sm:$0xff]
  %v3161 = vld [vmem:[%s3157 + $0x18] sm:$0xff]
  %v3163 = vsel %vm56, %v3141, 0
  %v3166 = vsel %vm56, %v3142, 0
  %v3169 = vsel %vm56, %v3143, 0
  %v3172 = vsel %vm56, %v3144, 0
  %v3175 = vsel %vm56, %v3145, 0
  %v3178 = vsel %vm56, %v3146, 0
  %v3181 = vsel %vm56, %v3147, 0
  %v3184 = vsel %vm56, %v3148, 0
  %v3187 = vsel %vm56, %v3149, 0
  %v3190 = vsel %vm56, %v3150, 0
  %v3193 = vsel %vm56, %v3151, 0
  %v3196 = vsel %vm56, %v3152, 0
  %v3199 = vsel %vm56, %v3153, 0
  %v3202 = vsel %vm56, %v3154, 0
  %v3205 = vsel %vm56, %v3155, 0
  %v3208 = vsel %vm56, %v3156, 0
  %3210 = vmatpush.msra.mxu0 0.0
  %3211 = vmatpush.msra.mxu0 0.0
  %3212 = vmatpush.msra.mxu0 0.0
  %3213 = vmatpush.msra.mxu0 0.0
  %3214 = vmatpush.msra.mxu0 0.0
  %3215 = vmatpush.msra.mxu0 0.0
  %3216 = vmatpush.msra.mxu0 0.0
  %3217 = vmatpush.msra.mxu0 0.0
  %3218 = vmatpush.msra.mxu0 0.0
  %3219 = vmatpush.msra.mxu0 0.0
  %3220 = vmatpush.msra.mxu0 0.0
  %3221 = vmatpush.msra.mxu0 0.0
  %3222 = vmatpush.msra.mxu0 %v3161
  %3223 = vmatpush.msra.mxu0 %v3160
  %3224 = vmatpush.msra.mxu0 %v3159
  %3225 = vmatpush.msra.mxu0 %v3158
  %3226 = vmatmul.f32.gmra.mxu0 %v3163
  %v3227 = vpop.f32.mrf.mxu0
  %v3228 = vadd.f32 0.0, %v3227
  %3229 = vmatmul.f32.gmra.mxu0 %v3166
  %v3230 = vpop.f32.mrf.mxu0
  %v3231 = vadd.f32 0.0, %v3230
  %3232 = vmatmul.f32.gmra.mxu0 %v3169
  %v3233 = vpop.f32.mrf.mxu0
  %v3234 = vadd.f32 0.0, %v3233
  %3235 = vmatmul.f32.gmra.mxu0 %v3172
  %v3236 = vpop.f32.mrf.mxu0
  %v3237 = vadd.f32 0.0, %v3236
  %3238 = vmatmul.f32.gmra.mxu0 %v3175
  %v3239 = vpop.f32.mrf.mxu0
  %v3240 = vadd.f32 0.0, %v3239
  %3241 = vmatmul.f32.gmra.mxu0 %v3178
  %v3242 = vpop.f32.mrf.mxu0
  %v3243 = vadd.f32 0.0, %v3242
  %3244 = vmatmul.f32.gmra.mxu0 %v3181
  %v3245 = vpop.f32.mrf.mxu0
  %v3246 = vadd.f32 0.0, %v3245
  %3247 = vmatmul.f32.gmra.mxu0 %v3184
  %v3248 = vpop.f32.mrf.mxu0
  %v3249 = vadd.f32 0.0, %v3248
  %3250 = vmatmul.f32.gmra.mxu0 %v3187
  %v3251 = vpop.f32.mrf.mxu0
  %v3252 = vadd.f32 0.0, %v3251
  %3253 = vmatmul.f32.gmra.mxu0 %v3190
  %v3254 = vpop.f32.mrf.mxu0
  %v3255 = vadd.f32 0.0, %v3254
  %3256 = vmatmul.f32.gmra.mxu0 %v3193
  %v3257 = vpop.f32.mrf.mxu0
  %v3258 = vadd.f32 0.0, %v3257
  %3259 = vmatmul.f32.gmra.mxu0 %v3196
  %v3260 = vpop.f32.mrf.mxu0
  %v3261 = vadd.f32 0.0, %v3260
  %3262 = vmatmul.f32.gmra.mxu0 %v3199
  %v3263 = vpop.f32.mrf.mxu0
  %v3264 = vadd.f32 0.0, %v3263
  %3265 = vmatmul.f32.gmra.mxu0 %v3202
  %v3266 = vpop.f32.mrf.mxu0
  %v3267 = vadd.f32 0.0, %v3266
  %3268 = vmatmul.f32.gmra.mxu0 %v3205
  %v3269 = vpop.f32.mrf.mxu0
  %v3270 = vadd.f32 0.0, %v3269
  %3271 = vmatmul.f32.gmra.mxu0 %v3208
  %v3272 = vpop.f32.mrf.mxu0
  %v3273 = vadd.f32 0.0, %v3272
  %3274 = vdwg.mxu0
  %v3275 = vadd.f32 %v3125, %v3228
  %v3276 = vadd.f32 %v3126, %v3231
  %v3277 = vadd.f32 %v3127, %v3234
  %v3278 = vadd.f32 %v3128, %v3237
  %v3279 = vadd.f32 %v3129, %v3240
  %v3280 = vadd.f32 %v3130, %v3243
  %v3281 = vadd.f32 %v3131, %v3246
  %v3282 = vadd.f32 %v3132, %v3249
  %v3283 = vadd.f32 %v3133, %v3252
  %v3284 = vadd.f32 %v3134, %v3255
  %v3285 = vadd.f32 %v3135, %v3258
  %v3286 = vadd.f32 %v3136, %v3261
  %v3287 = vadd.f32 %v3137, %v3264
  %v3288 = vadd.f32 %v3138, %v3267
  %v3289 = vadd.f32 %v3139, %v3270
  %v3290 = vadd.f32 %v3140, %v3273
  %v3291 = vld [vmem:[%s2989 + $0x2] sm:$0xff]
  %v3292 = vld [vmem:[%s2989 + $0x12] sm:$0xff]
  %v3293 = vld [vmem:[%s2989 + $0x22] sm:$0xff]
  %v3294 = vld [vmem:[%s2989 + $0x32] sm:$0xff]
  %v3295 = vld [vmem:[%s2989 + $0x42] sm:$0xff]
  %v3296 = vld [vmem:[%s2989 + $0x52] sm:$0xff]
  %v3297 = vld [vmem:[%s2989 + $0x62] sm:$0xff]
  %v3298 = vld [vmem:[%s2989 + $0x72] sm:$0xff]
  %v3299 = vld [vmem:[%s2998 + $0x2] sm:$0xff]
  %v3300 = vld [vmem:[%s2998 + $0x12] sm:$0xff]
  %v3301 = vld [vmem:[%s2998 + $0x22] sm:$0xff]
  %v3302 = vld [vmem:[%s2998 + $0x32] sm:$0xff]
  %v3303 = vld [vmem:[%s2998 + $0x42] sm:$0xff]
  %v3304 = vld [vmem:[%s2998 + $0x52] sm:$0xff]
  %v3305 = vld [vmem:[%s2998 + $0x62] sm:$0xff]
  %v3306 = vld [vmem:[%s2998 + $0x72] sm:$0xff]
  %s3307 = scalar_lea.vmem %s1, 704
  %v3308 = vld [vmem:[%s3307] sm:$0xff]
  %v3309 = vld [vmem:[%s3307 + $0x8] sm:$0xff]
  %v3310 = vld [vmem:[%s3307 + $0x10] sm:$0xff]
  %v3311 = vld [vmem:[%s3307 + $0x18] sm:$0xff]
  %v3313 = vsel %vm56, %v3291, 0
  %v3316 = vsel %vm56, %v3292, 0
  %v3319 = vsel %vm56, %v3293, 0
  %v3322 = vsel %vm56, %v3294, 0
  %v3325 = vsel %vm56, %v3295, 0
  %v3328 = vsel %vm56, %v3296, 0
  %v3331 = vsel %vm56, %v3297, 0
  %v3334 = vsel %vm56, %v3298, 0
  %v3337 = vsel %vm56, %v3299, 0
  %v3340 = vsel %vm56, %v3300, 0
  %v3343 = vsel %vm56, %v3301, 0
  %v3346 = vsel %vm56, %v3302, 0
  %v3349 = vsel %vm56, %v3303, 0
  %v3352 = vsel %vm56, %v3304, 0
  %v3355 = vsel %vm56, %v3305, 0
  %v3358 = vsel %vm56, %v3306, 0
  %3360 = vmatpush.msra.mxu0 0.0
  %3361 = vmatpush.msra.mxu0 0.0
  %3362 = vmatpush.msra.mxu0 0.0
  %3363 = vmatpush.msra.mxu0 0.0
  %3364 = vmatpush.msra.mxu0 0.0
  %3365 = vmatpush.msra.mxu0 0.0
  %3366 = vmatpush.msra.mxu0 0.0
  %3367 = vmatpush.msra.mxu0 0.0
  %3368 = vmatpush.msra.mxu0 0.0
  %3369 = vmatpush.msra.mxu0 0.0
  %3370 = vmatpush.msra.mxu0 0.0
  %3371 = vmatpush.msra.mxu0 0.0
  %3372 = vmatpush.msra.mxu0 %v3311
  %3373 = vmatpush.msra.mxu0 %v3310
  %3374 = vmatpush.msra.mxu0 %v3309
  %3375 = vmatpush.msra.mxu0 %v3308
  %3376 = vmatmul.f32.gmra.mxu0 %v3313
  %v3377 = vpop.f32.mrf.mxu0
  %v3378 = vadd.f32 0.0, %v3377
  %3379 = vmatmul.f32.gmra.mxu0 %v3316
  %v3380 = vpop.f32.mrf.mxu0
  %v3381 = vadd.f32 0.0, %v3380
  %3382 = vmatmul.f32.gmra.mxu0 %v3319
  %v3383 = vpop.f32.mrf.mxu0
  %v3384 = vadd.f32 0.0, %v3383
  %3385 = vmatmul.f32.gmra.mxu0 %v3322
  %v3386 = vpop.f32.mrf.mxu0
  %v3387 = vadd.f32 0.0, %v3386
  %3388 = vmatmul.f32.gmra.mxu0 %v3325
  %v3389 = vpop.f32.mrf.mxu0
  %v3390 = vadd.f32 0.0, %v3389
  %3391 = vmatmul.f32.gmra.mxu0 %v3328
  %v3392 = vpop.f32.mrf.mxu0
  %v3393 = vadd.f32 0.0, %v3392
  %3394 = vmatmul.f32.gmra.mxu0 %v3331
  %v3395 = vpop.f32.mrf.mxu0
  %v3396 = vadd.f32 0.0, %v3395
  %3397 = vmatmul.f32.gmra.mxu0 %v3334
  %v3398 = vpop.f32.mrf.mxu0
  %v3399 = vadd.f32 0.0, %v3398
  %3400 = vmatmul.f32.gmra.mxu0 %v3337
  %v3401 = vpop.f32.mrf.mxu0
  %v3402 = vadd.f32 0.0, %v3401
  %3403 = vmatmul.f32.gmra.mxu0 %v3340
  %v3404 = vpop.f32.mrf.mxu0
  %v3405 = vadd.f32 0.0, %v3404
  %3406 = vmatmul.f32.gmra.mxu0 %v3343
  %v3407 = vpop.f32.mrf.mxu0
  %v3408 = vadd.f32 0.0, %v3407
  %3409 = vmatmul.f32.gmra.mxu0 %v3346
  %v3410 = vpop.f32.mrf.mxu0
  %v3411 = vadd.f32 0.0, %v3410
  %3412 = vmatmul.f32.gmra.mxu0 %v3349
  %v3413 = vpop.f32.mrf.mxu0
  %v3414 = vadd.f32 0.0, %v3413
  %3415 = vmatmul.f32.gmra.mxu0 %v3352
  %v3416 = vpop.f32.mrf.mxu0
  %v3417 = vadd.f32 0.0, %v3416
  %3418 = vmatmul.f32.gmra.mxu0 %v3355
  %v3419 = vpop.f32.mrf.mxu0
  %v3420 = vadd.f32 0.0, %v3419
  %3421 = vmatmul.f32.gmra.mxu0 %v3358
  %v3422 = vpop.f32.mrf.mxu0
  %v3423 = vadd.f32 0.0, %v3422
  %3424 = vdwg.mxu0
  %v3425 = vadd.f32 %v3275, %v3378
  %v3426 = vadd.f32 %v3276, %v3381
  %v3427 = vadd.f32 %v3277, %v3384
  %v3428 = vadd.f32 %v3278, %v3387
  %v3429 = vadd.f32 %v3279, %v3390
  %v3430 = vadd.f32 %v3280, %v3393
  %v3431 = vadd.f32 %v3281, %v3396
  %v3432 = vadd.f32 %v3282, %v3399
  %v3433 = vadd.f32 %v3283, %v3402
  %v3434 = vadd.f32 %v3284, %v3405
  %v3435 = vadd.f32 %v3285, %v3408
  %v3436 = vadd.f32 %v3286, %v3411
  %v3437 = vadd.f32 %v3287, %v3414
  %v3438 = vadd.f32 %v3288, %v3417
  %v3439 = vadd.f32 %v3289, %v3420
  %v3440 = vadd.f32 %v3290, %v3423
  %v3441 = vld [vmem:[%s2989 + $0x3] sm:$0xff]
  %v3442 = vld [vmem:[%s2989 + $0x13] sm:$0xff]
  %v3443 = vld [vmem:[%s2989 + $0x23] sm:$0xff]
  %v3444 = vld [vmem:[%s2989 + $0x33] sm:$0xff]
  %v3445 = vld [vmem:[%s2989 + $0x43] sm:$0xff]
  %v3446 = vld [vmem:[%s2989 + $0x53] sm:$0xff]
  %v3447 = vld [vmem:[%s2989 + $0x63] sm:$0xff]
  %v3448 = vld [vmem:[%s2989 + $0x73] sm:$0xff]
  %v3449 = vld [vmem:[%s2998 + $0x3] sm:$0xff]
  %v3450 = vld [vmem:[%s2998 + $0x13] sm:$0xff]
  %v3451 = vld [vmem:[%s2998 + $0x23] sm:$0xff]
  %v3452 = vld [vmem:[%s2998 + $0x33] sm:$0xff]
  %v3453 = vld [vmem:[%s2998 + $0x43] sm:$0xff]
  %v3454 = vld [vmem:[%s2998 + $0x53] sm:$0xff]
  %v3455 = vld [vmem:[%s2998 + $0x63] sm:$0xff]
  %v3456 = vld [vmem:[%s2998 + $0x73] sm:$0xff]
  %s3457 = scalar_lea.vmem %s1, 736
  %v3458 = vld [vmem:[%s3457] sm:$0xff]
  %v3459 = vld [vmem:[%s3457 + $0x8] sm:$0xff]
  %v3460 = vld [vmem:[%s3457 + $0x10] sm:$0xff]
  %v3461 = vld [vmem:[%s3457 + $0x18] sm:$0xff]
  %v3463 = vsel %vm56, %v3441, 0
  %v3466 = vsel %vm56, %v3442, 0
  %v3469 = vsel %vm56, %v3443, 0
  %v3472 = vsel %vm56, %v3444, 0
  %v3475 = vsel %vm56, %v3445, 0
  %v3478 = vsel %vm56, %v3446, 0
  %v3481 = vsel %vm56, %v3447, 0
  %v3484 = vsel %vm56, %v3448, 0
  %v3487 = vsel %vm56, %v3449, 0
  %v3490 = vsel %vm56, %v3450, 0
  %v3493 = vsel %vm56, %v3451, 0
  %v3496 = vsel %vm56, %v3452, 0
  %v3499 = vsel %vm56, %v3453, 0
  %v3502 = vsel %vm56, %v3454, 0
  %v3505 = vsel %vm56, %v3455, 0
  %v3508 = vsel %vm56, %v3456, 0
  %3510 = vmatpush.msra.mxu0 0.0
  %3511 = vmatpush.msra.mxu0 0.0
  %3512 = vmatpush.msra.mxu0 0.0
  %3513 = vmatpush.msra.mxu0 0.0
  %3514 = vmatpush.msra.mxu0 0.0
  %3515 = vmatpush.msra.mxu0 0.0
  %3516 = vmatpush.msra.mxu0 0.0
  %3517 = vmatpush.msra.mxu0 0.0
  %3518 = vmatpush.msra.mxu0 0.0
  %3519 = vmatpush.msra.mxu0 0.0
  %3520 = vmatpush.msra.mxu0 0.0
  %3521 = vmatpush.msra.mxu0 0.0
  %3522 = vmatpush.msra.mxu0 %v3461
  %3523 = vmatpush.msra.mxu0 %v3460
  %3524 = vmatpush.msra.mxu0 %v3459
  %3525 = vmatpush.msra.mxu0 %v3458
  %3526 = vmatmul.f32.gmra.mxu0 %v3463
  %v3527 = vpop.f32.mrf.mxu0
  %v3528 = vadd.f32 0.0, %v3527
  %3529 = vmatmul.f32.gmra.mxu0 %v3466
  %v3530 = vpop.f32.mrf.mxu0
  %v3531 = vadd.f32 0.0, %v3530
  %3532 = vmatmul.f32.gmra.mxu0 %v3469
  %v3533 = vpop.f32.mrf.mxu0
  %v3534 = vadd.f32 0.0, %v3533
  %3535 = vmatmul.f32.gmra.mxu0 %v3472
  %v3536 = vpop.f32.mrf.mxu0
  %v3537 = vadd.f32 0.0, %v3536
  %3538 = vmatmul.f32.gmra.mxu0 %v3475
  %v3539 = vpop.f32.mrf.mxu0
  %v3540 = vadd.f32 0.0, %v3539
  %3541 = vmatmul.f32.gmra.mxu0 %v3478
  %v3542 = vpop.f32.mrf.mxu0
  %v3543 = vadd.f32 0.0, %v3542
  %3544 = vmatmul.f32.gmra.mxu0 %v3481
  %v3545 = vpop.f32.mrf.mxu0
  %v3546 = vadd.f32 0.0, %v3545
  %3547 = vmatmul.f32.gmra.mxu0 %v3484
  %v3548 = vpop.f32.mrf.mxu0
  %v3549 = vadd.f32 0.0, %v3548
  %3550 = vmatmul.f32.gmra.mxu0 %v3487
  %v3551 = vpop.f32.mrf.mxu0
  %v3552 = vadd.f32 0.0, %v3551
  %3553 = vmatmul.f32.gmra.mxu0 %v3490
  %v3554 = vpop.f32.mrf.mxu0
  %v3555 = vadd.f32 0.0, %v3554
  %3556 = vmatmul.f32.gmra.mxu0 %v3493
  %v3557 = vpop.f32.mrf.mxu0
  %v3558 = vadd.f32 0.0, %v3557
  %3559 = vmatmul.f32.gmra.mxu0 %v3496
  %v3560 = vpop.f32.mrf.mxu0
  %v3561 = vadd.f32 0.0, %v3560
  %3562 = vmatmul.f32.gmra.mxu0 %v3499
  %v3563 = vpop.f32.mrf.mxu0
  %v3564 = vadd.f32 0.0, %v3563
  %3565 = vmatmul.f32.gmra.mxu0 %v3502
  %v3566 = vpop.f32.mrf.mxu0
  %v3567 = vadd.f32 0.0, %v3566
  %3568 = vmatmul.f32.gmra.mxu0 %v3505
  %v3569 = vpop.f32.mrf.mxu0
  %v3570 = vadd.f32 0.0, %v3569
  %3571 = vmatmul.f32.gmra.mxu0 %v3508
  %v3572 = vpop.f32.mrf.mxu0
  %v3573 = vadd.f32 0.0, %v3572
  %3574 = vdwg.mxu0
  %v3575 = vadd.f32 %v3425, %v3528
  %v3576 = vadd.f32 %v3426, %v3531
  %v3577 = vadd.f32 %v3427, %v3534
  %v3578 = vadd.f32 %v3428, %v3537
  %v3579 = vadd.f32 %v3429, %v3540
  %v3580 = vadd.f32 %v3430, %v3543
  %v3581 = vadd.f32 %v3431, %v3546
  %v3582 = vadd.f32 %v3432, %v3549
  %v3583 = vadd.f32 %v3433, %v3552
  %v3584 = vadd.f32 %v3434, %v3555
  %v3585 = vadd.f32 %v3435, %v3558
  %v3586 = vadd.f32 %v3436, %v3561
  %v3587 = vadd.f32 %v3437, %v3564
  %v3588 = vadd.f32 %v3438, %v3567
  %v3589 = vadd.f32 %v3439, %v3570
  %v3590 = vadd.f32 %v3440, %v3573
  %v3591 = vld [vmem:[%s2989 + $0x4] sm:$0xff]
  %v3592 = vld [vmem:[%s2989 + $0x14] sm:$0xff]
  %v3593 = vld [vmem:[%s2989 + $0x24] sm:$0xff]
  %v3594 = vld [vmem:[%s2989 + $0x34] sm:$0xff]
  %v3595 = vld [vmem:[%s2989 + $0x44] sm:$0xff]
  %v3596 = vld [vmem:[%s2989 + $0x54] sm:$0xff]
  %v3597 = vld [vmem:[%s2989 + $0x64] sm:$0xff]
  %v3598 = vld [vmem:[%s2989 + $0x74] sm:$0xff]
  %v3599 = vld [vmem:[%s2998 + $0x4] sm:$0xff]
  %v3600 = vld [vmem:[%s2998 + $0x14] sm:$0xff]
  %v3601 = vld [vmem:[%s2998 + $0x24] sm:$0xff]
  %v3602 = vld [vmem:[%s2998 + $0x34] sm:$0xff]
  %v3603 = vld [vmem:[%s2998 + $0x44] sm:$0xff]
  %v3604 = vld [vmem:[%s2998 + $0x54] sm:$0xff]
  %v3605 = vld [vmem:[%s2998 + $0x64] sm:$0xff]
  %v3606 = vld [vmem:[%s2998 + $0x74] sm:$0xff]
  %s3607 = scalar_lea.vmem %s1, 768
  %v3608 = vld [vmem:[%s3607] sm:$0xff]
  %v3609 = vld [vmem:[%s3607 + $0x8] sm:$0xff]
  %v3610 = vld [vmem:[%s3607 + $0x10] sm:$0xff]
  %v3611 = vld [vmem:[%s3607 + $0x18] sm:$0xff]
  %v3613 = vsel %vm56, %v3591, 0
  %v3616 = vsel %vm56, %v3592, 0
  %v3619 = vsel %vm56, %v3593, 0
  %v3622 = vsel %vm56, %v3594, 0
  %v3625 = vsel %vm56, %v3595, 0
  %v3628 = vsel %vm56, %v3596, 0
  %v3631 = vsel %vm56, %v3597, 0
  %v3634 = vsel %vm56, %v3598, 0
  %v3637 = vsel %vm56, %v3599, 0
  %v3640 = vsel %vm56, %v3600, 0
  %v3643 = vsel %vm56, %v3601, 0
  %v3646 = vsel %vm56, %v3602, 0
  %v3649 = vsel %vm56, %v3603, 0
  %v3652 = vsel %vm56, %v3604, 0
  %v3655 = vsel %vm56, %v3605, 0
  %v3658 = vsel %vm56, %v3606, 0
  %3660 = vmatpush.msra.mxu0 0.0
  %3661 = vmatpush.msra.mxu0 0.0
  %3662 = vmatpush.msra.mxu0 0.0
  %3663 = vmatpush.msra.mxu0 0.0
  %3664 = vmatpush.msra.mxu0 0.0
  %3665 = vmatpush.msra.mxu0 0.0
  %3666 = vmatpush.msra.mxu0 0.0
  %3667 = vmatpush.msra.mxu0 0.0
  %3668 = vmatpush.msra.mxu0 0.0
  %3669 = vmatpush.msra.mxu0 0.0
  %3670 = vmatpush.msra.mxu0 0.0
  %3671 = vmatpush.msra.mxu0 0.0
  %3672 = vmatpush.msra.mxu0 %v3611
  %3673 = vmatpush.msra.mxu0 %v3610
  %3674 = vmatpush.msra.mxu0 %v3609
  %3675 = vmatpush.msra.mxu0 %v3608
  %3676 = vmatmul.f32.gmra.mxu0 %v3613
  %v3677 = vpop.f32.mrf.mxu0
  %v3678 = vadd.f32 0.0, %v3677
  %3679 = vmatmul.f32.gmra.mxu0 %v3616
  %v3680 = vpop.f32.mrf.mxu0
  %v3681 = vadd.f32 0.0, %v3680
  %3682 = vmatmul.f32.gmra.mxu0 %v3619
  %v3683 = vpop.f32.mrf.mxu0
  %v3684 = vadd.f32 0.0, %v3683
  %3685 = vmatmul.f32.gmra.mxu0 %v3622
  %v3686 = vpop.f32.mrf.mxu0
  %v3687 = vadd.f32 0.0, %v3686
  %3688 = vmatmul.f32.gmra.mxu0 %v3625
  %v3689 = vpop.f32.mrf.mxu0
  %v3690 = vadd.f32 0.0, %v3689
  %3691 = vmatmul.f32.gmra.mxu0 %v3628
  %v3692 = vpop.f32.mrf.mxu0
  %v3693 = vadd.f32 0.0, %v3692
  %3694 = vmatmul.f32.gmra.mxu0 %v3631
  %v3695 = vpop.f32.mrf.mxu0
  %v3696 = vadd.f32 0.0, %v3695
  %3697 = vmatmul.f32.gmra.mxu0 %v3634
  %v3698 = vpop.f32.mrf.mxu0
  %v3699 = vadd.f32 0.0, %v3698
  %3700 = vmatmul.f32.gmra.mxu0 %v3637
  %v3701 = vpop.f32.mrf.mxu0
  %v3702 = vadd.f32 0.0, %v3701
  %3703 = vmatmul.f32.gmra.mxu0 %v3640
  %v3704 = vpop.f32.mrf.mxu0
  %v3705 = vadd.f32 0.0, %v3704
  %3706 = vmatmul.f32.gmra.mxu0 %v3643
  %v3707 = vpop.f32.mrf.mxu0
  %v3708 = vadd.f32 0.0, %v3707
  %3709 = vmatmul.f32.gmra.mxu0 %v3646
  %v3710 = vpop.f32.mrf.mxu0
  %v3711 = vadd.f32 0.0, %v3710
  %3712 = vmatmul.f32.gmra.mxu0 %v3649
  %v3713 = vpop.f32.mrf.mxu0
  %v3714 = vadd.f32 0.0, %v3713
  %3715 = vmatmul.f32.gmra.mxu0 %v3652
  %v3716 = vpop.f32.mrf.mxu0
  %v3717 = vadd.f32 0.0, %v3716
  %3718 = vmatmul.f32.gmra.mxu0 %v3655
  %v3719 = vpop.f32.mrf.mxu0
  %v3720 = vadd.f32 0.0, %v3719
  %3721 = vmatmul.f32.gmra.mxu0 %v3658
  %v3722 = vpop.f32.mrf.mxu0
  %v3723 = vadd.f32 0.0, %v3722
  %3724 = vdwg.mxu0
  %v3725 = vadd.f32 %v3575, %v3678
  %v3726 = vadd.f32 %v3576, %v3681
  %v3727 = vadd.f32 %v3577, %v3684
  %v3728 = vadd.f32 %v3578, %v3687
  %v3729 = vadd.f32 %v3579, %v3690
  %v3730 = vadd.f32 %v3580, %v3693
  %v3731 = vadd.f32 %v3581, %v3696
  %v3732 = vadd.f32 %v3582, %v3699
  %v3733 = vadd.f32 %v3583, %v3702
  %v3734 = vadd.f32 %v3584, %v3705
  %v3735 = vadd.f32 %v3585, %v3708
  %v3736 = vadd.f32 %v3586, %v3711
  %v3737 = vadd.f32 %v3587, %v3714
  %v3738 = vadd.f32 %v3588, %v3717
  %v3739 = vadd.f32 %v3589, %v3720
  %v3740 = vadd.f32 %v3590, %v3723
  %vm3741 = vcmask 523264
  %3742 = vst.msk [vmem:[#allocation2] sm:$0xff] %vm3741, %v3725
  %3743 = vst.msk [vmem:[#allocation2 + $0x8] sm:$0xff] %vm3741, %v3726
  %3744 = vst.msk [vmem:[#allocation2 + $0x10] sm:$0xff] %vm3741, %v3727
  %3745 = vst.msk [vmem:[#allocation2 + $0x18] sm:$0xff] %vm3741, %v3728
  %3746 = vst.msk [vmem:[#allocation2 + $0x20] sm:$0xff] %vm3741, %v3729
  %3747 = vst.msk [vmem:[#allocation2 + $0x28] sm:$0xff] %vm3741, %v3730
  %3748 = vst.msk [vmem:[#allocation2 + $0x30] sm:$0xff] %vm3741, %v3731
  %3749 = vst.msk [vmem:[#allocation2 + $0x38] sm:$0xff] %vm3741, %v3732
  %3750 = vst.msk [vmem:[#allocation2 + $0x40] sm:$0xff] %vm3741, %v3733
  %3751 = vst.msk [vmem:[#allocation2 + $0x48] sm:$0xff] %vm3741, %v3734
  %3752 = vst.msk [vmem:[#allocation2 + $0x50] sm:$0xff] %vm3741, %v3735
  %3753 = vst.msk [vmem:[#allocation2 + $0x58] sm:$0xff] %vm3741, %v3736
  %3754 = vst.msk [vmem:[#allocation2 + $0x60] sm:$0xff] %vm3741, %v3737
  %3755 = vst.msk [vmem:[#allocation2 + $0x68] sm:$0xff] %vm3741, %v3738
  %3756 = vst.msk [vmem:[#allocation2 + $0x70] sm:$0xff] %vm3741, %v3739
  %3757 = vst.msk [vmem:[#allocation2 + $0x78] sm:$0xff] %vm3741, %v3740
  %v3758 = vld [vmem:[%s2] sm:$0x1]
  %v3760 = vperm.slane %v3758, 0
  %v3762 = vld [vmem:[#allocation2] ss:$2 sm:$0xf]
  %s3763 = scalar_lea.vmem [#allocation2], 1
  %v3764 = vld [vmem:[%s3763] ss:$2 sm:$0xf]
  %s3765 = scalar_lea.vmem [#allocation2], 8
  %v3766 = vld [vmem:[%s3765] ss:$2 sm:$0xf]
  %s3767 = scalar_lea.vmem [#allocation2], 9
  %v3768 = vld [vmem:[%s3767] ss:$2 sm:$0xf]
  %v3769 = vmax.f32 %v3762, %v3764
  %v3770 = vmax.f32 %v3766, %v3768
  %v3771 = vmax.f32 %v3769, %v3770
  %v3772 = vadd.f32 %v3771, %v3760
  %v3773 = vmax.f32 %v3772, 0.0
  %vm3774 = vcmask 519168
  %3775 = vst.msk [vmem:[%s3] sm:$0xf] %vm3774, %v3773
  %s3776 = scalar_lea.vmem [#allocation2], 16
  %v3777 = vld [vmem:[%s3776] ss:$2 sm:$0xf]
  %s3778 = scalar_lea.vmem [#allocation2], 17
  %v3779 = vld [vmem:[%s3778] ss:$2 sm:$0xf]
  %s3780 = scalar_lea.vmem [#allocation2], 24
  %v3781 = vld [vmem:[%s3780] ss:$2 sm:$0xf]
  %s3782 = scalar_lea.vmem [#allocation2], 25
  %v3783 = vld [vmem:[%s3782] ss:$2 sm:$0xf]
  %v3784 = vmax.f32 %v3777, %v3779
  %v3785 = vmax.f32 %v3781, %v3783
  %v3786 = vmax.f32 %v3784, %v3785
  %v3787 = vadd.f32 %v3786, %v3760
  %v3788 = vmax.f32 %v3787, 0.0
  %s3789 = scalar_lea.vmem %s3, 4
  %3790 = vst.msk [vmem:[%s3789] sm:$0xf] %vm3774, %v3788
  %s3791 = scalar_lea.vmem [#allocation2], 32
  %v3792 = vld [vmem:[%s3791] ss:$2 sm:$0xf]
  %s3793 = scalar_lea.vmem [#allocation2], 33
  %v3794 = vld [vmem:[%s3793] ss:$2 sm:$0xf]
  %s3795 = scalar_lea.vmem [#allocation2], 40
  %v3796 = vld [vmem:[%s3795] ss:$2 sm:$0xf]
  %s3797 = scalar_lea.vmem [#allocation2], 41
  %v3798 = vld [vmem:[%s3797] ss:$2 sm:$0xf]
  %v3799 = vmax.f32 %v3792, %v3794
  %v3800 = vmax.f32 %v3796, %v3798
  %v3801 = vmax.f32 %v3799, %v3800
  %v3802 = vadd.f32 %v3801, %v3760
  %v3803 = vmax.f32 %v3802, 0.0
  %s3804 = scalar_lea.vmem %s3, 8
  %3805 = vst.msk [vmem:[%s3804] sm:$0xf] %vm3774, %v3803
  %s3806 = scalar_lea.vmem [#allocation2], 48
  %v3807 = vld [vmem:[%s3806] ss:$2 sm:$0xf]
  %s3808 = scalar_lea.vmem [#allocation2], 49
  %v3809 = vld [vmem:[%s3808] ss:$2 sm:$0xf]
  %s3810 = scalar_lea.vmem [#allocation2], 56
  %v3811 = vld [vmem:[%s3810] ss:$2 sm:$0xf]
  %s3812 = scalar_lea.vmem [#allocation2], 57
  %v3813 = vld [vmem:[%s3812] ss:$2 sm:$0xf]
  %v3814 = vmax.f32 %v3807, %v3809
  %v3815 = vmax.f32 %v3811, %v3813
  %v3816 = vmax.f32 %v3814, %v3815
  %v3817 = vadd.f32 %v3816, %v3760
  %v3818 = vmax.f32 %v3817, 0.0
  %s3819 = scalar_lea.vmem %s3, 12
  %3820 = vst.msk [vmem:[%s3819] sm:$0xf] %vm3774, %v3818
  %s3821 = scalar_lea.vmem [#allocation2], 64
  %v3822 = vld [vmem:[%s3821] ss:$2 sm:$0xf]
  %s3823 = scalar_lea.vmem [#allocation2], 65
  %v3824 = vld [vmem:[%s3823] ss:$2 sm:$0xf]
  %s3825 = scalar_lea.vmem [#allocation2], 72
  %v3826 = vld [vmem:[%s3825] ss:$2 sm:$0xf]
  %s3827 = scalar_lea.vmem [#allocation2], 73
  %v3828 = vld [vmem:[%s3827] ss:$2 sm:$0xf]
  %v3829 = vmax.f32 %v3822, %v3824
  %v3830 = vmax.f32 %v3826, %v3828
  %v3831 = vmax.f32 %v3829, %v3830
  %v3832 = vadd.f32 %v3831, %v3760
  %v3833 = vmax.f32 %v3832, 0.0
  %s3834 = scalar_lea.vmem %s3, 16
  %3835 = vst.msk [vmem:[%s3834] sm:$0xf] %vm3774, %v3833
  %s3836 = scalar_lea.vmem [#allocation2], 80
  %v3837 = vld [vmem:[%s3836] ss:$2 sm:$0xf]
  %s3838 = scalar_lea.vmem [#allocation2], 81
  %v3839 = vld [vmem:[%s3838] ss:$2 sm:$0xf]
  %s3840 = scalar_lea.vmem [#allocation2], 88
  %v3841 = vld [vmem:[%s3840] ss:$2 sm:$0xf]
  %s3842 = scalar_lea.vmem [#allocation2], 89
  %v3843 = vld [vmem:[%s3842] ss:$2 sm:$0xf]
  %v3844 = vmax.f32 %v3837, %v3839
  %v3845 = vmax.f32 %v3841, %v3843
  %v3846 = vmax.f32 %v3844, %v3845
  %v3847 = vadd.f32 %v3846, %v3760
  %v3848 = vmax.f32 %v3847, 0.0
  %s3849 = scalar_lea.vmem %s3, 20
  %3850 = vst.msk [vmem:[%s3849] sm:$0xf] %vm3774, %v3848
  %s3851 = scalar_lea.vmem [#allocation2], 96
  %v3852 = vld [vmem:[%s3851] ss:$2 sm:$0xf]
  %s3853 = scalar_lea.vmem [#allocation2], 97
  %v3854 = vld [vmem:[%s3853] ss:$2 sm:$0xf]
  %s3855 = scalar_lea.vmem [#allocation2], 104
  %v3856 = vld [vmem:[%s3855] ss:$2 sm:$0xf]
  %s3857 = scalar_lea.vmem [#allocation2], 105
  %v3858 = vld [vmem:[%s3857] ss:$2 sm:$0xf]
  %v3859 = vmax.f32 %v3852, %v3854
  %v3860 = vmax.f32 %v3856, %v3858
  %v3861 = vmax.f32 %v3859, %v3860
  %v3862 = vadd.f32 %v3861, %v3760
  %v3863 = vmax.f32 %v3862, 0.0
  %s3864 = scalar_lea.vmem %s3, 24
  %3865 = vst.msk [vmem:[%s3864] sm:$0xf] %vm3774, %v3863
  %s3866 = scalar_lea.vmem [#allocation2], 112
  %v3867 = vld [vmem:[%s3866] ss:$2 sm:$0xf]
  %s3868 = scalar_lea.vmem [#allocation2], 113
  %v3869 = vld [vmem:[%s3868] ss:$2 sm:$0xf]
  %s3870 = scalar_lea.vmem [#allocation2], 120
  %v3871 = vld [vmem:[%s3870] ss:$2 sm:$0xf]
  %s3872 = scalar_lea.vmem [#allocation2], 121
  %v3873 = vld [vmem:[%s3872] ss:$2 sm:$0xf]
  %v3874 = vmax.f32 %v3867, %v3869
  %v3875 = vmax.f32 %v3871, %v3873
  %v3876 = vmax.f32 %v3874, %v3875
  %v3877 = vadd.f32 %v3876, %v3760
  %v3878 = vmax.f32 %v3877, 0.0
  %s3879 = scalar_lea.vmem %s3, 28
  %3880 = vst.msk [vmem:[%s3879] sm:$0xf] %vm3774, %v3878
  // Predicated region
  $region14: #{net_forward.4} parent=0 // pred_check
    _
  $region15: #{net_forward.4} parent=0 // pred_check_branch
    %3882 = sbr.rel (0) target = $region17
  $region16: #{net_forward.4} parent=0 // pred_region
    _
  $region17: #{net_forward.4} parent=0 // pred_fallthru
    _
  // Predicated region
  $region18: #{net_forward.4} parent=0 // pred_check
    _
  $region19: #{net_forward.4} parent=0 // pred_check_branch
    %3884 = sbr.rel (0) target = $region21
  $region20: #{net_forward.4} parent=0 // pred_region
    _
  $region21: #{net_forward.4} parent=0 // pred_fallthru
    _

</llo_original>
